<compile_context>
chip_gen: v6e
topology: v6e:2x2x1
jax: 0.10.0
libtpu: 0.0.40
codegen_flags: <defaults>
</compile_context>

<pallas_src>
import functools
import math

import jax
import jax.numpy as jnp
from jax.experimental import pallas as pl
from jax.experimental.pallas import tpu as pltpu

LN_EPS = 1e-5
OUT_PAD = 128  # lane-dense padding for the final (N=2) output column dim


def _round_up(n, m):
    return ((n + m - 1) // m) * m


# ----------------------------------------------------------------------------
# In-kernel math helpers
# ----------------------------------------------------------------------------
def _layernorm(y, gamma, beta):
    # f32 LayerNorm (biased variance, matching torch.nn.LayerNorm).
    mean = jnp.mean(y, axis=-1, keepdims=True)
    var = jnp.mean(jnp.square(y - mean), axis=-1, keepdims=True)
    return (y - mean) * jax.lax.rsqrt(var + LN_EPS) * gamma + beta


def _gelu(x):
    # tanh-approximation GELU (runs on the EUP).
    c = 0.7978845608028654  # sqrt(2/pi)
    return 0.5 * x * (1.0 + jnp.tanh(c * (x + 0.044715 * x * x * x)))


def _mm(x, w, b):
    # bf16 MXU matmul with f32 accumulation; bias add in f32.
    return jnp.dot(x.astype(jnp.bfloat16), w, preferred_element_type=jnp.float32) + b


def _block(x, w, b, gamma, beta):
    # Linear -> LayerNorm -> GELU (Dropout is identity in eval mode).
    return _gelu(_layernorm(_mm(x, w, b), gamma, beta))


# ----------------------------------------------------------------------------
# Row-pack helper (concatenate 2-D blocks along rows, remember static offsets)
# ----------------------------------------------------------------------------
class _RowPack:
    def __init__(self):
        self._parts, self.off, self._n = [], {}, 0

    def add(self, name, arr):
        arr = jnp.asarray(arr, jnp.float32)
        self.off[name] = (self._n, arr.shape[0])
        self._parts.append(arr)
        self._n += arr.shape[0]

    def cat(self, dtype):
        return jnp.concatenate(self._parts, axis=0).astype(dtype)


# ----------------------------------------------------------------------------
# The single fused forward kernel (factory closes over static offsets)
# ----------------------------------------------------------------------------
def make_fused_kernel(B, C, num_heads, num_groups, meta):
    Dh = C // num_heads
    scale = 1.0 / math.sqrt(Dh)
    w128_off, w256_off = meta["w128"], meta["w256"]
    v_off = {128: meta["v128"], 256: meta["v256"], 512: meta["v512"], 1024: meta["v1024"]}

    def kernel(gx, dx, gW1, gW2, gW3, gW4p, dW1, wc256, wc128,
               v1024, v512, v256, v128,
               fW1_hbm, fW2_hbm, fW3_hbm, out_ref,
               fW1_v, fW2_v, fW3_v, dsem):
        vref = {128: v128, 256: v256, 512: v512, 1024: v1024}

        def W(ref, off, name):           # static row-range slice of a weight pack
            s, n = off[name]
            return ref[s:s + n, :]

        def V(width, name):              # (1, width) bias / LN-param row
            s, _ = v_off[width][name]
            return vref[width][s:s + 1, :]

        # ---- start prefetch of the big final-MLP weights (overlaps all the
        #      group / discrete / attention compute below) ----
        cp1 = pltpu.make_async_copy(fW1_hbm, fW1_v, dsem.at[0]); cp1.start()
        cp2 = pltpu.make_async_copy(fW2_hbm, fW2_v, dsem.at[1]); cp2.start()
        cp3 = pltpu.make_async_copy(fW3_hbm, fW3_v, dsem.at[2]); cp3.start()

        # ---- group MLPs (3x Linear->LN->GELU, then fused [l4 ; residual proj]) ----
        group_out = []
        for g in range(num_groups):
            x = gx[g]                                                       # (B, gpad)
            h = _block(x, gW1[g], V(512, f"g{g}_b1"), V(512, f"g{g}_ln1g"), V(512, f"g{g}_ln1b"))
            h = _block(h, gW2[g], V(256, f"g{g}_b2"), V(256, f"g{g}_ln2g"), V(256, f"g{g}_ln2b"))
            h = _block(h, gW3[g], V(128, f"g{g}_b3"), V(128, f"g{g}_ln3g"), V(128, f"g{g}_ln3b"))
            hx = jnp.concatenate([h, x], axis=-1)                           # (B, 128+gpad)
            group_out.append(_mm(hx, gW4p[g], V(128, f"g{g}_b4p")))         # (B, C)

        # ---- discrete branch (LN+GELU sits before the residual add, so the
        #      l3 / proj dots cannot be split-K fused) ----
        xd = dx[...]                                                        # (B, dpad)
        d_res = _mm(xd, W(wc128, w128_off, "dWp"), V(128, "d_bp"))          # (B, C)
        h = _block(xd, dW1[...], V(512, "d_b1"), V(512, "d_ln1g"), V(512, "d_ln1b"))
        h = _block(h, W(wc256, w256_off, "dW2"), V(256, "d_b2"), V(256, "d_ln2g"), V(256, "d_ln2b"))
        h = _block(h, W(wc128, w128_off, "dW3"), V(128, "d_b3"), V(128, "d_ln3g"), V(128, "d_ln3b"))
        disc = h + d_res                                                    # (B, C)

        # ---- multi-head attention: one query (disc) over num_groups keys ----
        # Head selectors generated in-kernel; values are 0 / scale -> exact in bf16.
        lane = jax.lax.broadcasted_iota(jnp.int32, (C, num_heads), 0)
        head = jax.lax.broadcasted_iota(jnp.int32, (C, num_heads), 1)
        sel = (lane >= head * Dh) & (lane < (head + 1) * Dh)
        hsel = jnp.where(sel, scale, 0.0).astype(jnp.bfloat16)              # (C, H) reduce+scale
        laneT = jax.lax.broadcasted_iota(jnp.int32, (num_heads, C), 1)
        headT = jax.lax.broadcasted_iota(jnp.int32, (num_heads, C), 0)
        selT = (laneT >= headT * Dh) & (laneT < (headT + 1) * Dh)
        hselT = jnp.where(selT, 1.0, 0.0).astype(jnp.bfloat16)              # (H, C) broadcast

        q = _mm(disc, W(wc128, w128_off, "wq"), V(128, "bq"))               # (B, C)
        gcat = jnp.concatenate(group_out, axis=0)                           # (G*B, C)
        kv = _mm(gcat, W(wc256, w256_off, "wkv"), V(256, "bkv"))            # (G*B, 2C) fused K/V
        k, v = kv[:, :C], kv[:, C:]

        q_rep = jnp.concatenate([q] * num_groups, axis=0)                   # (G*B, C)
        s_all = jnp.dot((q_rep * k).astype(jnp.bfloat16), hsel,
                        preferred_element_type=jnp.float32)                 # (G*B, H), scaled
        s_b = [s_all[g * B:(g + 1) * B] for g in range(num_groups)]
        m = s_b[0]
        for s in s_b[1:]:
            m = jnp.maximum(m, s)
        e_b = [jnp.exp(s - m) for s in s_b]
        den = e_b[0]
        for e in e_b[1:]:
            den = den + e
        inv = pl.reciprocal(den, approx=True)                               # (B, H)
        w_all = jnp.concatenate([e * inv for e in e_b], axis=0)             # (G*B, H)
        pb = jnp.dot(w_all.astype(jnp.bfloat16), hselT,
                     preferred_element_type=jnp.float32)                    # (G*B, C)
        pv = pb * v
        attn = pv[0:B]
        for g in range(1, num_groups):
            attn = attn + pv[g * B:(g + 1) * B]
        attn = _mm(attn, W(wc128, w128_off, "wo"), V(128, "bo"))            # (B, C) out_proj

        # ---- attn_post_proj ----
        a = _block(attn, W(wc256, w256_off, "aW1"),
                   V(256, "a_b1"), V(256, "a_ln1g"), V(256, "a_ln1b"))      # (B, 256)
        attended = _mm(a, W(wc128, w128_off, "aW2"), V(128, "a_b2"))        # (B, C)

        # ---- final MLP on concat([attended, disc]); big weights arrive via DMA ----
        comb = jnp.concatenate([attended, disc], axis=-1)                   # (B, 2C)
        cp1.wait()
        h = _block(comb, fW1_v[...], V(1024, "f_b1"), V(1024, "f_ln1g"), V(1024, "f_ln1b"))
        cp2.wait()
        h = _block(h, fW2_v[...], V(512, "f_b2"), V(512, "f_ln2g"), V(512, "f_ln2b"))
        cp3.wait()
        h = _block(h, fW3_v[...], V(256, "f_b3"), V(256, "f_ln3g"), V(256, "f_ln3b"))
        h = _block(h, W(wc128, w128_off, "fW4"), V(128, "f_b4"), V(128, "f_ln4g"), V(128, "f_ln4b"))
        out_ref[...] = _mm(h, W(wc128, w128_off, "fW5"), V(128, "f_b5"))    # lanes >= 2 are zero

    return kernel


# ----------------------------------------------------------------------------
# pallas_call wrapper
# ----------------------------------------------------------------------------
def _full_vmem_spec(a):
    nd = a.ndim

    def imap(i):
        return (0,) * nd

    return pl.BlockSpec(a.shape, imap)


def forward(vmem_ops, hbm_ops, group_features, discrete_features, *,
            meta, combined_dim, num_heads, out_dim):
    B = discrete_features.shape[0]
    G = len(group_features)
    gpad, dpad = meta["gpad"], meta["dpad"]

    gx = jnp.stack(
        [jnp.pad(f.astype(jnp.float32), ((0, 0), (0, gpad - f.shape[1]))) for f in group_features]
    )                                                                        # (G, B, gpad)
    dx = jnp.pad(discrete_features.astype(jnp.float32),
                 ((0, 0), (0, dpad - discrete_features.shape[1])))           # (B, dpad)

    operands = (gx, dx) + tuple(vmem_ops) + tuple(hbm_ops)
    kernel = make_fused_kernel(B, combined_dim, num_heads, G, meta)
    fW1, fW2, fW3 = hbm_ops

    out = pl.pallas_call(
        kernel,
        out_shape=jax.ShapeDtypeStruct((B, OUT_PAD), jnp.float32),
        grid=(1,),
        in_specs=[_full_vmem_spec(a) for a in (gx, dx) + tuple(vmem_ops)]
        + [pl.BlockSpec(memory_space=pl.ANY)] * len(hbm_ops),
        out_specs=pl.BlockSpec((B, OUT_PAD), lambda i: (0, 0)),
        scratch_shapes=[
            pltpu.VMEM(fW1.shape, jnp.bfloat16),
            pltpu.VMEM(fW2.shape, jnp.bfloat16),
            pltpu.VMEM(fW3.shape, jnp.bfloat16),
            pltpu.SemaphoreType.DMA((3,)),
        ],
        compiler_params=pltpu.CompilerParams(
            dimension_semantics=("arbitrary",),
            vmem_limit_bytes=32 * 1024 * 1024,
        ),
    )(*operands)
    return out[:, :out_dim]


# ----------------------------------------------------------------------------
# Parameter construction (deterministic, synthetic) + packing for the kernel
# ----------------------------------------------------------------------------
def _init_linear(key, in_dim, out_dim):
    k1, k2 = jax.random.split(key)
    bound = 1.0 / math.sqrt(in_dim)
    return {
        "w": jax.random.uniform(k1, (in_dim, out_dim), jnp.float32, -bound, bound),
        "b": jax.random.uniform(k2, (out_dim,), jnp.float32, -bound, bound),
    }


def _init_ln(dim):
    return {"g": jnp.ones((dim,), jnp.float32), "b": jnp.zeros((dim,), jnp.float32)}


def init_params(key, group_dims, discrete_dim, combined_dim):
    keys = iter(jax.random.split(key, 128))
    lin = lambda i, o: _init_linear(next(keys), i, o)
    C = combined_dim
    return {
        "group_mlps": [
            {
                "l1": lin(d, 512), "ln1": _init_ln(512),
                "l2": lin(512, 256), "ln2": _init_ln(256),
                "l3": lin(256, 128), "ln3": _init_ln(128),
                "l4": lin(128, C),
            }
            for d in group_dims
        ],
        "group_projections": [lin(d, C) for d in group_dims],
        "discrete_proj": lin(discrete_dim, C),
        "discrete_mlp": {
            "l1": lin(discrete_dim, 512), "ln1": _init_ln(512),
            "l2": lin(512, 256), "ln2": _init_ln(256),
            "l3": lin(256, C), "ln3": _init_ln(C),
        },
        "mha": {"q": lin(C, C), "k": lin(C, C), "v": lin(C, C), "o": lin(C, C)},
        "attn_post_proj": {"l1": lin(C, 256), "ln1": _init_ln(256), "l2": lin(256, C)},
        "final_mlp": {
            "l1": lin(2 * C, 1024), "ln1": _init_ln(1024),
            "l2": lin(1024, 512), "ln2": _init_ln(512),
            "l3": lin(512, 256), "ln3": _init_ln(256),
            "l4": lin(256, 128), "ln4": _init_ln(128),
            "l5": lin(128, 2),
        },
    }


def pack_params(params, group_dims, discrete_dim, combined_dim, num_heads):
    """Pack all parameters into a handful of fused operands:
       - stacked per-group weights (bf16),
       - one bf16 row-pack per weight output-width (128 / 256),
       - one f32 row-pack per vector width (1024 / 512 / 256 / 128),
       - big final-MLP weights kept separate (stay in HBM; DMA'd in-kernel)."""
    C = combined_dim
    gpad = _round_up(max(group_dims), 16)
    dpad = _round_up(discrete_dim, 16)

    f32 = lambda a: jnp.asarray(a, jnp.float32)
    rowv = lambda v: f32(v).reshape(1, -1)
    pad_rows = lambda w, r: jnp.pad(f32(w), ((0, r - w.shape[0]), (0, 0)))

    gm, gp = params["group_mlps"], params["group_projections"]
    dm = params["discrete_mlp"]
    mha, app, f = params["mha"], params["attn_post_proj"], params["final_mlp"]

    # stacked per-group weights (bf16)
    gW1 = jnp.stack([pad_rows(p["l1"]["w"], gpad) for p in gm]).astype(jnp.bfloat16)
    gW2 = jnp.stack([f32(p["l2"]["w"]) for p in gm]).astype(jnp.bfloat16)
    gW3 = jnp.stack([f32(p["l3"]["w"]) for p in gm]).astype(jnp.bfloat16)
    gW4p = jnp.stack(
        [jnp.concatenate([f32(m["l4"]["w"]), pad_rows(p["w"], gpad)], axis=0)
         for m, p in zip(gm, gp)]
    ).astype(jnp.bfloat16)                                   # (G, 128+gpad, C) fused l4+proj
    dW1 = pad_rows(dm["l1"]["w"], dpad).astype(jnp.bfloat16)

    # 256-wide-output weight pack (all row counts are multiples of 16 -> aligned slices)
    w256 = _RowPack()
    w256.add("dW2", dm["l2"]["w"])
    w256.add("wkv", jnp.concatenate([f32(mha["k"]["w"]), f32(mha["v"]["w"])], axis=1))
    w256.add("aW1", app["l1"]["w"])
    wc256 = w256.cat(jnp.bfloat16)

    # 128-wide-output weight pack
    w128 = _RowPack()
    w128.add("dW3", dm["l3"]["w"])
    w128.add("dWp", pad_rows(params["discrete_proj"]["w"], dpad))
    w128.add("wq", mha["q"]["w"])
    w128.add("wo", mha["o"]["w"])
    w128.add("aW2", app["l2"]["w"])
    w128.add("fW4", f["l4"]["w"])
    w128.add("fW5", jnp.pad(f32(f["l5"]["w"]), ((0, 0), (0, OUT_PAD - f["l5"]["w"].shape[1]))))
    wc128 = w128.cat(jnp.bfloat16)

    # bias / LayerNorm vector packs (one row per vector)
    v1024, v512, v256, v128 = _RowPack(), _RowPack(), _RowPack(), _RowPack()
    for g, (m, p) in enumerate(zip(gm, gp)):
        v512.add(f"g{g}_b1", rowv(m["l1"]["b"]))
        v512.add(f"g{g}_ln1g", rowv(m["ln1"]["g"]))
        v512.add(f"g{g}_ln1b", rowv(m["ln1"]["b"]))
        v256.add(f"g{g}_b2", rowv(m["l2"]["b"]))
        v256.add(f"g{g}_ln2g", rowv(m["ln2"]["g"]))
        v256.add(f"g{g}_ln2b", rowv(m["ln2"]["b"]))
        v128.add(f"g{g}_b3", rowv(m["l3"]["b"]))
        v128.add(f"g{g}_ln3g", rowv(m["ln3"]["g"]))
        v128.add(f"g{g}_ln3b", rowv(m["ln3"]["b"]))
        v128.add(f"g{g}_b4p", rowv(f32(m["l4"]["b"]) + f32(p["b"])))  # fused l4 + proj bias

    v512.add("d_b1", rowv(dm["l1"]["b"])); v512.add("d_ln1g", rowv(dm["ln1"]["g"])); v512.add("d_ln1b", rowv(dm["ln1"]["b"]))
    v256.add("d_b2", rowv(dm["l2"]["b"])); v256.add("d_ln2g", rowv(dm["ln2"]["g"])); v256.add("d_ln2b", rowv(dm["ln2"]["b"]))
    v128.add("d_b3", rowv(dm["l3"]["b"])); v128.add("d_ln3g", rowv(dm["ln3"]["g"])); v128.add("d_ln3b", rowv(dm["ln3"]["b"]))
    v128.add("d_bp", rowv(params["discrete_proj"]["b"]))

    v128.add("bq", rowv(mha["q"]["b"]))
    v256.add("bkv", rowv(jnp.concatenate([f32(mha["k"]["b"]), f32(mha["v"]["b"])])))
    v128.add("bo", rowv(mha["o"]["b"]))

    v256.add("a_b1", rowv(app["l1"]["b"])); v256.add("a_ln1g", rowv(app["ln1"]["g"])); v256.add("a_ln1b", rowv(app["ln1"]["b"]))
    v128.add("a_b2", rowv(app["l2"]["b"]))

    v1024.add("f_b1", rowv(f["l1"]["b"])); v1024.add("f_ln1g", rowv(f["ln1"]["g"])); v1024.add("f_ln1b", rowv(f["ln1"]["b"]))
    v512.add("f_b2", rowv(f["l2"]["b"])); v512.add("f_ln2g", rowv(f["ln2"]["g"])); v512.add("f_ln2b", rowv(f["ln2"]["b"]))
    v256.add("f_b3", rowv(f["l3"]["b"])); v256.add("f_ln3g", rowv(f["ln3"]["g"])); v256.add("f_ln3b", rowv(f["ln3"]["b"]))
    v128.add("f_b4", rowv(f["l4"]["b"])); v128.add("f_ln4g", rowv(f["ln4"]["g"])); v128.add("f_ln4b", rowv(f["ln4"]["b"]))
    v128.add("f_b5", rowv(jnp.pad(f32(f["l5"]["b"]), (0, OUT_PAD - f["l5"]["b"].shape[0]))))

    # big final-MLP weights: stay in HBM, DMA'd inside the kernel
    fW1 = f32(f["l1"]["w"]).astype(jnp.bfloat16)   # (2C, 1024)
    fW2 = f32(f["l2"]["w"]).astype(jnp.bfloat16)   # (1024, 512)
    fW3 = f32(f["l3"]["w"]).astype(jnp.bfloat16)   # (512, 256)

    vmem_ops = (gW1, gW2, gW3, gW4p, dW1, wc256, wc128,
                v1024.cat(jnp.float32), v512.cat(jnp.float32),
                v256.cat(jnp.float32), v128.cat(jnp.float32))
    hbm_ops = (fW1, fW2, fW3)
    meta = {"gpad": gpad, "dpad": dpad,
            "w128": w128.off, "w256": w256.off,
            "v1024": v1024.off, "v512": v512.off, "v256": v256.off, "v128": v128.off}
    return vmem_ops, hbm_ops, meta


# ----------------------------------------------------------------------------
# Main
# ----------------------------------------------------------------------------
if __name__ == "__main__":
    B = 8
    group_dims = [16, 24, 32]
    discrete_dim = 10
    combined_dim = 128
    num_heads = 4
    out_dim = 2

    key = jax.random.PRNGKey(0)
    k_params, k_data = jax.random.split(key)
    params = init_params(k_params, group_dims, discrete_dim, combined_dim)
    vmem_ops, hbm_ops, meta = pack_params(params, group_dims, discrete_dim, combined_dim, num_heads)

    data_keys = jax.random.split(k_data, len(group_dims) + 1)
    group_features = tuple(
        jax.random.normal(data_keys[i], (B, d), jnp.float32) for i, d in enumerate(group_dims)
    )
    discrete_features = jax.random.normal(data_keys[-1], (B, discrete_dim), jnp.float32)

    fwd = jax.jit(functools.partial(
        forward, meta=meta, combined_dim=combined_dim, num_heads=num_heads, out_dim=out_dim))
    out = fwd(vmem_ops, hbm_ops, group_features, discrete_features)
    out = jax.block_until_ready(out)

    assert out.shape == (B, out_dim) and out.dtype == jnp.float32
    assert bool(jnp.all(jnp.isfinite(out)))
    print("KERNEL_OK")
</pallas_src>

<mosaic_0001>
module attributes {stable_mosaic.version = 11 : i64} {
  func.func @kernel(%arg0: i32, %arg1: memref<3x8x32xf32, #tpu.memory_space<vmem>>, %arg2: memref<8x16xf32, #tpu.memory_space<vmem>>, %arg3: memref<3x32x512xbf16, #tpu.memory_space<vmem>>, %arg4: memref<3x512x256xbf16, #tpu.memory_space<vmem>>, %arg5: memref<3x256x128xbf16, #tpu.memory_space<vmem>>, %arg6: memref<3x160x128xbf16, #tpu.memory_space<vmem>>, %arg7: memref<16x512xbf16, #tpu.memory_space<vmem>>, %arg8: memref<768x256xbf16, #tpu.memory_space<vmem>>, %arg9: memref<1168x128xbf16, #tpu.memory_space<vmem>>, %arg10: memref<3x1024xf32, #tpu.memory_space<vmem>>, %arg11: memref<15x512xf32, #tpu.memory_space<vmem>>, %arg12: memref<19x256xf32, #tpu.memory_space<vmem>>, %arg13: memref<23x128xf32, #tpu.memory_space<vmem>>, %arg14: memref<256x1024xbf16, #tpu.memory_space<any>>, %arg15: memref<1024x512xbf16, #tpu.memory_space<any>>, %arg16: memref<512x256xbf16, #tpu.memory_space<any>>, %arg17: memref<8x128xf32, #tpu.memory_space<vmem>>, %arg18: memref<256x1024xbf16, #tpu.memory_space<vmem>>, %arg19: memref<1024x512xbf16, #tpu.memory_space<vmem>>, %arg20: memref<512x256xbf16, #tpu.memory_space<vmem>>, %arg21: memref<3x!tpu.dma_semaphore, #tpu.memory_space<semaphore_mem>>) attributes {dimension_semantics = [#tpu.dimension_semantics<arbitrary>], iteration_bounds = array<i64: 1>, scalar_prefetch = 0 : i64, scratch_operands = 4 : i64, tpu.core_type = #tpu.core_type<tc>, window_params = [{pipeline_mode = #tpu.pipeline_mode<synchronous>, transform_indices = @transform_0, window_bounds = array<i64: 3, 8, 32>}, {pipeline_mode = #tpu.pipeline_mode<synchronous>, transform_indices = @transform_1, window_bounds = array<i64: 8, 16>}, {pipeline_mode = #tpu.pipeline_mode<synchronous>, transform_indices = @transform_2, window_bounds = array<i64: 3, 32, 512>}, {pipeline_mode = #tpu.pipeline_mode<synchronous>, transform_indices = @transform_3, window_bounds = array<i64: 3, 512, 256>}, {pipeline_mode = #tpu.pipeline_mode<synchronous>, transform_indices = @transform_4, window_bounds = array<i64: 3, 256, 128>}, {pipeline_mode = #tpu.pipeline_mode<synchronous>, transform_indices = @transform_5, window_bounds = array<i64: 3, 160, 128>}, {pipeline_mode = #tpu.pipeline_mode<synchronous>, transform_indices = @transform_6, window_bounds = array<i64: 16, 512>}, {pipeline_mode = #tpu.pipeline_mode<synchronous>, transform_indices = @transform_7, window_bounds = array<i64: 768, 256>}, {pipeline_mode = #tpu.pipeline_mode<synchronous>, transform_indices = @transform_8, window_bounds = array<i64: 1168, 128>}, {pipeline_mode = #tpu.pipeline_mode<synchronous>, transform_indices = @transform_9, window_bounds = array<i64: 3, 1024>}, {pipeline_mode = #tpu.pipeline_mode<synchronous>, transform_indices = @transform_10, window_bounds = array<i64: 15, 512>}, {pipeline_mode = #tpu.pipeline_mode<synchronous>, transform_indices = @transform_11, window_bounds = array<i64: 19, 256>}, {pipeline_mode = #tpu.pipeline_mode<synchronous>, transform_indices = @transform_12, window_bounds = array<i64: 23, 128>}, {}, {}, {}, {pipeline_mode = #tpu.pipeline_mode<synchronous>, transform_indices = @transform_16, window_bounds = array<i64: 8, 128>}]} {
    %c0_i32 = arith.constant 0 : i32
    %0 = tpu.memref_slice %arg21[%c0_i32] : memref<3x!tpu.dma_semaphore, #tpu.memory_space<semaphore_mem>> -> memref<1x!tpu.dma_semaphore, #tpu.memory_space<semaphore_mem>>
    %1 = tpu.memref_squeeze %0 : memref<1x!tpu.dma_semaphore, #tpu.memory_space<semaphore_mem>> -> memref<!tpu.dma_semaphore, #tpu.memory_space<semaphore_mem>>
    tpu.enqueue_dma source(%arg14 : memref<256x1024xbf16, #tpu.memory_space<any>>) target(%arg18 : memref<256x1024xbf16, #tpu.memory_space<vmem>>) target_semaphore(%1 : memref<!tpu.dma_semaphore, #tpu.memory_space<semaphore_mem>>)
    %c1_i32 = arith.constant 1 : i32
    %2 = tpu.memref_slice %arg21[%c1_i32] : memref<3x!tpu.dma_semaphore, #tpu.memory_space<semaphore_mem>> -> memref<1x!tpu.dma_semaphore, #tpu.memory_space<semaphore_mem>>
    %3 = tpu.memref_squeeze %2 : memref<1x!tpu.dma_semaphore, #tpu.memory_space<semaphore_mem>> -> memref<!tpu.dma_semaphore, #tpu.memory_space<semaphore_mem>>
    tpu.enqueue_dma source(%arg15 : memref<1024x512xbf16, #tpu.memory_space<any>>) target(%arg19 : memref<1024x512xbf16, #tpu.memory_space<vmem>>) target_semaphore(%3 : memref<!tpu.dma_semaphore, #tpu.memory_space<semaphore_mem>>)
    %c2_i32 = arith.constant 2 : i32
    %4 = tpu.memref_slice %arg21[%c2_i32] : memref<3x!tpu.dma_semaphore, #tpu.memory_space<semaphore_mem>> -> memref<1x!tpu.dma_semaphore, #tpu.memory_space<semaphore_mem>>
    %5 = tpu.memref_squeeze %4 : memref<1x!tpu.dma_semaphore, #tpu.memory_space<semaphore_mem>> -> memref<!tpu.dma_semaphore, #tpu.memory_space<semaphore_mem>>
    tpu.enqueue_dma source(%arg16 : memref<512x256xbf16, #tpu.memory_space<any>>) target(%arg20 : memref<512x256xbf16, #tpu.memory_space<vmem>>) target_semaphore(%5 : memref<!tpu.dma_semaphore, #tpu.memory_space<semaphore_mem>>)
    %c0 = arith.constant 0 : index
    %c0_0 = arith.constant 0 : index
    %c0_1 = arith.constant 0 : index
    %6 = vector.load %arg1[%c0, %c0_0, %c0_1] : memref<3x8x32xf32, #tpu.memory_space<vmem>>, vector<1x8x32xf32>
    %7 = vector.shape_cast %6 : vector<1x8x32xf32> to vector<8x32xf32>
    %c0_2 = arith.constant 0 : index
    %c0_3 = arith.constant 0 : index
    %c0_4 = arith.constant 0 : index
    %8 = vector.load %arg3[%c0_2, %c0_3, %c0_4] : memref<3x32x512xbf16, #tpu.memory_space<vmem>>, vector<1x32x512xbf16>
    %9 = vector.shape_cast %8 : vector<1x32x512xbf16> to vector<32x512xbf16>
    %c0_5 = arith.constant 0 : index
    %c0_6 = arith.constant 0 : index
    %10 = vector.load %arg11[%c0_5, %c0_6] : memref<15x512xf32, #tpu.memory_space<vmem>>, vector<1x512xf32>
    %c1 = arith.constant 1 : index
    %c0_7 = arith.constant 0 : index
    %11 = vector.load %arg11[%c1, %c0_7] : memref<15x512xf32, #tpu.memory_space<vmem>>, vector<1x512xf32>
    %c2 = arith.constant 2 : index
    %c0_8 = arith.constant 0 : index
    %12 = vector.load %arg11[%c2, %c0_8] : memref<15x512xf32, #tpu.memory_space<vmem>>, vector<1x512xf32>
    %13 = arith.truncf %7 : vector<8x32xf32> to vector<8x32xbf16>
    %cst = arith.constant dense<0.000000e+00> : vector<8x512xf32>
    %14 = tpu.matmul %13, %9, %cst {dimension_numbers = #tpu.dot_dimension_numbers<[1], [0], [0], [1], [0, 0, 1, 1], [], []>} : vector<8x32xbf16>, vector<32x512xbf16>, vector<8x512xf32> -> vector<8x512xf32>
    %15 = vector.broadcast %10 : vector<1x512xf32> to vector<8x512xf32>
    %16 = arith.addf %14, %15 : vector<8x512xf32>
    %cst_9 = arith.constant dense<0.000000e+00> : vector<8xf32>
    %17 = vector.multi_reduction <add>, %16, %cst_9 [1] : vector<8x512xf32> to vector<8xf32>
    %18 = vector.shape_cast %17 : vector<8xf32> to vector<8x1xf32>
    %cst_10 = arith.constant 5.120000e+02 : f32
    %19 = vector.broadcast %cst_10 : f32 to vector<8x1xf32>
    %20 = arith.divf %18, %19 : vector<8x1xf32>
    %21 = vector.broadcast %20 : vector<8x1xf32> to vector<8x512xf32>
    %22 = arith.subf %16, %21 : vector<8x512xf32>
    %23 = arith.mulf %22, %22 : vector<8x512xf32>
    %cst_11 = arith.constant dense<0.000000e+00> : vector<8xf32>
    %24 = vector.multi_reduction <add>, %23, %cst_11 [1] : vector<8x512xf32> to vector<8xf32>
    %25 = vector.shape_cast %24 : vector<8xf32> to vector<8x1xf32>
    %cst_12 = arith.constant 5.120000e+02 : f32
    %26 = vector.broadcast %cst_12 : f32 to vector<8x1xf32>
    %27 = arith.divf %25, %26 : vector<8x1xf32>
    %28 = vector.broadcast %20 : vector<8x1xf32> to vector<8x512xf32>
    %29 = arith.subf %16, %28 : vector<8x512xf32>
    %cst_13 = arith.constant 9.99999974E-6 : f32
    %30 = vector.broadcast %cst_13 : f32 to vector<8x1xf32>
    %31 = arith.addf %27, %30 : vector<8x1xf32>
    %32 = math.rsqrt %31 : vector<8x1xf32>
    %33 = vector.broadcast %32 : vector<8x1xf32> to vector<8x512xf32>
    %34 = arith.mulf %29, %33 : vector<8x512xf32>
    %35 = vector.broadcast %11 : vector<1x512xf32> to vector<8x512xf32>
    %36 = arith.mulf %34, %35 : vector<8x512xf32>
    %37 = vector.broadcast %12 : vector<1x512xf32> to vector<8x512xf32>
    %38 = arith.addf %36, %37 : vector<8x512xf32>
    %cst_14 = arith.constant 5.000000e-01 : f32
    %39 = vector.broadcast %cst_14 : f32 to vector<8x512xf32>
    %40 = arith.mulf %39, %38 : vector<8x512xf32>
    %cst_15 = arith.constant 4.471500e-02 : f32
    %41 = vector.broadcast %cst_15 : f32 to vector<8x512xf32>
    %42 = arith.mulf %41, %38 : vector<8x512xf32>
    %43 = arith.mulf %42, %38 : vector<8x512xf32>
    %44 = arith.mulf %43, %38 : vector<8x512xf32>
    %45 = arith.addf %38, %44 : vector<8x512xf32>
    %cst_16 = arith.constant 0.797884583 : f32
    %46 = vector.broadcast %cst_16 : f32 to vector<8x512xf32>
    %47 = arith.mulf %46, %45 : vector<8x512xf32>
    %48 = math.tanh %47 : vector<8x512xf32>
    %cst_17 = arith.constant 1.000000e+00 : f32
    %49 = vector.broadcast %cst_17 : f32 to vector<8x512xf32>
    %50 = arith.addf %49, %48 : vector<8x512xf32>
    %51 = arith.mulf %40, %50 : vector<8x512xf32>
    %c0_18 = arith.constant 0 : index
    %c0_19 = arith.constant 0 : index
    %c0_20 = arith.constant 0 : index
    %52 = vector.load %arg4[%c0_18, %c0_19, %c0_20] : memref<3x512x256xbf16, #tpu.memory_space<vmem>>, vector<1x512x256xbf16>
    %53 = vector.shape_cast %52 : vector<1x512x256xbf16> to vector<512x256xbf16>
    %c0_21 = arith.constant 0 : index
    %c0_22 = arith.constant 0 : index
    %54 = vector.load %arg12[%c0_21, %c0_22] : memref<19x256xf32, #tpu.memory_space<vmem>>, vector<1x256xf32>
    %c1_23 = arith.constant 1 : index
    %c0_24 = arith.constant 0 : index
    %55 = vector.load %arg12[%c1_23, %c0_24] : memref<19x256xf32, #tpu.memory_space<vmem>>, vector<1x256xf32>
    %c2_25 = arith.constant 2 : index
    %c0_26 = arith.constant 0 : index
    %56 = vector.load %arg12[%c2_25, %c0_26] : memref<19x256xf32, #tpu.memory_space<vmem>>, vector<1x256xf32>
    %57 = arith.truncf %51 : vector<8x512xf32> to vector<8x512xbf16>
    %cst_27 = arith.constant dense<0.000000e+00> : vector<8x256xf32>
    %58 = tpu.matmul %57, %53, %cst_27 {dimension_numbers = #tpu.dot_dimension_numbers<[1], [0], [0], [1], [0, 0, 1, 1], [], []>} : vector<8x512xbf16>, vector<512x256xbf16>, vector<8x256xf32> -> vector<8x256xf32>
    %59 = vector.broadcast %54 : vector<1x256xf32> to vector<8x256xf32>
    %60 = arith.addf %58, %59 : vector<8x256xf32>
    %cst_28 = arith.constant dense<0.000000e+00> : vector<8xf32>
    %61 = vector.multi_reduction <add>, %60, %cst_28 [1] : vector<8x256xf32> to vector<8xf32>
    %62 = vector.shape_cast %61 : vector<8xf32> to vector<8x1xf32>
    %cst_29 = arith.constant 2.560000e+02 : f32
    %63 = vector.broadcast %cst_29 : f32 to vector<8x1xf32>
    %64 = arith.divf %62, %63 : vector<8x1xf32>
    %65 = vector.broadcast %64 : vector<8x1xf32> to vector<8x256xf32>
    %66 = arith.subf %60, %65 : vector<8x256xf32>
    %67 = arith.mulf %66, %66 : vector<8x256xf32>
    %cst_30 = arith.constant dense<0.000000e+00> : vector<8xf32>
    %68 = vector.multi_reduction <add>, %67, %cst_30 [1] : vector<8x256xf32> to vector<8xf32>
    %69 = vector.shape_cast %68 : vector<8xf32> to vector<8x1xf32>
    %cst_31 = arith.constant 2.560000e+02 : f32
    %70 = vector.broadcast %cst_31 : f32 to vector<8x1xf32>
    %71 = arith.divf %69, %70 : vector<8x1xf32>
    %72 = vector.broadcast %64 : vector<8x1xf32> to vector<8x256xf32>
    %73 = arith.subf %60, %72 : vector<8x256xf32>
    %cst_32 = arith.constant 9.99999974E-6 : f32
    %74 = vector.broadcast %cst_32 : f32 to vector<8x1xf32>
    %75 = arith.addf %71, %74 : vector<8x1xf32>
    %76 = math.rsqrt %75 : vector<8x1xf32>
    %77 = vector.broadcast %76 : vector<8x1xf32> to vector<8x256xf32>
    %78 = arith.mulf %73, %77 : vector<8x256xf32>
    %79 = vector.broadcast %55 : vector<1x256xf32> to vector<8x256xf32>
    %80 = arith.mulf %78, %79 : vector<8x256xf32>
    %81 = vector.broadcast %56 : vector<1x256xf32> to vector<8x256xf32>
    %82 = arith.addf %80, %81 : vector<8x256xf32>
    %cst_33 = arith.constant 5.000000e-01 : f32
    %83 = vector.broadcast %cst_33 : f32 to vector<8x256xf32>
    %84 = arith.mulf %83, %82 : vector<8x256xf32>
    %cst_34 = arith.constant 4.471500e-02 : f32
    %85 = vector.broadcast %cst_34 : f32 to vector<8x256xf32>
    %86 = arith.mulf %85, %82 : vector<8x256xf32>
    %87 = arith.mulf %86, %82 : vector<8x256xf32>
    %88 = arith.mulf %87, %82 : vector<8x256xf32>
    %89 = arith.addf %82, %88 : vector<8x256xf32>
    %cst_35 = arith.constant 0.797884583 : f32
    %90 = vector.broadcast %cst_35 : f32 to vector<8x256xf32>
    %91 = arith.mulf %90, %89 : vector<8x256xf32>
    %92 = math.tanh %91 : vector<8x256xf32>
    %cst_36 = arith.constant 1.000000e+00 : f32
    %93 = vector.broadcast %cst_36 : f32 to vector<8x256xf32>
    %94 = arith.addf %93, %92 : vector<8x256xf32>
    %95 = arith.mulf %84, %94 : vector<8x256xf32>
    %c0_37 = arith.constant 0 : index
    %c0_38 = arith.constant 0 : index
    %c0_39 = arith.constant 0 : index
    %96 = vector.load %arg5[%c0_37, %c0_38, %c0_39] : memref<3x256x128xbf16, #tpu.memory_space<vmem>>, vector<1x256x128xbf16>
    %97 = vector.shape_cast %96 : vector<1x256x128xbf16> to vector<256x128xbf16>
    %c0_40 = arith.constant 0 : index
    %c0_41 = arith.constant 0 : index
    %98 = vector.load %arg13[%c0_40, %c0_41] : memref<23x128xf32, #tpu.memory_space<vmem>>, vector<1x128xf32>
    %c1_42 = arith.constant 1 : index
    %c0_43 = arith.constant 0 : index
    %99 = vector.load %arg13[%c1_42, %c0_43] : memref<23x128xf32, #tpu.memory_space<vmem>>, vector<1x128xf32>
    %c2_44 = arith.constant 2 : index
    %c0_45 = arith.constant 0 : index
    %100 = vector.load %arg13[%c2_44, %c0_45] : memref<23x128xf32, #tpu.memory_space<vmem>>, vector<1x128xf32>
    %101 = arith.truncf %95 : vector<8x256xf32> to vector<8x256xbf16>
    %cst_46 = arith.constant dense<0.000000e+00> : vector<8x128xf32>
    %102 = tpu.matmul %101, %97, %cst_46 {dimension_numbers = #tpu.dot_dimension_numbers<[1], [0], [0], [1], [0, 0, 1, 1], [], []>} : vector<8x256xbf16>, vector<256x128xbf16>, vector<8x128xf32> -> vector<8x128xf32>
    %103 = vector.broadcast %98 : vector<1x128xf32> to vector<8x128xf32>
    %104 = arith.addf %102, %103 : vector<8x128xf32>
    %cst_47 = arith.constant dense<0.000000e+00> : vector<8xf32>
    %105 = vector.multi_reduction <add>, %104, %cst_47 [1] : vector<8x128xf32> to vector<8xf32>
    %106 = vector.shape_cast %105 : vector<8xf32> to vector<8x1xf32>
    %cst_48 = arith.constant 1.280000e+02 : f32
    %107 = vector.broadcast %cst_48 : f32 to vector<8x1xf32>
    %108 = arith.divf %106, %107 : vector<8x1xf32>
    %109 = vector.broadcast %108 : vector<8x1xf32> to vector<8x128xf32>
    %110 = arith.subf %104, %109 : vector<8x128xf32>
    %111 = arith.mulf %110, %110 : vector<8x128xf32>
    %cst_49 = arith.constant dense<0.000000e+00> : vector<8xf32>
    %112 = vector.multi_reduction <add>, %111, %cst_49 [1] : vector<8x128xf32> to vector<8xf32>
    %113 = vector.shape_cast %112 : vector<8xf32> to vector<8x1xf32>
    %cst_50 = arith.constant 1.280000e+02 : f32
    %114 = vector.broadcast %cst_50 : f32 to vector<8x1xf32>
    %115 = arith.divf %113, %114 : vector<8x1xf32>
    %116 = vector.broadcast %108 : vector<8x1xf32> to vector<8x128xf32>
    %117 = arith.subf %104, %116 : vector<8x128xf32>
    %cst_51 = arith.constant 9.99999974E-6 : f32
    %118 = vector.broadcast %cst_51 : f32 to vector<8x1xf32>
    %119 = arith.addf %115, %118 : vector<8x1xf32>
    %120 = math.rsqrt %119 : vector<8x1xf32>
    %121 = vector.broadcast %120 : vector<8x1xf32> to vector<8x128xf32>
    %122 = arith.mulf %117, %121 : vector<8x128xf32>
    %123 = vector.broadcast %99 : vector<1x128xf32> to vector<8x128xf32>
    %124 = arith.mulf %122, %123 : vector<8x128xf32>
    %125 = vector.broadcast %100 : vector<1x128xf32> to vector<8x128xf32>
    %126 = arith.addf %124, %125 : vector<8x128xf32>
    %cst_52 = arith.constant 5.000000e-01 : f32
    %127 = vector.broadcast %cst_52 : f32 to vector<8x128xf32>
    %128 = arith.mulf %127, %126 : vector<8x128xf32>
    %cst_53 = arith.constant 4.471500e-02 : f32
    %129 = vector.broadcast %cst_53 : f32 to vector<8x128xf32>
    %130 = arith.mulf %129, %126 : vector<8x128xf32>
    %131 = arith.mulf %130, %126 : vector<8x128xf32>
    %132 = arith.mulf %131, %126 : vector<8x128xf32>
    %133 = arith.addf %126, %132 : vector<8x128xf32>
    %cst_54 = arith.constant 0.797884583 : f32
    %134 = vector.broadcast %cst_54 : f32 to vector<8x128xf32>
    %135 = arith.mulf %134, %133 : vector<8x128xf32>
    %136 = math.tanh %135 : vector<8x128xf32>
    %cst_55 = arith.constant 1.000000e+00 : f32
    %137 = vector.broadcast %cst_55 : f32 to vector<8x128xf32>
    %138 = arith.addf %137, %136 : vector<8x128xf32>
    %139 = arith.mulf %128, %138 : vector<8x128xf32>
    %140 = tpu.concatenate %139, %7 in 1 : vector<8x128xf32>, vector<8x32xf32> -> vector<8x160xf32>
    %c0_56 = arith.constant 0 : index
    %c0_57 = arith.constant 0 : index
    %c0_58 = arith.constant 0 : index
    %141 = vector.load %arg6[%c0_56, %c0_57, %c0_58] : memref<3x160x128xbf16, #tpu.memory_space<vmem>>, vector<1x160x128xbf16>
    %142 = vector.shape_cast %141 : vector<1x160x128xbf16> to vector<160x128xbf16>
    %c3 = arith.constant 3 : index
    %c0_59 = arith.constant 0 : index
    %143 = vector.load %arg13[%c3, %c0_59] : memref<23x128xf32, #tpu.memory_space<vmem>>, vector<1x128xf32>
    %144 = arith.truncf %140 : vector<8x160xf32> to vector<8x160xbf16>
    %cst_60 = arith.constant dense<0.000000e+00> : vector<8x128xf32>
    %145 = tpu.matmul %144, %142, %cst_60 {dimension_numbers = #tpu.dot_dimension_numbers<[1], [0], [0], [1], [0, 0, 1, 1], [], []>} : vector<8x160xbf16>, vector<160x128xbf16>, vector<8x128xf32> -> vector<8x128xf32>
    %146 = vector.broadcast %143 : vector<1x128xf32> to vector<8x128xf32>
    %147 = arith.addf %145, %146 : vector<8x128xf32>
    %c1_61 = arith.constant 1 : index
    %c0_62 = arith.constant 0 : index
    %c0_63 = arith.constant 0 : index
    %148 = vector.load %arg1[%c1_61, %c0_62, %c0_63] : memref<3x8x32xf32, #tpu.memory_space<vmem>>, vector<1x8x32xf32>
    %149 = vector.shape_cast %148 : vector<1x8x32xf32> to vector<8x32xf32>
    %c1_64 = arith.constant 1 : index
    %c0_65 = arith.constant 0 : index
    %c0_66 = arith.constant 0 : index
    %150 = vector.load %arg3[%c1_64, %c0_65, %c0_66] : memref<3x32x512xbf16, #tpu.memory_space<vmem>>, vector<1x32x512xbf16>
    %151 = vector.shape_cast %150 : vector<1x32x512xbf16> to vector<32x512xbf16>
    %c3_67 = arith.constant 3 : index
    %c0_68 = arith.constant 0 : index
    %152 = vector.load %arg11[%c3_67, %c0_68] : memref<15x512xf32, #tpu.memory_space<vmem>>, vector<1x512xf32>
    %c4 = arith.constant 4 : index
    %c0_69 = arith.constant 0 : index
    %153 = vector.load %arg11[%c4, %c0_69] : memref<15x512xf32, #tpu.memory_space<vmem>>, vector<1x512xf32>
    %c5 = arith.constant 5 : index
    %c0_70 = arith.constant 0 : index
    %154 = vector.load %arg11[%c5, %c0_70] : memref<15x512xf32, #tpu.memory_space<vmem>>, vector<1x512xf32>
    %155 = arith.truncf %149 : vector<8x32xf32> to vector<8x32xbf16>
    %cst_71 = arith.constant dense<0.000000e+00> : vector<8x512xf32>
    %156 = tpu.matmul %155, %151, %cst_71 {dimension_numbers = #tpu.dot_dimension_numbers<[1], [0], [0], [1], [0, 0, 1, 1], [], []>} : vector<8x32xbf16>, vector<32x512xbf16>, vector<8x512xf32> -> vector<8x512xf32>
    %157 = vector.broadcast %152 : vector<1x512xf32> to vector<8x512xf32>
    %158 = arith.addf %156, %157 : vector<8x512xf32>
    %cst_72 = arith.constant dense<0.000000e+00> : vector<8xf32>
    %159 = vector.multi_reduction <add>, %158, %cst_72 [1] : vector<8x512xf32> to vector<8xf32>
    %160 = vector.shape_cast %159 : vector<8xf32> to vector<8x1xf32>
    %cst_73 = arith.constant 5.120000e+02 : f32
    %161 = vector.broadcast %cst_73 : f32 to vector<8x1xf32>
    %162 = arith.divf %160, %161 : vector<8x1xf32>
    %163 = vector.broadcast %162 : vector<8x1xf32> to vector<8x512xf32>
    %164 = arith.subf %158, %163 : vector<8x512xf32>
    %165 = arith.mulf %164, %164 : vector<8x512xf32>
    %cst_74 = arith.constant dense<0.000000e+00> : vector<8xf32>
    %166 = vector.multi_reduction <add>, %165, %cst_74 [1] : vector<8x512xf32> to vector<8xf32>
    %167 = vector.shape_cast %166 : vector<8xf32> to vector<8x1xf32>
    %cst_75 = arith.constant 5.120000e+02 : f32
    %168 = vector.broadcast %cst_75 : f32 to vector<8x1xf32>
    %169 = arith.divf %167, %168 : vector<8x1xf32>
    %170 = vector.broadcast %162 : vector<8x1xf32> to vector<8x512xf32>
    %171 = arith.subf %158, %170 : vector<8x512xf32>
    %cst_76 = arith.constant 9.99999974E-6 : f32
    %172 = vector.broadcast %cst_76 : f32 to vector<8x1xf32>
    %173 = arith.addf %169, %172 : vector<8x1xf32>
    %174 = math.rsqrt %173 : vector<8x1xf32>
    %175 = vector.broadcast %174 : vector<8x1xf32> to vector<8x512xf32>
    %176 = arith.mulf %171, %175 : vector<8x512xf32>
    %177 = vector.broadcast %153 : vector<1x512xf32> to vector<8x512xf32>
    %178 = arith.mulf %176, %177 : vector<8x512xf32>
    %179 = vector.broadcast %154 : vector<1x512xf32> to vector<8x512xf32>
    %180 = arith.addf %178, %179 : vector<8x512xf32>
    %cst_77 = arith.constant 5.000000e-01 : f32
    %181 = vector.broadcast %cst_77 : f32 to vector<8x512xf32>
    %182 = arith.mulf %181, %180 : vector<8x512xf32>
    %cst_78 = arith.constant 4.471500e-02 : f32
    %183 = vector.broadcast %cst_78 : f32 to vector<8x512xf32>
    %184 = arith.mulf %183, %180 : vector<8x512xf32>
    %185 = arith.mulf %184, %180 : vector<8x512xf32>
    %186 = arith.mulf %185, %180 : vector<8x512xf32>
    %187 = arith.addf %180, %186 : vector<8x512xf32>
    %cst_79 = arith.constant 0.797884583 : f32
    %188 = vector.broadcast %cst_79 : f32 to vector<8x512xf32>
    %189 = arith.mulf %188, %187 : vector<8x512xf32>
    %190 = math.tanh %189 : vector<8x512xf32>
    %cst_80 = arith.constant 1.000000e+00 : f32
    %191 = vector.broadcast %cst_80 : f32 to vector<8x512xf32>
    %192 = arith.addf %191, %190 : vector<8x512xf32>
    %193 = arith.mulf %182, %192 : vector<8x512xf32>
    %c1_81 = arith.constant 1 : index
    %c0_82 = arith.constant 0 : index
    %c0_83 = arith.constant 0 : index
    %194 = vector.load %arg4[%c1_81, %c0_82, %c0_83] : memref<3x512x256xbf16, #tpu.memory_space<vmem>>, vector<1x512x256xbf16>
    %195 = vector.shape_cast %194 : vector<1x512x256xbf16> to vector<512x256xbf16>
    %c3_84 = arith.constant 3 : index
    %c0_85 = arith.constant 0 : index
    %196 = vector.load %arg12[%c3_84, %c0_85] : memref<19x256xf32, #tpu.memory_space<vmem>>, vector<1x256xf32>
    %c4_86 = arith.constant 4 : index
    %c0_87 = arith.constant 0 : index
    %197 = vector.load %arg12[%c4_86, %c0_87] : memref<19x256xf32, #tpu.memory_space<vmem>>, vector<1x256xf32>
    %c5_88 = arith.constant 5 : index
    %c0_89 = arith.constant 0 : index
    %198 = vector.load %arg12[%c5_88, %c0_89] : memref<19x256xf32, #tpu.memory_space<vmem>>, vector<1x256xf32>
    %199 = arith.truncf %193 : vector<8x512xf32> to vector<8x512xbf16>
    %cst_90 = arith.constant dense<0.000000e+00> : vector<8x256xf32>
    %200 = tpu.matmul %199, %195, %cst_90 {dimension_numbers = #tpu.dot_dimension_numbers<[1], [0], [0], [1], [0, 0, 1, 1], [], []>} : vector<8x512xbf16>, vector<512x256xbf16>, vector<8x256xf32> -> vector<8x256xf32>
    %201 = vector.broadcast %196 : vector<1x256xf32> to vector<8x256xf32>
    %202 = arith.addf %200, %201 : vector<8x256xf32>
    %cst_91 = arith.constant dense<0.000000e+00> : vector<8xf32>
    %203 = vector.multi_reduction <add>, %202, %cst_91 [1] : vector<8x256xf32> to vector<8xf32>
    %204 = vector.shape_cast %203 : vector<8xf32> to vector<8x1xf32>
    %cst_92 = arith.constant 2.560000e+02 : f32
    %205 = vector.broadcast %cst_92 : f32 to vector<8x1xf32>
    %206 = arith.divf %204, %205 : vector<8x1xf32>
    %207 = vector.broadcast %206 : vector<8x1xf32> to vector<8x256xf32>
    %208 = arith.subf %202, %207 : vector<8x256xf32>
    %209 = arith.mulf %208, %208 : vector<8x256xf32>
    %cst_93 = arith.constant dense<0.000000e+00> : vector<8xf32>
    %210 = vector.multi_reduction <add>, %209, %cst_93 [1] : vector<8x256xf32> to vector<8xf32>
    %211 = vector.shape_cast %210 : vector<8xf32> to vector<8x1xf32>
    %cst_94 = arith.constant 2.560000e+02 : f32
    %212 = vector.broadcast %cst_94 : f32 to vector<8x1xf32>
    %213 = arith.divf %211, %212 : vector<8x1xf32>
    %214 = vector.broadcast %206 : vector<8x1xf32> to vector<8x256xf32>
    %215 = arith.subf %202, %214 : vector<8x256xf32>
    %cst_95 = arith.constant 9.99999974E-6 : f32
    %216 = vector.broadcast %cst_95 : f32 to vector<8x1xf32>
    %217 = arith.addf %213, %216 : vector<8x1xf32>
    %218 = math.rsqrt %217 : vector<8x1xf32>
    %219 = vector.broadcast %218 : vector<8x1xf32> to vector<8x256xf32>
    %220 = arith.mulf %215, %219 : vector<8x256xf32>
    %221 = vector.broadcast %197 : vector<1x256xf32> to vector<8x256xf32>
    %222 = arith.mulf %220, %221 : vector<8x256xf32>
    %223 = vector.broadcast %198 : vector<1x256xf32> to vector<8x256xf32>
    %224 = arith.addf %222, %223 : vector<8x256xf32>
    %cst_96 = arith.constant 5.000000e-01 : f32
    %225 = vector.broadcast %cst_96 : f32 to vector<8x256xf32>
    %226 = arith.mulf %225, %224 : vector<8x256xf32>
    %cst_97 = arith.constant 4.471500e-02 : f32
    %227 = vector.broadcast %cst_97 : f32 to vector<8x256xf32>
    %228 = arith.mulf %227, %224 : vector<8x256xf32>
    %229 = arith.mulf %228, %224 : vector<8x256xf32>
    %230 = arith.mulf %229, %224 : vector<8x256xf32>
    %231 = arith.addf %224, %230 : vector<8x256xf32>
    %cst_98 = arith.constant 0.797884583 : f32
    %232 = vector.broadcast %cst_98 : f32 to vector<8x256xf32>
    %233 = arith.mulf %232, %231 : vector<8x256xf32>
    %234 = math.tanh %233 : vector<8x256xf32>
    %cst_99 = arith.constant 1.000000e+00 : f32
    %235 = vector.broadcast %cst_99 : f32 to vector<8x256xf32>
    %236 = arith.addf %235, %234 : vector<8x256xf32>
    %237 = arith.mulf %226, %236 : vector<8x256xf32>
    %c1_100 = arith.constant 1 : index
    %c0_101 = arith.constant 0 : index
    %c0_102 = arith.constant 0 : index
    %238 = vector.load %arg5[%c1_100, %c0_101, %c0_102] : memref<3x256x128xbf16, #tpu.memory_space<vmem>>, vector<1x256x128xbf16>
    %239 = vector.shape_cast %238 : vector<1x256x128xbf16> to vector<256x128xbf16>
    %c4_103 = arith.constant 4 : index
    %c0_104 = arith.constant 0 : index
    %240 = vector.load %arg13[%c4_103, %c0_104] : memref<23x128xf32, #tpu.memory_space<vmem>>, vector<1x128xf32>
    %c5_105 = arith.constant 5 : index
    %c0_106 = arith.constant 0 : index
    %241 = vector.load %arg13[%c5_105, %c0_106] : memref<23x128xf32, #tpu.memory_space<vmem>>, vector<1x128xf32>
    %c6 = arith.constant 6 : index
    %c0_107 = arith.constant 0 : index
    %242 = vector.load %arg13[%c6, %c0_107] : memref<23x128xf32, #tpu.memory_space<vmem>>, vector<1x128xf32>
    %243 = arith.truncf %237 : vector<8x256xf32> to vector<8x256xbf16>
    %cst_108 = arith.constant dense<0.000000e+00> : vector<8x128xf32>
    %244 = tpu.matmul %243, %239, %cst_108 {dimension_numbers = #tpu.dot_dimension_numbers<[1], [0], [0], [1], [0, 0, 1, 1], [], []>} : vector<8x256xbf16>, vector<256x128xbf16>, vector<8x128xf32> -> vector<8x128xf32>
    %245 = vector.broadcast %240 : vector<1x128xf32> to vector<8x128xf32>
    %246 = arith.addf %244, %245 : vector<8x128xf32>
    %cst_109 = arith.constant dense<0.000000e+00> : vector<8xf32>
    %247 = vector.multi_reduction <add>, %246, %cst_109 [1] : vector<8x128xf32> to vector<8xf32>
    %248 = vector.shape_cast %247 : vector<8xf32> to vector<8x1xf32>
    %cst_110 = arith.constant 1.280000e+02 : f32
    %249 = vector.broadcast %cst_110 : f32 to vector<8x1xf32>
    %250 = arith.divf %248, %249 : vector<8x1xf32>
    %251 = vector.broadcast %250 : vector<8x1xf32> to vector<8x128xf32>
    %252 = arith.subf %246, %251 : vector<8x128xf32>
    %253 = arith.mulf %252, %252 : vector<8x128xf32>
    %cst_111 = arith.constant dense<0.000000e+00> : vector<8xf32>
    %254 = vector.multi_reduction <add>, %253, %cst_111 [1] : vector<8x128xf32> to vector<8xf32>
    %255 = vector.shape_cast %254 : vector<8xf32> to vector<8x1xf32>
    %cst_112 = arith.constant 1.280000e+02 : f32
    %256 = vector.broadcast %cst_112 : f32 to vector<8x1xf32>
    %257 = arith.divf %255, %256 : vector<8x1xf32>
    %258 = vector.broadcast %250 : vector<8x1xf32> to vector<8x128xf32>
    %259 = arith.subf %246, %258 : vector<8x128xf32>
    %cst_113 = arith.constant 9.99999974E-6 : f32
    %260 = vector.broadcast %cst_113 : f32 to vector<8x1xf32>
    %261 = arith.addf %257, %260 : vector<8x1xf32>
    %262 = math.rsqrt %261 : vector<8x1xf32>
    %263 = vector.broadcast %262 : vector<8x1xf32> to vector<8x128xf32>
    %264 = arith.mulf %259, %263 : vector<8x128xf32>
    %265 = vector.broadcast %241 : vector<1x128xf32> to vector<8x128xf32>
    %266 = arith.mulf %264, %265 : vector<8x128xf32>
    %267 = vector.broadcast %242 : vector<1x128xf32> to vector<8x128xf32>
    %268 = arith.addf %266, %267 : vector<8x128xf32>
    %cst_114 = arith.constant 5.000000e-01 : f32
    %269 = vector.broadcast %cst_114 : f32 to vector<8x128xf32>
    %270 = arith.mulf %269, %268 : vector<8x128xf32>
    %cst_115 = arith.constant 4.471500e-02 : f32
    %271 = vector.broadcast %cst_115 : f32 to vector<8x128xf32>
    %272 = arith.mulf %271, %268 : vector<8x128xf32>
    %273 = arith.mulf %272, %268 : vector<8x128xf32>
    %274 = arith.mulf %273, %268 : vector<8x128xf32>
    %275 = arith.addf %268, %274 : vector<8x128xf32>
    %cst_116 = arith.constant 0.797884583 : f32
    %276 = vector.broadcast %cst_116 : f32 to vector<8x128xf32>
    %277 = arith.mulf %276, %275 : vector<8x128xf32>
    %278 = math.tanh %277 : vector<8x128xf32>
    %cst_117 = arith.constant 1.000000e+00 : f32
    %279 = vector.broadcast %cst_117 : f32 to vector<8x128xf32>
    %280 = arith.addf %279, %278 : vector<8x128xf32>
    %281 = arith.mulf %270, %280 : vector<8x128xf32>
    %282 = tpu.concatenate %281, %149 in 1 : vector<8x128xf32>, vector<8x32xf32> -> vector<8x160xf32>
    %c1_118 = arith.constant 1 : index
    %c0_119 = arith.constant 0 : index
    %c0_120 = arith.constant 0 : index
    %283 = vector.load %arg6[%c1_118, %c0_119, %c0_120] : memref<3x160x128xbf16, #tpu.memory_space<vmem>>, vector<1x160x128xbf16>
    %284 = vector.shape_cast %283 : vector<1x160x128xbf16> to vector<160x128xbf16>
    %c7 = arith.constant 7 : index
    %c0_121 = arith.constant 0 : index
    %285 = vector.load %arg13[%c7, %c0_121] : memref<23x128xf32, #tpu.memory_space<vmem>>, vector<1x128xf32>
    %286 = arith.truncf %282 : vector<8x160xf32> to vector<8x160xbf16>
    %cst_122 = arith.constant dense<0.000000e+00> : vector<8x128xf32>
    %287 = tpu.matmul %286, %284, %cst_122 {dimension_numbers = #tpu.dot_dimension_numbers<[1], [0], [0], [1], [0, 0, 1, 1], [], []>} : vector<8x160xbf16>, vector<160x128xbf16>, vector<8x128xf32> -> vector<8x128xf32>
    %288 = vector.broadcast %285 : vector<1x128xf32> to vector<8x128xf32>
    %289 = arith.addf %287, %288 : vector<8x128xf32>
    %c2_123 = arith.constant 2 : index
    %c0_124 = arith.constant 0 : index
    %c0_125 = arith.constant 0 : index
    %290 = vector.load %arg1[%c2_123, %c0_124, %c0_125] : memref<3x8x32xf32, #tpu.memory_space<vmem>>, vector<1x8x32xf32>
    %291 = vector.shape_cast %290 : vector<1x8x32xf32> to vector<8x32xf32>
    %c2_126 = arith.constant 2 : index
    %c0_127 = arith.constant 0 : index
    %c0_128 = arith.constant 0 : index
    %292 = vector.load %arg3[%c2_126, %c0_127, %c0_128] : memref<3x32x512xbf16, #tpu.memory_space<vmem>>, vector<1x32x512xbf16>
    %293 = vector.shape_cast %292 : vector<1x32x512xbf16> to vector<32x512xbf16>
    %c6_129 = arith.constant 6 : index
    %c0_130 = arith.constant 0 : index
    %294 = vector.load %arg11[%c6_129, %c0_130] : memref<15x512xf32, #tpu.memory_space<vmem>>, vector<1x512xf32>
    %c7_131 = arith.constant 7 : index
    %c0_132 = arith.constant 0 : index
    %295 = vector.load %arg11[%c7_131, %c0_132] : memref<15x512xf32, #tpu.memory_space<vmem>>, vector<1x512xf32>
    %c8 = arith.constant 8 : index
    %c0_133 = arith.constant 0 : index
    %296 = vector.load %arg11[%c8, %c0_133] : memref<15x512xf32, #tpu.memory_space<vmem>>, vector<1x512xf32>
    %297 = arith.truncf %291 : vector<8x32xf32> to vector<8x32xbf16>
    %cst_134 = arith.constant dense<0.000000e+00> : vector<8x512xf32>
    %298 = tpu.matmul %297, %293, %cst_134 {dimension_numbers = #tpu.dot_dimension_numbers<[1], [0], [0], [1], [0, 0, 1, 1], [], []>} : vector<8x32xbf16>, vector<32x512xbf16>, vector<8x512xf32> -> vector<8x512xf32>
    %299 = vector.broadcast %294 : vector<1x512xf32> to vector<8x512xf32>
    %300 = arith.addf %298, %299 : vector<8x512xf32>
    %cst_135 = arith.constant dense<0.000000e+00> : vector<8xf32>
    %301 = vector.multi_reduction <add>, %300, %cst_135 [1] : vector<8x512xf32> to vector<8xf32>
    %302 = vector.shape_cast %301 : vector<8xf32> to vector<8x1xf32>
    %cst_136 = arith.constant 5.120000e+02 : f32
    %303 = vector.broadcast %cst_136 : f32 to vector<8x1xf32>
    %304 = arith.divf %302, %303 : vector<8x1xf32>
    %305 = vector.broadcast %304 : vector<8x1xf32> to vector<8x512xf32>
    %306 = arith.subf %300, %305 : vector<8x512xf32>
    %307 = arith.mulf %306, %306 : vector<8x512xf32>
    %cst_137 = arith.constant dense<0.000000e+00> : vector<8xf32>
    %308 = vector.multi_reduction <add>, %307, %cst_137 [1] : vector<8x512xf32> to vector<8xf32>
    %309 = vector.shape_cast %308 : vector<8xf32> to vector<8x1xf32>
    %cst_138 = arith.constant 5.120000e+02 : f32
    %310 = vector.broadcast %cst_138 : f32 to vector<8x1xf32>
    %311 = arith.divf %309, %310 : vector<8x1xf32>
    %312 = vector.broadcast %304 : vector<8x1xf32> to vector<8x512xf32>
    %313 = arith.subf %300, %312 : vector<8x512xf32>
    %cst_139 = arith.constant 9.99999974E-6 : f32
    %314 = vector.broadcast %cst_139 : f32 to vector<8x1xf32>
    %315 = arith.addf %311, %314 : vector<8x1xf32>
    %316 = math.rsqrt %315 : vector<8x1xf32>
    %317 = vector.broadcast %316 : vector<8x1xf32> to vector<8x512xf32>
    %318 = arith.mulf %313, %317 : vector<8x512xf32>
    %319 = vector.broadcast %295 : vector<1x512xf32> to vector<8x512xf32>
    %320 = arith.mulf %318, %319 : vector<8x512xf32>
    %321 = vector.broadcast %296 : vector<1x512xf32> to vector<8x512xf32>
    %322 = arith.addf %320, %321 : vector<8x512xf32>
    %cst_140 = arith.constant 5.000000e-01 : f32
    %323 = vector.broadcast %cst_140 : f32 to vector<8x512xf32>
    %324 = arith.mulf %323, %322 : vector<8x512xf32>
    %cst_141 = arith.constant 4.471500e-02 : f32
    %325 = vector.broadcast %cst_141 : f32 to vector<8x512xf32>
    %326 = arith.mulf %325, %322 : vector<8x512xf32>
    %327 = arith.mulf %326, %322 : vector<8x512xf32>
    %328 = arith.mulf %327, %322 : vector<8x512xf32>
    %329 = arith.addf %322, %328 : vector<8x512xf32>
    %cst_142 = arith.constant 0.797884583 : f32
    %330 = vector.broadcast %cst_142 : f32 to vector<8x512xf32>
    %331 = arith.mulf %330, %329 : vector<8x512xf32>
    %332 = math.tanh %331 : vector<8x512xf32>
    %cst_143 = arith.constant 1.000000e+00 : f32
    %333 = vector.broadcast %cst_143 : f32 to vector<8x512xf32>
    %334 = arith.addf %333, %332 : vector<8x512xf32>
    %335 = arith.mulf %324, %334 : vector<8x512xf32>
    %c2_144 = arith.constant 2 : index
    %c0_145 = arith.constant 0 : index
    %c0_146 = arith.constant 0 : index
    %336 = vector.load %arg4[%c2_144, %c0_145, %c0_146] : memref<3x512x256xbf16, #tpu.memory_space<vmem>>, vector<1x512x256xbf16>
    %337 = vector.shape_cast %336 : vector<1x512x256xbf16> to vector<512x256xbf16>
    %c6_147 = arith.constant 6 : index
    %c0_148 = arith.constant 0 : index
    %338 = vector.load %arg12[%c6_147, %c0_148] : memref<19x256xf32, #tpu.memory_space<vmem>>, vector<1x256xf32>
    %c7_149 = arith.constant 7 : index
    %c0_150 = arith.constant 0 : index
    %339 = vector.load %arg12[%c7_149, %c0_150] : memref<19x256xf32, #tpu.memory_space<vmem>>, vector<1x256xf32>
    %c8_151 = arith.constant 8 : index
    %c0_152 = arith.constant 0 : index
    %340 = vector.load %arg12[%c8_151, %c0_152] : memref<19x256xf32, #tpu.memory_space<vmem>>, vector<1x256xf32>
    %341 = arith.truncf %335 : vector<8x512xf32> to vector<8x512xbf16>
    %cst_153 = arith.constant dense<0.000000e+00> : vector<8x256xf32>
    %342 = tpu.matmul %341, %337, %cst_153 {dimension_numbers = #tpu.dot_dimension_numbers<[1], [0], [0], [1], [0, 0, 1, 1], [], []>} : vector<8x512xbf16>, vector<512x256xbf16>, vector<8x256xf32> -> vector<8x256xf32>
    %343 = vector.broadcast %338 : vector<1x256xf32> to vector<8x256xf32>
    %344 = arith.addf %342, %343 : vector<8x256xf32>
    %cst_154 = arith.constant dense<0.000000e+00> : vector<8xf32>
    %345 = vector.multi_reduction <add>, %344, %cst_154 [1] : vector<8x256xf32> to vector<8xf32>
    %346 = vector.shape_cast %345 : vector<8xf32> to vector<8x1xf32>
    %cst_155 = arith.constant 2.560000e+02 : f32
    %347 = vector.broadcast %cst_155 : f32 to vector<8x1xf32>
    %348 = arith.divf %346, %347 : vector<8x1xf32>
    %349 = vector.broadcast %348 : vector<8x1xf32> to vector<8x256xf32>
    %350 = arith.subf %344, %349 : vector<8x256xf32>
    %351 = arith.mulf %350, %350 : vector<8x256xf32>
    %cst_156 = arith.constant dense<0.000000e+00> : vector<8xf32>
    %352 = vector.multi_reduction <add>, %351, %cst_156 [1] : vector<8x256xf32> to vector<8xf32>
    %353 = vector.shape_cast %352 : vector<8xf32> to vector<8x1xf32>
    %cst_157 = arith.constant 2.560000e+02 : f32
    %354 = vector.broadcast %cst_157 : f32 to vector<8x1xf32>
    %355 = arith.divf %353, %354 : vector<8x1xf32>
    %356 = vector.broadcast %348 : vector<8x1xf32> to vector<8x256xf32>
    %357 = arith.subf %344, %356 : vector<8x256xf32>
    %cst_158 = arith.constant 9.99999974E-6 : f32
    %358 = vector.broadcast %cst_158 : f32 to vector<8x1xf32>
    %359 = arith.addf %355, %358 : vector<8x1xf32>
    %360 = math.rsqrt %359 : vector<8x1xf32>
    %361 = vector.broadcast %360 : vector<8x1xf32> to vector<8x256xf32>
    %362 = arith.mulf %357, %361 : vector<8x256xf32>
    %363 = vector.broadcast %339 : vector<1x256xf32> to vector<8x256xf32>
    %364 = arith.mulf %362, %363 : vector<8x256xf32>
    %365 = vector.broadcast %340 : vector<1x256xf32> to vector<8x256xf32>
    %366 = arith.addf %364, %365 : vector<8x256xf32>
    %cst_159 = arith.constant 5.000000e-01 : f32
    %367 = vector.broadcast %cst_159 : f32 to vector<8x256xf32>
    %368 = arith.mulf %367, %366 : vector<8x256xf32>
    %cst_160 = arith.constant 4.471500e-02 : f32
    %369 = vector.broadcast %cst_160 : f32 to vector<8x256xf32>
    %370 = arith.mulf %369, %366 : vector<8x256xf32>
    %371 = arith.mulf %370, %366 : vector<8x256xf32>
    %372 = arith.mulf %371, %366 : vector<8x256xf32>
    %373 = arith.addf %366, %372 : vector<8x256xf32>
    %cst_161 = arith.constant 0.797884583 : f32
    %374 = vector.broadcast %cst_161 : f32 to vector<8x256xf32>
    %375 = arith.mulf %374, %373 : vector<8x256xf32>
    %376 = math.tanh %375 : vector<8x256xf32>
    %cst_162 = arith.constant 1.000000e+00 : f32
    %377 = vector.broadcast %cst_162 : f32 to vector<8x256xf32>
    %378 = arith.addf %377, %376 : vector<8x256xf32>
    %379 = arith.mulf %368, %378 : vector<8x256xf32>
    %c2_163 = arith.constant 2 : index
    %c0_164 = arith.constant 0 : index
    %c0_165 = arith.constant 0 : index
    %380 = vector.load %arg5[%c2_163, %c0_164, %c0_165] : memref<3x256x128xbf16, #tpu.memory_space<vmem>>, vector<1x256x128xbf16>
    %381 = vector.shape_cast %380 : vector<1x256x128xbf16> to vector<256x128xbf16>
    %c8_166 = arith.constant 8 : index
    %c0_167 = arith.constant 0 : index
    %382 = vector.load %arg13[%c8_166, %c0_167] : memref<23x128xf32, #tpu.memory_space<vmem>>, vector<1x128xf32>
    %c9 = arith.constant 9 : index
    %c0_168 = arith.constant 0 : index
    %383 = vector.load %arg13[%c9, %c0_168] : memref<23x128xf32, #tpu.memory_space<vmem>>, vector<1x128xf32>
    %c10 = arith.constant 10 : index
    %c0_169 = arith.constant 0 : index
    %384 = vector.load %arg13[%c10, %c0_169] : memref<23x128xf32, #tpu.memory_space<vmem>>, vector<1x128xf32>
    %385 = arith.truncf %379 : vector<8x256xf32> to vector<8x256xbf16>
    %cst_170 = arith.constant dense<0.000000e+00> : vector<8x128xf32>
    %386 = tpu.matmul %385, %381, %cst_170 {dimension_numbers = #tpu.dot_dimension_numbers<[1], [0], [0], [1], [0, 0, 1, 1], [], []>} : vector<8x256xbf16>, vector<256x128xbf16>, vector<8x128xf32> -> vector<8x128xf32>
    %387 = vector.broadcast %382 : vector<1x128xf32> to vector<8x128xf32>
    %388 = arith.addf %386, %387 : vector<8x128xf32>
    %cst_171 = arith.constant dense<0.000000e+00> : vector<8xf32>
    %389 = vector.multi_reduction <add>, %388, %cst_171 [1] : vector<8x128xf32> to vector<8xf32>
    %390 = vector.shape_cast %389 : vector<8xf32> to vector<8x1xf32>
    %cst_172 = arith.constant 1.280000e+02 : f32
    %391 = vector.broadcast %cst_172 : f32 to vector<8x1xf32>
    %392 = arith.divf %390, %391 : vector<8x1xf32>
    %393 = vector.broadcast %392 : vector<8x1xf32> to vector<8x128xf32>
    %394 = arith.subf %388, %393 : vector<8x128xf32>
    %395 = arith.mulf %394, %394 : vector<8x128xf32>
    %cst_173 = arith.constant dense<0.000000e+00> : vector<8xf32>
    %396 = vector.multi_reduction <add>, %395, %cst_173 [1] : vector<8x128xf32> to vector<8xf32>
    %397 = vector.shape_cast %396 : vector<8xf32> to vector<8x1xf32>
    %cst_174 = arith.constant 1.280000e+02 : f32
    %398 = vector.broadcast %cst_174 : f32 to vector<8x1xf32>
    %399 = arith.divf %397, %398 : vector<8x1xf32>
    %400 = vector.broadcast %392 : vector<8x1xf32> to vector<8x128xf32>
    %401 = arith.subf %388, %400 : vector<8x128xf32>
    %cst_175 = arith.constant 9.99999974E-6 : f32
    %402 = vector.broadcast %cst_175 : f32 to vector<8x1xf32>
    %403 = arith.addf %399, %402 : vector<8x1xf32>
    %404 = math.rsqrt %403 : vector<8x1xf32>
    %405 = vector.broadcast %404 : vector<8x1xf32> to vector<8x128xf32>
    %406 = arith.mulf %401, %405 : vector<8x128xf32>
    %407 = vector.broadcast %383 : vector<1x128xf32> to vector<8x128xf32>
    %408 = arith.mulf %406, %407 : vector<8x128xf32>
    %409 = vector.broadcast %384 : vector<1x128xf32> to vector<8x128xf32>
    %410 = arith.addf %408, %409 : vector<8x128xf32>
    %cst_176 = arith.constant 5.000000e-01 : f32
    %411 = vector.broadcast %cst_176 : f32 to vector<8x128xf32>
    %412 = arith.mulf %411, %410 : vector<8x128xf32>
    %cst_177 = arith.constant 4.471500e-02 : f32
    %413 = vector.broadcast %cst_177 : f32 to vector<8x128xf32>
    %414 = arith.mulf %413, %410 : vector<8x128xf32>
    %415 = arith.mulf %414, %410 : vector<8x128xf32>
    %416 = arith.mulf %415, %410 : vector<8x128xf32>
    %417 = arith.addf %410, %416 : vector<8x128xf32>
    %cst_178 = arith.constant 0.797884583 : f32
    %418 = vector.broadcast %cst_178 : f32 to vector<8x128xf32>
    %419 = arith.mulf %418, %417 : vector<8x128xf32>
    %420 = math.tanh %419 : vector<8x128xf32>
    %cst_179 = arith.constant 1.000000e+00 : f32
    %421 = vector.broadcast %cst_179 : f32 to vector<8x128xf32>
    %422 = arith.addf %421, %420 : vector<8x128xf32>
    %423 = arith.mulf %412, %422 : vector<8x128xf32>
    %424 = tpu.concatenate %423, %291 in 1 : vector<8x128xf32>, vector<8x32xf32> -> vector<8x160xf32>
    %c2_180 = arith.constant 2 : index
    %c0_181 = arith.constant 0 : index
    %c0_182 = arith.constant 0 : index
    %425 = vector.load %arg6[%c2_180, %c0_181, %c0_182] : memref<3x160x128xbf16, #tpu.memory_space<vmem>>, vector<1x160x128xbf16>
    %426 = vector.shape_cast %425 : vector<1x160x128xbf16> to vector<160x128xbf16>
    %c11 = arith.constant 11 : index
    %c0_183 = arith.constant 0 : index
    %427 = vector.load %arg13[%c11, %c0_183] : memref<23x128xf32, #tpu.memory_space<vmem>>, vector<1x128xf32>
    %428 = arith.truncf %424 : vector<8x160xf32> to vector<8x160xbf16>
    %cst_184 = arith.constant dense<0.000000e+00> : vector<8x128xf32>
    %429 = tpu.matmul %428, %426, %cst_184 {dimension_numbers = #tpu.dot_dimension_numbers<[1], [0], [0], [1], [0, 0, 1, 1], [], []>} : vector<8x160xbf16>, vector<160x128xbf16>, vector<8x128xf32> -> vector<8x128xf32>
    %430 = vector.broadcast %427 : vector<1x128xf32> to vector<8x128xf32>
    %431 = arith.addf %429, %430 : vector<8x128xf32>
    %c0_185 = arith.constant 0 : index
    %c0_186 = arith.constant 0 : index
    %432 = vector.load %arg2[%c0_185, %c0_186] : memref<8x16xf32, #tpu.memory_space<vmem>>, vector<8x16xf32>
    %c256 = arith.constant 256 : index
    %c0_187 = arith.constant 0 : index
    %433 = vector.load %arg9[%c256, %c0_187] : memref<1168x128xbf16, #tpu.memory_space<vmem>>, vector<16x128xbf16>
    %c15 = arith.constant 15 : index
    %c0_188 = arith.constant 0 : index
    %434 = vector.load %arg13[%c15, %c0_188] : memref<23x128xf32, #tpu.memory_space<vmem>>, vector<1x128xf32>
    %435 = arith.truncf %432 : vector<8x16xf32> to vector<8x16xbf16>
    %cst_189 = arith.constant dense<0.000000e+00> : vector<8x128xf32>
    %436 = tpu.matmul %435, %433, %cst_189 {dimension_numbers = #tpu.dot_dimension_numbers<[1], [0], [0], [1], [0, 0, 1, 1], [], []>} : vector<8x16xbf16>, vector<16x128xbf16>, vector<8x128xf32> -> vector<8x128xf32>
    %437 = vector.broadcast %434 : vector<1x128xf32> to vector<8x128xf32>
    %438 = arith.addf %436, %437 : vector<8x128xf32>
    %c0_190 = arith.constant 0 : index
    %c0_191 = arith.constant 0 : index
    %439 = vector.load %arg7[%c0_190, %c0_191] : memref<16x512xbf16, #tpu.memory_space<vmem>>, vector<16x512xbf16>
    %c9_192 = arith.constant 9 : index
    %c0_193 = arith.constant 0 : index
    %440 = vector.load %arg11[%c9_192, %c0_193] : memref<15x512xf32, #tpu.memory_space<vmem>>, vector<1x512xf32>
    %c10_194 = arith.constant 10 : index
    %c0_195 = arith.constant 0 : index
    %441 = vector.load %arg11[%c10_194, %c0_195] : memref<15x512xf32, #tpu.memory_space<vmem>>, vector<1x512xf32>
    %c11_196 = arith.constant 11 : index
    %c0_197 = arith.constant 0 : index
    %442 = vector.load %arg11[%c11_196, %c0_197] : memref<15x512xf32, #tpu.memory_space<vmem>>, vector<1x512xf32>
    %443 = arith.truncf %432 : vector<8x16xf32> to vector<8x16xbf16>
    %cst_198 = arith.constant dense<0.000000e+00> : vector<8x512xf32>
    %444 = tpu.matmul %443, %439, %cst_198 {dimension_numbers = #tpu.dot_dimension_numbers<[1], [0], [0], [1], [0, 0, 1, 1], [], []>} : vector<8x16xbf16>, vector<16x512xbf16>, vector<8x512xf32> -> vector<8x512xf32>
    %445 = vector.broadcast %440 : vector<1x512xf32> to vector<8x512xf32>
    %446 = arith.addf %444, %445 : vector<8x512xf32>
    %cst_199 = arith.constant dense<0.000000e+00> : vector<8xf32>
    %447 = vector.multi_reduction <add>, %446, %cst_199 [1] : vector<8x512xf32> to vector<8xf32>
    %448 = vector.shape_cast %447 : vector<8xf32> to vector<8x1xf32>
    %cst_200 = arith.constant 5.120000e+02 : f32
    %449 = vector.broadcast %cst_200 : f32 to vector<8x1xf32>
    %450 = arith.divf %448, %449 : vector<8x1xf32>
    %451 = vector.broadcast %450 : vector<8x1xf32> to vector<8x512xf32>
    %452 = arith.subf %446, %451 : vector<8x512xf32>
    %453 = arith.mulf %452, %452 : vector<8x512xf32>
    %cst_201 = arith.constant dense<0.000000e+00> : vector<8xf32>
    %454 = vector.multi_reduction <add>, %453, %cst_201 [1] : vector<8x512xf32> to vector<8xf32>
    %455 = vector.shape_cast %454 : vector<8xf32> to vector<8x1xf32>
    %cst_202 = arith.constant 5.120000e+02 : f32
    %456 = vector.broadcast %cst_202 : f32 to vector<8x1xf32>
    %457 = arith.divf %455, %456 : vector<8x1xf32>
    %458 = vector.broadcast %450 : vector<8x1xf32> to vector<8x512xf32>
    %459 = arith.subf %446, %458 : vector<8x512xf32>
    %cst_203 = arith.constant 9.99999974E-6 : f32
    %460 = vector.broadcast %cst_203 : f32 to vector<8x1xf32>
    %461 = arith.addf %457, %460 : vector<8x1xf32>
    %462 = math.rsqrt %461 : vector<8x1xf32>
    %463 = vector.broadcast %462 : vector<8x1xf32> to vector<8x512xf32>
    %464 = arith.mulf %459, %463 : vector<8x512xf32>
    %465 = vector.broadcast %441 : vector<1x512xf32> to vector<8x512xf32>
    %466 = arith.mulf %464, %465 : vector<8x512xf32>
    %467 = vector.broadcast %442 : vector<1x512xf32> to vector<8x512xf32>
    %468 = arith.addf %466, %467 : vector<8x512xf32>
    %cst_204 = arith.constant 5.000000e-01 : f32
    %469 = vector.broadcast %cst_204 : f32 to vector<8x512xf32>
    %470 = arith.mulf %469, %468 : vector<8x512xf32>
    %cst_205 = arith.constant 4.471500e-02 : f32
    %471 = vector.broadcast %cst_205 : f32 to vector<8x512xf32>
    %472 = arith.mulf %471, %468 : vector<8x512xf32>
    %473 = arith.mulf %472, %468 : vector<8x512xf32>
    %474 = arith.mulf %473, %468 : vector<8x512xf32>
    %475 = arith.addf %468, %474 : vector<8x512xf32>
    %cst_206 = arith.constant 0.797884583 : f32
    %476 = vector.broadcast %cst_206 : f32 to vector<8x512xf32>
    %477 = arith.mulf %476, %475 : vector<8x512xf32>
    %478 = math.tanh %477 : vector<8x512xf32>
    %cst_207 = arith.constant 1.000000e+00 : f32
    %479 = vector.broadcast %cst_207 : f32 to vector<8x512xf32>
    %480 = arith.addf %479, %478 : vector<8x512xf32>
    %481 = arith.mulf %470, %480 : vector<8x512xf32>
    %c0_208 = arith.constant 0 : index
    %c0_209 = arith.constant 0 : index
    %482 = vector.load %arg8[%c0_208, %c0_209] : memref<768x256xbf16, #tpu.memory_space<vmem>>, vector<512x256xbf16>
    %c9_210 = arith.constant 9 : index
    %c0_211 = arith.constant 0 : index
    %483 = vector.load %arg12[%c9_210, %c0_211] : memref<19x256xf32, #tpu.memory_space<vmem>>, vector<1x256xf32>
    %c10_212 = arith.constant 10 : index
    %c0_213 = arith.constant 0 : index
    %484 = vector.load %arg12[%c10_212, %c0_213] : memref<19x256xf32, #tpu.memory_space<vmem>>, vector<1x256xf32>
    %c11_214 = arith.constant 11 : index
    %c0_215 = arith.constant 0 : index
    %485 = vector.load %arg12[%c11_214, %c0_215] : memref<19x256xf32, #tpu.memory_space<vmem>>, vector<1x256xf32>
    %486 = arith.truncf %481 : vector<8x512xf32> to vector<8x512xbf16>
    %cst_216 = arith.constant dense<0.000000e+00> : vector<8x256xf32>
    %487 = tpu.matmul %486, %482, %cst_216 {dimension_numbers = #tpu.dot_dimension_numbers<[1], [0], [0], [1], [0, 0, 1, 1], [], []>} : vector<8x512xbf16>, vector<512x256xbf16>, vector<8x256xf32> -> vector<8x256xf32>
    %488 = vector.broadcast %483 : vector<1x256xf32> to vector<8x256xf32>
    %489 = arith.addf %487, %488 : vector<8x256xf32>
    %cst_217 = arith.constant dense<0.000000e+00> : vector<8xf32>
    %490 = vector.multi_reduction <add>, %489, %cst_217 [1] : vector<8x256xf32> to vector<8xf32>
    %491 = vector.shape_cast %490 : vector<8xf32> to vector<8x1xf32>
    %cst_218 = arith.constant 2.560000e+02 : f32
    %492 = vector.broadcast %cst_218 : f32 to vector<8x1xf32>
    %493 = arith.divf %491, %492 : vector<8x1xf32>
    %494 = vector.broadcast %493 : vector<8x1xf32> to vector<8x256xf32>
    %495 = arith.subf %489, %494 : vector<8x256xf32>
    %496 = arith.mulf %495, %495 : vector<8x256xf32>
    %cst_219 = arith.constant dense<0.000000e+00> : vector<8xf32>
    %497 = vector.multi_reduction <add>, %496, %cst_219 [1] : vector<8x256xf32> to vector<8xf32>
    %498 = vector.shape_cast %497 : vector<8xf32> to vector<8x1xf32>
    %cst_220 = arith.constant 2.560000e+02 : f32
    %499 = vector.broadcast %cst_220 : f32 to vector<8x1xf32>
    %500 = arith.divf %498, %499 : vector<8x1xf32>
    %501 = vector.broadcast %493 : vector<8x1xf32> to vector<8x256xf32>
    %502 = arith.subf %489, %501 : vector<8x256xf32>
    %cst_221 = arith.constant 9.99999974E-6 : f32
    %503 = vector.broadcast %cst_221 : f32 to vector<8x1xf32>
    %504 = arith.addf %500, %503 : vector<8x1xf32>
    %505 = math.rsqrt %504 : vector<8x1xf32>
    %506 = vector.broadcast %505 : vector<8x1xf32> to vector<8x256xf32>
    %507 = arith.mulf %502, %506 : vector<8x256xf32>
    %508 = vector.broadcast %484 : vector<1x256xf32> to vector<8x256xf32>
    %509 = arith.mulf %507, %508 : vector<8x256xf32>
    %510 = vector.broadcast %485 : vector<1x256xf32> to vector<8x256xf32>
    %511 = arith.addf %509, %510 : vector<8x256xf32>
    %cst_222 = arith.constant 5.000000e-01 : f32
    %512 = vector.broadcast %cst_222 : f32 to vector<8x256xf32>
    %513 = arith.mulf %512, %511 : vector<8x256xf32>
    %cst_223 = arith.constant 4.471500e-02 : f32
    %514 = vector.broadcast %cst_223 : f32 to vector<8x256xf32>
    %515 = arith.mulf %514, %511 : vector<8x256xf32>
    %516 = arith.mulf %515, %511 : vector<8x256xf32>
    %517 = arith.mulf %516, %511 : vector<8x256xf32>
    %518 = arith.addf %511, %517 : vector<8x256xf32>
    %cst_224 = arith.constant 0.797884583 : f32
    %519 = vector.broadcast %cst_224 : f32 to vector<8x256xf32>
    %520 = arith.mulf %519, %518 : vector<8x256xf32>
    %521 = math.tanh %520 : vector<8x256xf32>
    %cst_225 = arith.constant 1.000000e+00 : f32
    %522 = vector.broadcast %cst_225 : f32 to vector<8x256xf32>
    %523 = arith.addf %522, %521 : vector<8x256xf32>
    %524 = arith.mulf %513, %523 : vector<8x256xf32>
    %c0_226 = arith.constant 0 : index
    %c0_227 = arith.constant 0 : index
    %525 = vector.load %arg9[%c0_226, %c0_227] : memref<1168x128xbf16, #tpu.memory_space<vmem>>, vector<256x128xbf16>
    %c12 = arith.constant 12 : index
    %c0_228 = arith.constant 0 : index
    %526 = vector.load %arg13[%c12, %c0_228] : memref<23x128xf32, #tpu.memory_space<vmem>>, vector<1x128xf32>
    %c13 = arith.constant 13 : index
    %c0_229 = arith.constant 0 : index
    %527 = vector.load %arg13[%c13, %c0_229] : memref<23x128xf32, #tpu.memory_space<vmem>>, vector<1x128xf32>
    %c14 = arith.constant 14 : index
    %c0_230 = arith.constant 0 : index
    %528 = vector.load %arg13[%c14, %c0_230] : memref<23x128xf32, #tpu.memory_space<vmem>>, vector<1x128xf32>
    %529 = arith.truncf %524 : vector<8x256xf32> to vector<8x256xbf16>
    %cst_231 = arith.constant dense<0.000000e+00> : vector<8x128xf32>
    %530 = tpu.matmul %529, %525, %cst_231 {dimension_numbers = #tpu.dot_dimension_numbers<[1], [0], [0], [1], [0, 0, 1, 1], [], []>} : vector<8x256xbf16>, vector<256x128xbf16>, vector<8x128xf32> -> vector<8x128xf32>
    %531 = vector.broadcast %526 : vector<1x128xf32> to vector<8x128xf32>
    %532 = arith.addf %530, %531 : vector<8x128xf32>
    %cst_232 = arith.constant dense<0.000000e+00> : vector<8xf32>
    %533 = vector.multi_reduction <add>, %532, %cst_232 [1] : vector<8x128xf32> to vector<8xf32>
    %534 = vector.shape_cast %533 : vector<8xf32> to vector<8x1xf32>
    %cst_233 = arith.constant 1.280000e+02 : f32
    %535 = vector.broadcast %cst_233 : f32 to vector<8x1xf32>
    %536 = arith.divf %534, %535 : vector<8x1xf32>
    %537 = vector.broadcast %536 : vector<8x1xf32> to vector<8x128xf32>
    %538 = arith.subf %532, %537 : vector<8x128xf32>
    %539 = arith.mulf %538, %538 : vector<8x128xf32>
    %cst_234 = arith.constant dense<0.000000e+00> : vector<8xf32>
    %540 = vector.multi_reduction <add>, %539, %cst_234 [1] : vector<8x128xf32> to vector<8xf32>
    %541 = vector.shape_cast %540 : vector<8xf32> to vector<8x1xf32>
    %cst_235 = arith.constant 1.280000e+02 : f32
    %542 = vector.broadcast %cst_235 : f32 to vector<8x1xf32>
    %543 = arith.divf %541, %542 : vector<8x1xf32>
    %544 = vector.broadcast %536 : vector<8x1xf32> to vector<8x128xf32>
    %545 = arith.subf %532, %544 : vector<8x128xf32>
    %cst_236 = arith.constant 9.99999974E-6 : f32
    %546 = vector.broadcast %cst_236 : f32 to vector<8x1xf32>
    %547 = arith.addf %543, %546 : vector<8x1xf32>
    %548 = math.rsqrt %547 : vector<8x1xf32>
    %549 = vector.broadcast %548 : vector<8x1xf32> to vector<8x128xf32>
    %550 = arith.mulf %545, %549 : vector<8x128xf32>
    %551 = vector.broadcast %527 : vector<1x128xf32> to vector<8x128xf32>
    %552 = arith.mulf %550, %551 : vector<8x128xf32>
    %553 = vector.broadcast %528 : vector<1x128xf32> to vector<8x128xf32>
    %554 = arith.addf %552, %553 : vector<8x128xf32>
    %cst_237 = arith.constant 5.000000e-01 : f32
    %555 = vector.broadcast %cst_237 : f32 to vector<8x128xf32>
    %556 = arith.mulf %555, %554 : vector<8x128xf32>
    %cst_238 = arith.constant 4.471500e-02 : f32
    %557 = vector.broadcast %cst_238 : f32 to vector<8x128xf32>
    %558 = arith.mulf %557, %554 : vector<8x128xf32>
    %559 = arith.mulf %558, %554 : vector<8x128xf32>
    %560 = arith.mulf %559, %554 : vector<8x128xf32>
    %561 = arith.addf %554, %560 : vector<8x128xf32>
    %cst_239 = arith.constant 0.797884583 : f32
    %562 = vector.broadcast %cst_239 : f32 to vector<8x128xf32>
    %563 = arith.mulf %562, %561 : vector<8x128xf32>
    %564 = math.tanh %563 : vector<8x128xf32>
    %cst_240 = arith.constant 1.000000e+00 : f32
    %565 = vector.broadcast %cst_240 : f32 to vector<8x128xf32>
    %566 = arith.addf %565, %564 : vector<8x128xf32>
    %567 = arith.mulf %556, %566 : vector<8x128xf32>
    %568 = arith.addf %567, %438 : vector<8x128xf32>
    %569 = tpu.iota {dimensions = array<i32: 0>} : vector<128x4xi32>
    %570 = tpu.iota {dimensions = array<i32: 1>} : vector<128x4xi32>
    %c32_i32 = arith.constant 32 : i32
    %571 = vector.broadcast %c32_i32 : i32 to vector<128x4xi32>
    %572 = arith.muli %570, %571 : vector<128x4xi32>
    %573 = arith.cmpi sge, %569, %572 : vector<128x4xi32>
    %c1_i32_241 = arith.constant 1 : i32
    %574 = vector.broadcast %c1_i32_241 : i32 to vector<128x4xi32>
    %575 = arith.addi %570, %574 : vector<128x4xi32>
    %c32_i32_242 = arith.constant 32 : i32
    %576 = vector.broadcast %c32_i32_242 : i32 to vector<128x4xi32>
    %577 = arith.muli %575, %576 : vector<128x4xi32>
    %578 = arith.cmpi slt, %569, %577 : vector<128x4xi32>
    %579 = arith.andi %573, %578 : vector<128x4xi1>
    %cst_243 = arith.constant 0.176776692 : f32
    %cst_244 = arith.constant 0.000000e+00 : f32
    %580 = vector.broadcast %cst_243 : f32 to vector<128x4xf32>
    %581 = vector.broadcast %cst_244 : f32 to vector<128x4xf32>
    %582 = arith.select %579, %580, %581 : vector<128x4xi1>, vector<128x4xf32>
    %583 = arith.truncf %582 : vector<128x4xf32> to vector<128x4xbf16>
    %584 = tpu.iota {dimensions = array<i32: 1>} : vector<4x128xi32>
    %585 = tpu.iota {dimensions = array<i32: 0>} : vector<4x128xi32>
    %c32_i32_245 = arith.constant 32 : i32
    %586 = vector.broadcast %c32_i32_245 : i32 to vector<4x128xi32>
    %587 = arith.muli %585, %586 : vector<4x128xi32>
    %588 = arith.cmpi sge, %584, %587 : vector<4x128xi32>
    %c1_i32_246 = arith.constant 1 : i32
    %589 = vector.broadcast %c1_i32_246 : i32 to vector<4x128xi32>
    %590 = arith.addi %585, %589 : vector<4x128xi32>
    %c32_i32_247 = arith.constant 32 : i32
    %591 = vector.broadcast %c32_i32_247 : i32 to vector<4x128xi32>
    %592 = arith.muli %590, %591 : vector<4x128xi32>
    %593 = arith.cmpi slt, %584, %592 : vector<4x128xi32>
    %594 = arith.andi %588, %593 : vector<4x128xi1>
    %cst_248 = arith.constant 1.000000e+00 : f32
    %cst_249 = arith.constant 0.000000e+00 : f32
    %595 = vector.broadcast %cst_248 : f32 to vector<4x128xf32>
    %596 = vector.broadcast %cst_249 : f32 to vector<4x128xf32>
    %597 = arith.select %594, %595, %596 : vector<4x128xi1>, vector<4x128xf32>
    %598 = arith.truncf %597 : vector<4x128xf32> to vector<4x128xbf16>
    %c272 = arith.constant 272 : index
    %c0_250 = arith.constant 0 : index
    %599 = vector.load %arg9[%c272, %c0_250] : memref<1168x128xbf16, #tpu.memory_space<vmem>>, vector<128x128xbf16>
    %c16 = arith.constant 16 : index
    %c0_251 = arith.constant 0 : index
    %600 = vector.load %arg13[%c16, %c0_251] : memref<23x128xf32, #tpu.memory_space<vmem>>, vector<1x128xf32>
    %601 = arith.truncf %568 : vector<8x128xf32> to vector<8x128xbf16>
    %cst_252 = arith.constant dense<0.000000e+00> : vector<8x128xf32>
    %602 = tpu.matmul %601, %599, %cst_252 {dimension_numbers = #tpu.dot_dimension_numbers<[1], [0], [0], [1], [0, 0, 1, 1], [], []>} : vector<8x128xbf16>, vector<128x128xbf16>, vector<8x128xf32> -> vector<8x128xf32>
    %603 = vector.broadcast %600 : vector<1x128xf32> to vector<8x128xf32>
    %604 = arith.addf %602, %603 : vector<8x128xf32>
    %605 = tpu.concatenate %147, %289, %431 in 0 : vector<8x128xf32>, vector<8x128xf32>, vector<8x128xf32> -> vector<24x128xf32>
    %c512 = arith.constant 512 : index
    %c0_253 = arith.constant 0 : index
    %606 = vector.load %arg8[%c512, %c0_253] : memref<768x256xbf16, #tpu.memory_space<vmem>>, vector<128x256xbf16>
    %c12_254 = arith.constant 12 : index
    %c0_255 = arith.constant 0 : index
    %607 = vector.load %arg12[%c12_254, %c0_255] : memref<19x256xf32, #tpu.memory_space<vmem>>, vector<1x256xf32>
    %608 = arith.truncf %605 : vector<24x128xf32> to vector<24x128xbf16>
    %cst_256 = arith.constant dense<0.000000e+00> : vector<24x256xf32>
    %609 = tpu.matmul %608, %606, %cst_256 {dimension_numbers = #tpu.dot_dimension_numbers<[1], [0], [0], [1], [0, 0, 1, 1], [], []>} : vector<24x128xbf16>, vector<128x256xbf16>, vector<24x256xf32> -> vector<24x256xf32>
    %610 = vector.broadcast %607 : vector<1x256xf32> to vector<24x256xf32>
    %611 = arith.addf %609, %610 : vector<24x256xf32>
    %612 = vector.extract_strided_slice %611 {offsets = [0, 0], sizes = [24, 128], strides = [1, 1]} : vector<24x256xf32> to vector<24x128xf32>
    %613 = vector.extract_strided_slice %611 {offsets = [0, 128], sizes = [24, 128], strides = [1, 1]} : vector<24x256xf32> to vector<24x128xf32>
    %614 = tpu.concatenate %604, %604, %604 in 0 : vector<8x128xf32>, vector<8x128xf32>, vector<8x128xf32> -> vector<24x128xf32>
    %615 = arith.mulf %614, %612 : vector<24x128xf32>
    %616 = arith.truncf %615 : vector<24x128xf32> to vector<24x128xbf16>
    %cst_257 = arith.constant dense<0.000000e+00> : vector<24x4xf32>
    %617 = tpu.matmul %616, %583, %cst_257 {dimension_numbers = #tpu.dot_dimension_numbers<[1], [0], [0], [1], [0, 0, 1, 1], [], []>} : vector<24x128xbf16>, vector<128x4xbf16>, vector<24x4xf32> -> vector<24x4xf32>
    %618 = vector.extract_strided_slice %617 {offsets = [0, 0], sizes = [8, 4], strides = [1, 1]} : vector<24x4xf32> to vector<8x4xf32>
    %619 = vector.extract_strided_slice %617 {offsets = [8, 0], sizes = [8, 4], strides = [1, 1]} : vector<24x4xf32> to vector<8x4xf32>
    %620 = vector.extract_strided_slice %617 {offsets = [16, 0], sizes = [8, 4], strides = [1, 1]} : vector<24x4xf32> to vector<8x4xf32>
    %621 = arith.maximumf %618, %619 : vector<8x4xf32>
    %622 = arith.maximumf %621, %620 : vector<8x4xf32>
    %623 = arith.subf %618, %622 : vector<8x4xf32>
    %624 = math.exp %623 : vector<8x4xf32>
    %625 = arith.subf %619, %622 : vector<8x4xf32>
    %626 = math.exp %625 : vector<8x4xf32>
    %627 = arith.subf %620, %622 : vector<8x4xf32>
    %628 = math.exp %627 : vector<8x4xf32>
    %629 = arith.addf %624, %626 : vector<8x4xf32>
    %630 = arith.addf %629, %628 : vector<8x4xf32>
    %631 = tpu.reciprocal %630 {approx = true} : vector<8x4xf32> -> vector<8x4xf32>
    %632 = arith.mulf %624, %631 : vector<8x4xf32>
    %633 = arith.mulf %626, %631 : vector<8x4xf32>
    %634 = arith.mulf %628, %631 : vector<8x4xf32>
    %635 = tpu.concatenate %632, %633, %634 in 0 : vector<8x4xf32>, vector<8x4xf32>, vector<8x4xf32> -> vector<24x4xf32>
    %636 = arith.truncf %635 : vector<24x4xf32> to vector<24x4xbf16>
    %cst_258 = arith.constant dense<0.000000e+00> : vector<24x128xf32>
    %637 = tpu.matmul %636, %598, %cst_258 {dimension_numbers = #tpu.dot_dimension_numbers<[1], [0], [0], [1], [0, 0, 1, 1], [], []>} : vector<24x4xbf16>, vector<4x128xbf16>, vector<24x128xf32> -> vector<24x128xf32>
    %638 = arith.mulf %637, %613 : vector<24x128xf32>
    %639 = vector.extract_strided_slice %638 {offsets = [0, 0], sizes = [8, 128], strides = [1, 1]} : vector<24x128xf32> to vector<8x128xf32>
    %640 = vector.extract_strided_slice %638 {offsets = [8, 0], sizes = [8, 128], strides = [1, 1]} : vector<24x128xf32> to vector<8x128xf32>
    %641 = arith.addf %639, %640 : vector<8x128xf32>
    %642 = vector.extract_strided_slice %638 {offsets = [16, 0], sizes = [8, 128], strides = [1, 1]} : vector<24x128xf32> to vector<8x128xf32>
    %643 = arith.addf %641, %642 : vector<8x128xf32>
    %c400 = arith.constant 400 : index
    %c0_259 = arith.constant 0 : index
    %644 = vector.load %arg9[%c400, %c0_259] : memref<1168x128xbf16, #tpu.memory_space<vmem>>, vector<128x128xbf16>
    %c17 = arith.constant 17 : index
    %c0_260 = arith.constant 0 : index
    %645 = vector.load %arg13[%c17, %c0_260] : memref<23x128xf32, #tpu.memory_space<vmem>>, vector<1x128xf32>
    %646 = arith.truncf %643 : vector<8x128xf32> to vector<8x128xbf16>
    %cst_261 = arith.constant dense<0.000000e+00> : vector<8x128xf32>
    %647 = tpu.matmul %646, %644, %cst_261 {dimension_numbers = #tpu.dot_dimension_numbers<[1], [0], [0], [1], [0, 0, 1, 1], [], []>} : vector<8x128xbf16>, vector<128x128xbf16>, vector<8x128xf32> -> vector<8x128xf32>
    %648 = vector.broadcast %645 : vector<1x128xf32> to vector<8x128xf32>
    %649 = arith.addf %647, %648 : vector<8x128xf32>
    %c640 = arith.constant 640 : index
    %c0_262 = arith.constant 0 : index
    %650 = vector.load %arg8[%c640, %c0_262] : memref<768x256xbf16, #tpu.memory_space<vmem>>, vector<128x256xbf16>
    %c13_263 = arith.constant 13 : index
    %c0_264 = arith.constant 0 : index
    %651 = vector.load %arg12[%c13_263, %c0_264] : memref<19x256xf32, #tpu.memory_space<vmem>>, vector<1x256xf32>
    %c14_265 = arith.constant 14 : index
    %c0_266 = arith.constant 0 : index
    %652 = vector.load %arg12[%c14_265, %c0_266] : memref<19x256xf32, #tpu.memory_space<vmem>>, vector<1x256xf32>
    %c15_267 = arith.constant 15 : index
    %c0_268 = arith.constant 0 : index
    %653 = vector.load %arg12[%c15_267, %c0_268] : memref<19x256xf32, #tpu.memory_space<vmem>>, vector<1x256xf32>
    %654 = arith.truncf %649 : vector<8x128xf32> to vector<8x128xbf16>
    %cst_269 = arith.constant dense<0.000000e+00> : vector<8x256xf32>
    %655 = tpu.matmul %654, %650, %cst_269 {dimension_numbers = #tpu.dot_dimension_numbers<[1], [0], [0], [1], [0, 0, 1, 1], [], []>} : vector<8x128xbf16>, vector<128x256xbf16>, vector<8x256xf32> -> vector<8x256xf32>
    %656 = vector.broadcast %651 : vector<1x256xf32> to vector<8x256xf32>
    %657 = arith.addf %655, %656 : vector<8x256xf32>
    %cst_270 = arith.constant dense<0.000000e+00> : vector<8xf32>
    %658 = vector.multi_reduction <add>, %657, %cst_270 [1] : vector<8x256xf32> to vector<8xf32>
    %659 = vector.shape_cast %658 : vector<8xf32> to vector<8x1xf32>
    %cst_271 = arith.constant 2.560000e+02 : f32
    %660 = vector.broadcast %cst_271 : f32 to vector<8x1xf32>
    %661 = arith.divf %659, %660 : vector<8x1xf32>
    %662 = vector.broadcast %661 : vector<8x1xf32> to vector<8x256xf32>
    %663 = arith.subf %657, %662 : vector<8x256xf32>
    %664 = arith.mulf %663, %663 : vector<8x256xf32>
    %cst_272 = arith.constant dense<0.000000e+00> : vector<8xf32>
    %665 = vector.multi_reduction <add>, %664, %cst_272 [1] : vector<8x256xf32> to vector<8xf32>
    %666 = vector.shape_cast %665 : vector<8xf32> to vector<8x1xf32>
    %cst_273 = arith.constant 2.560000e+02 : f32
    %667 = vector.broadcast %cst_273 : f32 to vector<8x1xf32>
    %668 = arith.divf %666, %667 : vector<8x1xf32>
    %669 = vector.broadcast %661 : vector<8x1xf32> to vector<8x256xf32>
    %670 = arith.subf %657, %669 : vector<8x256xf32>
    %cst_274 = arith.constant 9.99999974E-6 : f32
    %671 = vector.broadcast %cst_274 : f32 to vector<8x1xf32>
    %672 = arith.addf %668, %671 : vector<8x1xf32>
    %673 = math.rsqrt %672 : vector<8x1xf32>
    %674 = vector.broadcast %673 : vector<8x1xf32> to vector<8x256xf32>
    %675 = arith.mulf %670, %674 : vector<8x256xf32>
    %676 = vector.broadcast %652 : vector<1x256xf32> to vector<8x256xf32>
    %677 = arith.mulf %675, %676 : vector<8x256xf32>
    %678 = vector.broadcast %653 : vector<1x256xf32> to vector<8x256xf32>
    %679 = arith.addf %677, %678 : vector<8x256xf32>
    %cst_275 = arith.constant 5.000000e-01 : f32
    %680 = vector.broadcast %cst_275 : f32 to vector<8x256xf32>
    %681 = arith.mulf %680, %679 : vector<8x256xf32>
    %cst_276 = arith.constant 4.471500e-02 : f32
    %682 = vector.broadcast %cst_276 : f32 to vector<8x256xf32>
    %683 = arith.mulf %682, %679 : vector<8x256xf32>
    %684 = arith.mulf %683, %679 : vector<8x256xf32>
    %685 = arith.mulf %684, %679 : vector<8x256xf32>
    %686 = arith.addf %679, %685 : vector<8x256xf32>
    %cst_277 = arith.constant 0.797884583 : f32
    %687 = vector.broadcast %cst_277 : f32 to vector<8x256xf32>
    %688 = arith.mulf %687, %686 : vector<8x256xf32>
    %689 = math.tanh %688 : vector<8x256xf32>
    %cst_278 = arith.constant 1.000000e+00 : f32
    %690 = vector.broadcast %cst_278 : f32 to vector<8x256xf32>
    %691 = arith.addf %690, %689 : vector<8x256xf32>
    %692 = arith.mulf %681, %691 : vector<8x256xf32>
    %c528 = arith.constant 528 : index
    %c0_279 = arith.constant 0 : index
    %693 = vector.load %arg9[%c528, %c0_279] : memref<1168x128xbf16, #tpu.memory_space<vmem>>, vector<256x128xbf16>
    %c18 = arith.constant 18 : index
    %c0_280 = arith.constant 0 : index
    %694 = vector.load %arg13[%c18, %c0_280] : memref<23x128xf32, #tpu.memory_space<vmem>>, vector<1x128xf32>
    %695 = arith.truncf %692 : vector<8x256xf32> to vector<8x256xbf16>
    %cst_281 = arith.constant dense<0.000000e+00> : vector<8x128xf32>
    %696 = tpu.matmul %695, %693, %cst_281 {dimension_numbers = #tpu.dot_dimension_numbers<[1], [0], [0], [1], [0, 0, 1, 1], [], []>} : vector<8x256xbf16>, vector<256x128xbf16>, vector<8x128xf32> -> vector<8x128xf32>
    %697 = vector.broadcast %694 : vector<1x128xf32> to vector<8x128xf32>
    %698 = arith.addf %696, %697 : vector<8x128xf32>
    %699 = tpu.concatenate %698, %568 in 1 : vector<8x128xf32>, vector<8x128xf32> -> vector<8x256xf32>
    %c0_i32_282 = arith.constant 0 : i32
    %700 = tpu.memref_slice %arg21[%c0_i32_282] : memref<3x!tpu.dma_semaphore, #tpu.memory_space<semaphore_mem>> -> memref<1x!tpu.dma_semaphore, #tpu.memory_space<semaphore_mem>>
    %701 = tpu.memref_squeeze %700 : memref<1x!tpu.dma_semaphore, #tpu.memory_space<semaphore_mem>> -> memref<!tpu.dma_semaphore, #tpu.memory_space<semaphore_mem>>
    tpu.wait_dma2 semaphore(%701 : memref<!tpu.dma_semaphore, #tpu.memory_space<semaphore_mem>>) src(%arg14 : memref<256x1024xbf16, #tpu.memory_space<any>>) dst(%arg18 : memref<256x1024xbf16, #tpu.memory_space<vmem>>)
    %c0_283 = arith.constant 0 : index
    %c0_284 = arith.constant 0 : index
    %702 = vector.load %arg18[%c0_283, %c0_284] : memref<256x1024xbf16, #tpu.memory_space<vmem>>, vector<256x1024xbf16>
    %c0_285 = arith.constant 0 : index
    %c0_286 = arith.constant 0 : index
    %703 = vector.load %arg10[%c0_285, %c0_286] : memref<3x1024xf32, #tpu.memory_space<vmem>>, vector<1x1024xf32>
    %c1_287 = arith.constant 1 : index
    %c0_288 = arith.constant 0 : index
    %704 = vector.load %arg10[%c1_287, %c0_288] : memref<3x1024xf32, #tpu.memory_space<vmem>>, vector<1x1024xf32>
    %c2_289 = arith.constant 2 : index
    %c0_290 = arith.constant 0 : index
    %705 = vector.load %arg10[%c2_289, %c0_290] : memref<3x1024xf32, #tpu.memory_space<vmem>>, vector<1x1024xf32>
    %706 = arith.truncf %699 : vector<8x256xf32> to vector<8x256xbf16>
    %cst_291 = arith.constant dense<0.000000e+00> : vector<8x1024xf32>
    %707 = tpu.matmul %706, %702, %cst_291 {dimension_numbers = #tpu.dot_dimension_numbers<[1], [0], [0], [1], [0, 0, 1, 1], [], []>} : vector<8x256xbf16>, vector<256x1024xbf16>, vector<8x1024xf32> -> vector<8x1024xf32>
    %708 = vector.broadcast %703 : vector<1x1024xf32> to vector<8x1024xf32>
    %709 = arith.addf %707, %708 : vector<8x1024xf32>
    %cst_292 = arith.constant dense<0.000000e+00> : vector<8xf32>
    %710 = vector.multi_reduction <add>, %709, %cst_292 [1] : vector<8x1024xf32> to vector<8xf32>
    %711 = vector.shape_cast %710 : vector<8xf32> to vector<8x1xf32>
    %cst_293 = arith.constant 1.024000e+03 : f32
    %712 = vector.broadcast %cst_293 : f32 to vector<8x1xf32>
    %713 = arith.divf %711, %712 : vector<8x1xf32>
    %714 = vector.broadcast %713 : vector<8x1xf32> to vector<8x1024xf32>
    %715 = arith.subf %709, %714 : vector<8x1024xf32>
    %716 = arith.mulf %715, %715 : vector<8x1024xf32>
    %cst_294 = arith.constant dense<0.000000e+00> : vector<8xf32>
    %717 = vector.multi_reduction <add>, %716, %cst_294 [1] : vector<8x1024xf32> to vector<8xf32>
    %718 = vector.shape_cast %717 : vector<8xf32> to vector<8x1xf32>
    %cst_295 = arith.constant 1.024000e+03 : f32
    %719 = vector.broadcast %cst_295 : f32 to vector<8x1xf32>
    %720 = arith.divf %718, %719 : vector<8x1xf32>
    %721 = vector.broadcast %713 : vector<8x1xf32> to vector<8x1024xf32>
    %722 = arith.subf %709, %721 : vector<8x1024xf32>
    %cst_296 = arith.constant 9.99999974E-6 : f32
    %723 = vector.broadcast %cst_296 : f32 to vector<8x1xf32>
    %724 = arith.addf %720, %723 : vector<8x1xf32>
    %725 = math.rsqrt %724 : vector<8x1xf32>
    %726 = vector.broadcast %725 : vector<8x1xf32> to vector<8x1024xf32>
    %727 = arith.mulf %722, %726 : vector<8x1024xf32>
    %728 = vector.broadcast %704 : vector<1x1024xf32> to vector<8x1024xf32>
    %729 = arith.mulf %727, %728 : vector<8x1024xf32>
    %730 = vector.broadcast %705 : vector<1x1024xf32> to vector<8x1024xf32>
    %731 = arith.addf %729, %730 : vector<8x1024xf32>
    %cst_297 = arith.constant 5.000000e-01 : f32
    %732 = vector.broadcast %cst_297 : f32 to vector<8x1024xf32>
    %733 = arith.mulf %732, %731 : vector<8x1024xf32>
    %cst_298 = arith.constant 4.471500e-02 : f32
    %734 = vector.broadcast %cst_298 : f32 to vector<8x1024xf32>
    %735 = arith.mulf %734, %731 : vector<8x1024xf32>
    %736 = arith.mulf %735, %731 : vector<8x1024xf32>
    %737 = arith.mulf %736, %731 : vector<8x1024xf32>
    %738 = arith.addf %731, %737 : vector<8x1024xf32>
    %cst_299 = arith.constant 0.797884583 : f32
    %739 = vector.broadcast %cst_299 : f32 to vector<8x1024xf32>
    %740 = arith.mulf %739, %738 : vector<8x1024xf32>
    %741 = math.tanh %740 : vector<8x1024xf32>
    %cst_300 = arith.constant 1.000000e+00 : f32
    %742 = vector.broadcast %cst_300 : f32 to vector<8x1024xf32>
    %743 = arith.addf %742, %741 : vector<8x1024xf32>
    %744 = arith.mulf %733, %743 : vector<8x1024xf32>
    %c1_i32_301 = arith.constant 1 : i32
    %745 = tpu.memref_slice %arg21[%c1_i32_301] : memref<3x!tpu.dma_semaphore, #tpu.memory_space<semaphore_mem>> -> memref<1x!tpu.dma_semaphore, #tpu.memory_space<semaphore_mem>>
    %746 = tpu.memref_squeeze %745 : memref<1x!tpu.dma_semaphore, #tpu.memory_space<semaphore_mem>> -> memref<!tpu.dma_semaphore, #tpu.memory_space<semaphore_mem>>
    tpu.wait_dma2 semaphore(%746 : memref<!tpu.dma_semaphore, #tpu.memory_space<semaphore_mem>>) src(%arg15 : memref<1024x512xbf16, #tpu.memory_space<any>>) dst(%arg19 : memref<1024x512xbf16, #tpu.memory_space<vmem>>)
    %c0_302 = arith.constant 0 : index
    %c0_303 = arith.constant 0 : index
    %747 = vector.load %arg19[%c0_302, %c0_303] : memref<1024x512xbf16, #tpu.memory_space<vmem>>, vector<1024x512xbf16>
    %c12_304 = arith.constant 12 : index
    %c0_305 = arith.constant 0 : index
    %748 = vector.load %arg11[%c12_304, %c0_305] : memref<15x512xf32, #tpu.memory_space<vmem>>, vector<1x512xf32>
    %c13_306 = arith.constant 13 : index
    %c0_307 = arith.constant 0 : index
    %749 = vector.load %arg11[%c13_306, %c0_307] : memref<15x512xf32, #tpu.memory_space<vmem>>, vector<1x512xf32>
    %c14_308 = arith.constant 14 : index
    %c0_309 = arith.constant 0 : index
    %750 = vector.load %arg11[%c14_308, %c0_309] : memref<15x512xf32, #tpu.memory_space<vmem>>, vector<1x512xf32>
    %751 = arith.truncf %744 : vector<8x1024xf32> to vector<8x1024xbf16>
    %cst_310 = arith.constant dense<0.000000e+00> : vector<8x512xf32>
    %752 = tpu.matmul %751, %747, %cst_310 {dimension_numbers = #tpu.dot_dimension_numbers<[1], [0], [0], [1], [0, 0, 1, 1], [], []>} : vector<8x1024xbf16>, vector<1024x512xbf16>, vector<8x512xf32> -> vector<8x512xf32>
    %753 = vector.broadcast %748 : vector<1x512xf32> to vector<8x512xf32>
    %754 = arith.addf %752, %753 : vector<8x512xf32>
    %cst_311 = arith.constant dense<0.000000e+00> : vector<8xf32>
    %755 = vector.multi_reduction <add>, %754, %cst_311 [1] : vector<8x512xf32> to vector<8xf32>
    %756 = vector.shape_cast %755 : vector<8xf32> to vector<8x1xf32>
    %cst_312 = arith.constant 5.120000e+02 : f32
    %757 = vector.broadcast %cst_312 : f32 to vector<8x1xf32>
    %758 = arith.divf %756, %757 : vector<8x1xf32>
    %759 = vector.broadcast %758 : vector<8x1xf32> to vector<8x512xf32>
    %760 = arith.subf %754, %759 : vector<8x512xf32>
    %761 = arith.mulf %760, %760 : vector<8x512xf32>
    %cst_313 = arith.constant dense<0.000000e+00> : vector<8xf32>
    %762 = vector.multi_reduction <add>, %761, %cst_313 [1] : vector<8x512xf32> to vector<8xf32>
    %763 = vector.shape_cast %762 : vector<8xf32> to vector<8x1xf32>
    %cst_314 = arith.constant 5.120000e+02 : f32
    %764 = vector.broadcast %cst_314 : f32 to vector<8x1xf32>
    %765 = arith.divf %763, %764 : vector<8x1xf32>
    %766 = vector.broadcast %758 : vector<8x1xf32> to vector<8x512xf32>
    %767 = arith.subf %754, %766 : vector<8x512xf32>
    %cst_315 = arith.constant 9.99999974E-6 : f32
    %768 = vector.broadcast %cst_315 : f32 to vector<8x1xf32>
    %769 = arith.addf %765, %768 : vector<8x1xf32>
    %770 = math.rsqrt %769 : vector<8x1xf32>
    %771 = vector.broadcast %770 : vector<8x1xf32> to vector<8x512xf32>
    %772 = arith.mulf %767, %771 : vector<8x512xf32>
    %773 = vector.broadcast %749 : vector<1x512xf32> to vector<8x512xf32>
    %774 = arith.mulf %772, %773 : vector<8x512xf32>
    %775 = vector.broadcast %750 : vector<1x512xf32> to vector<8x512xf32>
    %776 = arith.addf %774, %775 : vector<8x512xf32>
    %cst_316 = arith.constant 5.000000e-01 : f32
    %777 = vector.broadcast %cst_316 : f32 to vector<8x512xf32>
    %778 = arith.mulf %777, %776 : vector<8x512xf32>
    %cst_317 = arith.constant 4.471500e-02 : f32
    %779 = vector.broadcast %cst_317 : f32 to vector<8x512xf32>
    %780 = arith.mulf %779, %776 : vector<8x512xf32>
    %781 = arith.mulf %780, %776 : vector<8x512xf32>
    %782 = arith.mulf %781, %776 : vector<8x512xf32>
    %783 = arith.addf %776, %782 : vector<8x512xf32>
    %cst_318 = arith.constant 0.797884583 : f32
    %784 = vector.broadcast %cst_318 : f32 to vector<8x512xf32>
    %785 = arith.mulf %784, %783 : vector<8x512xf32>
    %786 = math.tanh %785 : vector<8x512xf32>
    %cst_319 = arith.constant 1.000000e+00 : f32
    %787 = vector.broadcast %cst_319 : f32 to vector<8x512xf32>
    %788 = arith.addf %787, %786 : vector<8x512xf32>
    %789 = arith.mulf %778, %788 : vector<8x512xf32>
    %c2_i32_320 = arith.constant 2 : i32
    %790 = tpu.memref_slice %arg21[%c2_i32_320] : memref<3x!tpu.dma_semaphore, #tpu.memory_space<semaphore_mem>> -> memref<1x!tpu.dma_semaphore, #tpu.memory_space<semaphore_mem>>
    %791 = tpu.memref_squeeze %790 : memref<1x!tpu.dma_semaphore, #tpu.memory_space<semaphore_mem>> -> memref<!tpu.dma_semaphore, #tpu.memory_space<semaphore_mem>>
    tpu.wait_dma2 semaphore(%791 : memref<!tpu.dma_semaphore, #tpu.memory_space<semaphore_mem>>) src(%arg16 : memref<512x256xbf16, #tpu.memory_space<any>>) dst(%arg20 : memref<512x256xbf16, #tpu.memory_space<vmem>>)
    %c0_321 = arith.constant 0 : index
    %c0_322 = arith.constant 0 : index
    %792 = vector.load %arg20[%c0_321, %c0_322] : memref<512x256xbf16, #tpu.memory_space<vmem>>, vector<512x256xbf16>
    %c16_323 = arith.constant 16 : index
    %c0_324 = arith.constant 0 : index
    %793 = vector.load %arg12[%c16_323, %c0_324] : memref<19x256xf32, #tpu.memory_space<vmem>>, vector<1x256xf32>
    %c17_325 = arith.constant 17 : index
    %c0_326 = arith.constant 0 : index
    %794 = vector.load %arg12[%c17_325, %c0_326] : memref<19x256xf32, #tpu.memory_space<vmem>>, vector<1x256xf32>
    %c18_327 = arith.constant 18 : index
    %c0_328 = arith.constant 0 : index
    %795 = vector.load %arg12[%c18_327, %c0_328] : memref<19x256xf32, #tpu.memory_space<vmem>>, vector<1x256xf32>
    %796 = arith.truncf %789 : vector<8x512xf32> to vector<8x512xbf16>
    %cst_329 = arith.constant dense<0.000000e+00> : vector<8x256xf32>
    %797 = tpu.matmul %796, %792, %cst_329 {dimension_numbers = #tpu.dot_dimension_numbers<[1], [0], [0], [1], [0, 0, 1, 1], [], []>} : vector<8x512xbf16>, vector<512x256xbf16>, vector<8x256xf32> -> vector<8x256xf32>
    %798 = vector.broadcast %793 : vector<1x256xf32> to vector<8x256xf32>
    %799 = arith.addf %797, %798 : vector<8x256xf32>
    %cst_330 = arith.constant dense<0.000000e+00> : vector<8xf32>
    %800 = vector.multi_reduction <add>, %799, %cst_330 [1] : vector<8x256xf32> to vector<8xf32>
    %801 = vector.shape_cast %800 : vector<8xf32> to vector<8x1xf32>
    %cst_331 = arith.constant 2.560000e+02 : f32
    %802 = vector.broadcast %cst_331 : f32 to vector<8x1xf32>
    %803 = arith.divf %801, %802 : vector<8x1xf32>
    %804 = vector.broadcast %803 : vector<8x1xf32> to vector<8x256xf32>
    %805 = arith.subf %799, %804 : vector<8x256xf32>
    %806 = arith.mulf %805, %805 : vector<8x256xf32>
    %cst_332 = arith.constant dense<0.000000e+00> : vector<8xf32>
    %807 = vector.multi_reduction <add>, %806, %cst_332 [1] : vector<8x256xf32> to vector<8xf32>
    %808 = vector.shape_cast %807 : vector<8xf32> to vector<8x1xf32>
    %cst_333 = arith.constant 2.560000e+02 : f32
    %809 = vector.broadcast %cst_333 : f32 to vector<8x1xf32>
    %810 = arith.divf %808, %809 : vector<8x1xf32>
    %811 = vector.broadcast %803 : vector<8x1xf32> to vector<8x256xf32>
    %812 = arith.subf %799, %811 : vector<8x256xf32>
    %cst_334 = arith.constant 9.99999974E-6 : f32
    %813 = vector.broadcast %cst_334 : f32 to vector<8x1xf32>
    %814 = arith.addf %810, %813 : vector<8x1xf32>
    %815 = math.rsqrt %814 : vector<8x1xf32>
    %816 = vector.broadcast %815 : vector<8x1xf32> to vector<8x256xf32>
    %817 = arith.mulf %812, %816 : vector<8x256xf32>
    %818 = vector.broadcast %794 : vector<1x256xf32> to vector<8x256xf32>
    %819 = arith.mulf %817, %818 : vector<8x256xf32>
    %820 = vector.broadcast %795 : vector<1x256xf32> to vector<8x256xf32>
    %821 = arith.addf %819, %820 : vector<8x256xf32>
    %cst_335 = arith.constant 5.000000e-01 : f32
    %822 = vector.broadcast %cst_335 : f32 to vector<8x256xf32>
    %823 = arith.mulf %822, %821 : vector<8x256xf32>
    %cst_336 = arith.constant 4.471500e-02 : f32
    %824 = vector.broadcast %cst_336 : f32 to vector<8x256xf32>
    %825 = arith.mulf %824, %821 : vector<8x256xf32>
    %826 = arith.mulf %825, %821 : vector<8x256xf32>
    %827 = arith.mulf %826, %821 : vector<8x256xf32>
    %828 = arith.addf %821, %827 : vector<8x256xf32>
    %cst_337 = arith.constant 0.797884583 : f32
    %829 = vector.broadcast %cst_337 : f32 to vector<8x256xf32>
    %830 = arith.mulf %829, %828 : vector<8x256xf32>
    %831 = math.tanh %830 : vector<8x256xf32>
    %cst_338 = arith.constant 1.000000e+00 : f32
    %832 = vector.broadcast %cst_338 : f32 to vector<8x256xf32>
    %833 = arith.addf %832, %831 : vector<8x256xf32>
    %834 = arith.mulf %823, %833 : vector<8x256xf32>
    %c784 = arith.constant 784 : index
    %c0_339 = arith.constant 0 : index
    %835 = vector.load %arg9[%c784, %c0_339] : memref<1168x128xbf16, #tpu.memory_space<vmem>>, vector<256x128xbf16>
    %c19 = arith.constant 19 : index
    %c0_340 = arith.constant 0 : index
    %836 = vector.load %arg13[%c19, %c0_340] : memref<23x128xf32, #tpu.memory_space<vmem>>, vector<1x128xf32>
    %c20 = arith.constant 20 : index
    %c0_341 = arith.constant 0 : index
    %837 = vector.load %arg13[%c20, %c0_341] : memref<23x128xf32, #tpu.memory_space<vmem>>, vector<1x128xf32>
    %c21 = arith.constant 21 : index
    %c0_342 = arith.constant 0 : index
    %838 = vector.load %arg13[%c21, %c0_342] : memref<23x128xf32, #tpu.memory_space<vmem>>, vector<1x128xf32>
    %839 = arith.truncf %834 : vector<8x256xf32> to vector<8x256xbf16>
    %cst_343 = arith.constant dense<0.000000e+00> : vector<8x128xf32>
    %840 = tpu.matmul %839, %835, %cst_343 {dimension_numbers = #tpu.dot_dimension_numbers<[1], [0], [0], [1], [0, 0, 1, 1], [], []>} : vector<8x256xbf16>, vector<256x128xbf16>, vector<8x128xf32> -> vector<8x128xf32>
    %841 = vector.broadcast %836 : vector<1x128xf32> to vector<8x128xf32>
    %842 = arith.addf %840, %841 : vector<8x128xf32>
    %cst_344 = arith.constant dense<0.000000e+00> : vector<8xf32>
    %843 = vector.multi_reduction <add>, %842, %cst_344 [1] : vector<8x128xf32> to vector<8xf32>
    %844 = vector.shape_cast %843 : vector<8xf32> to vector<8x1xf32>
    %cst_345 = arith.constant 1.280000e+02 : f32
    %845 = vector.broadcast %cst_345 : f32 to vector<8x1xf32>
    %846 = arith.divf %844, %845 : vector<8x1xf32>
    %847 = vector.broadcast %846 : vector<8x1xf32> to vector<8x128xf32>
    %848 = arith.subf %842, %847 : vector<8x128xf32>
    %849 = arith.mulf %848, %848 : vector<8x128xf32>
    %cst_346 = arith.constant dense<0.000000e+00> : vector<8xf32>
    %850 = vector.multi_reduction <add>, %849, %cst_346 [1] : vector<8x128xf32> to vector<8xf32>
    %851 = vector.shape_cast %850 : vector<8xf32> to vector<8x1xf32>
    %cst_347 = arith.constant 1.280000e+02 : f32
    %852 = vector.broadcast %cst_347 : f32 to vector<8x1xf32>
    %853 = arith.divf %851, %852 : vector<8x1xf32>
    %854 = vector.broadcast %846 : vector<8x1xf32> to vector<8x128xf32>
    %855 = arith.subf %842, %854 : vector<8x128xf32>
    %cst_348 = arith.constant 9.99999974E-6 : f32
    %856 = vector.broadcast %cst_348 : f32 to vector<8x1xf32>
    %857 = arith.addf %853, %856 : vector<8x1xf32>
    %858 = math.rsqrt %857 : vector<8x1xf32>
    %859 = vector.broadcast %858 : vector<8x1xf32> to vector<8x128xf32>
    %860 = arith.mulf %855, %859 : vector<8x128xf32>
    %861 = vector.broadcast %837 : vector<1x128xf32> to vector<8x128xf32>
    %862 = arith.mulf %860, %861 : vector<8x128xf32>
    %863 = vector.broadcast %838 : vector<1x128xf32> to vector<8x128xf32>
    %864 = arith.addf %862, %863 : vector<8x128xf32>
    %cst_349 = arith.constant 5.000000e-01 : f32
    %865 = vector.broadcast %cst_349 : f32 to vector<8x128xf32>
    %866 = arith.mulf %865, %864 : vector<8x128xf32>
    %cst_350 = arith.constant 4.471500e-02 : f32
    %867 = vector.broadcast %cst_350 : f32 to vector<8x128xf32>
    %868 = arith.mulf %867, %864 : vector<8x128xf32>
    %869 = arith.mulf %868, %864 : vector<8x128xf32>
    %870 = arith.mulf %869, %864 : vector<8x128xf32>
    %871 = arith.addf %864, %870 : vector<8x128xf32>
    %cst_351 = arith.constant 0.797884583 : f32
    %872 = vector.broadcast %cst_351 : f32 to vector<8x128xf32>
    %873 = arith.mulf %872, %871 : vector<8x128xf32>
    %874 = math.tanh %873 : vector<8x128xf32>
    %cst_352 = arith.constant 1.000000e+00 : f32
    %875 = vector.broadcast %cst_352 : f32 to vector<8x128xf32>
    %876 = arith.addf %875, %874 : vector<8x128xf32>
    %877 = arith.mulf %866, %876 : vector<8x128xf32>
    %c1040 = arith.constant 1040 : index
    %c0_353 = arith.constant 0 : index
    %878 = vector.load %arg9[%c1040, %c0_353] : memref<1168x128xbf16, #tpu.memory_space<vmem>>, vector<128x128xbf16>
    %c22 = arith.constant 22 : index
    %c0_354 = arith.constant 0 : index
    %879 = vector.load %arg13[%c22, %c0_354] : memref<23x128xf32, #tpu.memory_space<vmem>>, vector<1x128xf32>
    %880 = arith.truncf %877 : vector<8x128xf32> to vector<8x128xbf16>
    %cst_355 = arith.constant dense<0.000000e+00> : vector<8x128xf32>
    %881 = tpu.matmul %880, %878, %cst_355 {dimension_numbers = #tpu.dot_dimension_numbers<[1], [0], [0], [1], [0, 0, 1, 1], [], []>} : vector<8x128xbf16>, vector<128x128xbf16>, vector<8x128xf32> -> vector<8x128xf32>
    %882 = vector.broadcast %879 : vector<1x128xf32> to vector<8x128xf32>
    %883 = arith.addf %881, %882 : vector<8x128xf32>
    %c0_356 = arith.constant 0 : index
    %c0_357 = arith.constant 0 : index
    %884 = vector.load %arg17[%c0_356, %c0_357] : memref<8x128xf32, #tpu.memory_space<vmem>>, vector<8x128xf32>
    tpu.vector_store %arg17[%c0_356, %c0_357], %883 {strides = array<i32>} : memref<8x128xf32, #tpu.memory_space<vmem>>, vector<8x128xf32>,
    return
  }
  func.func @transform_0(%arg0: i32) -> (i32, i32, i32) {
    %c0_i32 = arith.constant 0 : i32
    %c0_i32_0 = arith.constant 0 : i32
    %c0_i32_1 = arith.constant 0 : i32
    %c0_i32_2 = arith.constant 0 : i32
    return %c0_i32, %c0_i32_0, %c0_i32_1 : i32, i32, i32
  }
  func.func @transform_1(%arg0: i32) -> (i32, i32) {
    %c0_i32 = arith.constant 0 : i32
    %c0_i32_0 = arith.constant 0 : i32
    %c0_i32_1 = arith.constant 0 : i32
    return %c0_i32, %c0_i32_0 : i32, i32
  }
  func.func @transform_2(%arg0: i32) -> (i32, i32, i32) {
    %c0_i32 = arith.constant 0 : i32
    %c0_i32_0 = arith.constant 0 : i32
    %c0_i32_1 = arith.constant 0 : i32
    %c0_i32_2 = arith.constant 0 : i32
    return %c0_i32, %c0_i32_0, %c0_i32_1 : i32, i32, i32
  }
  func.func @transform_3(%arg0: i32) -> (i32, i32, i32) {
    %c0_i32 = arith.constant 0 : i32
    %c0_i32_0 = arith.constant 0 : i32
    %c0_i32_1 = arith.constant 0 : i32
    %c0_i32_2 = arith.constant 0 : i32
    return %c0_i32, %c0_i32_0, %c0_i32_1 : i32, i32, i32
  }
  func.func @transform_4(%arg0: i32) -> (i32, i32, i32) {
    %c0_i32 = arith.constant 0 : i32
    %c0_i32_0 = arith.constant 0 : i32
    %c0_i32_1 = arith.constant 0 : i32
    %c0_i32_2 = arith.constant 0 : i32
    return %c0_i32, %c0_i32_0, %c0_i32_1 : i32, i32, i32
  }
  func.func @transform_5(%arg0: i32) -> (i32, i32, i32) {
    %c0_i32 = arith.constant 0 : i32
    %c0_i32_0 = arith.constant 0 : i32
    %c0_i32_1 = arith.constant 0 : i32
    %c0_i32_2 = arith.constant 0 : i32
    return %c0_i32, %c0_i32_0, %c0_i32_1 : i32, i32, i32
  }
  func.func @transform_6(%arg0: i32) -> (i32, i32) {
    %c0_i32 = arith.constant 0 : i32
    %c0_i32_0 = arith.constant 0 : i32
    %c0_i32_1 = arith.constant 0 : i32
    return %c0_i32, %c0_i32_0 : i32, i32
  }
  func.func @transform_7(%arg0: i32) -> (i32, i32) {
    %c0_i32 = arith.constant 0 : i32
    %c0_i32_0 = arith.constant 0 : i32
    %c0_i32_1 = arith.constant 0 : i32
    return %c0_i32, %c0_i32_0 : i32, i32
  }
  func.func @transform_8(%arg0: i32) -> (i32, i32) {
    %c0_i32 = arith.constant 0 : i32
    %c0_i32_0 = arith.constant 0 : i32
    %c0_i32_1 = arith.constant 0 : i32
    return %c0_i32, %c0_i32_0 : i32, i32
  }
  func.func @transform_9(%arg0: i32) -> (i32, i32) {
    %c0_i32 = arith.constant 0 : i32
    %c0_i32_0 = arith.constant 0 : i32
    %c0_i32_1 = arith.constant 0 : i32
    return %c0_i32, %c0_i32_0 : i32, i32
  }
  func.func @transform_10(%arg0: i32) -> (i32, i32) {
    %c0_i32 = arith.constant 0 : i32
    %c0_i32_0 = arith.constant 0 : i32
    %c0_i32_1 = arith.constant 0 : i32
    return %c0_i32, %c0_i32_0 : i32, i32
  }
  func.func @transform_11(%arg0: i32) -> (i32, i32) {
    %c0_i32 = arith.constant 0 : i32
    %c0_i32_0 = arith.constant 0 : i32
    %c0_i32_1 = arith.constant 0 : i32
    return %c0_i32, %c0_i32_0 : i32, i32
  }
  func.func @transform_12(%arg0: i32) -> (i32, i32) {
    %c0_i32 = arith.constant 0 : i32
    %c0_i32_0 = arith.constant 0 : i32
    %c0_i32_1 = arith.constant 0 : i32
    return %c0_i32, %c0_i32_0 : i32, i32
  }
  func.func @transform_16(%arg0: i32) -> (i32, i32) {
    %c0_i32 = arith.constant 0 : i32
    %c0_i32_0 = arith.constant 0 : i32
    %c0_i32_1 = arith.constant 0 : i32
    return %c0_i32, %c0_i32_0 : i32, i32
  }
}

</mosaic_0001>

<llo_original>
// kernel: forward.1
$region0: #{forward.1}
  #allocation0 [shape = 'u32[]', space=smem, size = 0x4, offset = 0x4, fixed_abs, tag = 'smem constant byte address 0x4 - core index']
  #allocation1 [shape = 'u32[144,128]{1,0:T(1,128)}', space=vmem, size = 0x12000, scoped, tag = 'internal scratch']
  #allocation2 [shape = 'bf16[256,1024]{1,0:T(8,128)(2,1)}', space=vmem, size = 0x80000, scoped, tag = 'scratch operand']
  #allocation3 [shape = 'bf16[1024,512]{1,0:T(8,128)(2,1)}', space=vmem, size = 0x100000, scoped, tag = 'scratch operand']
  #allocation4 [shape = 'bf16[512,256]{1,0:T(8,128)(2,1)}', space=vmem, size = 0x40000, scoped, tag = 'scratch operand']
  #allocation5 [shape = 's32[3]{0}', space=sflag, size = 0xc, scoped, tag = 'scratch operand']
  #allocation20 [shape = 's32[]', space=sflag, size = 0x4, offset = 0, fixed_abs, tag = 'sflag constant byte address 0x0 - dummy sync flag']
  #allocation21 [shape = 's32[]', space=sflag, size = 0x4, offset = 0, fixed_abs, tag = 'sflag constant byte address 0x0 - dummy sync flag']
  #allocation22 [shape = 'u32[]', space=smem, size = 0x4, offset = 0x44, fixed_abs, tag = 'smem constant byte address 0x44 - assertion arg 0']
  #allocation23 [shape = 'u32[]', space=smem, size = 0x4, offset = 0x48, fixed_abs, tag = 'smem constant byte address 0x48 - assertion arg 1']
  #allocation24 [shape = 's32[]', space=sflag, size = 0x4, offset = 0, fixed_abs, tag = 'sflag constant byte address 0x0 - dummy sync flag']
  #allocation25 [shape = 's32[]', space=sflag, size = 0x4, offset = 0, fixed_abs, tag = 'sflag constant byte address 0x0 - dummy sync flag']
  #allocation26 [shape = 's32[]', space=sflag, size = 0x4, offset = 0, fixed_abs, tag = 'sflag constant byte address 0x0 - dummy sync flag']
  #allocation27 [shape = 's32[]', space=sflag, size = 0x4, offset = 0, fixed_abs, tag = 'sflag constant byte address 0x0 - dummy sync flag']
  %s0 = inlined_call_operand.vmem [shape: f32[3,8,32], index: 0, kind: input, shape index: {}]
  %s1 = inlined_call_operand.vmem [shape: f32[8,16], index: 1, kind: input, shape index: {}]
  %s2 = inlined_call_operand.hbm [shape: bf16[3,32,512], index: 2, kind: input, shape index: {}]
  %s3 = inlined_call_operand.hbm [shape: bf16[3,512,256], index: 3, kind: input, shape index: {}]
  %s4 = inlined_call_operand.hbm [shape: bf16[3,256,128], index: 4, kind: input, shape index: {}]
  %s5 = inlined_call_operand.hbm [shape: bf16[3,160,128], index: 5, kind: input, shape index: {}]
  %s6 = inlined_call_operand.vmem [shape: bf16[16,512], index: 6, kind: input, shape index: {}]
  %s7 = inlined_call_operand.hbm [shape: bf16[768,256], index: 7, kind: input, shape index: {}]
  %s8 = inlined_call_operand.hbm [shape: bf16[1168,128], index: 8, kind: input, shape index: {}]
  %s9 = inlined_call_operand.hbm [shape: f32[3,1024], index: 9, kind: input, shape index: {}]
  %s10 = inlined_call_operand.vmem [shape: f32[15,512], index: 10, kind: input, shape index: {}]
  %s11 = inlined_call_operand.hbm [shape: f32[19,256], index: 11, kind: input, shape index: {}]
  %s12 = inlined_call_operand.hbm [shape: f32[23,128], index: 12, kind: input, shape index: {}]
  %s13 = inlined_call_operand.hbm [shape: bf16[256,1024], index: 13, kind: input, shape index: {}]
  %s14 = inlined_call_operand.hbm [shape: bf16[1024,512], index: 14, kind: input, shape index: {}]
  %s15 = inlined_call_operand.hbm [shape: bf16[512,256], index: 15, kind: input, shape index: {}]
  %s16 = inlined_call_operand.vmem [shape: f32[8,128], index: 16, kind: output, shape index: {}]
  %s17 = sld [smem:[#allocation0]]
  $region110: #{forward.1} parent=0
    _
  %s19 = ssub.s32 1, %s17
  %s20 = scalar_select 0, %s19, %s17
  $region1: #{forward.1} parent=0
    #allocation6 [shape = 'u8[98304]{0}', space=vmem, size = 0x18000, scoped, tag = 'input window, operand 2, single buffered']
    #allocation7 [shape = 's32[1]{0}', space=sflag, size = 0x4, scoped, tag = 'scoped memory for forward.1']
    #allocation8 [shape = 'u8[786432]{0}', space=vmem, size = 0xc0000, scoped, tag = 'input window, operand 3, single buffered']
    #allocation9 [shape = 's32[1]{0}', space=sflag, size = 0x4, scoped, tag = 'scoped memory for forward.1']
    #allocation10 [shape = 'u8[196608]{0}', space=vmem, size = 0x30000, scoped, tag = 'input window, operand 4, single buffered']
    #allocation11 [shape = 'u8[122880]{0}', space=vmem, size = 0x1e000, scoped, tag = 'input window, operand 5, single buffered']
    #allocation12 [shape = 's32[1]{0}', space=sflag, size = 0x4, scoped, tag = 'scoped memory for forward.1']
    #allocation13 [shape = 'u8[393216]{0}', space=vmem, size = 0x60000, scoped, tag = 'input window, operand 7, single buffered']
    #allocation14 [shape = 'u8[299008]{0}', space=vmem, size = 0x49000, scoped, tag = 'input window, operand 8, single buffered']
    #allocation15 [shape = 's32[1]{0}', space=sflag, size = 0x4, scoped, tag = 'scoped memory for forward.1']
    #allocation16 [shape = 'u8[16384]{0}', space=vmem, size = 0x4000, scoped, tag = 'input window, operand 9, single buffered']
    #allocation17 [shape = 'u8[24576]{0}', space=vmem, size = 0x6000, scoped, tag = 'input window, operand 11, single buffered']
    #allocation18 [shape = 's32[1]{0}', space=sflag, size = 0x4, scoped, tag = 'scoped memory for forward.1']
    #allocation19 [shape = 'u8[12288]{0}', space=vmem, size = 0x3000, scoped, tag = 'input window, operand 12, single buffered']
    %21 = vsyncpa [#allocation7], 0
    %22 = vsyncpa [#allocation9], 0
    %23 = vsyncpa [#allocation12], 0
    %24 = vsyncpa [#allocation15], 0
    %25 = vsyncpa [#allocation18], 0
    // Predicated region
    $region2: #{forward.1} parent=1 // pred_check
      _
    $region3: #{forward.1} parent=1 // pred_check_branch
      %27 = sbr.rel (0) target = $region5
    $region4: #{forward.1} parent=1 // pred_region
      _
    $region5: #{forward.1} parent=1 // pred_fallthru
      _
    // Predicated region
    $region6: #{forward.1} parent=1 // pred_check
      _
    $region7: #{forward.1} parent=1 // pred_check_branch
      %29 = sbr.rel (0) target = $region9
    $region8: #{forward.1} parent=1 // pred_region
      _
    $region9: #{forward.1} parent=1 // pred_fallthru
      _
    // Predicated region
    $region10: #{forward.1} parent=1 // pred_check
      _
    $region11: #{forward.1} parent=1 // pred_check_branch
      %31 = sbr.rel (0) target = $region13
    $region12: #{forward.1} parent=1 // pred_region
      %s33 = ssub.s32 3072, 3072
      %34 = vsyncadd [#allocation7], %s33
      %s35 = sshll.u32 [#allocation6], 4
      %s36 = int_to_ptr.vmem [resolvable:$true] %s35
      %41 = dma.hbm_to_vmem [thread:$0]  %s2, 3072, %s36, [#allocation7], 256, 256, 16
    $region13: #{forward.1} parent=1 // pred_fallthru
      _
    // Predicated region
    $region14: #{forward.1} parent=1 // pred_check
      _
    $region15: #{forward.1} parent=1 // pred_check_branch
      %43 = sbr.rel (0) target = $region17
    $region16: #{forward.1} parent=1 // pred_region
      %s45 = ssub.s32 24576, 24576
      %46 = vsyncadd [#allocation9], %s45
      %s47 = sshll.u32 [#allocation8], 4
      %s48 = int_to_ptr.vmem [resolvable:$true] %s47
      %53 = dma.hbm_to_vmem [thread:$0]  %s3, 24576, %s48, [#allocation9], 128, 128, 8
    $region17: #{forward.1} parent=1 // pred_fallthru
      _
    // Predicated region
    $region18: #{forward.1} parent=1 // pred_check
      _
    $region19: #{forward.1} parent=1 // pred_check_branch
      %55 = sbr.rel (0) target = $region21
    $region20: #{forward.1} parent=1 // pred_region
      %s57 = ssub.s32 6144, 6144
      %58 = vsyncadd [#allocation9], %s57
      %s59 = sshll.u32 [#allocation10], 4
      %s60 = int_to_ptr.vmem [resolvable:$true] %s59
      %65 = dma.hbm_to_vmem [thread:$0]  %s4, 6144, %s60, [#allocation9], 64, 64, 4
    $region21: #{forward.1} parent=1 // pred_fallthru
      _
    // Predicated region
    $region22: #{forward.1} parent=1 // pred_check
      _
    $region23: #{forward.1} parent=1 // pred_check_branch
      %67 = sbr.rel (0) target = $region25
    $region24: #{forward.1} parent=1 // pred_region
      %s69 = ssub.s32 3840, 3840
      %70 = vsyncadd [#allocation12], %s69
      %s71 = sshll.u32 [#allocation11], 4
      %s72 = int_to_ptr.vmem [resolvable:$true] %s71
      %77 = dma.hbm_to_vmem [thread:$0]  %s5, 3840, %s72, [#allocation12], 64, 64, 4
    $region25: #{forward.1} parent=1 // pred_fallthru
      _
    // Predicated region
    $region26: #{forward.1} parent=1 // pred_check
      _
    $region27: #{forward.1} parent=1 // pred_check_branch
      %79 = sbr.rel (0) target = $region29
    $region28: #{forward.1} parent=1 // pred_region
      _
    $region29: #{forward.1} parent=1 // pred_fallthru
      _
    // Predicated region
    $region30: #{forward.1} parent=1 // pred_check
      _
    $region31: #{forward.1} parent=1 // pred_check_branch
      %81 = sbr.rel (0) target = $region33
    $region32: #{forward.1} parent=1 // pred_region
      %s83 = ssub.s32 12288, 12288
      %84 = vsyncadd [#allocation12], %s83
      %s85 = sshll.u32 [#allocation13], 4
      %s86 = int_to_ptr.vmem [resolvable:$true] %s85
      %91 = dma.hbm_to_vmem [thread:$0]  %s7, 12288, %s86, [#allocation12], 128, 128, 8
    $region33: #{forward.1} parent=1 // pred_fallthru
      _
    // Predicated region
    $region34: #{forward.1} parent=1 // pred_check
      _
    $region35: #{forward.1} parent=1 // pred_check_branch
      %93 = sbr.rel (0) target = $region37
    $region36: #{forward.1} parent=1 // pred_region
      %s95 = ssub.s32 9344, 9344
      %96 = vsyncadd [#allocation15], %s95
      %s97 = sshll.u32 [#allocation14], 4
      %s98 = int_to_ptr.vmem [resolvable:$true] %s97
      %103 = dma.hbm_to_vmem [thread:$0]  %s8, 9344, %s98, [#allocation15], 64, 64, 4
    $region37: #{forward.1} parent=1 // pred_fallthru
      _
    // Predicated region
    $region38: #{forward.1} parent=1 // pred_check
      _
    $region39: #{forward.1} parent=1 // pred_check_branch
      %105 = sbr.rel (0) target = $region41
    $region40: #{forward.1} parent=1 // pred_region
      %s107 = ssub.s32 512, 512
      %108 = vsyncadd [#allocation15], %s107
      %s110 = sshll.u32 [#allocation16], 4
      %s111 = int_to_ptr.vmem [resolvable:$true] %s110
      %113 = dma.hbm_to_vmem [thread:$0]  %s9, 512, %s111, [#allocation15]
    $region41: #{forward.1} parent=1 // pred_fallthru
      _
    // Predicated region
    $region42: #{forward.1} parent=1 // pred_check
      _
    $region43: #{forward.1} parent=1 // pred_check_branch
      %115 = sbr.rel (0) target = $region45
    $region44: #{forward.1} parent=1 // pred_region
      _
    $region45: #{forward.1} parent=1 // pred_fallthru
      _
    // Predicated region
    $region46: #{forward.1} parent=1 // pred_check
      _
    $region47: #{forward.1} parent=1 // pred_check_branch
      %117 = sbr.rel (0) target = $region49
    $region48: #{forward.1} parent=1 // pred_region
      %s119 = ssub.s32 768, 768
      %120 = vsyncadd [#allocation18], %s119
      %s121 = sshll.u32 [#allocation17], 4
      %s122 = int_to_ptr.vmem [resolvable:$true] %s121
      %127 = dma.hbm_to_vmem [thread:$0]  %s11, 768, %s122, [#allocation18], 256, 256, 16
    $region49: #{forward.1} parent=1 // pred_fallthru
      _
    // Predicated region
    $region50: #{forward.1} parent=1 // pred_check
      _
    $region51: #{forward.1} parent=1 // pred_check_branch
      %129 = sbr.rel (0) target = $region53
    $region52: #{forward.1} parent=1 // pred_region
      %s131 = ssub.s32 384, 384
      %132 = vsyncadd [#allocation18], %s131
      %s133 = sshll.u32 [#allocation19], 4
      %s134 = int_to_ptr.vmem [resolvable:$true] %s133
      %139 = dma.hbm_to_vmem [thread:$0]  %s12, 384, %s134, [#allocation18], 128, 128, 8
    $region53: #{forward.1} parent=1 // pred_fallthru
      _
    // Predicated region
    $region54: #{forward.1} parent=1 // pred_check
      _
    $region55: #{forward.1} parent=1 // pred_check_branch
      %141 = sbr.rel (0) target = $region57
    $region56: #{forward.1} parent=1 // pred_region
      %142 = dma.done [#allocation7], 3072
    $region57: #{forward.1} parent=1 // pred_fallthru
      _
    // Predicated region
    $region58: #{forward.1} parent=1 // pred_check
      _
    $region59: #{forward.1} parent=1 // pred_check_branch
      %144 = sbr.rel (0) target = $region61
    $region60: #{forward.1} parent=1 // pred_region
      %145 = dma.done [#allocation9], 24576
    $region61: #{forward.1} parent=1 // pred_fallthru
      _
    // Predicated region
    $region62: #{forward.1} parent=1 // pred_check
      _
    $region63: #{forward.1} parent=1 // pred_check_branch
      %147 = sbr.rel (0) target = $region65
    $region64: #{forward.1} parent=1 // pred_region
      %148 = dma.done [#allocation9], 6144
    $region65: #{forward.1} parent=1 // pred_fallthru
      _
    // Predicated region
    $region66: #{forward.1} parent=1 // pred_check
      _
    $region67: #{forward.1} parent=1 // pred_check_branch
      %150 = sbr.rel (0) target = $region69
    $region68: #{forward.1} parent=1 // pred_region
      %151 = dma.done [#allocation12], 3840
    $region69: #{forward.1} parent=1 // pred_fallthru
      _
    // Predicated region
    $region70: #{forward.1} parent=1 // pred_check
      _
    $region71: #{forward.1} parent=1 // pred_check_branch
      %153 = sbr.rel (0) target = $region73
    $region72: #{forward.1} parent=1 // pred_region
      %154 = dma.done [#allocation12], 12288
    $region73: #{forward.1} parent=1 // pred_fallthru
      _
    // Predicated region
    $region74: #{forward.1} parent=1 // pred_check
      _
    $region75: #{forward.1} parent=1 // pred_check_branch
      %156 = sbr.rel (0) target = $region77
    $region76: #{forward.1} parent=1 // pred_region
      %157 = dma.done [#allocation15], 9344
    $region77: #{forward.1} parent=1 // pred_fallthru
      _
    // Predicated region
    $region78: #{forward.1} parent=1 // pred_check
      _
    $region79: #{forward.1} parent=1 // pred_check_branch
      %159 = sbr.rel (0) target = $region81
    $region80: #{forward.1} parent=1 // pred_region
      %160 = dma.done [#allocation15], 512
    $region81: #{forward.1} parent=1 // pred_fallthru
      _
    // Predicated region
    $region82: #{forward.1} parent=1 // pred_check
      _
    $region83: #{forward.1} parent=1 // pred_check_branch
      %162 = sbr.rel (0) target = $region85
    $region84: #{forward.1} parent=1 // pred_region
      %163 = dma.done [#allocation18], 768
    $region85: #{forward.1} parent=1 // pred_fallthru
      _
    // Predicated region
    $region86: #{forward.1} parent=1 // pred_check
      _
    $region87: #{forward.1} parent=1 // pred_check_branch
      %165 = sbr.rel (0) target = $region89
    $region88: #{forward.1} parent=1 // pred_region
      %166 = dma.done [#allocation18], 384
    $region89: #{forward.1} parent=1 // pred_fallthru
      _
    // Predicated region
    $region90: #{forward.1} parent=1 // pred_check
      _
    $region91: #{forward.1} parent=1 // pred_check_branch
      %169 = sbr.rel target = $region93
    $region92: #{forward.1} parent=1 // pred_region
      %170 = sst [smem:[#allocation22]] [#allocation21]
      %171 = sst [smem:[#allocation23]] [#allocation20]
    $region93: #{forward.1} parent=1 // pred_fallthru
      _
    %173 = shalt.err (0)
    %s175 = sshll.u32 [#allocation2], 4
    %s176 = int_to_ptr.vmem [resolvable:$true] %s175
    %178 = dma.hbm_to_vmem [thread:$0]  %s13, 16384, %s176, [#allocation5]
    %s179 = scalar_lea.sflag [#allocation5], 1
    // Predicated region
    $region94: #{forward.1} parent=1 // pred_check
      _
    $region95: #{forward.1} parent=1 // pred_check_branch
      %181 = sbr.rel target = $region97
    $region96: #{forward.1} parent=1 // pred_region
      %182 = sst [smem:[#allocation22]] [#allocation25]
      %183 = sst [smem:[#allocation23]] [#allocation24]
    $region97: #{forward.1} parent=1 // pred_fallthru
      _
    %185 = shalt.err (0)
    %s187 = sshll.u32 [#allocation3], 4
    %s188 = int_to_ptr.vmem [resolvable:$true] %s187
    %190 = dma.hbm_to_vmem [thread:$0]  %s14, 32768, %s188, %s179
    %s191 = scalar_lea.sflag [#allocation5], 2
    // Predicated region
    $region98: #{forward.1} parent=1 // pred_check
      _
    $region99: #{forward.1} parent=1 // pred_check_branch
      %193 = sbr.rel target = $region101
    $region100: #{forward.1} parent=1 // pred_region
      %194 = sst [smem:[#allocation22]] [#allocation27]
      %195 = sst [smem:[#allocation23]] [#allocation26]
    $region101: #{forward.1} parent=1 // pred_fallthru
      _
    %197 = shalt.err (0)
    %s199 = sshll.u32 [#allocation4], 4
    %s200 = int_to_ptr.vmem [resolvable:$true] %s199
    %202 = dma.hbm_to_vmem [thread:$0]  %s15, 8192, %s200, %s191
    %v203 = vld [vmem:[%s0] sm:$0xff]
    %v204 = vld [vmem:[#allocation6] sm:$0xff]
    %v205 = vld [vmem:[#allocation6 + $0x8] sm:$0xff]
    %v206 = vld [vmem:[#allocation6 + $0x10] sm:$0xff]
    %v207 = vld [vmem:[#allocation6 + $0x18] sm:$0xff]
    %v208 = vld [vmem:[#allocation6 + $0x20] sm:$0xff]
    %v209 = vld [vmem:[#allocation6 + $0x28] sm:$0xff]
    %v210 = vld [vmem:[#allocation6 + $0x30] sm:$0xff]
    %v211 = vld [vmem:[#allocation6 + $0x38] sm:$0xff]
    %v212 = vld [vmem:[%s10] ss:$8 sm:$0xf]
    %s213 = scalar_lea.vmem %s10, 1
    %v214 = vld [vmem:[%s213] ss:$8 sm:$0xf]
    %s215 = scalar_lea.vmem %s10, 2
    %v216 = vld [vmem:[%s215] ss:$8 sm:$0xf]
    %v217 = vpack.c.bf16 %v203, %v203
    %v219 = vlaneseq
    %v220 = vshrl.u32 %v219, 7
    %v221 = vsub.s32 0, %v220
    %v222 = vrot.slane %v212, %v221
    %v223 = vlaneseq
    %v224 = vshrl.u32 %v223, 7
    %v225 = vsub.s32 1, %v224
    %v226 = vrot.slane %v212, %v225
    %v227 = vlaneseq
    %v228 = vshrl.u32 %v227, 7
    %v229 = vsub.s32 2, %v228
    %v230 = vrot.slane %v212, %v229
    %v231 = vlaneseq
    %v232 = vshrl.u32 %v231, 7
    %v233 = vsub.s32 3, %v232
    %v234 = vrot.slane %v212, %v233
    %v247 = vunpack.c.l.b16 %v204
    %v248 = vunpack.c.h.b16 %v204
    %v249 = vunpack.c.l.b16 %v205
    %v250 = vunpack.c.h.b16 %v205
    %v251 = vunpack.c.l.b16 %v206
    %v252 = vunpack.c.h.b16 %v206
    %v253 = vunpack.c.l.b16 %v207
    %v254 = vunpack.c.h.b16 %v207
    %v255 = vunpack.c.l.b16 %v208
    %v256 = vunpack.c.h.b16 %v208
    %v257 = vunpack.c.l.b16 %v209
    %v258 = vunpack.c.h.b16 %v209
    %v259 = vunpack.c.l.b16 %v210
    %v260 = vunpack.c.h.b16 %v210
    %v261 = vunpack.c.l.b16 %v211
    %v262 = vunpack.c.h.b16 %v211
    %v263 = vpack.c.b16 %v251, %v247
    %v264 = vpack.c.b16 %v252, %v248
    %v265 = vpack.c.b16 %v253, %v249
    %v266 = vpack.c.b16 %v254, %v250
    %v267 = vpack.c.b16 %v259, %v255
    %v268 = vpack.c.b16 %v260, %v256
    %v269 = vpack.c.b16 %v261, %v257
    %v270 = vpack.c.b16 %v262, %v258
    %vm279 = vcmask 261120
    %v281 = vsel %vm279, %v217, 0
    %283 = vmatprep.subr.bf16.mxu0 0
    %284 = vmatpush1.bf16.msra.mxu0 0
    %285 = vmatprep.subr.bf16.mxu0 0
    %286 = vmatpush1.bf16.msra.mxu0 0
    %287 = vmatprep.subr.bf16.mxu0 0
    %288 = vmatpush1.bf16.msra.mxu0 0
    %289 = vmatprep.subr.bf16.mxu0 0
    %290 = vmatpush1.bf16.msra.mxu0 0
    %291 = vmatprep.subr.bf16.mxu0 0
    %292 = vmatpush1.bf16.msra.mxu0 0
    %293 = vmatprep.subr.bf16.mxu0 0
    %294 = vmatpush1.bf16.msra.mxu0 0
    %295 = vmatprep.subr.bf16.mxu0 %v268
    %296 = vmatpush1.bf16.msra.mxu0 %v267
    %297 = vmatprep.subr.bf16.mxu0 %v264
    %298 = vmatpush1.bf16.msra.mxu0 %v263
    %299 = vmatprep.subr.bf16.mxu0 0
    %300 = vmatpush2.bf16.msra.mxu0 0
    %301 = vmatprep.subr.bf16.mxu0 0
    %302 = vmatpush2.bf16.msra.mxu0 0
    %303 = vmatprep.subr.bf16.mxu0 0
    %304 = vmatpush2.bf16.msra.mxu0 0
    %305 = vmatprep.subr.bf16.mxu0 0
    %306 = vmatpush2.bf16.msra.mxu0 0
    %307 = vmatprep.subr.bf16.mxu0 0
    %308 = vmatpush2.bf16.msra.mxu0 0
    %309 = vmatprep.subr.bf16.mxu0 0
    %310 = vmatpush2.bf16.msra.mxu0 0
    %311 = vmatprep.subr.bf16.mxu0 0
    %312 = vmatpush2.bf16.msra.mxu0 0
    %313 = vmatprep.subr.bf16.mxu0 0
    %314 = vmatpush2.bf16.msra.mxu0 0
    %315 = vmatprep.mubr.bf16.mxu0 0
    %316 = vmatmul.mubr.bf16.gmra.mxu0 %v281
    %v317 = vpop.f32.mrf.mxu0
    %v318 = vadd.f32 %v222, %v317
    %v319 = vpop.f32.mrf.mxu0
    %v320 = vadd.f32 %v226, %v319
    %v321 = vpop.f32.mrf.mxu0
    %v322 = vpop.f32.mrf.mxu0
    %323 = vdwg.mxu0
    %324 = vmatprep.subr.bf16.mxu0 0
    %325 = vmatpush1.bf16.msra.mxu0 0
    %326 = vmatprep.subr.bf16.mxu0 0
    %327 = vmatpush1.bf16.msra.mxu0 0
    %328 = vmatprep.subr.bf16.mxu0 0
    %329 = vmatpush1.bf16.msra.mxu0 0
    %330 = vmatprep.subr.bf16.mxu0 0
    %331 = vmatpush1.bf16.msra.mxu0 0
    %332 = vmatprep.subr.bf16.mxu0 0
    %333 = vmatpush1.bf16.msra.mxu0 0
    %334 = vmatprep.subr.bf16.mxu0 0
    %335 = vmatpush1.bf16.msra.mxu0 0
    %336 = vmatprep.subr.bf16.mxu0 %v270
    %337 = vmatpush1.bf16.msra.mxu0 %v269
    %338 = vmatprep.subr.bf16.mxu0 %v266
    %339 = vmatpush1.bf16.msra.mxu0 %v265
    %340 = vmatprep.subr.bf16.mxu0 0
    %341 = vmatpush2.bf16.msra.mxu0 0
    %342 = vmatprep.subr.bf16.mxu0 0
    %343 = vmatpush2.bf16.msra.mxu0 0
    %344 = vmatprep.subr.bf16.mxu0 0
    %345 = vmatpush2.bf16.msra.mxu0 0
    %346 = vmatprep.subr.bf16.mxu0 0
    %347 = vmatpush2.bf16.msra.mxu0 0
    %348 = vmatprep.subr.bf16.mxu0 0
    %349 = vmatpush2.bf16.msra.mxu0 0
    %350 = vmatprep.subr.bf16.mxu0 0
    %351 = vmatpush2.bf16.msra.mxu0 0
    %352 = vmatprep.subr.bf16.mxu0 0
    %353 = vmatpush2.bf16.msra.mxu0 0
    %354 = vmatprep.subr.bf16.mxu0 0
    %355 = vmatpush2.bf16.msra.mxu0 0
    %356 = vmatprep.mubr.bf16.mxu0 0
    %357 = vmatmul.mubr.bf16.gmra.mxu0 %v281
    %v358 = vpop.f32.mrf.mxu0
    %v359 = vadd.f32 %v230, %v358
    %v360 = vpop.f32.mrf.mxu0
    %v361 = vadd.f32 %v234, %v360
    %v362 = vpop.f32.mrf.mxu0
    %v363 = vpop.f32.mrf.mxu0
    %364 = vdwg.mxu0
    %v365 = vadd.f32 %v318, %v320
    %v366 = vadd.f32 %v365, %v359
    %v367 = vadd.f32 %v366, %v361
    %368 = vadd.xlane.f32.xlu0 %v367
    %v369 = vpop.xlane.xlu0 %368
    %v370 = vrcp.pop 512.0
    %v371 = vmul.f32 %v369, %v370
    %v372 = vsub.f32 %v318, %v371
    %v373 = vsub.f32 %v320, %v371
    %v374 = vsub.f32 %v359, %v371
    %v375 = vsub.f32 %v361, %v371
    %v376 = vmul.f32 %v372, %v372
    %v377 = vmul.f32 %v373, %v373
    %v378 = vmul.f32 %v374, %v374
    %v379 = vmul.f32 %v375, %v375
    %v380 = vadd.f32 %v376, %v377
    %v381 = vadd.f32 %v380, %v378
    %v382 = vadd.f32 %v381, %v379
    %383 = vadd.xlane.f32.xlu0 %v382
    %v384 = vpop.xlane.xlu0 %383
    %v385 = vmul.f32 %v384, %v370
    %v386 = vadd.f32 %v385, 1e-05
    %v387 = vrsqrt.pop %v386
    %v388 = vmul.f32 %v372, %v387
    %v389 = vmul.f32 %v373, %v387
    %v390 = vmul.f32 %v374, %v387
    %v391 = vmul.f32 %v375, %v387
    %v393 = vlaneseq
    %v394 = vshrl.u32 %v393, 7
    %v395 = vsub.s32 0, %v394
    %v396 = vrot.slane %v214, %v395
    %v397 = vlaneseq
    %v398 = vshrl.u32 %v397, 7
    %v399 = vsub.s32 1, %v398
    %v400 = vrot.slane %v214, %v399
    %v401 = vlaneseq
    %v402 = vshrl.u32 %v401, 7
    %v403 = vsub.s32 2, %v402
    %v404 = vrot.slane %v214, %v403
    %v405 = vlaneseq
    %v406 = vshrl.u32 %v405, 7
    %v407 = vsub.s32 3, %v406
    %v408 = vrot.slane %v214, %v407
    %v413 = vmul.f32 %v388, %v396
    %v414 = vmul.f32 %v389, %v400
    %v415 = vmul.f32 %v390, %v404
    %v416 = vmul.f32 %v391, %v408
    %v418 = vlaneseq
    %v419 = vshrl.u32 %v418, 7
    %v420 = vsub.s32 0, %v419
    %v421 = vrot.slane %v216, %v420
    %v422 = vlaneseq
    %v423 = vshrl.u32 %v422, 7
    %v424 = vsub.s32 1, %v423
    %v425 = vrot.slane %v216, %v424
    %v426 = vlaneseq
    %v427 = vshrl.u32 %v426, 7
    %v428 = vsub.s32 2, %v427
    %v429 = vrot.slane %v216, %v428
    %v430 = vlaneseq
    %v431 = vshrl.u32 %v430, 7
    %v432 = vsub.s32 3, %v431
    %v433 = vrot.slane %v216, %v432
    %v438 = vadd.f32 %v413, %v421
    %v439 = vadd.f32 %v414, %v425
    %v440 = vadd.f32 %v415, %v429
    %v441 = vadd.f32 %v416, %v433
    %v442 = vmul.f32 %v438, 0.5
    %v443 = vmul.f32 %v439, 0.5
    %v444 = vmul.f32 %v440, 0.5
    %v445 = vmul.f32 %v441, 0.5
    %v446 = vmul.f32 %v438, 0.044715
    %v447 = vmul.f32 %v439, 0.044715
    %v448 = vmul.f32 %v440, 0.044715
    %v449 = vmul.f32 %v441, 0.044715
    %v450 = vmul.f32 %v446, %v438
    %v451 = vmul.f32 %v447, %v439
    %v452 = vmul.f32 %v448, %v440
    %v453 = vmul.f32 %v449, %v441
    %v454 = vmul.f32 %v450, %v438
    %v455 = vmul.f32 %v451, %v439
    %v456 = vmul.f32 %v452, %v440
    %v457 = vmul.f32 %v453, %v441
    %v458 = vadd.f32 %v438, %v454
    %v459 = vadd.f32 %v439, %v455
    %v460 = vadd.f32 %v440, %v456
    %v461 = vadd.f32 %v441, %v457
    %v462 = vmul.f32 %v458, 0.7978846
    %v463 = vmul.f32 %v459, 0.7978846
    %v464 = vmul.f32 %v460, 0.7978846
    %v465 = vmul.f32 %v461, 0.7978846
    %v466 = vtanh.pop %v462
    %v467 = vtanh.pop %v463
    %v468 = vtanh.pop %v464
    %v469 = vtanh.pop %v465
    %v470 = vadd.f32 %v466, 1.0
    %v471 = vadd.f32 %v467, 1.0
    %v472 = vadd.f32 %v468, 1.0
    %v473 = vadd.f32 %v469, 1.0
    %v474 = vmul.f32 %v442, %v470
    %v475 = vmul.f32 %v443, %v471
    %v476 = vmul.f32 %v444, %v472
    %v477 = vmul.f32 %v445, %v473
    %v478 = vld [vmem:[#allocation8] sm:$0xff]
    %v479 = vld [vmem:[#allocation8 + $0x8] sm:$0xff]
    %v480 = vld [vmem:[#allocation8 + $0x10] sm:$0xff]
    %v481 = vld [vmem:[#allocation8 + $0x18] sm:$0xff]
    %v482 = vld [vmem:[#allocation8 + $0x20] sm:$0xff]
    %v483 = vld [vmem:[#allocation8 + $0x28] sm:$0xff]
    %v484 = vld [vmem:[#allocation8 + $0x30] sm:$0xff]
    %v485 = vld [vmem:[#allocation8 + $0x38] sm:$0xff]
    %v486 = vld [vmem:[#allocation8 + $0x40] sm:$0xff]
    %v487 = vld [vmem:[#allocation8 + $0x48] sm:$0xff]
    %v488 = vld [vmem:[#allocation8 + $0x50] sm:$0xff]
    %v489 = vld [vmem:[#allocation8 + $0x58] sm:$0xff]
    %v490 = vld [vmem:[#allocation8 + $0x60] sm:$0xff]
    %v491 = vld [vmem:[#allocation8 + $0x68] sm:$0xff]
    %v492 = vld [vmem:[#allocation8 + $0x70] sm:$0xff]
    %v493 = vld [vmem:[#allocation8 + $0x78] sm:$0xff]
    %v494 = vld [vmem:[#allocation8 + $0x80] sm:$0xff]
    %v495 = vld [vmem:[#allocation8 + $0x88] sm:$0xff]
    %v496 = vld [vmem:[#allocation8 + $0x90] sm:$0xff]
    %v497 = vld [vmem:[#allocation8 + $0x98] sm:$0xff]
    %v498 = vld [vmem:[#allocation8 + $0xa0] sm:$0xff]
    %v499 = vld [vmem:[#allocation8 + $0xa8] sm:$0xff]
    %v500 = vld [vmem:[#allocation8 + $0xb0] sm:$0xff]
    %v501 = vld [vmem:[#allocation8 + $0xb8] sm:$0xff]
    %v502 = vld [vmem:[#allocation8 + $0xc0] sm:$0xff]
    %v503 = vld [vmem:[#allocation8 + $0xc8] sm:$0xff]
    %v504 = vld [vmem:[#allocation8 + $0xd0] sm:$0xff]
    %v505 = vld [vmem:[#allocation8 + $0xd8] sm:$0xff]
    %v506 = vld [vmem:[#allocation8 + $0xe0] sm:$0xff]
    %v507 = vld [vmem:[#allocation8 + $0xe8] sm:$0xff]
    %v508 = vld [vmem:[#allocation8 + $0xf0] sm:$0xff]
    %v509 = vld [vmem:[#allocation8 + $0xf8] sm:$0xff]
    %v510 = vld [vmem:[#allocation8 + $0x100] sm:$0xff]
    %v511 = vld [vmem:[#allocation8 + $0x108] sm:$0xff]
    %v512 = vld [vmem:[#allocation8 + $0x110] sm:$0xff]
    %v513 = vld [vmem:[#allocation8 + $0x118] sm:$0xff]
    %v514 = vld [vmem:[#allocation8 + $0x120] sm:$0xff]
    %v515 = vld [vmem:[#allocation8 + $0x128] sm:$0xff]
    %v516 = vld [vmem:[#allocation8 + $0x130] sm:$0xff]
    %v517 = vld [vmem:[#allocation8 + $0x138] sm:$0xff]
    %v518 = vld [vmem:[#allocation8 + $0x140] sm:$0xff]
    %v519 = vld [vmem:[#allocation8 + $0x148] sm:$0xff]
    %v520 = vld [vmem:[#allocation8 + $0x150] sm:$0xff]
    %v521 = vld [vmem:[#allocation8 + $0x158] sm:$0xff]
    %v522 = vld [vmem:[#allocation8 + $0x160] sm:$0xff]
    %v523 = vld [vmem:[#allocation8 + $0x168] sm:$0xff]
    %v524 = vld [vmem:[#allocation8 + $0x170] sm:$0xff]
    %v525 = vld [vmem:[#allocation8 + $0x178] sm:$0xff]
    %v526 = vld [vmem:[#allocation8 + $0x180] sm:$0xff]
    %v527 = vld [vmem:[#allocation8 + $0x188] sm:$0xff]
    %v528 = vld [vmem:[#allocation8 + $0x190] sm:$0xff]
    %v529 = vld [vmem:[#allocation8 + $0x198] sm:$0xff]
    %v530 = vld [vmem:[#allocation8 + $0x1a0] sm:$0xff]
    %v531 = vld [vmem:[#allocation8 + $0x1a8] sm:$0xff]
    %v532 = vld [vmem:[#allocation8 + $0x1b0] sm:$0xff]
    %v533 = vld [vmem:[#allocation8 + $0x1b8] sm:$0xff]
    %v534 = vld [vmem:[#allocation8 + $0x1c0] sm:$0xff]
    %v535 = vld [vmem:[#allocation8 + $0x1c8] sm:$0xff]
    %v536 = vld [vmem:[#allocation8 + $0x1d0] sm:$0xff]
    %v537 = vld [vmem:[#allocation8 + $0x1d8] sm:$0xff]
    %v538 = vld [vmem:[#allocation8 + $0x1e0] sm:$0xff]
    %v539 = vld [vmem:[#allocation8 + $0x1e8] sm:$0xff]
    %v540 = vld [vmem:[#allocation8 + $0x1f0] sm:$0xff]
    %v541 = vld [vmem:[#allocation8 + $0x1f8] sm:$0xff]
    %v542 = vld [vmem:[#allocation17] ss:$8 sm:$0x3]
    %s543 = scalar_lea.vmem [#allocation17], 1
    %v544 = vld [vmem:[%s543] ss:$8 sm:$0x3]
    %s545 = scalar_lea.vmem [#allocation17], 2
    %v546 = vld [vmem:[%s545] ss:$8 sm:$0x3]
    %v547 = vpack.c.bf16 %v474, %v474
    %v548 = vpack.c.bf16 %v475, %v475
    %v549 = vpack.c.bf16 %v476, %v476
    %v550 = vpack.c.bf16 %v477, %v477
    %v552 = vlaneseq
    %v553 = vshrl.u32 %v552, 7
    %v554 = vsub.s32 0, %v553
    %v555 = vrot.slane %v542, %v554
    %v556 = vlaneseq
    %v557 = vshrl.u32 %v556, 7
    %v558 = vsub.s32 1, %v557
    %v559 = vrot.slane %v542, %v558
    %v626 = vunpack.c.l.b16 %v478
    %v627 = vunpack.c.h.b16 %v478
    %v628 = vunpack.c.l.b16 %v479
    %v629 = vunpack.c.h.b16 %v479
    %v630 = vunpack.c.l.b16 %v480
    %v631 = vunpack.c.h.b16 %v480
    %v632 = vunpack.c.l.b16 %v481
    %v633 = vunpack.c.h.b16 %v481
    %v634 = vunpack.c.l.b16 %v482
    %v635 = vunpack.c.h.b16 %v482
    %v636 = vunpack.c.l.b16 %v483
    %v637 = vunpack.c.h.b16 %v483
    %v638 = vunpack.c.l.b16 %v484
    %v639 = vunpack.c.h.b16 %v484
    %v640 = vunpack.c.l.b16 %v485
    %v641 = vunpack.c.h.b16 %v485
    %v642 = vunpack.c.l.b16 %v486
    %v643 = vunpack.c.h.b16 %v486
    %v644 = vunpack.c.l.b16 %v487
    %v645 = vunpack.c.h.b16 %v487
    %v646 = vunpack.c.l.b16 %v488
    %v647 = vunpack.c.h.b16 %v488
    %v648 = vunpack.c.l.b16 %v489
    %v649 = vunpack.c.h.b16 %v489
    %v650 = vunpack.c.l.b16 %v490
    %v651 = vunpack.c.h.b16 %v490
    %v652 = vunpack.c.l.b16 %v491
    %v653 = vunpack.c.h.b16 %v491
    %v654 = vunpack.c.l.b16 %v492
    %v655 = vunpack.c.h.b16 %v492
    %v656 = vunpack.c.l.b16 %v493
    %v657 = vunpack.c.h.b16 %v493
    %v658 = vunpack.c.l.b16 %v494
    %v659 = vunpack.c.h.b16 %v494
    %v660 = vunpack.c.l.b16 %v495
    %v661 = vunpack.c.h.b16 %v495
    %v662 = vunpack.c.l.b16 %v496
    %v663 = vunpack.c.h.b16 %v496
    %v664 = vunpack.c.l.b16 %v497
    %v665 = vunpack.c.h.b16 %v497
    %v666 = vunpack.c.l.b16 %v498
    %v667 = vunpack.c.h.b16 %v498
    %v668 = vunpack.c.l.b16 %v499
    %v669 = vunpack.c.h.b16 %v499
    %v670 = vunpack.c.l.b16 %v500
    %v671 = vunpack.c.h.b16 %v500
    %v672 = vunpack.c.l.b16 %v501
    %v673 = vunpack.c.h.b16 %v501
    %v674 = vunpack.c.l.b16 %v502
    %v675 = vunpack.c.h.b16 %v502
    %v676 = vunpack.c.l.b16 %v503
    %v677 = vunpack.c.h.b16 %v503
    %v678 = vunpack.c.l.b16 %v504
    %v679 = vunpack.c.h.b16 %v504
    %v680 = vunpack.c.l.b16 %v505
    %v681 = vunpack.c.h.b16 %v505
    %v682 = vunpack.c.l.b16 %v506
    %v683 = vunpack.c.h.b16 %v506
    %v684 = vunpack.c.l.b16 %v507
    %v685 = vunpack.c.h.b16 %v507
    %v686 = vunpack.c.l.b16 %v508
    %v687 = vunpack.c.h.b16 %v508
    %v688 = vunpack.c.l.b16 %v509
    %v689 = vunpack.c.h.b16 %v509
    %v690 = vunpack.c.l.b16 %v510
    %v691 = vunpack.c.h.b16 %v510
    %v692 = vunpack.c.l.b16 %v511
    %v693 = vunpack.c.h.b16 %v511
    %v694 = vunpack.c.l.b16 %v512
    %v695 = vunpack.c.h.b16 %v512
    %v696 = vunpack.c.l.b16 %v513
    %v697 = vunpack.c.h.b16 %v513
    %v698 = vunpack.c.l.b16 %v514
    %v699 = vunpack.c.h.b16 %v514
    %v700 = vunpack.c.l.b16 %v515
    %v701 = vunpack.c.h.b16 %v515
    %v702 = vunpack.c.l.b16 %v516
    %v703 = vunpack.c.h.b16 %v516
    %v704 = vunpack.c.l.b16 %v517
    %v705 = vunpack.c.h.b16 %v517
    %v706 = vunpack.c.l.b16 %v518
    %v707 = vunpack.c.h.b16 %v518
    %v708 = vunpack.c.l.b16 %v519
    %v709 = vunpack.c.h.b16 %v519
    %v710 = vunpack.c.l.b16 %v520
    %v711 = vunpack.c.h.b16 %v520
    %v712 = vunpack.c.l.b16 %v521
    %v713 = vunpack.c.h.b16 %v521
    %v714 = vunpack.c.l.b16 %v522
    %v715 = vunpack.c.h.b16 %v522
    %v716 = vunpack.c.l.b16 %v523
    %v717 = vunpack.c.h.b16 %v523
    %v718 = vunpack.c.l.b16 %v524
    %v719 = vunpack.c.h.b16 %v524
    %v720 = vunpack.c.l.b16 %v525
    %v721 = vunpack.c.h.b16 %v525
    %v722 = vunpack.c.l.b16 %v526
    %v723 = vunpack.c.h.b16 %v526
    %v724 = vunpack.c.l.b16 %v527
    %v725 = vunpack.c.h.b16 %v527
    %v726 = vunpack.c.l.b16 %v528
    %v727 = vunpack.c.h.b16 %v528
    %v728 = vunpack.c.l.b16 %v529
    %v729 = vunpack.c.h.b16 %v529
    %v730 = vunpack.c.l.b16 %v530
    %v731 = vunpack.c.h.b16 %v530
    %v732 = vunpack.c.l.b16 %v531
    %v733 = vunpack.c.h.b16 %v531
    %v734 = vunpack.c.l.b16 %v532
    %v735 = vunpack.c.h.b16 %v532
    %v736 = vunpack.c.l.b16 %v533
    %v737 = vunpack.c.h.b16 %v533
    %v738 = vunpack.c.l.b16 %v534
    %v739 = vunpack.c.h.b16 %v534
    %v740 = vunpack.c.l.b16 %v535
    %v741 = vunpack.c.h.b16 %v535
    %v742 = vunpack.c.l.b16 %v536
    %v743 = vunpack.c.h.b16 %v536
    %v744 = vunpack.c.l.b16 %v537
    %v745 = vunpack.c.h.b16 %v537
    %v746 = vunpack.c.l.b16 %v538
    %v747 = vunpack.c.h.b16 %v538
    %v748 = vunpack.c.l.b16 %v539
    %v749 = vunpack.c.h.b16 %v539
    %v750 = vunpack.c.l.b16 %v540
    %v751 = vunpack.c.h.b16 %v540
    %v752 = vunpack.c.l.b16 %v541
    %v753 = vunpack.c.h.b16 %v541
    %v754 = vpack.c.b16 %v628, %v626
    %v755 = vpack.c.b16 %v629, %v627
    %v756 = vpack.c.b16 %v632, %v630
    %v757 = vpack.c.b16 %v633, %v631
    %v758 = vpack.c.b16 %v636, %v634
    %v759 = vpack.c.b16 %v637, %v635
    %v760 = vpack.c.b16 %v640, %v638
    %v761 = vpack.c.b16 %v641, %v639
    %v762 = vpack.c.b16 %v644, %v642
    %v763 = vpack.c.b16 %v645, %v643
    %v764 = vpack.c.b16 %v648, %v646
    %v765 = vpack.c.b16 %v649, %v647
    %v766 = vpack.c.b16 %v652, %v650
    %v767 = vpack.c.b16 %v653, %v651
    %v768 = vpack.c.b16 %v656, %v654
    %v769 = vpack.c.b16 %v657, %v655
    %v770 = vpack.c.b16 %v660, %v658
    %v771 = vpack.c.b16 %v661, %v659
    %v772 = vpack.c.b16 %v664, %v662
    %v773 = vpack.c.b16 %v665, %v663
    %v774 = vpack.c.b16 %v668, %v666
    %v775 = vpack.c.b16 %v669, %v667
    %v776 = vpack.c.b16 %v672, %v670
    %v777 = vpack.c.b16 %v673, %v671
    %v778 = vpack.c.b16 %v676, %v674
    %v779 = vpack.c.b16 %v677, %v675
    %v780 = vpack.c.b16 %v680, %v678
    %v781 = vpack.c.b16 %v681, %v679
    %v782 = vpack.c.b16 %v684, %v682
    %v783 = vpack.c.b16 %v685, %v683
    %v784 = vpack.c.b16 %v688, %v686
    %v785 = vpack.c.b16 %v689, %v687
    %v786 = vpack.c.b16 %v692, %v690
    %v787 = vpack.c.b16 %v693, %v691
    %v788 = vpack.c.b16 %v696, %v694
    %v789 = vpack.c.b16 %v697, %v695
    %v790 = vpack.c.b16 %v700, %v698
    %v791 = vpack.c.b16 %v701, %v699
    %v792 = vpack.c.b16 %v704, %v702
    %v793 = vpack.c.b16 %v705, %v703
    %v794 = vpack.c.b16 %v708, %v706
    %v795 = vpack.c.b16 %v709, %v707
    %v796 = vpack.c.b16 %v712, %v710
    %v797 = vpack.c.b16 %v713, %v711
    %v798 = vpack.c.b16 %v716, %v714
    %v799 = vpack.c.b16 %v717, %v715
    %v800 = vpack.c.b16 %v720, %v718
    %v801 = vpack.c.b16 %v721, %v719
    %v802 = vpack.c.b16 %v724, %v722
    %v803 = vpack.c.b16 %v725, %v723
    %v804 = vpack.c.b16 %v728, %v726
    %v805 = vpack.c.b16 %v729, %v727
    %v806 = vpack.c.b16 %v732, %v730
    %v807 = vpack.c.b16 %v733, %v731
    %v808 = vpack.c.b16 %v736, %v734
    %v809 = vpack.c.b16 %v737, %v735
    %v810 = vpack.c.b16 %v740, %v738
    %v811 = vpack.c.b16 %v741, %v739
    %v812 = vpack.c.b16 %v744, %v742
    %v813 = vpack.c.b16 %v745, %v743
    %v814 = vpack.c.b16 %v748, %v746
    %v815 = vpack.c.b16 %v749, %v747
    %v816 = vpack.c.b16 %v752, %v750
    %v817 = vpack.c.b16 %v753, %v751
    %882 = vmatprep.subr.bf16.mxu0 %v769
    %883 = vmatpush1.bf16.msra.mxu0 %v768
    %884 = vmatprep.subr.bf16.mxu0 %v767
    %885 = vmatpush1.bf16.msra.mxu0 %v766
    %886 = vmatprep.subr.bf16.mxu0 %v765
    %887 = vmatpush1.bf16.msra.mxu0 %v764
    %888 = vmatprep.subr.bf16.mxu0 %v763
    %889 = vmatpush1.bf16.msra.mxu0 %v762
    %890 = vmatprep.subr.bf16.mxu0 %v761
    %891 = vmatpush1.bf16.msra.mxu0 %v760
    %892 = vmatprep.subr.bf16.mxu0 %v759
    %893 = vmatpush1.bf16.msra.mxu0 %v758
    %894 = vmatprep.subr.bf16.mxu0 %v757
    %895 = vmatpush1.bf16.msra.mxu0 %v756
    %896 = vmatprep.subr.bf16.mxu0 %v755
    %897 = vmatpush1.bf16.msra.mxu0 %v754
    %898 = vmatprep.subr.bf16.mxu0 %v785
    %899 = vmatpush2.bf16.msra.mxu0 %v784
    %900 = vmatprep.subr.bf16.mxu0 %v783
    %901 = vmatpush2.bf16.msra.mxu0 %v782
    %902 = vmatprep.subr.bf16.mxu0 %v781
    %903 = vmatpush2.bf16.msra.mxu0 %v780
    %904 = vmatprep.subr.bf16.mxu0 %v779
    %905 = vmatpush2.bf16.msra.mxu0 %v778
    %906 = vmatprep.subr.bf16.mxu0 %v777
    %907 = vmatpush2.bf16.msra.mxu0 %v776
    %908 = vmatprep.subr.bf16.mxu0 %v775
    %909 = vmatpush2.bf16.msra.mxu0 %v774
    %910 = vmatprep.subr.bf16.mxu0 %v773
    %911 = vmatpush2.bf16.msra.mxu0 %v772
    %912 = vmatprep.subr.bf16.mxu0 %v771
    %913 = vmatpush2.bf16.msra.mxu0 %v770
    %914 = vmatprep.mubr.bf16.mxu0 %v548
    %915 = vmatmul.mubr.bf16.gmra.mxu0 %v547
    %v916 = vpop.f32.mrf.mxu0
    %v917 = vadd.f32 %v555, %v916
    %v918 = vpop.f32.mrf.mxu0
    %v919 = vadd.f32 %v559, %v918
    %v920 = vpop.f32.mrf.mxu0
    %v921 = vpop.f32.mrf.mxu0
    %922 = vdwg.mxu0
    %923 = vmatprep.subr.bf16.mxu0 %v801
    %924 = vmatpush1.bf16.msra.mxu0 %v800
    %925 = vmatprep.subr.bf16.mxu0 %v799
    %926 = vmatpush1.bf16.msra.mxu0 %v798
    %927 = vmatprep.subr.bf16.mxu0 %v797
    %928 = vmatpush1.bf16.msra.mxu0 %v796
    %929 = vmatprep.subr.bf16.mxu0 %v795
    %930 = vmatpush1.bf16.msra.mxu0 %v794
    %931 = vmatprep.subr.bf16.mxu0 %v793
    %932 = vmatpush1.bf16.msra.mxu0 %v792
    %933 = vmatprep.subr.bf16.mxu0 %v791
    %934 = vmatpush1.bf16.msra.mxu0 %v790
    %935 = vmatprep.subr.bf16.mxu0 %v789
    %936 = vmatpush1.bf16.msra.mxu0 %v788
    %937 = vmatprep.subr.bf16.mxu0 %v787
    %938 = vmatpush1.bf16.msra.mxu0 %v786
    %939 = vmatprep.subr.bf16.mxu0 %v817
    %940 = vmatpush2.bf16.msra.mxu0 %v816
    %941 = vmatprep.subr.bf16.mxu0 %v815
    %942 = vmatpush2.bf16.msra.mxu0 %v814
    %943 = vmatprep.subr.bf16.mxu0 %v813
    %944 = vmatpush2.bf16.msra.mxu0 %v812
    %945 = vmatprep.subr.bf16.mxu0 %v811
    %946 = vmatpush2.bf16.msra.mxu0 %v810
    %947 = vmatprep.subr.bf16.mxu0 %v809
    %948 = vmatpush2.bf16.msra.mxu0 %v808
    %949 = vmatprep.subr.bf16.mxu0 %v807
    %950 = vmatpush2.bf16.msra.mxu0 %v806
    %951 = vmatprep.subr.bf16.mxu0 %v805
    %952 = vmatpush2.bf16.msra.mxu0 %v804
    %953 = vmatprep.subr.bf16.mxu0 %v803
    %954 = vmatpush2.bf16.msra.mxu0 %v802
    %955 = vmatprep.mubr.bf16.mxu0 %v550
    %956 = vmatmul.mubr.bf16.gmra.mxu0 %v549
    %v957 = vpop.f32.mrf.mxu0
    %v958 = vadd.f32 %v917, %v957
    %v959 = vpop.f32.mrf.mxu0
    %v960 = vadd.f32 %v919, %v959
    %v961 = vpop.f32.mrf.mxu0
    %v962 = vpop.f32.mrf.mxu0
    %963 = vdwg.mxu0
    %v964 = vadd.f32 %v958, %v960
    %965 = vadd.xlane.f32.xlu0 %v964
    %v966 = vpop.xlane.xlu0 %965
    %v967 = vrcp.pop 256.0
    %v968 = vmul.f32 %v966, %v967
    %v969 = vsub.f32 %v958, %v968
    %v970 = vsub.f32 %v960, %v968
    %v971 = vmul.f32 %v969, %v969
    %v972 = vmul.f32 %v970, %v970
    %v973 = vadd.f32 %v971, %v972
    %974 = vadd.xlane.f32.xlu0 %v973
    %v975 = vpop.xlane.xlu0 %974
    %v976 = vmul.f32 %v975, %v967
    %v977 = vadd.f32 %v976, 1e-05
    %v978 = vrsqrt.pop %v977
    %v979 = vmul.f32 %v969, %v978
    %v980 = vmul.f32 %v970, %v978
    %v982 = vlaneseq
    %v983 = vshrl.u32 %v982, 7
    %v984 = vsub.s32 0, %v983
    %v985 = vrot.slane %v544, %v984
    %v986 = vlaneseq
    %v987 = vshrl.u32 %v986, 7
    %v988 = vsub.s32 1, %v987
    %v989 = vrot.slane %v544, %v988
    %v992 = vmul.f32 %v979, %v985
    %v993 = vmul.f32 %v980, %v989
    %v995 = vlaneseq
    %v996 = vshrl.u32 %v995, 7
    %v997 = vsub.s32 0, %v996
    %v998 = vrot.slane %v546, %v997
    %v999 = vlaneseq
    %v1000 = vshrl.u32 %v999, 7
    %v1001 = vsub.s32 1, %v1000
    %v1002 = vrot.slane %v546, %v1001
    %v1005 = vadd.f32 %v992, %v998
    %v1006 = vadd.f32 %v993, %v1002
    %v1007 = vmul.f32 %v1005, 0.5
    %v1008 = vmul.f32 %v1006, 0.5
    %v1009 = vmul.f32 %v1005, 0.044715
    %v1010 = vmul.f32 %v1006, 0.044715
    %v1011 = vmul.f32 %v1009, %v1005
    %v1012 = vmul.f32 %v1010, %v1006
    %v1013 = vmul.f32 %v1011, %v1005
    %v1014 = vmul.f32 %v1012, %v1006
    %v1015 = vadd.f32 %v1005, %v1013
    %v1016 = vadd.f32 %v1006, %v1014
    %v1017 = vmul.f32 %v1015, 0.7978846
    %v1018 = vmul.f32 %v1016, 0.7978846
    %v1019 = vtanh.pop %v1017
    %v1020 = vtanh.pop %v1018
    %v1021 = vadd.f32 %v1019, 1.0
    %v1022 = vadd.f32 %v1020, 1.0
    %v1023 = vmul.f32 %v1007, %v1021
    %v1024 = vmul.f32 %v1008, %v1022
    %v1025 = vld [vmem:[#allocation10] sm:$0xf]
    %v1026 = vld [vmem:[#allocation10 + $0x4] sm:$0xf]
    %v1027 = vld [vmem:[#allocation10 + $0x8] sm:$0xf]
    %v1028 = vld [vmem:[#allocation10 + $0xc] sm:$0xf]
    %v1029 = vld [vmem:[#allocation10 + $0x10] sm:$0xf]
    %v1030 = vld [vmem:[#allocation10 + $0x14] sm:$0xf]
    %v1031 = vld [vmem:[#allocation10 + $0x18] sm:$0xf]
    %v1032 = vld [vmem:[#allocation10 + $0x1c] sm:$0xf]
    %v1033 = vld [vmem:[#allocation10 + $0x20] sm:$0xf]
    %v1034 = vld [vmem:[#allocation10 + $0x24] sm:$0xf]
    %v1035 = vld [vmem:[#allocation10 + $0x28] sm:$0xf]
    %v1036 = vld [vmem:[#allocation10 + $0x2c] sm:$0xf]
    %v1037 = vld [vmem:[#allocation10 + $0x30] sm:$0xf]
    %v1038 = vld [vmem:[#allocation10 + $0x34] sm:$0xf]
    %v1039 = vld [vmem:[#allocation10 + $0x38] sm:$0xf]
    %v1040 = vld [vmem:[#allocation10 + $0x3c] sm:$0xf]
    %v1041 = vld [vmem:[#allocation10 + $0x40] sm:$0xf]
    %v1042 = vld [vmem:[#allocation10 + $0x44] sm:$0xf]
    %v1043 = vld [vmem:[#allocation10 + $0x48] sm:$0xf]
    %v1044 = vld [vmem:[#allocation10 + $0x4c] sm:$0xf]
    %v1045 = vld [vmem:[#allocation10 + $0x50] sm:$0xf]
    %v1046 = vld [vmem:[#allocation10 + $0x54] sm:$0xf]
    %v1047 = vld [vmem:[#allocation10 + $0x58] sm:$0xf]
    %v1048 = vld [vmem:[#allocation10 + $0x5c] sm:$0xf]
    %v1049 = vld [vmem:[#allocation10 + $0x60] sm:$0xf]
    %v1050 = vld [vmem:[#allocation10 + $0x64] sm:$0xf]
    %v1051 = vld [vmem:[#allocation10 + $0x68] sm:$0xf]
    %v1052 = vld [vmem:[#allocation10 + $0x6c] sm:$0xf]
    %v1053 = vld [vmem:[#allocation10 + $0x70] sm:$0xf]
    %v1054 = vld [vmem:[#allocation10 + $0x74] sm:$0xf]
    %v1055 = vld [vmem:[#allocation10 + $0x78] sm:$0xf]
    %v1056 = vld [vmem:[#allocation10 + $0x7c] sm:$0xf]
    %v1057 = vld [vmem:[#allocation19] sm:$0x1]
    %v1058 = vld [vmem:[#allocation19 + $0x1] sm:$0x1]
    %v1059 = vld [vmem:[#allocation19 + $0x2] sm:$0x1]
    %v1060 = vpack.c.bf16 %v1023, %v1023
    %v1061 = vpack.c.bf16 %v1024, %v1024
    %v1062 = vlaneseq
    %v1063 = vshrl.u32 %v1062, 7
    %v1064 = vsub.s32 0, %v1063
    %v1065 = vrot.slane %v1057, %v1064
    %v1098 = vunpack.c.l.b16 %v1025
    %v1099 = vunpack.c.l.b16 %v1026
    %v1100 = vunpack.c.l.b16 %v1027
    %v1101 = vunpack.c.l.b16 %v1028
    %v1102 = vunpack.c.l.b16 %v1029
    %v1103 = vunpack.c.l.b16 %v1030
    %v1104 = vunpack.c.l.b16 %v1031
    %v1105 = vunpack.c.l.b16 %v1032
    %v1106 = vunpack.c.l.b16 %v1033
    %v1107 = vunpack.c.l.b16 %v1034
    %v1108 = vunpack.c.l.b16 %v1035
    %v1109 = vunpack.c.l.b16 %v1036
    %v1110 = vunpack.c.l.b16 %v1037
    %v1111 = vunpack.c.l.b16 %v1038
    %v1112 = vunpack.c.l.b16 %v1039
    %v1113 = vunpack.c.l.b16 %v1040
    %v1114 = vunpack.c.l.b16 %v1041
    %v1115 = vunpack.c.l.b16 %v1042
    %v1116 = vunpack.c.l.b16 %v1043
    %v1117 = vunpack.c.l.b16 %v1044
    %v1118 = vunpack.c.l.b16 %v1045
    %v1119 = vunpack.c.l.b16 %v1046
    %v1120 = vunpack.c.l.b16 %v1047
    %v1121 = vunpack.c.l.b16 %v1048
    %v1122 = vunpack.c.l.b16 %v1049
    %v1123 = vunpack.c.l.b16 %v1050
    %v1124 = vunpack.c.l.b16 %v1051
    %v1125 = vunpack.c.l.b16 %v1052
    %v1126 = vunpack.c.l.b16 %v1053
    %v1127 = vunpack.c.l.b16 %v1054
    %v1128 = vunpack.c.l.b16 %v1055
    %v1129 = vunpack.c.l.b16 %v1056
    %v1130 = vpack.c.b16 %v1099, %v1098
    %v1131 = vpack.c.b16 %v1101, %v1100
    %v1132 = vpack.c.b16 %v1103, %v1102
    %v1133 = vpack.c.b16 %v1105, %v1104
    %v1134 = vpack.c.b16 %v1107, %v1106
    %v1135 = vpack.c.b16 %v1109, %v1108
    %v1136 = vpack.c.b16 %v1111, %v1110
    %v1137 = vpack.c.b16 %v1113, %v1112
    %v1138 = vpack.c.b16 %v1115, %v1114
    %v1139 = vpack.c.b16 %v1117, %v1116
    %v1140 = vpack.c.b16 %v1119, %v1118
    %v1141 = vpack.c.b16 %v1121, %v1120
    %v1142 = vpack.c.b16 %v1123, %v1122
    %v1143 = vpack.c.b16 %v1125, %v1124
    %v1144 = vpack.c.b16 %v1127, %v1126
    %v1145 = vpack.c.b16 %v1129, %v1128
    %1162 = vmatprep.subr.bf16.mxu0 0
    %1163 = vmatpush1.bf16.msra.mxu0 %v1137
    %1164 = vmatprep.subr.bf16.mxu0 0
    %1165 = vmatpush1.bf16.msra.mxu0 %v1136
    %1166 = vmatprep.subr.bf16.mxu0 0
    %1167 = vmatpush1.bf16.msra.mxu0 %v1135
    %1168 = vmatprep.subr.bf16.mxu0 0
    %1169 = vmatpush1.bf16.msra.mxu0 %v1134
    %1170 = vmatprep.subr.bf16.mxu0 0
    %1171 = vmatpush1.bf16.msra.mxu0 %v1133
    %1172 = vmatprep.subr.bf16.mxu0 0
    %1173 = vmatpush1.bf16.msra.mxu0 %v1132
    %1174 = vmatprep.subr.bf16.mxu0 0
    %1175 = vmatpush1.bf16.msra.mxu0 %v1131
    %1176 = vmatprep.subr.bf16.mxu0 0
    %1177 = vmatpush1.bf16.msra.mxu0 %v1130
    %1178 = vmatprep.subr.bf16.mxu0 0
    %1179 = vmatpush2.bf16.msra.mxu0 %v1145
    %1180 = vmatprep.subr.bf16.mxu0 0
    %1181 = vmatpush2.bf16.msra.mxu0 %v1144
    %1182 = vmatprep.subr.bf16.mxu0 0
    %1183 = vmatpush2.bf16.msra.mxu0 %v1143
    %1184 = vmatprep.subr.bf16.mxu0 0
    %1185 = vmatpush2.bf16.msra.mxu0 %v1142
    %1186 = vmatprep.subr.bf16.mxu0 0
    %1187 = vmatpush2.bf16.msra.mxu0 %v1141
    %1188 = vmatprep.subr.bf16.mxu0 0
    %1189 = vmatpush2.bf16.msra.mxu0 %v1140
    %1190 = vmatprep.subr.bf16.mxu0 0
    %1191 = vmatpush2.bf16.msra.mxu0 %v1139
    %1192 = vmatprep.subr.bf16.mxu0 0
    %1193 = vmatpush2.bf16.msra.mxu0 %v1138
    %1194 = vmatprep.mubr.bf16.mxu0 %v1061
    %1195 = vmatmul.mubr.bf16.gmra.mxu0 %v1060
    %v1196 = vpop.f32.mrf.mxu0
    %v1197 = vadd.f32 %v1065, %v1196
    %v1198 = vpop.f32.mrf.mxu0
    %v1199 = vpop.f32.mrf.mxu0
    %v1200 = vpop.f32.mrf.mxu0
    %1201 = vdwg.mxu0
    %1202 = vadd.xlane.f32.xlu0 %v1197
    %v1203 = vpop.xlane.xlu0 %1202
    %v1204 = vrcp.pop 128.0
    %v1205 = vmul.f32 %v1203, %v1204
    %v1206 = vsub.f32 %v1197, %v1205
    %v1207 = vmul.f32 %v1206, %v1206
    %1208 = vadd.xlane.f32.xlu0 %v1207
    %v1209 = vpop.xlane.xlu0 %1208
    %v1210 = vmul.f32 %v1209, %v1204
    %v1211 = vadd.f32 %v1210, 1e-05
    %v1212 = vrsqrt.pop %v1211
    %v1213 = vmul.f32 %v1206, %v1212
    %v1214 = vlaneseq
    %v1215 = vshrl.u32 %v1214, 7
    %v1216 = vsub.s32 0, %v1215
    %v1217 = vrot.slane %v1058, %v1216
    %v1218 = vmul.f32 %v1213, %v1217
    %v1219 = vlaneseq
    %v1220 = vshrl.u32 %v1219, 7
    %v1221 = vsub.s32 0, %v1220
    %v1222 = vrot.slane %v1059, %v1221
    %v1223 = vadd.f32 %v1218, %v1222
    %v1224 = vmul.f32 %v1223, 0.5
    %v1225 = vmul.f32 %v1223, 0.044715
    %v1226 = vmul.f32 %v1225, %v1223
    %v1227 = vmul.f32 %v1226, %v1223
    %v1228 = vadd.f32 %v1223, %v1227
    %v1229 = vmul.f32 %v1228, 0.7978846
    %v1230 = vtanh.pop %v1229
    %v1231 = vadd.f32 %v1230, 1.0
    %v1232 = vmul.f32 %v1224, %v1231
    %v1233 = vld [vmem:[#allocation11] sm:$0xf]
    %v1234 = vld [vmem:[#allocation11 + $0x4] sm:$0xf]
    %v1235 = vld [vmem:[#allocation11 + $0x8] sm:$0xf]
    %v1236 = vld [vmem:[#allocation11 + $0xc] sm:$0xf]
    %v1237 = vld [vmem:[#allocation11 + $0x10] sm:$0xf]
    %v1238 = vld [vmem:[#allocation11 + $0x14] sm:$0xf]
    %v1239 = vld [vmem:[#allocation11 + $0x18] sm:$0xf]
    %v1240 = vld [vmem:[#allocation11 + $0x1c] sm:$0xf]
    %v1241 = vld [vmem:[#allocation11 + $0x20] sm:$0xf]
    %v1242 = vld [vmem:[#allocation11 + $0x24] sm:$0xf]
    %v1243 = vld [vmem:[#allocation11 + $0x28] sm:$0xf]
    %v1244 = vld [vmem:[#allocation11 + $0x2c] sm:$0xf]
    %v1245 = vld [vmem:[#allocation11 + $0x30] sm:$0xf]
    %v1246 = vld [vmem:[#allocation11 + $0x34] sm:$0xf]
    %v1247 = vld [vmem:[#allocation11 + $0x38] sm:$0xf]
    %v1248 = vld [vmem:[#allocation11 + $0x3c] sm:$0xf]
    %v1249 = vld [vmem:[#allocation11 + $0x40] sm:$0xf]
    %v1250 = vld [vmem:[#allocation11 + $0x44] sm:$0xf]
    %v1251 = vld [vmem:[#allocation11 + $0x48] sm:$0xf]
    %v1252 = vld [vmem:[#allocation11 + $0x4c] sm:$0xf]
    %v1253 = vld [vmem:[#allocation19 + $0x3] sm:$0x1]
    %v1254 = vpack.c.bf16 %v1232, %v1232
    %v1255 = vlaneseq
    %v1256 = vshrl.u32 %v1255, 7
    %v1257 = vsub.s32 0, %v1256
    %v1258 = vrot.slane %v1253, %v1257
    %v1279 = vunpack.c.l.b16 %v1233
    %v1280 = vunpack.c.l.b16 %v1234
    %v1281 = vunpack.c.l.b16 %v1235
    %v1282 = vunpack.c.l.b16 %v1236
    %v1283 = vunpack.c.l.b16 %v1237
    %v1284 = vunpack.c.l.b16 %v1238
    %v1285 = vunpack.c.l.b16 %v1239
    %v1286 = vunpack.c.l.b16 %v1240
    %v1287 = vunpack.c.l.b16 %v1241
    %v1288 = vunpack.c.l.b16 %v1242
    %v1289 = vunpack.c.l.b16 %v1243
    %v1290 = vunpack.c.l.b16 %v1244
    %v1291 = vunpack.c.l.b16 %v1245
    %v1292 = vunpack.c.l.b16 %v1246
    %v1293 = vunpack.c.l.b16 %v1247
    %v1294 = vunpack.c.l.b16 %v1248
    %v1295 = vunpack.c.l.b16 %v1249
    %v1296 = vunpack.c.l.b16 %v1250
    %v1297 = vunpack.c.l.b16 %v1251
    %v1298 = vunpack.c.l.b16 %v1252
    %v1299 = vpack.c.b16 %v1280, %v1279
    %v1300 = vpack.c.b16 %v1282, %v1281
    %v1301 = vpack.c.b16 %v1284, %v1283
    %v1302 = vpack.c.b16 %v1286, %v1285
    %v1303 = vpack.c.b16 %v1288, %v1287
    %v1304 = vpack.c.b16 %v1290, %v1289
    %v1305 = vpack.c.b16 %v1292, %v1291
    %v1306 = vpack.c.b16 %v1294, %v1293
    %v1307 = vpack.c.b16 %v1296, %v1295
    %v1308 = vpack.c.b16 %v1298, %v1297
    %1319 = vmatprep.subr.bf16.mxu0 0
    %1320 = vmatpush1.bf16.msra.mxu0 %v1306
    %1321 = vmatprep.subr.bf16.mxu0 0
    %1322 = vmatpush1.bf16.msra.mxu0 %v1305
    %1323 = vmatprep.subr.bf16.mxu0 0
    %1324 = vmatpush1.bf16.msra.mxu0 %v1304
    %1325 = vmatprep.subr.bf16.mxu0 0
    %1326 = vmatpush1.bf16.msra.mxu0 %v1303
    %1327 = vmatprep.subr.bf16.mxu0 0
    %1328 = vmatpush1.bf16.msra.mxu0 %v1302
    %1329 = vmatprep.subr.bf16.mxu0 0
    %1330 = vmatpush1.bf16.msra.mxu0 %v1301
    %1331 = vmatprep.subr.bf16.mxu0 0
    %1332 = vmatpush1.bf16.msra.mxu0 %v1300
    %1333 = vmatprep.subr.bf16.mxu0 0
    %1334 = vmatpush1.bf16.msra.mxu0 %v1299
    %1335 = vmatprep.subr.bf16.mxu0 0
    %1336 = vmatpush2.bf16.msra.mxu0 0
    %1337 = vmatprep.subr.bf16.mxu0 0
    %1338 = vmatpush2.bf16.msra.mxu0 0
    %1339 = vmatprep.subr.bf16.mxu0 0
    %1340 = vmatpush2.bf16.msra.mxu0 0
    %1341 = vmatprep.subr.bf16.mxu0 0
    %1342 = vmatpush2.bf16.msra.mxu0 0
    %1343 = vmatprep.subr.bf16.mxu0 0
    %1344 = vmatpush2.bf16.msra.mxu0 0
    %1345 = vmatprep.subr.bf16.mxu0 0
    %1346 = vmatpush2.bf16.msra.mxu0 0
    %1347 = vmatprep.subr.bf16.mxu0 0
    %1348 = vmatpush2.bf16.msra.mxu0 %v1308
    %1349 = vmatprep.subr.bf16.mxu0 0
    %1350 = vmatpush2.bf16.msra.mxu0 %v1307
    %1351 = vmatprep.mubr.bf16.mxu0 %v281
    %1352 = vmatmul.mubr.bf16.gmra.mxu0 %v1254
    %v1353 = vpop.f32.mrf.mxu0
    %v1354 = vadd.f32 %v1258, %v1353
    %v1355 = vpop.f32.mrf.mxu0
    %v1356 = vpop.f32.mrf.mxu0
    %v1357 = vpop.f32.mrf.mxu0
    %1358 = vdwg.mxu0
    %s1359 = scalar_lea.vmem %s0, 8
    %v1360 = vld [vmem:[%s1359] sm:$0xff]
    %s1361 = scalar_lea.vmem [#allocation6], 64
    %v1362 = vld [vmem:[%s1361] sm:$0xff]
    %v1363 = vld [vmem:[%s1361 + $0x8] sm:$0xff]
    %v1364 = vld [vmem:[%s1361 + $0x10] sm:$0xff]
    %v1365 = vld [vmem:[%s1361 + $0x18] sm:$0xff]
    %v1366 = vld [vmem:[%s1361 + $0x20] sm:$0xff]
    %v1367 = vld [vmem:[%s1361 + $0x28] sm:$0xff]
    %v1368 = vld [vmem:[%s1361 + $0x30] sm:$0xff]
    %v1369 = vld [vmem:[%s1361 + $0x38] sm:$0xff]
    %s1370 = scalar_lea.vmem %s10, 3
    %v1371 = vld [vmem:[%s1370] ss:$8 sm:$0xf]
    %s1372 = scalar_lea.vmem %s10, 4
    %v1373 = vld [vmem:[%s1372] ss:$8 sm:$0xf]
    %s1374 = scalar_lea.vmem %s10, 5
    %v1375 = vld [vmem:[%s1374] ss:$8 sm:$0xf]
    %v1376 = vpack.c.bf16 %v1360, %v1360
    %v1378 = vlaneseq
    %v1379 = vshrl.u32 %v1378, 7
    %v1380 = vsub.s32 0, %v1379
    %v1381 = vrot.slane %v1371, %v1380
    %v1382 = vlaneseq
    %v1383 = vshrl.u32 %v1382, 7
    %v1384 = vsub.s32 1, %v1383
    %v1385 = vrot.slane %v1371, %v1384
    %v1386 = vlaneseq
    %v1387 = vshrl.u32 %v1386, 7
    %v1388 = vsub.s32 2, %v1387
    %v1389 = vrot.slane %v1371, %v1388
    %v1390 = vlaneseq
    %v1391 = vshrl.u32 %v1390, 7
    %v1392 = vsub.s32 3, %v1391
    %v1393 = vrot.slane %v1371, %v1392
    %v1406 = vunpack.c.l.b16 %v1362
    %v1407 = vunpack.c.h.b16 %v1362
    %v1408 = vunpack.c.l.b16 %v1363
    %v1409 = vunpack.c.h.b16 %v1363
    %v1410 = vunpack.c.l.b16 %v1364
    %v1411 = vunpack.c.h.b16 %v1364
    %v1412 = vunpack.c.l.b16 %v1365
    %v1413 = vunpack.c.h.b16 %v1365
    %v1414 = vunpack.c.l.b16 %v1366
    %v1415 = vunpack.c.h.b16 %v1366
    %v1416 = vunpack.c.l.b16 %v1367
    %v1417 = vunpack.c.h.b16 %v1367
    %v1418 = vunpack.c.l.b16 %v1368
    %v1419 = vunpack.c.h.b16 %v1368
    %v1420 = vunpack.c.l.b16 %v1369
    %v1421 = vunpack.c.h.b16 %v1369
    %v1422 = vpack.c.b16 %v1410, %v1406
    %v1423 = vpack.c.b16 %v1411, %v1407
    %v1424 = vpack.c.b16 %v1412, %v1408
    %v1425 = vpack.c.b16 %v1413, %v1409
    %v1426 = vpack.c.b16 %v1418, %v1414
    %v1427 = vpack.c.b16 %v1419, %v1415
    %v1428 = vpack.c.b16 %v1420, %v1416
    %v1429 = vpack.c.b16 %v1421, %v1417
    %v1439 = vsel %vm279, %v1376, 0
    %1441 = vmatprep.subr.bf16.mxu0 0
    %1442 = vmatpush1.bf16.msra.mxu0 0
    %1443 = vmatprep.subr.bf16.mxu0 0
    %1444 = vmatpush1.bf16.msra.mxu0 0
    %1445 = vmatprep.subr.bf16.mxu0 0
    %1446 = vmatpush1.bf16.msra.mxu0 0
    %1447 = vmatprep.subr.bf16.mxu0 0
    %1448 = vmatpush1.bf16.msra.mxu0 0
    %1449 = vmatprep.subr.bf16.mxu0 0
    %1450 = vmatpush1.bf16.msra.mxu0 0
    %1451 = vmatprep.subr.bf16.mxu0 0
    %1452 = vmatpush1.bf16.msra.mxu0 0
    %1453 = vmatprep.subr.bf16.mxu0 %v1427
    %1454 = vmatpush1.bf16.msra.mxu0 %v1426
    %1455 = vmatprep.subr.bf16.mxu0 %v1423
    %1456 = vmatpush1.bf16.msra.mxu0 %v1422
    %1457 = vmatprep.subr.bf16.mxu0 0
    %1458 = vmatpush2.bf16.msra.mxu0 0
    %1459 = vmatprep.subr.bf16.mxu0 0
    %1460 = vmatpush2.bf16.msra.mxu0 0
    %1461 = vmatprep.subr.bf16.mxu0 0
    %1462 = vmatpush2.bf16.msra.mxu0 0
    %1463 = vmatprep.subr.bf16.mxu0 0
    %1464 = vmatpush2.bf16.msra.mxu0 0
    %1465 = vmatprep.subr.bf16.mxu0 0
    %1466 = vmatpush2.bf16.msra.mxu0 0
    %1467 = vmatprep.subr.bf16.mxu0 0
    %1468 = vmatpush2.bf16.msra.mxu0 0
    %1469 = vmatprep.subr.bf16.mxu0 0
    %1470 = vmatpush2.bf16.msra.mxu0 0
    %1471 = vmatprep.subr.bf16.mxu0 0
    %1472 = vmatpush2.bf16.msra.mxu0 0
    %1473 = vmatprep.mubr.bf16.mxu0 0
    %1474 = vmatmul.mubr.bf16.gmra.mxu0 %v1439
    %v1475 = vpop.f32.mrf.mxu0
    %v1476 = vadd.f32 %v1381, %v1475
    %v1477 = vpop.f32.mrf.mxu0
    %v1478 = vadd.f32 %v1385, %v1477
    %v1479 = vpop.f32.mrf.mxu0
    %v1480 = vpop.f32.mrf.mxu0
    %1481 = vdwg.mxu0
    %1482 = vmatprep.subr.bf16.mxu0 0
    %1483 = vmatpush1.bf16.msra.mxu0 0
    %1484 = vmatprep.subr.bf16.mxu0 0
    %1485 = vmatpush1.bf16.msra.mxu0 0
    %1486 = vmatprep.subr.bf16.mxu0 0
    %1487 = vmatpush1.bf16.msra.mxu0 0
    %1488 = vmatprep.subr.bf16.mxu0 0
    %1489 = vmatpush1.bf16.msra.mxu0 0
    %1490 = vmatprep.subr.bf16.mxu0 0
    %1491 = vmatpush1.bf16.msra.mxu0 0
    %1492 = vmatprep.subr.bf16.mxu0 0
    %1493 = vmatpush1.bf16.msra.mxu0 0
    %1494 = vmatprep.subr.bf16.mxu0 %v1429
    %1495 = vmatpush1.bf16.msra.mxu0 %v1428
    %1496 = vmatprep.subr.bf16.mxu0 %v1425
    %1497 = vmatpush1.bf16.msra.mxu0 %v1424
    %1498 = vmatprep.subr.bf16.mxu0 0
    %1499 = vmatpush2.bf16.msra.mxu0 0
    %1500 = vmatprep.subr.bf16.mxu0 0
    %1501 = vmatpush2.bf16.msra.mxu0 0
    %1502 = vmatprep.subr.bf16.mxu0 0
    %1503 = vmatpush2.bf16.msra.mxu0 0
    %1504 = vmatprep.subr.bf16.mxu0 0
    %1505 = vmatpush2.bf16.msra.mxu0 0
    %1506 = vmatprep.subr.bf16.mxu0 0
    %1507 = vmatpush2.bf16.msra.mxu0 0
    %1508 = vmatprep.subr.bf16.mxu0 0
    %1509 = vmatpush2.bf16.msra.mxu0 0
    %1510 = vmatprep.subr.bf16.mxu0 0
    %1511 = vmatpush2.bf16.msra.mxu0 0
    %1512 = vmatprep.subr.bf16.mxu0 0
    %1513 = vmatpush2.bf16.msra.mxu0 0
    %1514 = vmatprep.mubr.bf16.mxu0 0
    %1515 = vmatmul.mubr.bf16.gmra.mxu0 %v1439
    %v1516 = vpop.f32.mrf.mxu0
    %v1517 = vadd.f32 %v1389, %v1516
    %v1518 = vpop.f32.mrf.mxu0
    %v1519 = vadd.f32 %v1393, %v1518
    %v1520 = vpop.f32.mrf.mxu0
    %v1521 = vpop.f32.mrf.mxu0
    %1522 = vdwg.mxu0
    %v1523 = vadd.f32 %v1476, %v1478
    %v1524 = vadd.f32 %v1523, %v1517
    %v1525 = vadd.f32 %v1524, %v1519
    %1526 = vadd.xlane.f32.xlu0 %v1525
    %v1527 = vpop.xlane.xlu0 %1526
    %v1528 = vmul.f32 %v1527, %v370
    %v1529 = vsub.f32 %v1476, %v1528
    %v1530 = vsub.f32 %v1478, %v1528
    %v1531 = vsub.f32 %v1517, %v1528
    %v1532 = vsub.f32 %v1519, %v1528
    %v1533 = vmul.f32 %v1529, %v1529
    %v1534 = vmul.f32 %v1530, %v1530
    %v1535 = vmul.f32 %v1531, %v1531
    %v1536 = vmul.f32 %v1532, %v1532
    %v1537 = vadd.f32 %v1533, %v1534
    %v1538 = vadd.f32 %v1537, %v1535
    %v1539 = vadd.f32 %v1538, %v1536
    %1540 = vadd.xlane.f32.xlu0 %v1539
    %v1541 = vpop.xlane.xlu0 %1540
    %v1542 = vmul.f32 %v1541, %v370
    %v1543 = vadd.f32 %v1542, 1e-05
    %v1544 = vrsqrt.pop %v1543
    %v1545 = vmul.f32 %v1529, %v1544
    %v1546 = vmul.f32 %v1530, %v1544
    %v1547 = vmul.f32 %v1531, %v1544
    %v1548 = vmul.f32 %v1532, %v1544
    %v1550 = vlaneseq
    %v1551 = vshrl.u32 %v1550, 7
    %v1552 = vsub.s32 0, %v1551
    %v1553 = vrot.slane %v1373, %v1552
    %v1554 = vlaneseq
    %v1555 = vshrl.u32 %v1554, 7
    %v1556 = vsub.s32 1, %v1555
    %v1557 = vrot.slane %v1373, %v1556
    %v1558 = vlaneseq
    %v1559 = vshrl.u32 %v1558, 7
    %v1560 = vsub.s32 2, %v1559
    %v1561 = vrot.slane %v1373, %v1560
    %v1562 = vlaneseq
    %v1563 = vshrl.u32 %v1562, 7
    %v1564 = vsub.s32 3, %v1563
    %v1565 = vrot.slane %v1373, %v1564
    %v1570 = vmul.f32 %v1545, %v1553
    %v1571 = vmul.f32 %v1546, %v1557
    %v1572 = vmul.f32 %v1547, %v1561
    %v1573 = vmul.f32 %v1548, %v1565
    %v1575 = vlaneseq
    %v1576 = vshrl.u32 %v1575, 7
    %v1577 = vsub.s32 0, %v1576
    %v1578 = vrot.slane %v1375, %v1577
    %v1579 = vlaneseq
    %v1580 = vshrl.u32 %v1579, 7
    %v1581 = vsub.s32 1, %v1580
    %v1582 = vrot.slane %v1375, %v1581
    %v1583 = vlaneseq
    %v1584 = vshrl.u32 %v1583, 7
    %v1585 = vsub.s32 2, %v1584
    %v1586 = vrot.slane %v1375, %v1585
    %v1587 = vlaneseq
    %v1588 = vshrl.u32 %v1587, 7
    %v1589 = vsub.s32 3, %v1588
    %v1590 = vrot.slane %v1375, %v1589
    %v1595 = vadd.f32 %v1570, %v1578
    %v1596 = vadd.f32 %v1571, %v1582
    %v1597 = vadd.f32 %v1572, %v1586
    %v1598 = vadd.f32 %v1573, %v1590
    %v1599 = vmul.f32 %v1595, 0.5
    %v1600 = vmul.f32 %v1596, 0.5
    %v1601 = vmul.f32 %v1597, 0.5
    %v1602 = vmul.f32 %v1598, 0.5
    %v1603 = vmul.f32 %v1595, 0.044715
    %v1604 = vmul.f32 %v1596, 0.044715
    %v1605 = vmul.f32 %v1597, 0.044715
    %v1606 = vmul.f32 %v1598, 0.044715
    %v1607 = vmul.f32 %v1603, %v1595
    %v1608 = vmul.f32 %v1604, %v1596
    %v1609 = vmul.f32 %v1605, %v1597
    %v1610 = vmul.f32 %v1606, %v1598
    %v1611 = vmul.f32 %v1607, %v1595
    %v1612 = vmul.f32 %v1608, %v1596
    %v1613 = vmul.f32 %v1609, %v1597
    %v1614 = vmul.f32 %v1610, %v1598
    %v1615 = vadd.f32 %v1595, %v1611
    %v1616 = vadd.f32 %v1596, %v1612
    %v1617 = vadd.f32 %v1597, %v1613
    %v1618 = vadd.f32 %v1598, %v1614
    %v1619 = vmul.f32 %v1615, 0.7978846
    %v1620 = vmul.f32 %v1616, 0.7978846
    %v1621 = vmul.f32 %v1617, 0.7978846
    %v1622 = vmul.f32 %v1618, 0.7978846
    %v1623 = vtanh.pop %v1619
    %v1624 = vtanh.pop %v1620
    %v1625 = vtanh.pop %v1621
    %v1626 = vtanh.pop %v1622
    %v1627 = vadd.f32 %v1623, 1.0
    %v1628 = vadd.f32 %v1624, 1.0
    %v1629 = vadd.f32 %v1625, 1.0
    %v1630 = vadd.f32 %v1626, 1.0
    %v1631 = vmul.f32 %v1599, %v1627
    %v1632 = vmul.f32 %v1600, %v1628
    %v1633 = vmul.f32 %v1601, %v1629
    %v1634 = vmul.f32 %v1602, %v1630
    %s1635 = scalar_lea.vmem [#allocation8], 512
    %v1636 = vld [vmem:[%s1635] sm:$0xff]
    %v1637 = vld [vmem:[%s1635 + $0x8] sm:$0xff]
    %v1638 = vld [vmem:[%s1635 + $0x10] sm:$0xff]
    %v1639 = vld [vmem:[%s1635 + $0x18] sm:$0xff]
    %v1640 = vld [vmem:[%s1635 + $0x20] sm:$0xff]
    %v1641 = vld [vmem:[%s1635 + $0x28] sm:$0xff]
    %v1642 = vld [vmem:[%s1635 + $0x30] sm:$0xff]
    %v1643 = vld [vmem:[%s1635 + $0x38] sm:$0xff]
    %v1644 = vld [vmem:[%s1635 + $0x40] sm:$0xff]
    %v1645 = vld [vmem:[%s1635 + $0x48] sm:$0xff]
    %v1646 = vld [vmem:[%s1635 + $0x50] sm:$0xff]
    %v1647 = vld [vmem:[%s1635 + $0x58] sm:$0xff]
    %v1648 = vld [vmem:[%s1635 + $0x60] sm:$0xff]
    %v1649 = vld [vmem:[%s1635 + $0x68] sm:$0xff]
    %v1650 = vld [vmem:[%s1635 + $0x70] sm:$0xff]
    %v1651 = vld [vmem:[%s1635 + $0x78] sm:$0xff]
    %v1652 = vld [vmem:[%s1635 + $0x80] sm:$0xff]
    %v1653 = vld [vmem:[%s1635 + $0x88] sm:$0xff]
    %v1654 = vld [vmem:[%s1635 + $0x90] sm:$0xff]
    %v1655 = vld [vmem:[%s1635 + $0x98] sm:$0xff]
    %v1656 = vld [vmem:[%s1635 + $0xa0] sm:$0xff]
    %v1657 = vld [vmem:[%s1635 + $0xa8] sm:$0xff]
    %v1658 = vld [vmem:[%s1635 + $0xb0] sm:$0xff]
    %v1659 = vld [vmem:[%s1635 + $0xb8] sm:$0xff]
    %v1660 = vld [vmem:[%s1635 + $0xc0] sm:$0xff]
    %v1661 = vld [vmem:[%s1635 + $0xc8] sm:$0xff]
    %v1662 = vld [vmem:[%s1635 + $0xd0] sm:$0xff]
    %v1663 = vld [vmem:[%s1635 + $0xd8] sm:$0xff]
    %v1664 = vld [vmem:[%s1635 + $0xe0] sm:$0xff]
    %v1665 = vld [vmem:[%s1635 + $0xe8] sm:$0xff]
    %v1666 = vld [vmem:[%s1635 + $0xf0] sm:$0xff]
    %v1667 = vld [vmem:[%s1635 + $0xf8] sm:$0xff]
    %v1668 = vld [vmem:[%s1635 + $0x100] sm:$0xff]
    %v1669 = vld [vmem:[%s1635 + $0x108] sm:$0xff]
    %v1670 = vld [vmem:[%s1635 + $0x110] sm:$0xff]
    %v1671 = vld [vmem:[%s1635 + $0x118] sm:$0xff]
    %v1672 = vld [vmem:[%s1635 + $0x120] sm:$0xff]
    %v1673 = vld [vmem:[%s1635 + $0x128] sm:$0xff]
    %v1674 = vld [vmem:[%s1635 + $0x130] sm:$0xff]
    %v1675 = vld [vmem:[%s1635 + $0x138] sm:$0xff]
    %v1676 = vld [vmem:[%s1635 + $0x140] sm:$0xff]
    %v1677 = vld [vmem:[%s1635 + $0x148] sm:$0xff]
    %v1678 = vld [vmem:[%s1635 + $0x150] sm:$0xff]
    %v1679 = vld [vmem:[%s1635 + $0x158] sm:$0xff]
    %v1680 = vld [vmem:[%s1635 + $0x160] sm:$0xff]
    %v1681 = vld [vmem:[%s1635 + $0x168] sm:$0xff]
    %v1682 = vld [vmem:[%s1635 + $0x170] sm:$0xff]
    %v1683 = vld [vmem:[%s1635 + $0x178] sm:$0xff]
    %v1684 = vld [vmem:[%s1635 + $0x180] sm:$0xff]
    %v1685 = vld [vmem:[%s1635 + $0x188] sm:$0xff]
    %v1686 = vld [vmem:[%s1635 + $0x190] sm:$0xff]
    %v1687 = vld [vmem:[%s1635 + $0x198] sm:$0xff]
    %v1688 = vld [vmem:[%s1635 + $0x1a0] sm:$0xff]
    %v1689 = vld [vmem:[%s1635 + $0x1a8] sm:$0xff]
    %v1690 = vld [vmem:[%s1635 + $0x1b0] sm:$0xff]
    %v1691 = vld [vmem:[%s1635 + $0x1b8] sm:$0xff]
    %v1692 = vld [vmem:[%s1635 + $0x1c0] sm:$0xff]
    %v1693 = vld [vmem:[%s1635 + $0x1c8] sm:$0xff]
    %v1694 = vld [vmem:[%s1635 + $0x1d0] sm:$0xff]
    %v1695 = vld [vmem:[%s1635 + $0x1d8] sm:$0xff]
    %v1696 = vld [vmem:[%s1635 + $0x1e0] sm:$0xff]
    %v1697 = vld [vmem:[%s1635 + $0x1e8] sm:$0xff]
    %v1698 = vld [vmem:[%s1635 + $0x1f0] sm:$0xff]
    %v1699 = vld [vmem:[%s1635 + $0x1f8] sm:$0xff]
    %s1700 = scalar_lea.vmem [#allocation17], 3
    %v1701 = vld [vmem:[%s1700] ss:$8 sm:$0x3]
    %s1702 = scalar_lea.vmem [#allocation17], 4
    %v1703 = vld [vmem:[%s1702] ss:$8 sm:$0x3]
    %s1704 = scalar_lea.vmem [#allocation17], 5
    %v1705 = vld [vmem:[%s1704] ss:$8 sm:$0x3]
    %v1706 = vpack.c.bf16 %v1631, %v1631
    %v1707 = vpack.c.bf16 %v1632, %v1632
    %v1708 = vpack.c.bf16 %v1633, %v1633
    %v1709 = vpack.c.bf16 %v1634, %v1634
    %v1711 = vlaneseq
    %v1712 = vshrl.u32 %v1711, 7
    %v1713 = vsub.s32 0, %v1712
    %v1714 = vrot.slane %v1701, %v1713
    %v1715 = vlaneseq
    %v1716 = vshrl.u32 %v1715, 7
    %v1717 = vsub.s32 1, %v1716
    %v1718 = vrot.slane %v1701, %v1717
    %v1785 = vunpack.c.l.b16 %v1636
    %v1786 = vunpack.c.h.b16 %v1636
    %v1787 = vunpack.c.l.b16 %v1637
    %v1788 = vunpack.c.h.b16 %v1637
    %v1789 = vunpack.c.l.b16 %v1638
    %v1790 = vunpack.c.h.b16 %v1638
    %v1791 = vunpack.c.l.b16 %v1639
    %v1792 = vunpack.c.h.b16 %v1639
    %v1793 = vunpack.c.l.b16 %v1640
    %v1794 = vunpack.c.h.b16 %v1640
    %v1795 = vunpack.c.l.b16 %v1641
    %v1796 = vunpack.c.h.b16 %v1641
    %v1797 = vunpack.c.l.b16 %v1642
    %v1798 = vunpack.c.h.b16 %v1642
    %v1799 = vunpack.c.l.b16 %v1643
    %v1800 = vunpack.c.h.b16 %v1643
    %v1801 = vunpack.c.l.b16 %v1644
    %v1802 = vunpack.c.h.b16 %v1644
    %v1803 = vunpack.c.l.b16 %v1645
    %v1804 = vunpack.c.h.b16 %v1645
    %v1805 = vunpack.c.l.b16 %v1646
    %v1806 = vunpack.c.h.b16 %v1646
    %v1807 = vunpack.c.l.b16 %v1647
    %v1808 = vunpack.c.h.b16 %v1647
    %v1809 = vunpack.c.l.b16 %v1648
    %v1810 = vunpack.c.h.b16 %v1648
    %v1811 = vunpack.c.l.b16 %v1649
    %v1812 = vunpack.c.h.b16 %v1649
    %v1813 = vunpack.c.l.b16 %v1650
    %v1814 = vunpack.c.h.b16 %v1650
    %v1815 = vunpack.c.l.b16 %v1651
    %v1816 = vunpack.c.h.b16 %v1651
    %v1817 = vunpack.c.l.b16 %v1652
    %v1818 = vunpack.c.h.b16 %v1652
    %v1819 = vunpack.c.l.b16 %v1653
    %v1820 = vunpack.c.h.b16 %v1653
    %v1821 = vunpack.c.l.b16 %v1654
    %v1822 = vunpack.c.h.b16 %v1654
    %v1823 = vunpack.c.l.b16 %v1655
    %v1824 = vunpack.c.h.b16 %v1655
    %v1825 = vunpack.c.l.b16 %v1656
    %v1826 = vunpack.c.h.b16 %v1656
    %v1827 = vunpack.c.l.b16 %v1657
    %v1828 = vunpack.c.h.b16 %v1657
    %v1829 = vunpack.c.l.b16 %v1658
    %v1830 = vunpack.c.h.b16 %v1658
    %v1831 = vunpack.c.l.b16 %v1659
    %v1832 = vunpack.c.h.b16 %v1659
    %v1833 = vunpack.c.l.b16 %v1660
    %v1834 = vunpack.c.h.b16 %v1660
    %v1835 = vunpack.c.l.b16 %v1661
    %v1836 = vunpack.c.h.b16 %v1661
    %v1837 = vunpack.c.l.b16 %v1662
    %v1838 = vunpack.c.h.b16 %v1662
    %v1839 = vunpack.c.l.b16 %v1663
    %v1840 = vunpack.c.h.b16 %v1663
    %v1841 = vunpack.c.l.b16 %v1664
    %v1842 = vunpack.c.h.b16 %v1664
    %v1843 = vunpack.c.l.b16 %v1665
    %v1844 = vunpack.c.h.b16 %v1665
    %v1845 = vunpack.c.l.b16 %v1666
    %v1846 = vunpack.c.h.b16 %v1666
    %v1847 = vunpack.c.l.b16 %v1667
    %v1848 = vunpack.c.h.b16 %v1667
    %v1849 = vunpack.c.l.b16 %v1668
    %v1850 = vunpack.c.h.b16 %v1668
    %v1851 = vunpack.c.l.b16 %v1669
    %v1852 = vunpack.c.h.b16 %v1669
    %v1853 = vunpack.c.l.b16 %v1670
    %v1854 = vunpack.c.h.b16 %v1670
    %v1855 = vunpack.c.l.b16 %v1671
    %v1856 = vunpack.c.h.b16 %v1671
    %v1857 = vunpack.c.l.b16 %v1672
    %v1858 = vunpack.c.h.b16 %v1672
    %v1859 = vunpack.c.l.b16 %v1673
    %v1860 = vunpack.c.h.b16 %v1673
    %v1861 = vunpack.c.l.b16 %v1674
    %v1862 = vunpack.c.h.b16 %v1674
    %v1863 = vunpack.c.l.b16 %v1675
    %v1864 = vunpack.c.h.b16 %v1675
    %v1865 = vunpack.c.l.b16 %v1676
    %v1866 = vunpack.c.h.b16 %v1676
    %v1867 = vunpack.c.l.b16 %v1677
    %v1868 = vunpack.c.h.b16 %v1677
    %v1869 = vunpack.c.l.b16 %v1678
    %v1870 = vunpack.c.h.b16 %v1678
    %v1871 = vunpack.c.l.b16 %v1679
    %v1872 = vunpack.c.h.b16 %v1679
    %v1873 = vunpack.c.l.b16 %v1680
    %v1874 = vunpack.c.h.b16 %v1680
    %v1875 = vunpack.c.l.b16 %v1681
    %v1876 = vunpack.c.h.b16 %v1681
    %v1877 = vunpack.c.l.b16 %v1682
    %v1878 = vunpack.c.h.b16 %v1682
    %v1879 = vunpack.c.l.b16 %v1683
    %v1880 = vunpack.c.h.b16 %v1683
    %v1881 = vunpack.c.l.b16 %v1684
    %v1882 = vunpack.c.h.b16 %v1684
    %v1883 = vunpack.c.l.b16 %v1685
    %v1884 = vunpack.c.h.b16 %v1685
    %v1885 = vunpack.c.l.b16 %v1686
    %v1886 = vunpack.c.h.b16 %v1686
    %v1887 = vunpack.c.l.b16 %v1687
    %v1888 = vunpack.c.h.b16 %v1687
    %v1889 = vunpack.c.l.b16 %v1688
    %v1890 = vunpack.c.h.b16 %v1688
    %v1891 = vunpack.c.l.b16 %v1689
    %v1892 = vunpack.c.h.b16 %v1689
    %v1893 = vunpack.c.l.b16 %v1690
    %v1894 = vunpack.c.h.b16 %v1690
    %v1895 = vunpack.c.l.b16 %v1691
    %v1896 = vunpack.c.h.b16 %v1691
    %v1897 = vunpack.c.l.b16 %v1692
    %v1898 = vunpack.c.h.b16 %v1692
    %v1899 = vunpack.c.l.b16 %v1693
    %v1900 = vunpack.c.h.b16 %v1693
    %v1901 = vunpack.c.l.b16 %v1694
    %v1902 = vunpack.c.h.b16 %v1694
    %v1903 = vunpack.c.l.b16 %v1695
    %v1904 = vunpack.c.h.b16 %v1695
    %v1905 = vunpack.c.l.b16 %v1696
    %v1906 = vunpack.c.h.b16 %v1696
    %v1907 = vunpack.c.l.b16 %v1697
    %v1908 = vunpack.c.h.b16 %v1697
    %v1909 = vunpack.c.l.b16 %v1698
    %v1910 = vunpack.c.h.b16 %v1698
    %v1911 = vunpack.c.l.b16 %v1699
    %v1912 = vunpack.c.h.b16 %v1699
    %v1913 = vpack.c.b16 %v1787, %v1785
    %v1914 = vpack.c.b16 %v1788, %v1786
    %v1915 = vpack.c.b16 %v1791, %v1789
    %v1916 = vpack.c.b16 %v1792, %v1790
    %v1917 = vpack.c.b16 %v1795, %v1793
    %v1918 = vpack.c.b16 %v1796, %v1794
    %v1919 = vpack.c.b16 %v1799, %v1797
    %v1920 = vpack.c.b16 %v1800, %v1798
    %v1921 = vpack.c.b16 %v1803, %v1801
    %v1922 = vpack.c.b16 %v1804, %v1802
    %v1923 = vpack.c.b16 %v1807, %v1805
    %v1924 = vpack.c.b16 %v1808, %v1806
    %v1925 = vpack.c.b16 %v1811, %v1809
    %v1926 = vpack.c.b16 %v1812, %v1810
    %v1927 = vpack.c.b16 %v1815, %v1813
    %v1928 = vpack.c.b16 %v1816, %v1814
    %v1929 = vpack.c.b16 %v1819, %v1817
    %v1930 = vpack.c.b16 %v1820, %v1818
    %v1931 = vpack.c.b16 %v1823, %v1821
    %v1932 = vpack.c.b16 %v1824, %v1822
    %v1933 = vpack.c.b16 %v1827, %v1825
    %v1934 = vpack.c.b16 %v1828, %v1826
    %v1935 = vpack.c.b16 %v1831, %v1829
    %v1936 = vpack.c.b16 %v1832, %v1830
    %v1937 = vpack.c.b16 %v1835, %v1833
    %v1938 = vpack.c.b16 %v1836, %v1834
    %v1939 = vpack.c.b16 %v1839, %v1837
    %v1940 = vpack.c.b16 %v1840, %v1838
    %v1941 = vpack.c.b16 %v1843, %v1841
    %v1942 = vpack.c.b16 %v1844, %v1842
    %v1943 = vpack.c.b16 %v1847, %v1845
    %v1944 = vpack.c.b16 %v1848, %v1846
    %v1945 = vpack.c.b16 %v1851, %v1849
    %v1946 = vpack.c.b16 %v1852, %v1850
    %v1947 = vpack.c.b16 %v1855, %v1853
    %v1948 = vpack.c.b16 %v1856, %v1854
    %v1949 = vpack.c.b16 %v1859, %v1857
    %v1950 = vpack.c.b16 %v1860, %v1858
    %v1951 = vpack.c.b16 %v1863, %v1861
    %v1952 = vpack.c.b16 %v1864, %v1862
    %v1953 = vpack.c.b16 %v1867, %v1865
    %v1954 = vpack.c.b16 %v1868, %v1866
    %v1955 = vpack.c.b16 %v1871, %v1869
    %v1956 = vpack.c.b16 %v1872, %v1870
    %v1957 = vpack.c.b16 %v1875, %v1873
    %v1958 = vpack.c.b16 %v1876, %v1874
    %v1959 = vpack.c.b16 %v1879, %v1877
    %v1960 = vpack.c.b16 %v1880, %v1878
    %v1961 = vpack.c.b16 %v1883, %v1881
    %v1962 = vpack.c.b16 %v1884, %v1882
    %v1963 = vpack.c.b16 %v1887, %v1885
    %v1964 = vpack.c.b16 %v1888, %v1886
    %v1965 = vpack.c.b16 %v1891, %v1889
    %v1966 = vpack.c.b16 %v1892, %v1890
    %v1967 = vpack.c.b16 %v1895, %v1893
    %v1968 = vpack.c.b16 %v1896, %v1894
    %v1969 = vpack.c.b16 %v1899, %v1897
    %v1970 = vpack.c.b16 %v1900, %v1898
    %v1971 = vpack.c.b16 %v1903, %v1901
    %v1972 = vpack.c.b16 %v1904, %v1902
    %v1973 = vpack.c.b16 %v1907, %v1905
    %v1974 = vpack.c.b16 %v1908, %v1906
    %v1975 = vpack.c.b16 %v1911, %v1909
    %v1976 = vpack.c.b16 %v1912, %v1910
    %2041 = vmatprep.subr.bf16.mxu0 %v1928
    %2042 = vmatpush1.bf16.msra.mxu0 %v1927
    %2043 = vmatprep.subr.bf16.mxu0 %v1926
    %2044 = vmatpush1.bf16.msra.mxu0 %v1925
    %2045 = vmatprep.subr.bf16.mxu0 %v1924
    %2046 = vmatpush1.bf16.msra.mxu0 %v1923
    %2047 = vmatprep.subr.bf16.mxu0 %v1922
    %2048 = vmatpush1.bf16.msra.mxu0 %v1921
    %2049 = vmatprep.subr.bf16.mxu0 %v1920
    %2050 = vmatpush1.bf16.msra.mxu0 %v1919
    %2051 = vmatprep.subr.bf16.mxu0 %v1918
    %2052 = vmatpush1.bf16.msra.mxu0 %v1917
    %2053 = vmatprep.subr.bf16.mxu0 %v1916
    %2054 = vmatpush1.bf16.msra.mxu0 %v1915
    %2055 = vmatprep.subr.bf16.mxu0 %v1914
    %2056 = vmatpush1.bf16.msra.mxu0 %v1913
    %2057 = vmatprep.subr.bf16.mxu0 %v1944
    %2058 = vmatpush2.bf16.msra.mxu0 %v1943
    %2059 = vmatprep.subr.bf16.mxu0 %v1942
    %2060 = vmatpush2.bf16.msra.mxu0 %v1941
    %2061 = vmatprep.subr.bf16.mxu0 %v1940
    %2062 = vmatpush2.bf16.msra.mxu0 %v1939
    %2063 = vmatprep.subr.bf16.mxu0 %v1938
    %2064 = vmatpush2.bf16.msra.mxu0 %v1937
    %2065 = vmatprep.subr.bf16.mxu0 %v1936
    %2066 = vmatpush2.bf16.msra.mxu0 %v1935
    %2067 = vmatprep.subr.bf16.mxu0 %v1934
    %2068 = vmatpush2.bf16.msra.mxu0 %v1933
    %2069 = vmatprep.subr.bf16.mxu0 %v1932
    %2070 = vmatpush2.bf16.msra.mxu0 %v1931
    %2071 = vmatprep.subr.bf16.mxu0 %v1930
    %2072 = vmatpush2.bf16.msra.mxu0 %v1929
    %2073 = vmatprep.mubr.bf16.mxu0 %v1707
    %2074 = vmatmul.mubr.bf16.gmra.mxu0 %v1706
    %v2075 = vpop.f32.mrf.mxu0
    %v2076 = vadd.f32 %v1714, %v2075
    %v2077 = vpop.f32.mrf.mxu0
    %v2078 = vadd.f32 %v1718, %v2077
    %v2079 = vpop.f32.mrf.mxu0
    %v2080 = vpop.f32.mrf.mxu0
    %2081 = vdwg.mxu0
    %2082 = vmatprep.subr.bf16.mxu0 %v1960
    %2083 = vmatpush1.bf16.msra.mxu0 %v1959
    %2084 = vmatprep.subr.bf16.mxu0 %v1958
    %2085 = vmatpush1.bf16.msra.mxu0 %v1957
    %2086 = vmatprep.subr.bf16.mxu0 %v1956
    %2087 = vmatpush1.bf16.msra.mxu0 %v1955
    %2088 = vmatprep.subr.bf16.mxu0 %v1954
    %2089 = vmatpush1.bf16.msra.mxu0 %v1953
    %2090 = vmatprep.subr.bf16.mxu0 %v1952
    %2091 = vmatpush1.bf16.msra.mxu0 %v1951
    %2092 = vmatprep.subr.bf16.mxu0 %v1950
    %2093 = vmatpush1.bf16.msra.mxu0 %v1949
    %2094 = vmatprep.subr.bf16.mxu0 %v1948
    %2095 = vmatpush1.bf16.msra.mxu0 %v1947
    %2096 = vmatprep.subr.bf16.mxu0 %v1946
    %2097 = vmatpush1.bf16.msra.mxu0 %v1945
    %2098 = vmatprep.subr.bf16.mxu0 %v1976
    %2099 = vmatpush2.bf16.msra.mxu0 %v1975
    %2100 = vmatprep.subr.bf16.mxu0 %v1974
    %2101 = vmatpush2.bf16.msra.mxu0 %v1973
    %2102 = vmatprep.subr.bf16.mxu0 %v1972
    %2103 = vmatpush2.bf16.msra.mxu0 %v1971
    %2104 = vmatprep.subr.bf16.mxu0 %v1970
    %2105 = vmatpush2.bf16.msra.mxu0 %v1969
    %2106 = vmatprep.subr.bf16.mxu0 %v1968
    %2107 = vmatpush2.bf16.msra.mxu0 %v1967
    %2108 = vmatprep.subr.bf16.mxu0 %v1966
    %2109 = vmatpush2.bf16.msra.mxu0 %v1965
    %2110 = vmatprep.subr.bf16.mxu0 %v1964
    %2111 = vmatpush2.bf16.msra.mxu0 %v1963
    %2112 = vmatprep.subr.bf16.mxu0 %v1962
    %2113 = vmatpush2.bf16.msra.mxu0 %v1961
    %2114 = vmatprep.mubr.bf16.mxu0 %v1709
    %2115 = vmatmul.mubr.bf16.gmra.mxu0 %v1708
    %v2116 = vpop.f32.mrf.mxu0
    %v2117 = vadd.f32 %v2076, %v2116
    %v2118 = vpop.f32.mrf.mxu0
    %v2119 = vadd.f32 %v2078, %v2118
    %v2120 = vpop.f32.mrf.mxu0
    %v2121 = vpop.f32.mrf.mxu0
    %2122 = vdwg.mxu0
    %v2123 = vadd.f32 %v2117, %v2119
    %2124 = vadd.xlane.f32.xlu0 %v2123
    %v2125 = vpop.xlane.xlu0 %2124
    %v2126 = vmul.f32 %v2125, %v967
    %v2127 = vsub.f32 %v2117, %v2126
    %v2128 = vsub.f32 %v2119, %v2126
    %v2129 = vmul.f32 %v2127, %v2127
    %v2130 = vmul.f32 %v2128, %v2128
    %v2131 = vadd.f32 %v2129, %v2130
    %2132 = vadd.xlane.f32.xlu0 %v2131
    %v2133 = vpop.xlane.xlu0 %2132
    %v2134 = vmul.f32 %v2133, %v967
    %v2135 = vadd.f32 %v2134, 1e-05
    %v2136 = vrsqrt.pop %v2135
    %v2137 = vmul.f32 %v2127, %v2136
    %v2138 = vmul.f32 %v2128, %v2136
    %v2140 = vlaneseq
    %v2141 = vshrl.u32 %v2140, 7
    %v2142 = vsub.s32 0, %v2141
    %v2143 = vrot.slane %v1703, %v2142
    %v2144 = vlaneseq
    %v2145 = vshrl.u32 %v2144, 7
    %v2146 = vsub.s32 1, %v2145
    %v2147 = vrot.slane %v1703, %v2146
    %v2150 = vmul.f32 %v2137, %v2143
    %v2151 = vmul.f32 %v2138, %v2147
    %v2153 = vlaneseq
    %v2154 = vshrl.u32 %v2153, 7
    %v2155 = vsub.s32 0, %v2154
    %v2156 = vrot.slane %v1705, %v2155
    %v2157 = vlaneseq
    %v2158 = vshrl.u32 %v2157, 7
    %v2159 = vsub.s32 1, %v2158
    %v2160 = vrot.slane %v1705, %v2159
    %v2163 = vadd.f32 %v2150, %v2156
    %v2164 = vadd.f32 %v2151, %v2160
    %v2165 = vmul.f32 %v2163, 0.5
    %v2166 = vmul.f32 %v2164, 0.5
    %v2167 = vmul.f32 %v2163, 0.044715
    %v2168 = vmul.f32 %v2164, 0.044715
    %v2169 = vmul.f32 %v2167, %v2163
    %v2170 = vmul.f32 %v2168, %v2164
    %v2171 = vmul.f32 %v2169, %v2163
    %v2172 = vmul.f32 %v2170, %v2164
    %v2173 = vadd.f32 %v2163, %v2171
    %v2174 = vadd.f32 %v2164, %v2172
    %v2175 = vmul.f32 %v2173, 0.7978846
    %v2176 = vmul.f32 %v2174, 0.7978846
    %v2177 = vtanh.pop %v2175
    %v2178 = vtanh.pop %v2176
    %v2179 = vadd.f32 %v2177, 1.0
    %v2180 = vadd.f32 %v2178, 1.0
    %v2181 = vmul.f32 %v2165, %v2179
    %v2182 = vmul.f32 %v2166, %v2180
    %s2183 = scalar_lea.vmem [#allocation10], 128
    %v2184 = vld [vmem:[%s2183] sm:$0xf]
    %v2185 = vld [vmem:[%s2183 + $0x4] sm:$0xf]
    %v2186 = vld [vmem:[%s2183 + $0x8] sm:$0xf]
    %v2187 = vld [vmem:[%s2183 + $0xc] sm:$0xf]
    %v2188 = vld [vmem:[%s2183 + $0x10] sm:$0xf]
    %v2189 = vld [vmem:[%s2183 + $0x14] sm:$0xf]
    %v2190 = vld [vmem:[%s2183 + $0x18] sm:$0xf]
    %v2191 = vld [vmem:[%s2183 + $0x1c] sm:$0xf]
    %v2192 = vld [vmem:[%s2183 + $0x20] sm:$0xf]
    %v2193 = vld [vmem:[%s2183 + $0x24] sm:$0xf]
    %v2194 = vld [vmem:[%s2183 + $0x28] sm:$0xf]
    %v2195 = vld [vmem:[%s2183 + $0x2c] sm:$0xf]
    %v2196 = vld [vmem:[%s2183 + $0x30] sm:$0xf]
    %v2197 = vld [vmem:[%s2183 + $0x34] sm:$0xf]
    %v2198 = vld [vmem:[%s2183 + $0x38] sm:$0xf]
    %v2199 = vld [vmem:[%s2183 + $0x3c] sm:$0xf]
    %v2200 = vld [vmem:[%s2183 + $0x40] sm:$0xf]
    %v2201 = vld [vmem:[%s2183 + $0x44] sm:$0xf]
    %v2202 = vld [vmem:[%s2183 + $0x48] sm:$0xf]
    %v2203 = vld [vmem:[%s2183 + $0x4c] sm:$0xf]
    %v2204 = vld [vmem:[%s2183 + $0x50] sm:$0xf]
    %v2205 = vld [vmem:[%s2183 + $0x54] sm:$0xf]
    %v2206 = vld [vmem:[%s2183 + $0x58] sm:$0xf]
    %v2207 = vld [vmem:[%s2183 + $0x5c] sm:$0xf]
    %v2208 = vld [vmem:[%s2183 + $0x60] sm:$0xf]
    %v2209 = vld [vmem:[%s2183 + $0x64] sm:$0xf]
    %v2210 = vld [vmem:[%s2183 + $0x68] sm:$0xf]
    %v2211 = vld [vmem:[%s2183 + $0x6c] sm:$0xf]
    %v2212 = vld [vmem:[%s2183 + $0x70] sm:$0xf]
    %v2213 = vld [vmem:[%s2183 + $0x74] sm:$0xf]
    %v2214 = vld [vmem:[%s2183 + $0x78] sm:$0xf]
    %v2215 = vld [vmem:[%s2183 + $0x7c] sm:$0xf]
    %v2216 = vld [vmem:[#allocation19 + $0x4] sm:$0x1]
    %v2217 = vld [vmem:[#allocation19 + $0x5] sm:$0x1]
    %v2218 = vld [vmem:[#allocation19 + $0x6] sm:$0x1]
    %v2219 = vpack.c.bf16 %v2181, %v2181
    %v2220 = vpack.c.bf16 %v2182, %v2182
    %v2221 = vlaneseq
    %v2222 = vshrl.u32 %v2221, 7
    %v2223 = vsub.s32 0, %v2222
    %v2224 = vrot.slane %v2216, %v2223
    %v2257 = vunpack.c.l.b16 %v2184
    %v2258 = vunpack.c.l.b16 %v2185
    %v2259 = vunpack.c.l.b16 %v2186
    %v2260 = vunpack.c.l.b16 %v2187
    %v2261 = vunpack.c.l.b16 %v2188
    %v2262 = vunpack.c.l.b16 %v2189
    %v2263 = vunpack.c.l.b16 %v2190
    %v2264 = vunpack.c.l.b16 %v2191
    %v2265 = vunpack.c.l.b16 %v2192
    %v2266 = vunpack.c.l.b16 %v2193
    %v2267 = vunpack.c.l.b16 %v2194
    %v2268 = vunpack.c.l.b16 %v2195
    %v2269 = vunpack.c.l.b16 %v2196
    %v2270 = vunpack.c.l.b16 %v2197
    %v2271 = vunpack.c.l.b16 %v2198
    %v2272 = vunpack.c.l.b16 %v2199
    %v2273 = vunpack.c.l.b16 %v2200
    %v2274 = vunpack.c.l.b16 %v2201
    %v2275 = vunpack.c.l.b16 %v2202
    %v2276 = vunpack.c.l.b16 %v2203
    %v2277 = vunpack.c.l.b16 %v2204
    %v2278 = vunpack.c.l.b16 %v2205
    %v2279 = vunpack.c.l.b16 %v2206
    %v2280 = vunpack.c.l.b16 %v2207
    %v2281 = vunpack.c.l.b16 %v2208
    %v2282 = vunpack.c.l.b16 %v2209
    %v2283 = vunpack.c.l.b16 %v2210
    %v2284 = vunpack.c.l.b16 %v2211
    %v2285 = vunpack.c.l.b16 %v2212
    %v2286 = vunpack.c.l.b16 %v2213
    %v2287 = vunpack.c.l.b16 %v2214
    %v2288 = vunpack.c.l.b16 %v2215
    %v2289 = vpack.c.b16 %v2258, %v2257
    %v2290 = vpack.c.b16 %v2260, %v2259
    %v2291 = vpack.c.b16 %v2262, %v2261
    %v2292 = vpack.c.b16 %v2264, %v2263
    %v2293 = vpack.c.b16 %v2266, %v2265
    %v2294 = vpack.c.b16 %v2268, %v2267
    %v2295 = vpack.c.b16 %v2270, %v2269
    %v2296 = vpack.c.b16 %v2272, %v2271
    %v2297 = vpack.c.b16 %v2274, %v2273
    %v2298 = vpack.c.b16 %v2276, %v2275
    %v2299 = vpack.c.b16 %v2278, %v2277
    %v2300 = vpack.c.b16 %v2280, %v2279
    %v2301 = vpack.c.b16 %v2282, %v2281
    %v2302 = vpack.c.b16 %v2284, %v2283
    %v2303 = vpack.c.b16 %v2286, %v2285
    %v2304 = vpack.c.b16 %v2288, %v2287
    %2321 = vmatprep.subr.bf16.mxu0 0
    %2322 = vmatpush1.bf16.msra.mxu0 %v2296
    %2323 = vmatprep.subr.bf16.mxu0 0
    %2324 = vmatpush1.bf16.msra.mxu0 %v2295
    %2325 = vmatprep.subr.bf16.mxu0 0
    %2326 = vmatpush1.bf16.msra.mxu0 %v2294
    %2327 = vmatprep.subr.bf16.mxu0 0
    %2328 = vmatpush1.bf16.msra.mxu0 %v2293
    %2329 = vmatprep.subr.bf16.mxu0 0
    %2330 = vmatpush1.bf16.msra.mxu0 %v2292
    %2331 = vmatprep.subr.bf16.mxu0 0
    %2332 = vmatpush1.bf16.msra.mxu0 %v2291
    %2333 = vmatprep.subr.bf16.mxu0 0
    %2334 = vmatpush1.bf16.msra.mxu0 %v2290
    %2335 = vmatprep.subr.bf16.mxu0 0
    %2336 = vmatpush1.bf16.msra.mxu0 %v2289
    %2337 = vmatprep.subr.bf16.mxu0 0
    %2338 = vmatpush2.bf16.msra.mxu0 %v2304
    %2339 = vmatprep.subr.bf16.mxu0 0
    %2340 = vmatpush2.bf16.msra.mxu0 %v2303
    %2341 = vmatprep.subr.bf16.mxu0 0
    %2342 = vmatpush2.bf16.msra.mxu0 %v2302
    %2343 = vmatprep.subr.bf16.mxu0 0
    %2344 = vmatpush2.bf16.msra.mxu0 %v2301
    %2345 = vmatprep.subr.bf16.mxu0 0
    %2346 = vmatpush2.bf16.msra.mxu0 %v2300
    %2347 = vmatprep.subr.bf16.mxu0 0
    %2348 = vmatpush2.bf16.msra.mxu0 %v2299
    %2349 = vmatprep.subr.bf16.mxu0 0
    %2350 = vmatpush2.bf16.msra.mxu0 %v2298
    %2351 = vmatprep.subr.bf16.mxu0 0
    %2352 = vmatpush2.bf16.msra.mxu0 %v2297
    %2353 = vmatprep.mubr.bf16.mxu0 %v2220
    %2354 = vmatmul.mubr.bf16.gmra.mxu0 %v2219
    %v2355 = vpop.f32.mrf.mxu0
    %v2356 = vadd.f32 %v2224, %v2355
    %v2357 = vpop.f32.mrf.mxu0
    %v2358 = vpop.f32.mrf.mxu0
    %v2359 = vpop.f32.mrf.mxu0
    %2360 = vdwg.mxu0
    %2361 = vadd.xlane.f32.xlu0 %v2356
    %v2362 = vpop.xlane.xlu0 %2361
    %v2363 = vmul.f32 %v2362, %v1204
    %v2364 = vsub.f32 %v2356, %v2363
    %v2365 = vmul.f32 %v2364, %v2364
    %2366 = vadd.xlane.f32.xlu0 %v2365
    %v2367 = vpop.xlane.xlu0 %2366
    %v2368 = vmul.f32 %v2367, %v1204
    %v2369 = vadd.f32 %v2368, 1e-05
    %v2370 = vrsqrt.pop %v2369
    %v2371 = vmul.f32 %v2364, %v2370
    %v2372 = vlaneseq
    %v2373 = vshrl.u32 %v2372, 7
    %v2374 = vsub.s32 0, %v2373
    %v2375 = vrot.slane %v2217, %v2374
    %v2376 = vmul.f32 %v2371, %v2375
    %v2377 = vlaneseq
    %v2378 = vshrl.u32 %v2377, 7
    %v2379 = vsub.s32 0, %v2378
    %v2380 = vrot.slane %v2218, %v2379
    %v2381 = vadd.f32 %v2376, %v2380
    %v2382 = vmul.f32 %v2381, 0.5
    %v2383 = vmul.f32 %v2381, 0.044715
    %v2384 = vmul.f32 %v2383, %v2381
    %v2385 = vmul.f32 %v2384, %v2381
    %v2386 = vadd.f32 %v2381, %v2385
    %v2387 = vmul.f32 %v2386, 0.7978846
    %v2388 = vtanh.pop %v2387
    %v2389 = vadd.f32 %v2388, 1.0
    %v2390 = vmul.f32 %v2382, %v2389
    %s2391 = scalar_lea.vmem [#allocation11], 80
    %v2392 = vld [vmem:[%s2391] sm:$0xf]
    %v2393 = vld [vmem:[%s2391 + $0x4] sm:$0xf]
    %v2394 = vld [vmem:[%s2391 + $0x8] sm:$0xf]
    %v2395 = vld [vmem:[%s2391 + $0xc] sm:$0xf]
    %v2396 = vld [vmem:[%s2391 + $0x10] sm:$0xf]
    %v2397 = vld [vmem:[%s2391 + $0x14] sm:$0xf]
    %v2398 = vld [vmem:[%s2391 + $0x18] sm:$0xf]
    %v2399 = vld [vmem:[%s2391 + $0x1c] sm:$0xf]
    %v2400 = vld [vmem:[%s2391 + $0x20] sm:$0xf]
    %v2401 = vld [vmem:[%s2391 + $0x24] sm:$0xf]
    %v2402 = vld [vmem:[%s2391 + $0x28] sm:$0xf]
    %v2403 = vld [vmem:[%s2391 + $0x2c] sm:$0xf]
    %v2404 = vld [vmem:[%s2391 + $0x30] sm:$0xf]
    %v2405 = vld [vmem:[%s2391 + $0x34] sm:$0xf]
    %v2406 = vld [vmem:[%s2391 + $0x38] sm:$0xf]
    %v2407 = vld [vmem:[%s2391 + $0x3c] sm:$0xf]
    %v2408 = vld [vmem:[%s2391 + $0x40] sm:$0xf]
    %v2409 = vld [vmem:[%s2391 + $0x44] sm:$0xf]
    %v2410 = vld [vmem:[%s2391 + $0x48] sm:$0xf]
    %v2411 = vld [vmem:[%s2391 + $0x4c] sm:$0xf]
    %v2412 = vld [vmem:[#allocation19 + $0x7] sm:$0x1]
    %v2413 = vpack.c.bf16 %v2390, %v2390
    %v2414 = vlaneseq
    %v2415 = vshrl.u32 %v2414, 7
    %v2416 = vsub.s32 0, %v2415
    %v2417 = vrot.slane %v2412, %v2416
    %v2438 = vunpack.c.l.b16 %v2392
    %v2439 = vunpack.c.l.b16 %v2393
    %v2440 = vunpack.c.l.b16 %v2394
    %v2441 = vunpack.c.l.b16 %v2395
    %v2442 = vunpack.c.l.b16 %v2396
    %v2443 = vunpack.c.l.b16 %v2397
    %v2444 = vunpack.c.l.b16 %v2398
    %v2445 = vunpack.c.l.b16 %v2399
    %v2446 = vunpack.c.l.b16 %v2400
    %v2447 = vunpack.c.l.b16 %v2401
    %v2448 = vunpack.c.l.b16 %v2402
    %v2449 = vunpack.c.l.b16 %v2403
    %v2450 = vunpack.c.l.b16 %v2404
    %v2451 = vunpack.c.l.b16 %v2405
    %v2452 = vunpack.c.l.b16 %v2406
    %v2453 = vunpack.c.l.b16 %v2407
    %v2454 = vunpack.c.l.b16 %v2408
    %v2455 = vunpack.c.l.b16 %v2409
    %v2456 = vunpack.c.l.b16 %v2410
    %v2457 = vunpack.c.l.b16 %v2411
    %v2458 = vpack.c.b16 %v2439, %v2438
    %v2459 = vpack.c.b16 %v2441, %v2440
    %v2460 = vpack.c.b16 %v2443, %v2442
    %v2461 = vpack.c.b16 %v2445, %v2444
    %v2462 = vpack.c.b16 %v2447, %v2446
    %v2463 = vpack.c.b16 %v2449, %v2448
    %v2464 = vpack.c.b16 %v2451, %v2450
    %v2465 = vpack.c.b16 %v2453, %v2452
    %v2466 = vpack.c.b16 %v2455, %v2454
    %v2467 = vpack.c.b16 %v2457, %v2456
    %2478 = vmatprep.subr.bf16.mxu0 0
    %2479 = vmatpush1.bf16.msra.mxu0 %v2465
    %2480 = vmatprep.subr.bf16.mxu0 0
    %2481 = vmatpush1.bf16.msra.mxu0 %v2464
    %2482 = vmatprep.subr.bf16.mxu0 0
    %2483 = vmatpush1.bf16.msra.mxu0 %v2463
    %2484 = vmatprep.subr.bf16.mxu0 0
    %2485 = vmatpush1.bf16.msra.mxu0 %v2462
    %2486 = vmatprep.subr.bf16.mxu0 0
    %2487 = vmatpush1.bf16.msra.mxu0 %v2461
    %2488 = vmatprep.subr.bf16.mxu0 0
    %2489 = vmatpush1.bf16.msra.mxu0 %v2460
    %2490 = vmatprep.subr.bf16.mxu0 0
    %2491 = vmatpush1.bf16.msra.mxu0 %v2459
    %2492 = vmatprep.subr.bf16.mxu0 0
    %2493 = vmatpush1.bf16.msra.mxu0 %v2458
    %2494 = vmatprep.subr.bf16.mxu0 0
    %2495 = vmatpush2.bf16.msra.mxu0 0
    %2496 = vmatprep.subr.bf16.mxu0 0
    %2497 = vmatpush2.bf16.msra.mxu0 0
    %2498 = vmatprep.subr.bf16.mxu0 0
    %2499 = vmatpush2.bf16.msra.mxu0 0
    %2500 = vmatprep.subr.bf16.mxu0 0
    %2501 = vmatpush2.bf16.msra.mxu0 0
    %2502 = vmatprep.subr.bf16.mxu0 0
    %2503 = vmatpush2.bf16.msra.mxu0 0
    %2504 = vmatprep.subr.bf16.mxu0 0
    %2505 = vmatpush2.bf16.msra.mxu0 0
    %2506 = vmatprep.subr.bf16.mxu0 0
    %2507 = vmatpush2.bf16.msra.mxu0 %v2467
    %2508 = vmatprep.subr.bf16.mxu0 0
    %2509 = vmatpush2.bf16.msra.mxu0 %v2466
    %2510 = vmatprep.mubr.bf16.mxu0 %v1439
    %2511 = vmatmul.mubr.bf16.gmra.mxu0 %v2413
    %v2512 = vpop.f32.mrf.mxu0
    %v2513 = vadd.f32 %v2417, %v2512
    %v2514 = vpop.f32.mrf.mxu0
    %v2515 = vpop.f32.mrf.mxu0
    %v2516 = vpop.f32.mrf.mxu0
    %2517 = vdwg.mxu0
    %s2518 = scalar_lea.vmem %s0, 16
    %v2519 = vld [vmem:[%s2518] sm:$0xff]
    %s2520 = scalar_lea.vmem [#allocation6], 128
    %v2521 = vld [vmem:[%s2520] sm:$0xff]
    %v2522 = vld [vmem:[%s2520 + $0x8] sm:$0xff]
    %v2523 = vld [vmem:[%s2520 + $0x10] sm:$0xff]
    %v2524 = vld [vmem:[%s2520 + $0x18] sm:$0xff]
    %v2525 = vld [vmem:[%s2520 + $0x20] sm:$0xff]
    %v2526 = vld [vmem:[%s2520 + $0x28] sm:$0xff]
    %v2527 = vld [vmem:[%s2520 + $0x30] sm:$0xff]
    %v2528 = vld [vmem:[%s2520 + $0x38] sm:$0xff]
    %s2529 = scalar_lea.vmem %s10, 6
    %v2530 = vld [vmem:[%s2529] ss:$8 sm:$0xf]
    %s2531 = scalar_lea.vmem %s10, 7
    %v2532 = vld [vmem:[%s2531] ss:$8 sm:$0xf]
    %s2533 = scalar_lea.vmem %s10, 32
    %v2534 = vld [vmem:[%s2533] ss:$8 sm:$0xf]
    %v2535 = vpack.c.bf16 %v2519, %v2519
    %v2537 = vlaneseq
    %v2538 = vshrl.u32 %v2537, 7
    %v2539 = vsub.s32 0, %v2538
    %v2540 = vrot.slane %v2530, %v2539
    %v2541 = vlaneseq
    %v2542 = vshrl.u32 %v2541, 7
    %v2543 = vsub.s32 1, %v2542
    %v2544 = vrot.slane %v2530, %v2543
    %v2545 = vlaneseq
    %v2546 = vshrl.u32 %v2545, 7
    %v2547 = vsub.s32 2, %v2546
    %v2548 = vrot.slane %v2530, %v2547
    %v2549 = vlaneseq
    %v2550 = vshrl.u32 %v2549, 7
    %v2551 = vsub.s32 3, %v2550
    %v2552 = vrot.slane %v2530, %v2551
    %v2565 = vunpack.c.l.b16 %v2521
    %v2566 = vunpack.c.h.b16 %v2521
    %v2567 = vunpack.c.l.b16 %v2522
    %v2568 = vunpack.c.h.b16 %v2522
    %v2569 = vunpack.c.l.b16 %v2523
    %v2570 = vunpack.c.h.b16 %v2523
    %v2571 = vunpack.c.l.b16 %v2524
    %v2572 = vunpack.c.h.b16 %v2524
    %v2573 = vunpack.c.l.b16 %v2525
    %v2574 = vunpack.c.h.b16 %v2525
    %v2575 = vunpack.c.l.b16 %v2526
    %v2576 = vunpack.c.h.b16 %v2526
    %v2577 = vunpack.c.l.b16 %v2527
    %v2578 = vunpack.c.h.b16 %v2527
    %v2579 = vunpack.c.l.b16 %v2528
    %v2580 = vunpack.c.h.b16 %v2528
    %v2581 = vpack.c.b16 %v2569, %v2565
    %v2582 = vpack.c.b16 %v2570, %v2566
    %v2583 = vpack.c.b16 %v2571, %v2567
    %v2584 = vpack.c.b16 %v2572, %v2568
    %v2585 = vpack.c.b16 %v2577, %v2573
    %v2586 = vpack.c.b16 %v2578, %v2574
    %v2587 = vpack.c.b16 %v2579, %v2575
    %v2588 = vpack.c.b16 %v2580, %v2576
    %v2598 = vsel %vm279, %v2535, 0
    %2600 = vmatprep.subr.bf16.mxu0 0
    %2601 = vmatpush1.bf16.msra.mxu0 0
    %2602 = vmatprep.subr.bf16.mxu0 0
    %2603 = vmatpush1.bf16.msra.mxu0 0
    %2604 = vmatprep.subr.bf16.mxu0 0
    %2605 = vmatpush1.bf16.msra.mxu0 0
    %2606 = vmatprep.subr.bf16.mxu0 0
    %2607 = vmatpush1.bf16.msra.mxu0 0
    %2608 = vmatprep.subr.bf16.mxu0 0
    %2609 = vmatpush1.bf16.msra.mxu0 0
    %2610 = vmatprep.subr.bf16.mxu0 0
    %2611 = vmatpush1.bf16.msra.mxu0 0
    %2612 = vmatprep.subr.bf16.mxu0 %v2586
    %2613 = vmatpush1.bf16.msra.mxu0 %v2585
    %2614 = vmatprep.subr.bf16.mxu0 %v2582
    %2615 = vmatpush1.bf16.msra.mxu0 %v2581
    %2616 = vmatprep.subr.bf16.mxu0 0
    %2617 = vmatpush2.bf16.msra.mxu0 0
    %2618 = vmatprep.subr.bf16.mxu0 0
    %2619 = vmatpush2.bf16.msra.mxu0 0
    %2620 = vmatprep.subr.bf16.mxu0 0
    %2621 = vmatpush2.bf16.msra.mxu0 0
    %2622 = vmatprep.subr.bf16.mxu0 0
    %2623 = vmatpush2.bf16.msra.mxu0 0
    %2624 = vmatprep.subr.bf16.mxu0 0
    %2625 = vmatpush2.bf16.msra.mxu0 0
    %2626 = vmatprep.subr.bf16.mxu0 0
    %2627 = vmatpush2.bf16.msra.mxu0 0
    %2628 = vmatprep.subr.bf16.mxu0 0
    %2629 = vmatpush2.bf16.msra.mxu0 0
    %2630 = vmatprep.subr.bf16.mxu0 0
    %2631 = vmatpush2.bf16.msra.mxu0 0
    %2632 = vmatprep.mubr.bf16.mxu0 0
    %2633 = vmatmul.mubr.bf16.gmra.mxu0 %v2598
    %v2634 = vpop.f32.mrf.mxu0
    %v2635 = vadd.f32 %v2540, %v2634
    %v2636 = vpop.f32.mrf.mxu0
    %v2637 = vadd.f32 %v2544, %v2636
    %v2638 = vpop.f32.mrf.mxu0
    %v2639 = vpop.f32.mrf.mxu0
    %2640 = vdwg.mxu0
    %2641 = vmatprep.subr.bf16.mxu0 0
    %2642 = vmatpush1.bf16.msra.mxu0 0
    %2643 = vmatprep.subr.bf16.mxu0 0
    %2644 = vmatpush1.bf16.msra.mxu0 0
    %2645 = vmatprep.subr.bf16.mxu0 0
    %2646 = vmatpush1.bf16.msra.mxu0 0
    %2647 = vmatprep.subr.bf16.mxu0 0
    %2648 = vmatpush1.bf16.msra.mxu0 0
    %2649 = vmatprep.subr.bf16.mxu0 0
    %2650 = vmatpush1.bf16.msra.mxu0 0
    %2651 = vmatprep.subr.bf16.mxu0 0
    %2652 = vmatpush1.bf16.msra.mxu0 0
    %2653 = vmatprep.subr.bf16.mxu0 %v2588
    %2654 = vmatpush1.bf16.msra.mxu0 %v2587
    %2655 = vmatprep.subr.bf16.mxu0 %v2584
    %2656 = vmatpush1.bf16.msra.mxu0 %v2583
    %2657 = vmatprep.subr.bf16.mxu0 0
    %2658 = vmatpush2.bf16.msra.mxu0 0
    %2659 = vmatprep.subr.bf16.mxu0 0
    %2660 = vmatpush2.bf16.msra.mxu0 0
    %2661 = vmatprep.subr.bf16.mxu0 0
    %2662 = vmatpush2.bf16.msra.mxu0 0
    %2663 = vmatprep.subr.bf16.mxu0 0
    %2664 = vmatpush2.bf16.msra.mxu0 0
    %2665 = vmatprep.subr.bf16.mxu0 0
    %2666 = vmatpush2.bf16.msra.mxu0 0
    %2667 = vmatprep.subr.bf16.mxu0 0
    %2668 = vmatpush2.bf16.msra.mxu0 0
    %2669 = vmatprep.subr.bf16.mxu0 0
    %2670 = vmatpush2.bf16.msra.mxu0 0
    %2671 = vmatprep.subr.bf16.mxu0 0
    %2672 = vmatpush2.bf16.msra.mxu0 0
    %2673 = vmatprep.mubr.bf16.mxu0 0
    %2674 = vmatmul.mubr.bf16.gmra.mxu0 %v2598
    %v2675 = vpop.f32.mrf.mxu0
    %v2676 = vadd.f32 %v2548, %v2675
    %v2677 = vpop.f32.mrf.mxu0
    %v2678 = vadd.f32 %v2552, %v2677
    %v2679 = vpop.f32.mrf.mxu0
    %v2680 = vpop.f32.mrf.mxu0
    %2681 = vdwg.mxu0
    %v2682 = vadd.f32 %v2635, %v2637
    %v2683 = vadd.f32 %v2682, %v2676
    %v2684 = vadd.f32 %v2683, %v2678
    %2685 = vadd.xlane.f32.xlu0 %v2684
    %v2686 = vpop.xlane.xlu0 %2685
    %v2687 = vmul.f32 %v2686, %v370
    %v2688 = vsub.f32 %v2635, %v2687
    %v2689 = vsub.f32 %v2637, %v2687
    %v2690 = vsub.f32 %v2676, %v2687
    %v2691 = vsub.f32 %v2678, %v2687
    %v2692 = vmul.f32 %v2688, %v2688
    %v2693 = vmul.f32 %v2689, %v2689
    %v2694 = vmul.f32 %v2690, %v2690
    %v2695 = vmul.f32 %v2691, %v2691
    %v2696 = vadd.f32 %v2692, %v2693
    %v2697 = vadd.f32 %v2696, %v2694
    %v2698 = vadd.f32 %v2697, %v2695
    %2699 = vadd.xlane.f32.xlu0 %v2698
    %v2700 = vpop.xlane.xlu0 %2699
    %v2701 = vmul.f32 %v2700, %v370
    %v2702 = vadd.f32 %v2701, 1e-05
    %v2703 = vrsqrt.pop %v2702
    %v2704 = vmul.f32 %v2688, %v2703
    %v2705 = vmul.f32 %v2689, %v2703
    %v2706 = vmul.f32 %v2690, %v2703
    %v2707 = vmul.f32 %v2691, %v2703
    %v2709 = vlaneseq
    %v2710 = vshrl.u32 %v2709, 7
    %v2711 = vsub.s32 0, %v2710
    %v2712 = vrot.slane %v2532, %v2711
    %v2713 = vlaneseq
    %v2714 = vshrl.u32 %v2713, 7
    %v2715 = vsub.s32 1, %v2714
    %v2716 = vrot.slane %v2532, %v2715
    %v2717 = vlaneseq
    %v2718 = vshrl.u32 %v2717, 7
    %v2719 = vsub.s32 2, %v2718
    %v2720 = vrot.slane %v2532, %v2719
    %v2721 = vlaneseq
    %v2722 = vshrl.u32 %v2721, 7
    %v2723 = vsub.s32 3, %v2722
    %v2724 = vrot.slane %v2532, %v2723
    %v2729 = vmul.f32 %v2704, %v2712
    %v2730 = vmul.f32 %v2705, %v2716
    %v2731 = vmul.f32 %v2706, %v2720
    %v2732 = vmul.f32 %v2707, %v2724
    %v2734 = vlaneseq
    %v2735 = vshrl.u32 %v2734, 7
    %v2736 = vsub.s32 0, %v2735
    %v2737 = vrot.slane %v2534, %v2736
    %v2738 = vlaneseq
    %v2739 = vshrl.u32 %v2738, 7
    %v2740 = vsub.s32 1, %v2739
    %v2741 = vrot.slane %v2534, %v2740
    %v2742 = vlaneseq
    %v2743 = vshrl.u32 %v2742, 7
    %v2744 = vsub.s32 2, %v2743
    %v2745 = vrot.slane %v2534, %v2744
    %v2746 = vlaneseq
    %v2747 = vshrl.u32 %v2746, 7
    %v2748 = vsub.s32 3, %v2747
    %v2749 = vrot.slane %v2534, %v2748
    %v2754 = vadd.f32 %v2729, %v2737
    %v2755 = vadd.f32 %v2730, %v2741
    %v2756 = vadd.f32 %v2731, %v2745
    %v2757 = vadd.f32 %v2732, %v2749
    %v2758 = vmul.f32 %v2754, 0.5
    %v2759 = vmul.f32 %v2755, 0.5
    %v2760 = vmul.f32 %v2756, 0.5
    %v2761 = vmul.f32 %v2757, 0.5
    %v2762 = vmul.f32 %v2754, 0.044715
    %v2763 = vmul.f32 %v2755, 0.044715
    %v2764 = vmul.f32 %v2756, 0.044715
    %v2765 = vmul.f32 %v2757, 0.044715
    %v2766 = vmul.f32 %v2762, %v2754
    %v2767 = vmul.f32 %v2763, %v2755
    %v2768 = vmul.f32 %v2764, %v2756
    %v2769 = vmul.f32 %v2765, %v2757
    %v2770 = vmul.f32 %v2766, %v2754
    %v2771 = vmul.f32 %v2767, %v2755
    %v2772 = vmul.f32 %v2768, %v2756
    %v2773 = vmul.f32 %v2769, %v2757
    %v2774 = vadd.f32 %v2754, %v2770
    %v2775 = vadd.f32 %v2755, %v2771
    %v2776 = vadd.f32 %v2756, %v2772
    %v2777 = vadd.f32 %v2757, %v2773
    %v2778 = vmul.f32 %v2774, 0.7978846
    %v2779 = vmul.f32 %v2775, 0.7978846
    %v2780 = vmul.f32 %v2776, 0.7978846
    %v2781 = vmul.f32 %v2777, 0.7978846
    %v2782 = vtanh.pop %v2778
    %v2783 = vtanh.pop %v2779
    %v2784 = vtanh.pop %v2780
    %v2785 = vtanh.pop %v2781
    %v2786 = vadd.f32 %v2782, 1.0
    %v2787 = vadd.f32 %v2783, 1.0
    %v2788 = vadd.f32 %v2784, 1.0
    %v2789 = vadd.f32 %v2785, 1.0
    %v2790 = vmul.f32 %v2758, %v2786
    %v2791 = vmul.f32 %v2759, %v2787
    %v2792 = vmul.f32 %v2760, %v2788
    %v2793 = vmul.f32 %v2761, %v2789
    %s2794 = scalar_lea.vmem [#allocation8], 1024
    %v2795 = vld [vmem:[%s2794] sm:$0xff]
    %v2796 = vld [vmem:[%s2794 + $0x8] sm:$0xff]
    %v2797 = vld [vmem:[%s2794 + $0x10] sm:$0xff]
    %v2798 = vld [vmem:[%s2794 + $0x18] sm:$0xff]
    %v2799 = vld [vmem:[%s2794 + $0x20] sm:$0xff]
    %v2800 = vld [vmem:[%s2794 + $0x28] sm:$0xff]
    %v2801 = vld [vmem:[%s2794 + $0x30] sm:$0xff]
    %v2802 = vld [vmem:[%s2794 + $0x38] sm:$0xff]
    %v2803 = vld [vmem:[%s2794 + $0x40] sm:$0xff]
    %v2804 = vld [vmem:[%s2794 + $0x48] sm:$0xff]
    %v2805 = vld [vmem:[%s2794 + $0x50] sm:$0xff]
    %v2806 = vld [vmem:[%s2794 + $0x58] sm:$0xff]
    %v2807 = vld [vmem:[%s2794 + $0x60] sm:$0xff]
    %v2808 = vld [vmem:[%s2794 + $0x68] sm:$0xff]
    %v2809 = vld [vmem:[%s2794 + $0x70] sm:$0xff]
    %v2810 = vld [vmem:[%s2794 + $0x78] sm:$0xff]
    %v2811 = vld [vmem:[%s2794 + $0x80] sm:$0xff]
    %v2812 = vld [vmem:[%s2794 + $0x88] sm:$0xff]
    %v2813 = vld [vmem:[%s2794 + $0x90] sm:$0xff]
    %v2814 = vld [vmem:[%s2794 + $0x98] sm:$0xff]
    %v2815 = vld [vmem:[%s2794 + $0xa0] sm:$0xff]
    %v2816 = vld [vmem:[%s2794 + $0xa8] sm:$0xff]
    %v2817 = vld [vmem:[%s2794 + $0xb0] sm:$0xff]
    %v2818 = vld [vmem:[%s2794 + $0xb8] sm:$0xff]
    %v2819 = vld [vmem:[%s2794 + $0xc0] sm:$0xff]
    %v2820 = vld [vmem:[%s2794 + $0xc8] sm:$0xff]
    %v2821 = vld [vmem:[%s2794 + $0xd0] sm:$0xff]
    %v2822 = vld [vmem:[%s2794 + $0xd8] sm:$0xff]
    %v2823 = vld [vmem:[%s2794 + $0xe0] sm:$0xff]
    %v2824 = vld [vmem:[%s2794 + $0xe8] sm:$0xff]
    %v2825 = vld [vmem:[%s2794 + $0xf0] sm:$0xff]
    %v2826 = vld [vmem:[%s2794 + $0xf8] sm:$0xff]
    %v2827 = vld [vmem:[%s2794 + $0x100] sm:$0xff]
    %v2828 = vld [vmem:[%s2794 + $0x108] sm:$0xff]
    %v2829 = vld [vmem:[%s2794 + $0x110] sm:$0xff]
    %v2830 = vld [vmem:[%s2794 + $0x118] sm:$0xff]
    %v2831 = vld [vmem:[%s2794 + $0x120] sm:$0xff]
    %v2832 = vld [vmem:[%s2794 + $0x128] sm:$0xff]
    %v2833 = vld [vmem:[%s2794 + $0x130] sm:$0xff]
    %v2834 = vld [vmem:[%s2794 + $0x138] sm:$0xff]
    %v2835 = vld [vmem:[%s2794 + $0x140] sm:$0xff]
    %v2836 = vld [vmem:[%s2794 + $0x148] sm:$0xff]
    %v2837 = vld [vmem:[%s2794 + $0x150] sm:$0xff]
    %v2838 = vld [vmem:[%s2794 + $0x158] sm:$0xff]
    %v2839 = vld [vmem:[%s2794 + $0x160] sm:$0xff]
    %v2840 = vld [vmem:[%s2794 + $0x168] sm:$0xff]
    %v2841 = vld [vmem:[%s2794 + $0x170] sm:$0xff]
    %v2842 = vld [vmem:[%s2794 + $0x178] sm:$0xff]
    %v2843 = vld [vmem:[%s2794 + $0x180] sm:$0xff]
    %v2844 = vld [vmem:[%s2794 + $0x188] sm:$0xff]
    %v2845 = vld [vmem:[%s2794 + $0x190] sm:$0xff]
    %v2846 = vld [vmem:[%s2794 + $0x198] sm:$0xff]
    %v2847 = vld [vmem:[%s2794 + $0x1a0] sm:$0xff]
    %v2848 = vld [vmem:[%s2794 + $0x1a8] sm:$0xff]
    %v2849 = vld [vmem:[%s2794 + $0x1b0] sm:$0xff]
    %v2850 = vld [vmem:[%s2794 + $0x1b8] sm:$0xff]
    %v2851 = vld [vmem:[%s2794 + $0x1c0] sm:$0xff]
    %v2852 = vld [vmem:[%s2794 + $0x1c8] sm:$0xff]
    %v2853 = vld [vmem:[%s2794 + $0x1d0] sm:$0xff]
    %v2854 = vld [vmem:[%s2794 + $0x1d8] sm:$0xff]
    %v2855 = vld [vmem:[%s2794 + $0x1e0] sm:$0xff]
    %v2856 = vld [vmem:[%s2794 + $0x1e8] sm:$0xff]
    %v2857 = vld [vmem:[%s2794 + $0x1f0] sm:$0xff]
    %v2858 = vld [vmem:[%s2794 + $0x1f8] sm:$0xff]
    %s2859 = scalar_lea.vmem [#allocation17], 6
    %v2860 = vld [vmem:[%s2859] ss:$8 sm:$0x3]
    %s2861 = scalar_lea.vmem [#allocation17], 7
    %v2862 = vld [vmem:[%s2861] ss:$8 sm:$0x3]
    %s2863 = scalar_lea.vmem [#allocation17], 16
    %v2864 = vld [vmem:[%s2863] ss:$8 sm:$0x3]
    %v2865 = vpack.c.bf16 %v2790, %v2790
    %v2866 = vpack.c.bf16 %v2791, %v2791
    %v2867 = vpack.c.bf16 %v2792, %v2792
    %v2868 = vpack.c.bf16 %v2793, %v2793
    %v2870 = vlaneseq
    %v2871 = vshrl.u32 %v2870, 7
    %v2872 = vsub.s32 0, %v2871
    %v2873 = vrot.slane %v2860, %v2872
    %v2874 = vlaneseq
    %v2875 = vshrl.u32 %v2874, 7
    %v2876 = vsub.s32 1, %v2875
    %v2877 = vrot.slane %v2860, %v2876
    %v2944 = vunpack.c.l.b16 %v2795
    %v2945 = vunpack.c.h.b16 %v2795
    %v2946 = vunpack.c.l.b16 %v2796
    %v2947 = vunpack.c.h.b16 %v2796
    %v2948 = vunpack.c.l.b16 %v2797
    %v2949 = vunpack.c.h.b16 %v2797
    %v2950 = vunpack.c.l.b16 %v2798
    %v2951 = vunpack.c.h.b16 %v2798
    %v2952 = vunpack.c.l.b16 %v2799
    %v2953 = vunpack.c.h.b16 %v2799
    %v2954 = vunpack.c.l.b16 %v2800
    %v2955 = vunpack.c.h.b16 %v2800
    %v2956 = vunpack.c.l.b16 %v2801
    %v2957 = vunpack.c.h.b16 %v2801
    %v2958 = vunpack.c.l.b16 %v2802
    %v2959 = vunpack.c.h.b16 %v2802
    %v2960 = vunpack.c.l.b16 %v2803
    %v2961 = vunpack.c.h.b16 %v2803
    %v2962 = vunpack.c.l.b16 %v2804
    %v2963 = vunpack.c.h.b16 %v2804
    %v2964 = vunpack.c.l.b16 %v2805
    %v2965 = vunpack.c.h.b16 %v2805
    %v2966 = vunpack.c.l.b16 %v2806
    %v2967 = vunpack.c.h.b16 %v2806
    %v2968 = vunpack.c.l.b16 %v2807
    %v2969 = vunpack.c.h.b16 %v2807
    %v2970 = vunpack.c.l.b16 %v2808
    %v2971 = vunpack.c.h.b16 %v2808
    %v2972 = vunpack.c.l.b16 %v2809
    %v2973 = vunpack.c.h.b16 %v2809
    %v2974 = vunpack.c.l.b16 %v2810
    %v2975 = vunpack.c.h.b16 %v2810
    %v2976 = vunpack.c.l.b16 %v2811
    %v2977 = vunpack.c.h.b16 %v2811
    %v2978 = vunpack.c.l.b16 %v2812
    %v2979 = vunpack.c.h.b16 %v2812
    %v2980 = vunpack.c.l.b16 %v2813
    %v2981 = vunpack.c.h.b16 %v2813
    %v2982 = vunpack.c.l.b16 %v2814
    %v2983 = vunpack.c.h.b16 %v2814
    %v2984 = vunpack.c.l.b16 %v2815
    %v2985 = vunpack.c.h.b16 %v2815
    %v2986 = vunpack.c.l.b16 %v2816
    %v2987 = vunpack.c.h.b16 %v2816
    %v2988 = vunpack.c.l.b16 %v2817
    %v2989 = vunpack.c.h.b16 %v2817
    %v2990 = vunpack.c.l.b16 %v2818
    %v2991 = vunpack.c.h.b16 %v2818
    %v2992 = vunpack.c.l.b16 %v2819
    %v2993 = vunpack.c.h.b16 %v2819
    %v2994 = vunpack.c.l.b16 %v2820
    %v2995 = vunpack.c.h.b16 %v2820
    %v2996 = vunpack.c.l.b16 %v2821
    %v2997 = vunpack.c.h.b16 %v2821
    %v2998 = vunpack.c.l.b16 %v2822
    %v2999 = vunpack.c.h.b16 %v2822
    %v3000 = vunpack.c.l.b16 %v2823
    %v3001 = vunpack.c.h.b16 %v2823
    %v3002 = vunpack.c.l.b16 %v2824
    %v3003 = vunpack.c.h.b16 %v2824
    %v3004 = vunpack.c.l.b16 %v2825
    %v3005 = vunpack.c.h.b16 %v2825
    %v3006 = vunpack.c.l.b16 %v2826
    %v3007 = vunpack.c.h.b16 %v2826
    %v3008 = vunpack.c.l.b16 %v2827
    %v3009 = vunpack.c.h.b16 %v2827
    %v3010 = vunpack.c.l.b16 %v2828
    %v3011 = vunpack.c.h.b16 %v2828
    %v3012 = vunpack.c.l.b16 %v2829
    %v3013 = vunpack.c.h.b16 %v2829
    %v3014 = vunpack.c.l.b16 %v2830
    %v3015 = vunpack.c.h.b16 %v2830
    %v3016 = vunpack.c.l.b16 %v2831
    %v3017 = vunpack.c.h.b16 %v2831
    %v3018 = vunpack.c.l.b16 %v2832
    %v3019 = vunpack.c.h.b16 %v2832
    %v3020 = vunpack.c.l.b16 %v2833
    %v3021 = vunpack.c.h.b16 %v2833
    %v3022 = vunpack.c.l.b16 %v2834
    %v3023 = vunpack.c.h.b16 %v2834
    %v3024 = vunpack.c.l.b16 %v2835
    %v3025 = vunpack.c.h.b16 %v2835
    %v3026 = vunpack.c.l.b16 %v2836
    %v3027 = vunpack.c.h.b16 %v2836
    %v3028 = vunpack.c.l.b16 %v2837
    %v3029 = vunpack.c.h.b16 %v2837
    %v3030 = vunpack.c.l.b16 %v2838
    %v3031 = vunpack.c.h.b16 %v2838
    %v3032 = vunpack.c.l.b16 %v2839
    %v3033 = vunpack.c.h.b16 %v2839
    %v3034 = vunpack.c.l.b16 %v2840
    %v3035 = vunpack.c.h.b16 %v2840
    %v3036 = vunpack.c.l.b16 %v2841
    %v3037 = vunpack.c.h.b16 %v2841
    %v3038 = vunpack.c.l.b16 %v2842
    %v3039 = vunpack.c.h.b16 %v2842
    %v3040 = vunpack.c.l.b16 %v2843
    %v3041 = vunpack.c.h.b16 %v2843
    %v3042 = vunpack.c.l.b16 %v2844
    %v3043 = vunpack.c.h.b16 %v2844
    %v3044 = vunpack.c.l.b16 %v2845
    %v3045 = vunpack.c.h.b16 %v2845
    %v3046 = vunpack.c.l.b16 %v2846
    %v3047 = vunpack.c.h.b16 %v2846
    %v3048 = vunpack.c.l.b16 %v2847
    %v3049 = vunpack.c.h.b16 %v2847
    %v3050 = vunpack.c.l.b16 %v2848
    %v3051 = vunpack.c.h.b16 %v2848
    %v3052 = vunpack.c.l.b16 %v2849
    %v3053 = vunpack.c.h.b16 %v2849
    %v3054 = vunpack.c.l.b16 %v2850
    %v3055 = vunpack.c.h.b16 %v2850
    %v3056 = vunpack.c.l.b16 %v2851
    %v3057 = vunpack.c.h.b16 %v2851
    %v3058 = vunpack.c.l.b16 %v2852
    %v3059 = vunpack.c.h.b16 %v2852
    %v3060 = vunpack.c.l.b16 %v2853
    %v3061 = vunpack.c.h.b16 %v2853
    %v3062 = vunpack.c.l.b16 %v2854
    %v3063 = vunpack.c.h.b16 %v2854
    %v3064 = vunpack.c.l.b16 %v2855
    %v3065 = vunpack.c.h.b16 %v2855
    %v3066 = vunpack.c.l.b16 %v2856
    %v3067 = vunpack.c.h.b16 %v2856
    %v3068 = vunpack.c.l.b16 %v2857
    %v3069 = vunpack.c.h.b16 %v2857
    %v3070 = vunpack.c.l.b16 %v2858
    %v3071 = vunpack.c.h.b16 %v2858
    %v3072 = vpack.c.b16 %v2946, %v2944
    %v3073 = vpack.c.b16 %v2947, %v2945
    %v3074 = vpack.c.b16 %v2950, %v2948
    %v3075 = vpack.c.b16 %v2951, %v2949
    %v3076 = vpack.c.b16 %v2954, %v2952
    %v3077 = vpack.c.b16 %v2955, %v2953
    %v3078 = vpack.c.b16 %v2958, %v2956
    %v3079 = vpack.c.b16 %v2959, %v2957
    %v3080 = vpack.c.b16 %v2962, %v2960
    %v3081 = vpack.c.b16 %v2963, %v2961
    %v3082 = vpack.c.b16 %v2966, %v2964
    %v3083 = vpack.c.b16 %v2967, %v2965
    %v3084 = vpack.c.b16 %v2970, %v2968
    %v3085 = vpack.c.b16 %v2971, %v2969
    %v3086 = vpack.c.b16 %v2974, %v2972
    %v3087 = vpack.c.b16 %v2975, %v2973
    %v3088 = vpack.c.b16 %v2978, %v2976
    %v3089 = vpack.c.b16 %v2979, %v2977
    %v3090 = vpack.c.b16 %v2982, %v2980
    %v3091 = vpack.c.b16 %v2983, %v2981
    %v3092 = vpack.c.b16 %v2986, %v2984
    %v3093 = vpack.c.b16 %v2987, %v2985
    %v3094 = vpack.c.b16 %v2990, %v2988
    %v3095 = vpack.c.b16 %v2991, %v2989
    %v3096 = vpack.c.b16 %v2994, %v2992
    %v3097 = vpack.c.b16 %v2995, %v2993
    %v3098 = vpack.c.b16 %v2998, %v2996
    %v3099 = vpack.c.b16 %v2999, %v2997
    %v3100 = vpack.c.b16 %v3002, %v3000
    %v3101 = vpack.c.b16 %v3003, %v3001
    %v3102 = vpack.c.b16 %v3006, %v3004
    %v3103 = vpack.c.b16 %v3007, %v3005
    %v3104 = vpack.c.b16 %v3010, %v3008
    %v3105 = vpack.c.b16 %v3011, %v3009
    %v3106 = vpack.c.b16 %v3014, %v3012
    %v3107 = vpack.c.b16 %v3015, %v3013
    %v3108 = vpack.c.b16 %v3018, %v3016
    %v3109 = vpack.c.b16 %v3019, %v3017
    %v3110 = vpack.c.b16 %v3022, %v3020
    %v3111 = vpack.c.b16 %v3023, %v3021
    %v3112 = vpack.c.b16 %v3026, %v3024
    %v3113 = vpack.c.b16 %v3027, %v3025
    %v3114 = vpack.c.b16 %v3030, %v3028
    %v3115 = vpack.c.b16 %v3031, %v3029
    %v3116 = vpack.c.b16 %v3034, %v3032
    %v3117 = vpack.c.b16 %v3035, %v3033
    %v3118 = vpack.c.b16 %v3038, %v3036
    %v3119 = vpack.c.b16 %v3039, %v3037
    %v3120 = vpack.c.b16 %v3042, %v3040
    %v3121 = vpack.c.b16 %v3043, %v3041
    %v3122 = vpack.c.b16 %v3046, %v3044
    %v3123 = vpack.c.b16 %v3047, %v3045
    %v3124 = vpack.c.b16 %v3050, %v3048
    %v3125 = vpack.c.b16 %v3051, %v3049
    %v3126 = vpack.c.b16 %v3054, %v3052
    %v3127 = vpack.c.b16 %v3055, %v3053
    %v3128 = vpack.c.b16 %v3058, %v3056
    %v3129 = vpack.c.b16 %v3059, %v3057
    %v3130 = vpack.c.b16 %v3062, %v3060
    %v3131 = vpack.c.b16 %v3063, %v3061
    %v3132 = vpack.c.b16 %v3066, %v3064
    %v3133 = vpack.c.b16 %v3067, %v3065
    %v3134 = vpack.c.b16 %v3070, %v3068
    %v3135 = vpack.c.b16 %v3071, %v3069
    %3200 = vmatprep.subr.bf16.mxu0 %v3087
    %3201 = vmatpush1.bf16.msra.mxu0 %v3086
    %3202 = vmatprep.subr.bf16.mxu0 %v3085
    %3203 = vmatpush1.bf16.msra.mxu0 %v3084
    %3204 = vmatprep.subr.bf16.mxu0 %v3083
    %3205 = vmatpush1.bf16.msra.mxu0 %v3082
    %3206 = vmatprep.subr.bf16.mxu0 %v3081
    %3207 = vmatpush1.bf16.msra.mxu0 %v3080
    %3208 = vmatprep.subr.bf16.mxu0 %v3079
    %3209 = vmatpush1.bf16.msra.mxu0 %v3078
    %3210 = vmatprep.subr.bf16.mxu0 %v3077
    %3211 = vmatpush1.bf16.msra.mxu0 %v3076
    %3212 = vmatprep.subr.bf16.mxu0 %v3075
    %3213 = vmatpush1.bf16.msra.mxu0 %v3074
    %3214 = vmatprep.subr.bf16.mxu0 %v3073
    %3215 = vmatpush1.bf16.msra.mxu0 %v3072
    %3216 = vmatprep.subr.bf16.mxu0 %v3103
    %3217 = vmatpush2.bf16.msra.mxu0 %v3102
    %3218 = vmatprep.subr.bf16.mxu0 %v3101
    %3219 = vmatpush2.bf16.msra.mxu0 %v3100
    %3220 = vmatprep.subr.bf16.mxu0 %v3099
    %3221 = vmatpush2.bf16.msra.mxu0 %v3098
    %3222 = vmatprep.subr.bf16.mxu0 %v3097
    %3223 = vmatpush2.bf16.msra.mxu0 %v3096
    %3224 = vmatprep.subr.bf16.mxu0 %v3095
    %3225 = vmatpush2.bf16.msra.mxu0 %v3094
    %3226 = vmatprep.subr.bf16.mxu0 %v3093
    %3227 = vmatpush2.bf16.msra.mxu0 %v3092
    %3228 = vmatprep.subr.bf16.mxu0 %v3091
    %3229 = vmatpush2.bf16.msra.mxu0 %v3090
    %3230 = vmatprep.subr.bf16.mxu0 %v3089
    %3231 = vmatpush2.bf16.msra.mxu0 %v3088
    %3232 = vmatprep.mubr.bf16.mxu0 %v2866
    %3233 = vmatmul.mubr.bf16.gmra.mxu0 %v2865
    %v3234 = vpop.f32.mrf.mxu0
    %v3235 = vadd.f32 %v2873, %v3234
    %v3236 = vpop.f32.mrf.mxu0
    %v3237 = vadd.f32 %v2877, %v3236
    %v3238 = vpop.f32.mrf.mxu0
    %v3239 = vpop.f32.mrf.mxu0
    %3240 = vdwg.mxu0
    %3241 = vmatprep.subr.bf16.mxu0 %v3119
    %3242 = vmatpush1.bf16.msra.mxu0 %v3118
    %3243 = vmatprep.subr.bf16.mxu0 %v3117
    %3244 = vmatpush1.bf16.msra.mxu0 %v3116
    %3245 = vmatprep.subr.bf16.mxu0 %v3115
    %3246 = vmatpush1.bf16.msra.mxu0 %v3114
    %3247 = vmatprep.subr.bf16.mxu0 %v3113
    %3248 = vmatpush1.bf16.msra.mxu0 %v3112
    %3249 = vmatprep.subr.bf16.mxu0 %v3111
    %3250 = vmatpush1.bf16.msra.mxu0 %v3110
    %3251 = vmatprep.subr.bf16.mxu0 %v3109
    %3252 = vmatpush1.bf16.msra.mxu0 %v3108
    %3253 = vmatprep.subr.bf16.mxu0 %v3107
    %3254 = vmatpush1.bf16.msra.mxu0 %v3106
    %3255 = vmatprep.subr.bf16.mxu0 %v3105
    %3256 = vmatpush1.bf16.msra.mxu0 %v3104
    %3257 = vmatprep.subr.bf16.mxu0 %v3135
    %3258 = vmatpush2.bf16.msra.mxu0 %v3134
    %3259 = vmatprep.subr.bf16.mxu0 %v3133
    %3260 = vmatpush2.bf16.msra.mxu0 %v3132
    %3261 = vmatprep.subr.bf16.mxu0 %v3131
    %3262 = vmatpush2.bf16.msra.mxu0 %v3130
    %3263 = vmatprep.subr.bf16.mxu0 %v3129
    %3264 = vmatpush2.bf16.msra.mxu0 %v3128
    %3265 = vmatprep.subr.bf16.mxu0 %v3127
    %3266 = vmatpush2.bf16.msra.mxu0 %v3126
    %3267 = vmatprep.subr.bf16.mxu0 %v3125
    %3268 = vmatpush2.bf16.msra.mxu0 %v3124
    %3269 = vmatprep.subr.bf16.mxu0 %v3123
    %3270 = vmatpush2.bf16.msra.mxu0 %v3122
    %3271 = vmatprep.subr.bf16.mxu0 %v3121
    %3272 = vmatpush2.bf16.msra.mxu0 %v3120
    %3273 = vmatprep.mubr.bf16.mxu0 %v2868
    %3274 = vmatmul.mubr.bf16.gmra.mxu0 %v2867
    %v3275 = vpop.f32.mrf.mxu0
    %v3276 = vadd.f32 %v3235, %v3275
    %v3277 = vpop.f32.mrf.mxu0
    %v3278 = vadd.f32 %v3237, %v3277
    %v3279 = vpop.f32.mrf.mxu0
    %v3280 = vpop.f32.mrf.mxu0
    %3281 = vdwg.mxu0
    %v3282 = vadd.f32 %v3276, %v3278
    %3283 = vadd.xlane.f32.xlu0 %v3282
    %v3284 = vpop.xlane.xlu0 %3283
    %v3285 = vmul.f32 %v3284, %v967
    %v3286 = vsub.f32 %v3276, %v3285
    %v3287 = vsub.f32 %v3278, %v3285
    %v3288 = vmul.f32 %v3286, %v3286
    %v3289 = vmul.f32 %v3287, %v3287
    %v3290 = vadd.f32 %v3288, %v3289
    %3291 = vadd.xlane.f32.xlu0 %v3290
    %v3292 = vpop.xlane.xlu0 %3291
    %v3293 = vmul.f32 %v3292, %v967
    %v3294 = vadd.f32 %v3293, 1e-05
    %v3295 = vrsqrt.pop %v3294
    %v3296 = vmul.f32 %v3286, %v3295
    %v3297 = vmul.f32 %v3287, %v3295
    %v3299 = vlaneseq
    %v3300 = vshrl.u32 %v3299, 7
    %v3301 = vsub.s32 0, %v3300
    %v3302 = vrot.slane %v2862, %v3301
    %v3303 = vlaneseq
    %v3304 = vshrl.u32 %v3303, 7
    %v3305 = vsub.s32 1, %v3304
    %v3306 = vrot.slane %v2862, %v3305
    %v3309 = vmul.f32 %v3296, %v3302
    %v3310 = vmul.f32 %v3297, %v3306
    %v3312 = vlaneseq
    %v3313 = vshrl.u32 %v3312, 7
    %v3314 = vsub.s32 0, %v3313
    %v3315 = vrot.slane %v2864, %v3314
    %v3316 = vlaneseq
    %v3317 = vshrl.u32 %v3316, 7
    %v3318 = vsub.s32 1, %v3317
    %v3319 = vrot.slane %v2864, %v3318
    %v3322 = vadd.f32 %v3309, %v3315
    %v3323 = vadd.f32 %v3310, %v3319
    %v3324 = vmul.f32 %v3322, 0.5
    %v3325 = vmul.f32 %v3323, 0.5
    %v3326 = vmul.f32 %v3322, 0.044715
    %v3327 = vmul.f32 %v3323, 0.044715
    %v3328 = vmul.f32 %v3326, %v3322
    %v3329 = vmul.f32 %v3327, %v3323
    %v3330 = vmul.f32 %v3328, %v3322
    %v3331 = vmul.f32 %v3329, %v3323
    %v3332 = vadd.f32 %v3322, %v3330
    %v3333 = vadd.f32 %v3323, %v3331
    %v3334 = vmul.f32 %v3332, 0.7978846
    %v3335 = vmul.f32 %v3333, 0.7978846
    %v3336 = vtanh.pop %v3334
    %v3337 = vtanh.pop %v3335
    %v3338 = vadd.f32 %v3336, 1.0
    %v3339 = vadd.f32 %v3337, 1.0
    %v3340 = vmul.f32 %v3324, %v3338
    %v3341 = vmul.f32 %v3325, %v3339
    %s3342 = scalar_lea.vmem [#allocation10], 256
    %v3343 = vld [vmem:[%s3342] sm:$0xf]
    %v3344 = vld [vmem:[%s3342 + $0x4] sm:$0xf]
    %v3345 = vld [vmem:[%s3342 + $0x8] sm:$0xf]
    %v3346 = vld [vmem:[%s3342 + $0xc] sm:$0xf]
    %v3347 = vld [vmem:[%s3342 + $0x10] sm:$0xf]
    %v3348 = vld [vmem:[%s3342 + $0x14] sm:$0xf]
    %v3349 = vld [vmem:[%s3342 + $0x18] sm:$0xf]
    %v3350 = vld [vmem:[%s3342 + $0x1c] sm:$0xf]
    %v3351 = vld [vmem:[%s3342 + $0x20] sm:$0xf]
    %v3352 = vld [vmem:[%s3342 + $0x24] sm:$0xf]
    %v3353 = vld [vmem:[%s3342 + $0x28] sm:$0xf]
    %v3354 = vld [vmem:[%s3342 + $0x2c] sm:$0xf]
    %v3355 = vld [vmem:[%s3342 + $0x30] sm:$0xf]
    %v3356 = vld [vmem:[%s3342 + $0x34] sm:$0xf]
    %v3357 = vld [vmem:[%s3342 + $0x38] sm:$0xf]
    %v3358 = vld [vmem:[%s3342 + $0x3c] sm:$0xf]
    %v3359 = vld [vmem:[%s3342 + $0x40] sm:$0xf]
    %v3360 = vld [vmem:[%s3342 + $0x44] sm:$0xf]
    %v3361 = vld [vmem:[%s3342 + $0x48] sm:$0xf]
    %v3362 = vld [vmem:[%s3342 + $0x4c] sm:$0xf]
    %v3363 = vld [vmem:[%s3342 + $0x50] sm:$0xf]
    %v3364 = vld [vmem:[%s3342 + $0x54] sm:$0xf]
    %v3365 = vld [vmem:[%s3342 + $0x58] sm:$0xf]
    %v3366 = vld [vmem:[%s3342 + $0x5c] sm:$0xf]
    %v3367 = vld [vmem:[%s3342 + $0x60] sm:$0xf]
    %v3368 = vld [vmem:[%s3342 + $0x64] sm:$0xf]
    %v3369 = vld [vmem:[%s3342 + $0x68] sm:$0xf]
    %v3370 = vld [vmem:[%s3342 + $0x6c] sm:$0xf]
    %v3371 = vld [vmem:[%s3342 + $0x70] sm:$0xf]
    %v3372 = vld [vmem:[%s3342 + $0x74] sm:$0xf]
    %v3373 = vld [vmem:[%s3342 + $0x78] sm:$0xf]
    %v3374 = vld [vmem:[%s3342 + $0x7c] sm:$0xf]
    %v3375 = vld [vmem:[#allocation19 + $0x8] sm:$0x1]
    %v3376 = vld [vmem:[#allocation19 + $0x9] sm:$0x1]
    %v3377 = vld [vmem:[#allocation19 + $0xa] sm:$0x1]
    %v3378 = vpack.c.bf16 %v3340, %v3340
    %v3379 = vpack.c.bf16 %v3341, %v3341
    %v3380 = vlaneseq
    %v3381 = vshrl.u32 %v3380, 7
    %v3382 = vsub.s32 0, %v3381
    %v3383 = vrot.slane %v3375, %v3382
    %v3416 = vunpack.c.l.b16 %v3343
    %v3417 = vunpack.c.l.b16 %v3344
    %v3418 = vunpack.c.l.b16 %v3345
    %v3419 = vunpack.c.l.b16 %v3346
    %v3420 = vunpack.c.l.b16 %v3347
    %v3421 = vunpack.c.l.b16 %v3348
    %v3422 = vunpack.c.l.b16 %v3349
    %v3423 = vunpack.c.l.b16 %v3350
    %v3424 = vunpack.c.l.b16 %v3351
    %v3425 = vunpack.c.l.b16 %v3352
    %v3426 = vunpack.c.l.b16 %v3353
    %v3427 = vunpack.c.l.b16 %v3354
    %v3428 = vunpack.c.l.b16 %v3355
    %v3429 = vunpack.c.l.b16 %v3356
    %v3430 = vunpack.c.l.b16 %v3357
    %v3431 = vunpack.c.l.b16 %v3358
    %v3432 = vunpack.c.l.b16 %v3359
    %v3433 = vunpack.c.l.b16 %v3360
    %v3434 = vunpack.c.l.b16 %v3361
    %v3435 = vunpack.c.l.b16 %v3362
    %v3436 = vunpack.c.l.b16 %v3363
    %v3437 = vunpack.c.l.b16 %v3364
    %v3438 = vunpack.c.l.b16 %v3365
    %v3439 = vunpack.c.l.b16 %v3366
    %v3440 = vunpack.c.l.b16 %v3367
    %v3441 = vunpack.c.l.b16 %v3368
    %v3442 = vunpack.c.l.b16 %v3369
    %v3443 = vunpack.c.l.b16 %v3370
    %v3444 = vunpack.c.l.b16 %v3371
    %v3445 = vunpack.c.l.b16 %v3372
    %v3446 = vunpack.c.l.b16 %v3373
    %v3447 = vunpack.c.l.b16 %v3374
    %v3448 = vpack.c.b16 %v3417, %v3416
    %v3449 = vpack.c.b16 %v3419, %v3418
    %v3450 = vpack.c.b16 %v3421, %v3420
    %v3451 = vpack.c.b16 %v3423, %v3422
    %v3452 = vpack.c.b16 %v3425, %v3424
    %v3453 = vpack.c.b16 %v3427, %v3426
    %v3454 = vpack.c.b16 %v3429, %v3428
    %v3455 = vpack.c.b16 %v3431, %v3430
    %v3456 = vpack.c.b16 %v3433, %v3432
    %v3457 = vpack.c.b16 %v3435, %v3434
    %v3458 = vpack.c.b16 %v3437, %v3436
    %v3459 = vpack.c.b16 %v3439, %v3438
    %v3460 = vpack.c.b16 %v3441, %v3440
    %v3461 = vpack.c.b16 %v3443, %v3442
    %v3462 = vpack.c.b16 %v3445, %v3444
    %v3463 = vpack.c.b16 %v3447, %v3446
    %3480 = vmatprep.subr.bf16.mxu0 0
    %3481 = vmatpush1.bf16.msra.mxu0 %v3455
    %3482 = vmatprep.subr.bf16.mxu0 0
    %3483 = vmatpush1.bf16.msra.mxu0 %v3454
    %3484 = vmatprep.subr.bf16.mxu0 0
    %3485 = vmatpush1.bf16.msra.mxu0 %v3453
    %3486 = vmatprep.subr.bf16.mxu0 0
    %3487 = vmatpush1.bf16.msra.mxu0 %v3452
    %3488 = vmatprep.subr.bf16.mxu0 0
    %3489 = vmatpush1.bf16.msra.mxu0 %v3451
    %3490 = vmatprep.subr.bf16.mxu0 0
    %3491 = vmatpush1.bf16.msra.mxu0 %v3450
    %3492 = vmatprep.subr.bf16.mxu0 0
    %3493 = vmatpush1.bf16.msra.mxu0 %v3449
    %3494 = vmatprep.subr.bf16.mxu0 0
    %3495 = vmatpush1.bf16.msra.mxu0 %v3448
    %3496 = vmatprep.subr.bf16.mxu0 0
    %3497 = vmatpush2.bf16.msra.mxu0 %v3463
    %3498 = vmatprep.subr.bf16.mxu0 0
    %3499 = vmatpush2.bf16.msra.mxu0 %v3462
    %3500 = vmatprep.subr.bf16.mxu0 0
    %3501 = vmatpush2.bf16.msra.mxu0 %v3461
    %3502 = vmatprep.subr.bf16.mxu0 0
    %3503 = vmatpush2.bf16.msra.mxu0 %v3460
    %3504 = vmatprep.subr.bf16.mxu0 0
    %3505 = vmatpush2.bf16.msra.mxu0 %v3459
    %3506 = vmatprep.subr.bf16.mxu0 0
    %3507 = vmatpush2.bf16.msra.mxu0 %v3458
    %3508 = vmatprep.subr.bf16.mxu0 0
    %3509 = vmatpush2.bf16.msra.mxu0 %v3457
    %3510 = vmatprep.subr.bf16.mxu0 0
    %3511 = vmatpush2.bf16.msra.mxu0 %v3456
    %3512 = vmatprep.mubr.bf16.mxu0 %v3379
    %3513 = vmatmul.mubr.bf16.gmra.mxu0 %v3378
    %v3514 = vpop.f32.mrf.mxu0
    %v3515 = vadd.f32 %v3383, %v3514
    %v3516 = vpop.f32.mrf.mxu0
    %v3517 = vpop.f32.mrf.mxu0
    %v3518 = vpop.f32.mrf.mxu0
    %3519 = vdwg.mxu0
    %3520 = vadd.xlane.f32.xlu0 %v3515
    %v3521 = vpop.xlane.xlu0 %3520
    %v3522 = vmul.f32 %v3521, %v1204
    %v3523 = vsub.f32 %v3515, %v3522
    %v3524 = vmul.f32 %v3523, %v3523
    %3525 = vadd.xlane.f32.xlu0 %v3524
    %v3526 = vpop.xlane.xlu0 %3525
    %v3527 = vmul.f32 %v3526, %v1204
    %v3528 = vadd.f32 %v3527, 1e-05
    %v3529 = vrsqrt.pop %v3528
    %v3530 = vmul.f32 %v3523, %v3529
    %v3531 = vlaneseq
    %v3532 = vshrl.u32 %v3531, 7
    %v3533 = vsub.s32 0, %v3532
    %v3534 = vrot.slane %v3376, %v3533
    %v3535 = vmul.f32 %v3530, %v3534
    %v3536 = vlaneseq
    %v3537 = vshrl.u32 %v3536, 7
    %v3538 = vsub.s32 0, %v3537
    %v3539 = vrot.slane %v3377, %v3538
    %v3540 = vadd.f32 %v3535, %v3539
    %v3541 = vmul.f32 %v3540, 0.5
    %v3542 = vmul.f32 %v3540, 0.044715
    %v3543 = vmul.f32 %v3542, %v3540
    %v3544 = vmul.f32 %v3543, %v3540
    %v3545 = vadd.f32 %v3540, %v3544
    %v3546 = vmul.f32 %v3545, 0.7978846
    %v3547 = vtanh.pop %v3546
    %v3548 = vadd.f32 %v3547, 1.0
    %v3549 = vmul.f32 %v3541, %v3548
    %s3550 = scalar_lea.vmem [#allocation11], 160
    %v3551 = vld [vmem:[%s3550] sm:$0xf]
    %v3552 = vld [vmem:[%s3550 + $0x4] sm:$0xf]
    %v3553 = vld [vmem:[%s3550 + $0x8] sm:$0xf]
    %v3554 = vld [vmem:[%s3550 + $0xc] sm:$0xf]
    %v3555 = vld [vmem:[%s3550 + $0x10] sm:$0xf]
    %v3556 = vld [vmem:[%s3550 + $0x14] sm:$0xf]
    %v3557 = vld [vmem:[%s3550 + $0x18] sm:$0xf]
    %v3558 = vld [vmem:[%s3550 + $0x1c] sm:$0xf]
    %v3559 = vld [vmem:[%s3550 + $0x20] sm:$0xf]
    %v3560 = vld [vmem:[%s3550 + $0x24] sm:$0xf]
    %v3561 = vld [vmem:[%s3550 + $0x28] sm:$0xf]
    %v3562 = vld [vmem:[%s3550 + $0x2c] sm:$0xf]
    %v3563 = vld [vmem:[%s3550 + $0x30] sm:$0xf]
    %v3564 = vld [vmem:[%s3550 + $0x34] sm:$0xf]
    %v3565 = vld [vmem:[%s3550 + $0x38] sm:$0xf]
    %v3566 = vld [vmem:[%s3550 + $0x3c] sm:$0xf]
    %v3567 = vld [vmem:[%s3550 + $0x40] sm:$0xf]
    %v3568 = vld [vmem:[%s3550 + $0x44] sm:$0xf]
    %v3569 = vld [vmem:[%s3550 + $0x48] sm:$0xf]
    %v3570 = vld [vmem:[%s3550 + $0x4c] sm:$0xf]
    %v3571 = vld [vmem:[#allocation19 + $0xb] sm:$0x1]
    %v3572 = vpack.c.bf16 %v3549, %v3549
    %v3573 = vlaneseq
    %v3574 = vshrl.u32 %v3573, 7
    %v3575 = vsub.s32 0, %v3574
    %v3576 = vrot.slane %v3571, %v3575
    %v3597 = vunpack.c.l.b16 %v3551
    %v3598 = vunpack.c.l.b16 %v3552
    %v3599 = vunpack.c.l.b16 %v3553
    %v3600 = vunpack.c.l.b16 %v3554
    %v3601 = vunpack.c.l.b16 %v3555
    %v3602 = vunpack.c.l.b16 %v3556
    %v3603 = vunpack.c.l.b16 %v3557
    %v3604 = vunpack.c.l.b16 %v3558
    %v3605 = vunpack.c.l.b16 %v3559
    %v3606 = vunpack.c.l.b16 %v3560
    %v3607 = vunpack.c.l.b16 %v3561
    %v3608 = vunpack.c.l.b16 %v3562
    %v3609 = vunpack.c.l.b16 %v3563
    %v3610 = vunpack.c.l.b16 %v3564
    %v3611 = vunpack.c.l.b16 %v3565
    %v3612 = vunpack.c.l.b16 %v3566
    %v3613 = vunpack.c.l.b16 %v3567
    %v3614 = vunpack.c.l.b16 %v3568
    %v3615 = vunpack.c.l.b16 %v3569
    %v3616 = vunpack.c.l.b16 %v3570
    %v3617 = vpack.c.b16 %v3598, %v3597
    %v3618 = vpack.c.b16 %v3600, %v3599
    %v3619 = vpack.c.b16 %v3602, %v3601
    %v3620 = vpack.c.b16 %v3604, %v3603
    %v3621 = vpack.c.b16 %v3606, %v3605
    %v3622 = vpack.c.b16 %v3608, %v3607
    %v3623 = vpack.c.b16 %v3610, %v3609
    %v3624 = vpack.c.b16 %v3612, %v3611
    %v3625 = vpack.c.b16 %v3614, %v3613
    %v3626 = vpack.c.b16 %v3616, %v3615
    %3637 = vmatprep.subr.bf16.mxu0 0
    %3638 = vmatpush1.bf16.msra.mxu0 %v3624
    %3639 = vmatprep.subr.bf16.mxu0 0
    %3640 = vmatpush1.bf16.msra.mxu0 %v3623
    %3641 = vmatprep.subr.bf16.mxu0 0
    %3642 = vmatpush1.bf16.msra.mxu0 %v3622
    %3643 = vmatprep.subr.bf16.mxu0 0
    %3644 = vmatpush1.bf16.msra.mxu0 %v3621
    %3645 = vmatprep.subr.bf16.mxu0 0
    %3646 = vmatpush1.bf16.msra.mxu0 %v3620
    %3647 = vmatprep.subr.bf16.mxu0 0
    %3648 = vmatpush1.bf16.msra.mxu0 %v3619
    %3649 = vmatprep.subr.bf16.mxu0 0
    %3650 = vmatpush1.bf16.msra.mxu0 %v3618
    %3651 = vmatprep.subr.bf16.mxu0 0
    %3652 = vmatpush1.bf16.msra.mxu0 %v3617
    %3653 = vmatprep.subr.bf16.mxu0 0
    %3654 = vmatpush2.bf16.msra.mxu0 0
    %3655 = vmatprep.subr.bf16.mxu0 0
    %3656 = vmatpush2.bf16.msra.mxu0 0
    %3657 = vmatprep.subr.bf16.mxu0 0
    %3658 = vmatpush2.bf16.msra.mxu0 0
    %3659 = vmatprep.subr.bf16.mxu0 0
    %3660 = vmatpush2.bf16.msra.mxu0 0
    %3661 = vmatprep.subr.bf16.mxu0 0
    %3662 = vmatpush2.bf16.msra.mxu0 0
    %3663 = vmatprep.subr.bf16.mxu0 0
    %3664 = vmatpush2.bf16.msra.mxu0 0
    %3665 = vmatprep.subr.bf16.mxu0 0
    %3666 = vmatpush2.bf16.msra.mxu0 %v3626
    %3667 = vmatprep.subr.bf16.mxu0 0
    %3668 = vmatpush2.bf16.msra.mxu0 %v3625
    %3669 = vmatprep.mubr.bf16.mxu0 %v2598
    %3670 = vmatmul.mubr.bf16.gmra.mxu0 %v3572
    %v3671 = vpop.f32.mrf.mxu0
    %v3672 = vadd.f32 %v3576, %v3671
    %v3673 = vpop.f32.mrf.mxu0
    %v3674 = vpop.f32.mrf.mxu0
    %v3675 = vpop.f32.mrf.mxu0
    %3676 = vdwg.mxu0
    %v3677 = vld [vmem:[%s1] sm:$0xff]
    %v3678 = vld [vmem:[#allocation14 + $0x80] sm:$0xf]
    %v3679 = vld [vmem:[#allocation14 + $0x84] sm:$0xf]
    %v3680 = vld [vmem:[#allocation19 + $0xf] sm:$0x1]
    %v3681 = vpack.c.bf16 %v3677, %v3677
    %v3682 = vlaneseq
    %v3683 = vshrl.u32 %v3682, 7
    %v3684 = vsub.s32 0, %v3683
    %v3685 = vrot.slane %v3680, %v3684
    %v3688 = vunpack.c.l.b16 %v3678
    %v3689 = vunpack.c.l.b16 %v3679
    %v3690 = vpack.c.b16 %v3689, %v3688
    %vm3692 = vcmask 130048
    %v3694 = vsel %vm3692, %v3681, 0
    %3696 = vmatprep.subr.bf16.mxu0 0
    %3697 = vmatpush1.bf16.msra.mxu0 0
    %3698 = vmatprep.subr.bf16.mxu0 0
    %3699 = vmatpush1.bf16.msra.mxu0 0
    %3700 = vmatprep.subr.bf16.mxu0 0
    %3701 = vmatpush1.bf16.msra.mxu0 0
    %3702 = vmatprep.subr.bf16.mxu0 0
    %3703 = vmatpush1.bf16.msra.mxu0 0
    %3704 = vmatprep.subr.bf16.mxu0 0
    %3705 = vmatpush1.bf16.msra.mxu0 0
    %3706 = vmatprep.subr.bf16.mxu0 0
    %3707 = vmatpush1.bf16.msra.mxu0 0
    %3708 = vmatprep.subr.bf16.mxu0 0
    %3709 = vmatpush1.bf16.msra.mxu0 0
    %3710 = vmatprep.subr.bf16.mxu0 0
    %3711 = vmatpush1.bf16.msra.mxu0 %v3690
    %3712 = vmatprep.subr.bf16.mxu0 0
    %3713 = vmatpush2.bf16.msra.mxu0 0
    %3714 = vmatprep.subr.bf16.mxu0 0
    %3715 = vmatpush2.bf16.msra.mxu0 0
    %3716 = vmatprep.subr.bf16.mxu0 0
    %3717 = vmatpush2.bf16.msra.mxu0 0
    %3718 = vmatprep.subr.bf16.mxu0 0
    %3719 = vmatpush2.bf16.msra.mxu0 0
    %3720 = vmatprep.subr.bf16.mxu0 0
    %3721 = vmatpush2.bf16.msra.mxu0 0
    %3722 = vmatprep.subr.bf16.mxu0 0
    %3723 = vmatpush2.bf16.msra.mxu0 0
    %3724 = vmatprep.subr.bf16.mxu0 0
    %3725 = vmatpush2.bf16.msra.mxu0 0
    %3726 = vmatprep.subr.bf16.mxu0 0
    %3727 = vmatpush2.bf16.msra.mxu0 0
    %3728 = vmatprep.mubr.bf16.mxu0 0
    %3729 = vmatmul.mubr.bf16.gmra.mxu0 %v3694
    %v3730 = vpop.f32.mrf.mxu0
    %v3731 = vadd.f32 %v3685, %v3730
    %v3732 = vpop.f32.mrf.mxu0
    %v3733 = vpop.f32.mrf.mxu0
    %v3734 = vpop.f32.mrf.mxu0
    %3735 = vdwg.mxu0
    %v3736 = vld [vmem:[%s6] sm:$0xff]
    %v3737 = vld [vmem:[%s6 + $0x8] sm:$0xff]
    %v3738 = vld [vmem:[%s6 + $0x10] sm:$0xff]
    %v3739 = vld [vmem:[%s6 + $0x18] sm:$0xff]
    %s3740 = scalar_lea.vmem %s10, 33
    %v3741 = vld [vmem:[%s3740] ss:$8 sm:$0xf]
    %s3742 = scalar_lea.vmem %s10, 34
    %v3743 = vld [vmem:[%s3742] ss:$8 sm:$0xf]
    %s3744 = scalar_lea.vmem %s10, 35
    %v3745 = vld [vmem:[%s3744] ss:$8 sm:$0xf]
    %v3747 = vlaneseq
    %v3748 = vshrl.u32 %v3747, 7
    %v3749 = vsub.s32 0, %v3748
    %v3750 = vrot.slane %v3741, %v3749
    %v3751 = vlaneseq
    %v3752 = vshrl.u32 %v3751, 7
    %v3753 = vsub.s32 1, %v3752
    %v3754 = vrot.slane %v3741, %v3753
    %v3755 = vlaneseq
    %v3756 = vshrl.u32 %v3755, 7
    %v3757 = vsub.s32 2, %v3756
    %v3758 = vrot.slane %v3741, %v3757
    %v3759 = vlaneseq
    %v3760 = vshrl.u32 %v3759, 7
    %v3761 = vsub.s32 3, %v3760
    %v3762 = vrot.slane %v3741, %v3761
    %v3771 = vunpack.c.l.b16 %v3736
    %v3772 = vunpack.c.h.b16 %v3736
    %v3773 = vunpack.c.l.b16 %v3737
    %v3774 = vunpack.c.h.b16 %v3737
    %v3775 = vunpack.c.l.b16 %v3738
    %v3776 = vunpack.c.h.b16 %v3738
    %v3777 = vunpack.c.l.b16 %v3739
    %v3778 = vunpack.c.h.b16 %v3739
    %v3779 = vpack.c.b16 %v3775, %v3771
    %v3780 = vpack.c.b16 %v3776, %v3772
    %v3781 = vpack.c.b16 %v3777, %v3773
    %v3782 = vpack.c.b16 %v3778, %v3774
    %3787 = vmatprep.subr.bf16.mxu0 0
    %3788 = vmatpush1.bf16.msra.mxu0 0
    %3789 = vmatprep.subr.bf16.mxu0 0
    %3790 = vmatpush1.bf16.msra.mxu0 0
    %3791 = vmatprep.subr.bf16.mxu0 0
    %3792 = vmatpush1.bf16.msra.mxu0 0
    %3793 = vmatprep.subr.bf16.mxu0 0
    %3794 = vmatpush1.bf16.msra.mxu0 0
    %3795 = vmatprep.subr.bf16.mxu0 0
    %3796 = vmatpush1.bf16.msra.mxu0 0
    %3797 = vmatprep.subr.bf16.mxu0 0
    %3798 = vmatpush1.bf16.msra.mxu0 0
    %3799 = vmatprep.subr.bf16.mxu0 0
    %3800 = vmatpush1.bf16.msra.mxu0 0
    %3801 = vmatprep.subr.bf16.mxu0 %v3780
    %3802 = vmatpush1.bf16.msra.mxu0 %v3779
    %3803 = vmatprep.subr.bf16.mxu0 0
    %3804 = vmatpush2.bf16.msra.mxu0 0
    %3805 = vmatprep.subr.bf16.mxu0 0
    %3806 = vmatpush2.bf16.msra.mxu0 0
    %3807 = vmatprep.subr.bf16.mxu0 0
    %3808 = vmatpush2.bf16.msra.mxu0 0
    %3809 = vmatprep.subr.bf16.mxu0 0
    %3810 = vmatpush2.bf16.msra.mxu0 0
    %3811 = vmatprep.subr.bf16.mxu0 0
    %3812 = vmatpush2.bf16.msra.mxu0 0
    %3813 = vmatprep.subr.bf16.mxu0 0
    %3814 = vmatpush2.bf16.msra.mxu0 0
    %3815 = vmatprep.subr.bf16.mxu0 0
    %3816 = vmatpush2.bf16.msra.mxu0 0
    %3817 = vmatprep.subr.bf16.mxu0 0
    %3818 = vmatpush2.bf16.msra.mxu0 0
    %3819 = vmatprep.mubr.bf16.mxu0 0
    %3820 = vmatmul.mubr.bf16.gmra.mxu0 %v3694
    %v3821 = vpop.f32.mrf.mxu0
    %v3822 = vadd.f32 %v3750, %v3821
    %v3823 = vpop.f32.mrf.mxu0
    %v3824 = vadd.f32 %v3754, %v3823
    %v3825 = vpop.f32.mrf.mxu0
    %v3826 = vpop.f32.mrf.mxu0
    %3827 = vdwg.mxu0
    %3828 = vmatprep.subr.bf16.mxu0 0
    %3829 = vmatpush1.bf16.msra.mxu0 0
    %3830 = vmatprep.subr.bf16.mxu0 0
    %3831 = vmatpush1.bf16.msra.mxu0 0
    %3832 = vmatprep.subr.bf16.mxu0 0
    %3833 = vmatpush1.bf16.msra.mxu0 0
    %3834 = vmatprep.subr.bf16.mxu0 0
    %3835 = vmatpush1.bf16.msra.mxu0 0
    %3836 = vmatprep.subr.bf16.mxu0 0
    %3837 = vmatpush1.bf16.msra.mxu0 0
    %3838 = vmatprep.subr.bf16.mxu0 0
    %3839 = vmatpush1.bf16.msra.mxu0 0
    %3840 = vmatprep.subr.bf16.mxu0 0
    %3841 = vmatpush1.bf16.msra.mxu0 0
    %3842 = vmatprep.subr.bf16.mxu0 %v3782
    %3843 = vmatpush1.bf16.msra.mxu0 %v3781
    %3844 = vmatprep.subr.bf16.mxu0 0
    %3845 = vmatpush2.bf16.msra.mxu0 0
    %3846 = vmatprep.subr.bf16.mxu0 0
    %3847 = vmatpush2.bf16.msra.mxu0 0
    %3848 = vmatprep.subr.bf16.mxu0 0
    %3849 = vmatpush2.bf16.msra.mxu0 0
    %3850 = vmatprep.subr.bf16.mxu0 0
    %3851 = vmatpush2.bf16.msra.mxu0 0
    %3852 = vmatprep.subr.bf16.mxu0 0
    %3853 = vmatpush2.bf16.msra.mxu0 0
    %3854 = vmatprep.subr.bf16.mxu0 0
    %3855 = vmatpush2.bf16.msra.mxu0 0
    %3856 = vmatprep.subr.bf16.mxu0 0
    %3857 = vmatpush2.bf16.msra.mxu0 0
    %3858 = vmatprep.subr.bf16.mxu0 0
    %3859 = vmatpush2.bf16.msra.mxu0 0
    %3860 = vmatprep.mubr.bf16.mxu0 0
    %3861 = vmatmul.mubr.bf16.gmra.mxu0 %v3694
    %v3862 = vpop.f32.mrf.mxu0
    %v3863 = vadd.f32 %v3758, %v3862
    %v3864 = vpop.f32.mrf.mxu0
    %v3865 = vadd.f32 %v3762, %v3864
    %v3866 = vpop.f32.mrf.mxu0
    %v3867 = vpop.f32.mrf.mxu0
    %3868 = vdwg.mxu0
    %v3869 = vadd.f32 %v3822, %v3824
    %v3870 = vadd.f32 %v3869, %v3863
    %v3871 = vadd.f32 %v3870, %v3865
    %3872 = vadd.xlane.f32.xlu0 %v3871
    %v3873 = vpop.xlane.xlu0 %3872
    %v3874 = vmul.f32 %v3873, %v370
    %v3875 = vsub.f32 %v3822, %v3874
    %v3876 = vsub.f32 %v3824, %v3874
    %v3877 = vsub.f32 %v3863, %v3874
    %v3878 = vsub.f32 %v3865, %v3874
    %v3879 = vmul.f32 %v3875, %v3875
    %v3880 = vmul.f32 %v3876, %v3876
    %v3881 = vmul.f32 %v3877, %v3877
    %v3882 = vmul.f32 %v3878, %v3878
    %v3883 = vadd.f32 %v3879, %v3880
    %v3884 = vadd.f32 %v3883, %v3881
    %v3885 = vadd.f32 %v3884, %v3882
    %3886 = vadd.xlane.f32.xlu0 %v3885
    %v3887 = vpop.xlane.xlu0 %3886
    %v3888 = vmul.f32 %v3887, %v370
    %v3889 = vadd.f32 %v3888, 1e-05
    %v3890 = vrsqrt.pop %v3889
    %v3891 = vmul.f32 %v3875, %v3890
    %v3892 = vmul.f32 %v3876, %v3890
    %v3893 = vmul.f32 %v3877, %v3890
    %v3894 = vmul.f32 %v3878, %v3890
    %v3896 = vlaneseq
    %v3897 = vshrl.u32 %v3896, 7
    %v3898 = vsub.s32 0, %v3897
    %v3899 = vrot.slane %v3743, %v3898
    %v3900 = vlaneseq
    %v3901 = vshrl.u32 %v3900, 7
    %v3902 = vsub.s32 1, %v3901
    %v3903 = vrot.slane %v3743, %v3902
    %v3904 = vlaneseq
    %v3905 = vshrl.u32 %v3904, 7
    %v3906 = vsub.s32 2, %v3905
    %v3907 = vrot.slane %v3743, %v3906
    %v3908 = vlaneseq
    %v3909 = vshrl.u32 %v3908, 7
    %v3910 = vsub.s32 3, %v3909
    %v3911 = vrot.slane %v3743, %v3910
    %v3916 = vmul.f32 %v3891, %v3899
    %v3917 = vmul.f32 %v3892, %v3903
    %v3918 = vmul.f32 %v3893, %v3907
    %v3919 = vmul.f32 %v3894, %v3911
    %v3921 = vlaneseq
    %v3922 = vshrl.u32 %v3921, 7
    %v3923 = vsub.s32 0, %v3922
    %v3924 = vrot.slane %v3745, %v3923
    %v3925 = vlaneseq
    %v3926 = vshrl.u32 %v3925, 7
    %v3927 = vsub.s32 1, %v3926
    %v3928 = vrot.slane %v3745, %v3927
    %v3929 = vlaneseq
    %v3930 = vshrl.u32 %v3929, 7
    %v3931 = vsub.s32 2, %v3930
    %v3932 = vrot.slane %v3745, %v3931
    %v3933 = vlaneseq
    %v3934 = vshrl.u32 %v3933, 7
    %v3935 = vsub.s32 3, %v3934
    %v3936 = vrot.slane %v3745, %v3935
    %v3941 = vadd.f32 %v3916, %v3924
    %v3942 = vadd.f32 %v3917, %v3928
    %v3943 = vadd.f32 %v3918, %v3932
    %v3944 = vadd.f32 %v3919, %v3936
    %v3945 = vmul.f32 %v3941, 0.5
    %v3946 = vmul.f32 %v3942, 0.5
    %v3947 = vmul.f32 %v3943, 0.5
    %v3948 = vmul.f32 %v3944, 0.5
    %v3949 = vmul.f32 %v3941, 0.044715
    %v3950 = vmul.f32 %v3942, 0.044715
    %v3951 = vmul.f32 %v3943, 0.044715
    %v3952 = vmul.f32 %v3944, 0.044715
    %v3953 = vmul.f32 %v3949, %v3941
    %v3954 = vmul.f32 %v3950, %v3942
    %v3955 = vmul.f32 %v3951, %v3943
    %v3956 = vmul.f32 %v3952, %v3944
    %v3957 = vmul.f32 %v3953, %v3941
    %v3958 = vmul.f32 %v3954, %v3942
    %v3959 = vmul.f32 %v3955, %v3943
    %v3960 = vmul.f32 %v3956, %v3944
    %v3961 = vadd.f32 %v3941, %v3957
    %v3962 = vadd.f32 %v3942, %v3958
    %v3963 = vadd.f32 %v3943, %v3959
    %v3964 = vadd.f32 %v3944, %v3960
    %v3965 = vmul.f32 %v3961, 0.7978846
    %v3966 = vmul.f32 %v3962, 0.7978846
    %v3967 = vmul.f32 %v3963, 0.7978846
    %v3968 = vmul.f32 %v3964, 0.7978846
    %v3969 = vtanh.pop %v3965
    %v3970 = vtanh.pop %v3966
    %v3971 = vtanh.pop %v3967
    %v3972 = vtanh.pop %v3968
    %v3973 = vadd.f32 %v3969, 1.0
    %v3974 = vadd.f32 %v3970, 1.0
    %v3975 = vadd.f32 %v3971, 1.0
    %v3976 = vadd.f32 %v3972, 1.0
    %v3977 = vmul.f32 %v3945, %v3973
    %v3978 = vmul.f32 %v3946, %v3974
    %v3979 = vmul.f32 %v3947, %v3975
    %v3980 = vmul.f32 %v3948, %v3976
    %v3981 = vld [vmem:[#allocation13] sm:$0xff]
    %v3982 = vld [vmem:[#allocation13 + $0x8] sm:$0xff]
    %v3983 = vld [vmem:[#allocation13 + $0x10] sm:$0xff]
    %v3984 = vld [vmem:[#allocation13 + $0x18] sm:$0xff]
    %v3985 = vld [vmem:[#allocation13 + $0x20] sm:$0xff]
    %v3986 = vld [vmem:[#allocation13 + $0x28] sm:$0xff]
    %v3987 = vld [vmem:[#allocation13 + $0x30] sm:$0xff]
    %v3988 = vld [vmem:[#allocation13 + $0x38] sm:$0xff]
    %v3989 = vld [vmem:[#allocation13 + $0x40] sm:$0xff]
    %v3990 = vld [vmem:[#allocation13 + $0x48] sm:$0xff]
    %v3991 = vld [vmem:[#allocation13 + $0x50] sm:$0xff]
    %v3992 = vld [vmem:[#allocation13 + $0x58] sm:$0xff]
    %v3993 = vld [vmem:[#allocation13 + $0x60] sm:$0xff]
    %v3994 = vld [vmem:[#allocation13 + $0x68] sm:$0xff]
    %v3995 = vld [vmem:[#allocation13 + $0x70] sm:$0xff]
    %v3996 = vld [vmem:[#allocation13 + $0x78] sm:$0xff]
    %v3997 = vld [vmem:[#allocation13 + $0x80] sm:$0xff]
    %v3998 = vld [vmem:[#allocation13 + $0x88] sm:$0xff]
    %v3999 = vld [vmem:[#allocation13 + $0x90] sm:$0xff]
    %v4000 = vld [vmem:[#allocation13 + $0x98] sm:$0xff]
    %v4001 = vld [vmem:[#allocation13 + $0xa0] sm:$0xff]
    %v4002 = vld [vmem:[#allocation13 + $0xa8] sm:$0xff]
    %v4003 = vld [vmem:[#allocation13 + $0xb0] sm:$0xff]
    %v4004 = vld [vmem:[#allocation13 + $0xb8] sm:$0xff]
    %v4005 = vld [vmem:[#allocation13 + $0xc0] sm:$0xff]
    %v4006 = vld [vmem:[#allocation13 + $0xc8] sm:$0xff]
    %v4007 = vld [vmem:[#allocation13 + $0xd0] sm:$0xff]
    %v4008 = vld [vmem:[#allocation13 + $0xd8] sm:$0xff]
    %v4009 = vld [vmem:[#allocation13 + $0xe0] sm:$0xff]
    %v4010 = vld [vmem:[#allocation13 + $0xe8] sm:$0xff]
    %v4011 = vld [vmem:[#allocation13 + $0xf0] sm:$0xff]
    %v4012 = vld [vmem:[#allocation13 + $0xf8] sm:$0xff]
    %v4013 = vld [vmem:[#allocation13 + $0x100] sm:$0xff]
    %v4014 = vld [vmem:[#allocation13 + $0x108] sm:$0xff]
    %v4015 = vld [vmem:[#allocation13 + $0x110] sm:$0xff]
    %v4016 = vld [vmem:[#allocation13 + $0x118] sm:$0xff]
    %v4017 = vld [vmem:[#allocation13 + $0x120] sm:$0xff]
    %v4018 = vld [vmem:[#allocation13 + $0x128] sm:$0xff]
    %v4019 = vld [vmem:[#allocation13 + $0x130] sm:$0xff]
    %v4020 = vld [vmem:[#allocation13 + $0x138] sm:$0xff]
    %v4021 = vld [vmem:[#allocation13 + $0x140] sm:$0xff]
    %v4022 = vld [vmem:[#allocation13 + $0x148] sm:$0xff]
    %v4023 = vld [vmem:[#allocation13 + $0x150] sm:$0xff]
    %v4024 = vld [vmem:[#allocation13 + $0x158] sm:$0xff]
    %v4025 = vld [vmem:[#allocation13 + $0x160] sm:$0xff]
    %v4026 = vld [vmem:[#allocation13 + $0x168] sm:$0xff]
    %v4027 = vld [vmem:[#allocation13 + $0x170] sm:$0xff]
    %v4028 = vld [vmem:[#allocation13 + $0x178] sm:$0xff]
    %v4029 = vld [vmem:[#allocation13 + $0x180] sm:$0xff]
    %v4030 = vld [vmem:[#allocation13 + $0x188] sm:$0xff]
    %v4031 = vld [vmem:[#allocation13 + $0x190] sm:$0xff]
    %v4032 = vld [vmem:[#allocation13 + $0x198] sm:$0xff]
    %v4033 = vld [vmem:[#allocation13 + $0x1a0] sm:$0xff]
    %v4034 = vld [vmem:[#allocation13 + $0x1a8] sm:$0xff]
    %v4035 = vld [vmem:[#allocation13 + $0x1b0] sm:$0xff]
    %v4036 = vld [vmem:[#allocation13 + $0x1b8] sm:$0xff]
    %v4037 = vld [vmem:[#allocation13 + $0x1c0] sm:$0xff]
    %v4038 = vld [vmem:[#allocation13 + $0x1c8] sm:$0xff]
    %v4039 = vld [vmem:[#allocation13 + $0x1d0] sm:$0xff]
    %v4040 = vld [vmem:[#allocation13 + $0x1d8] sm:$0xff]
    %v4041 = vld [vmem:[#allocation13 + $0x1e0] sm:$0xff]
    %v4042 = vld [vmem:[#allocation13 + $0x1e8] sm:$0xff]
    %v4043 = vld [vmem:[#allocation13 + $0x1f0] sm:$0xff]
    %v4044 = vld [vmem:[#allocation13 + $0x1f8] sm:$0xff]
    %s4045 = scalar_lea.vmem [#allocation17], 17
    %v4046 = vld [vmem:[%s4045] ss:$8 sm:$0x3]
    %s4047 = scalar_lea.vmem [#allocation17], 18
    %v4048 = vld [vmem:[%s4047] ss:$8 sm:$0x3]
    %s4049 = scalar_lea.vmem [#allocation17], 19
    %v4050 = vld [vmem:[%s4049] ss:$8 sm:$0x3]
    %v4051 = vpack.c.bf16 %v3977, %v3977
    %v4052 = vpack.c.bf16 %v3978, %v3978
    %v4053 = vpack.c.bf16 %v3979, %v3979
    %v4054 = vpack.c.bf16 %v3980, %v3980
    %v4056 = vlaneseq
    %v4057 = vshrl.u32 %v4056, 7
    %v4058 = vsub.s32 0, %v4057
    %v4059 = vrot.slane %v4046, %v4058
    %v4060 = vlaneseq
    %v4061 = vshrl.u32 %v4060, 7
    %v4062 = vsub.s32 1, %v4061
    %v4063 = vrot.slane %v4046, %v4062
    %v4130 = vunpack.c.l.b16 %v3981
    %v4131 = vunpack.c.h.b16 %v3981
    %v4132 = vunpack.c.l.b16 %v3982
    %v4133 = vunpack.c.h.b16 %v3982
    %v4134 = vunpack.c.l.b16 %v3983
    %v4135 = vunpack.c.h.b16 %v3983
    %v4136 = vunpack.c.l.b16 %v3984
    %v4137 = vunpack.c.h.b16 %v3984
    %v4138 = vunpack.c.l.b16 %v3985
    %v4139 = vunpack.c.h.b16 %v3985
    %v4140 = vunpack.c.l.b16 %v3986
    %v4141 = vunpack.c.h.b16 %v3986
    %v4142 = vunpack.c.l.b16 %v3987
    %v4143 = vunpack.c.h.b16 %v3987
    %v4144 = vunpack.c.l.b16 %v3988
    %v4145 = vunpack.c.h.b16 %v3988
    %v4146 = vunpack.c.l.b16 %v3989
    %v4147 = vunpack.c.h.b16 %v3989
    %v4148 = vunpack.c.l.b16 %v3990
    %v4149 = vunpack.c.h.b16 %v3990
    %v4150 = vunpack.c.l.b16 %v3991
    %v4151 = vunpack.c.h.b16 %v3991
    %v4152 = vunpack.c.l.b16 %v3992
    %v4153 = vunpack.c.h.b16 %v3992
    %v4154 = vunpack.c.l.b16 %v3993
    %v4155 = vunpack.c.h.b16 %v3993
    %v4156 = vunpack.c.l.b16 %v3994
    %v4157 = vunpack.c.h.b16 %v3994
    %v4158 = vunpack.c.l.b16 %v3995
    %v4159 = vunpack.c.h.b16 %v3995
    %v4160 = vunpack.c.l.b16 %v3996
    %v4161 = vunpack.c.h.b16 %v3996
    %v4162 = vunpack.c.l.b16 %v3997
    %v4163 = vunpack.c.h.b16 %v3997
    %v4164 = vunpack.c.l.b16 %v3998
    %v4165 = vunpack.c.h.b16 %v3998
    %v4166 = vunpack.c.l.b16 %v3999
    %v4167 = vunpack.c.h.b16 %v3999
    %v4168 = vunpack.c.l.b16 %v4000
    %v4169 = vunpack.c.h.b16 %v4000
    %v4170 = vunpack.c.l.b16 %v4001
    %v4171 = vunpack.c.h.b16 %v4001
    %v4172 = vunpack.c.l.b16 %v4002
    %v4173 = vunpack.c.h.b16 %v4002
    %v4174 = vunpack.c.l.b16 %v4003
    %v4175 = vunpack.c.h.b16 %v4003
    %v4176 = vunpack.c.l.b16 %v4004
    %v4177 = vunpack.c.h.b16 %v4004
    %v4178 = vunpack.c.l.b16 %v4005
    %v4179 = vunpack.c.h.b16 %v4005
    %v4180 = vunpack.c.l.b16 %v4006
    %v4181 = vunpack.c.h.b16 %v4006
    %v4182 = vunpack.c.l.b16 %v4007
    %v4183 = vunpack.c.h.b16 %v4007
    %v4184 = vunpack.c.l.b16 %v4008
    %v4185 = vunpack.c.h.b16 %v4008
    %v4186 = vunpack.c.l.b16 %v4009
    %v4187 = vunpack.c.h.b16 %v4009
    %v4188 = vunpack.c.l.b16 %v4010
    %v4189 = vunpack.c.h.b16 %v4010
    %v4190 = vunpack.c.l.b16 %v4011
    %v4191 = vunpack.c.h.b16 %v4011
    %v4192 = vunpack.c.l.b16 %v4012
    %v4193 = vunpack.c.h.b16 %v4012
    %v4194 = vunpack.c.l.b16 %v4013
    %v4195 = vunpack.c.h.b16 %v4013
    %v4196 = vunpack.c.l.b16 %v4014
    %v4197 = vunpack.c.h.b16 %v4014
    %v4198 = vunpack.c.l.b16 %v4015
    %v4199 = vunpack.c.h.b16 %v4015
    %v4200 = vunpack.c.l.b16 %v4016
    %v4201 = vunpack.c.h.b16 %v4016
    %v4202 = vunpack.c.l.b16 %v4017
    %v4203 = vunpack.c.h.b16 %v4017
    %v4204 = vunpack.c.l.b16 %v4018
    %v4205 = vunpack.c.h.b16 %v4018
    %v4206 = vunpack.c.l.b16 %v4019
    %v4207 = vunpack.c.h.b16 %v4019
    %v4208 = vunpack.c.l.b16 %v4020
    %v4209 = vunpack.c.h.b16 %v4020
    %v4210 = vunpack.c.l.b16 %v4021
    %v4211 = vunpack.c.h.b16 %v4021
    %v4212 = vunpack.c.l.b16 %v4022
    %v4213 = vunpack.c.h.b16 %v4022
    %v4214 = vunpack.c.l.b16 %v4023
    %v4215 = vunpack.c.h.b16 %v4023
    %v4216 = vunpack.c.l.b16 %v4024
    %v4217 = vunpack.c.h.b16 %v4024
    %v4218 = vunpack.c.l.b16 %v4025
    %v4219 = vunpack.c.h.b16 %v4025
    %v4220 = vunpack.c.l.b16 %v4026
    %v4221 = vunpack.c.h.b16 %v4026
    %v4222 = vunpack.c.l.b16 %v4027
    %v4223 = vunpack.c.h.b16 %v4027
    %v4224 = vunpack.c.l.b16 %v4028
    %v4225 = vunpack.c.h.b16 %v4028
    %v4226 = vunpack.c.l.b16 %v4029
    %v4227 = vunpack.c.h.b16 %v4029
    %v4228 = vunpack.c.l.b16 %v4030
    %v4229 = vunpack.c.h.b16 %v4030
    %v4230 = vunpack.c.l.b16 %v4031
    %v4231 = vunpack.c.h.b16 %v4031
    %v4232 = vunpack.c.l.b16 %v4032
    %v4233 = vunpack.c.h.b16 %v4032
    %v4234 = vunpack.c.l.b16 %v4033
    %v4235 = vunpack.c.h.b16 %v4033
    %v4236 = vunpack.c.l.b16 %v4034
    %v4237 = vunpack.c.h.b16 %v4034
    %v4238 = vunpack.c.l.b16 %v4035
    %v4239 = vunpack.c.h.b16 %v4035
    %v4240 = vunpack.c.l.b16 %v4036
    %v4241 = vunpack.c.h.b16 %v4036
    %v4242 = vunpack.c.l.b16 %v4037
    %v4243 = vunpack.c.h.b16 %v4037
    %v4244 = vunpack.c.l.b16 %v4038
    %v4245 = vunpack.c.h.b16 %v4038
    %v4246 = vunpack.c.l.b16 %v4039
    %v4247 = vunpack.c.h.b16 %v4039
    %v4248 = vunpack.c.l.b16 %v4040
    %v4249 = vunpack.c.h.b16 %v4040
    %v4250 = vunpack.c.l.b16 %v4041
    %v4251 = vunpack.c.h.b16 %v4041
    %v4252 = vunpack.c.l.b16 %v4042
    %v4253 = vunpack.c.h.b16 %v4042
    %v4254 = vunpack.c.l.b16 %v4043
    %v4255 = vunpack.c.h.b16 %v4043
    %v4256 = vunpack.c.l.b16 %v4044
    %v4257 = vunpack.c.h.b16 %v4044
    %v4258 = vpack.c.b16 %v4132, %v4130
    %v4259 = vpack.c.b16 %v4133, %v4131
    %v4260 = vpack.c.b16 %v4136, %v4134
    %v4261 = vpack.c.b16 %v4137, %v4135
    %v4262 = vpack.c.b16 %v4140, %v4138
    %v4263 = vpack.c.b16 %v4141, %v4139
    %v4264 = vpack.c.b16 %v4144, %v4142
    %v4265 = vpack.c.b16 %v4145, %v4143
    %v4266 = vpack.c.b16 %v4148, %v4146
    %v4267 = vpack.c.b16 %v4149, %v4147
    %v4268 = vpack.c.b16 %v4152, %v4150
    %v4269 = vpack.c.b16 %v4153, %v4151
    %v4270 = vpack.c.b16 %v4156, %v4154
    %v4271 = vpack.c.b16 %v4157, %v4155
    %v4272 = vpack.c.b16 %v4160, %v4158
    %v4273 = vpack.c.b16 %v4161, %v4159
    %v4274 = vpack.c.b16 %v4164, %v4162
    %v4275 = vpack.c.b16 %v4165, %v4163
    %v4276 = vpack.c.b16 %v4168, %v4166
    %v4277 = vpack.c.b16 %v4169, %v4167
    %v4278 = vpack.c.b16 %v4172, %v4170
    %v4279 = vpack.c.b16 %v4173, %v4171
    %v4280 = vpack.c.b16 %v4176, %v4174
    %v4281 = vpack.c.b16 %v4177, %v4175
    %v4282 = vpack.c.b16 %v4180, %v4178
    %v4283 = vpack.c.b16 %v4181, %v4179
    %v4284 = vpack.c.b16 %v4184, %v4182
    %v4285 = vpack.c.b16 %v4185, %v4183
    %v4286 = vpack.c.b16 %v4188, %v4186
    %v4287 = vpack.c.b16 %v4189, %v4187
    %v4288 = vpack.c.b16 %v4192, %v4190
    %v4289 = vpack.c.b16 %v4193, %v4191
    %v4290 = vpack.c.b16 %v4196, %v4194
    %v4291 = vpack.c.b16 %v4197, %v4195
    %v4292 = vpack.c.b16 %v4200, %v4198
    %v4293 = vpack.c.b16 %v4201, %v4199
    %v4294 = vpack.c.b16 %v4204, %v4202
    %v4295 = vpack.c.b16 %v4205, %v4203
    %v4296 = vpack.c.b16 %v4208, %v4206
    %v4297 = vpack.c.b16 %v4209, %v4207
    %v4298 = vpack.c.b16 %v4212, %v4210
    %v4299 = vpack.c.b16 %v4213, %v4211
    %v4300 = vpack.c.b16 %v4216, %v4214
    %v4301 = vpack.c.b16 %v4217, %v4215
    %v4302 = vpack.c.b16 %v4220, %v4218
    %v4303 = vpack.c.b16 %v4221, %v4219
    %v4304 = vpack.c.b16 %v4224, %v4222
    %v4305 = vpack.c.b16 %v4225, %v4223
    %v4306 = vpack.c.b16 %v4228, %v4226
    %v4307 = vpack.c.b16 %v4229, %v4227
    %v4308 = vpack.c.b16 %v4232, %v4230
    %v4309 = vpack.c.b16 %v4233, %v4231
    %v4310 = vpack.c.b16 %v4236, %v4234
    %v4311 = vpack.c.b16 %v4237, %v4235
    %v4312 = vpack.c.b16 %v4240, %v4238
    %v4313 = vpack.c.b16 %v4241, %v4239
    %v4314 = vpack.c.b16 %v4244, %v4242
    %v4315 = vpack.c.b16 %v4245, %v4243
    %v4316 = vpack.c.b16 %v4248, %v4246
    %v4317 = vpack.c.b16 %v4249, %v4247
    %v4318 = vpack.c.b16 %v4252, %v4250
    %v4319 = vpack.c.b16 %v4253, %v4251
    %v4320 = vpack.c.b16 %v4256, %v4254
    %v4321 = vpack.c.b16 %v4257, %v4255
    %4386 = vmatprep.subr.bf16.mxu0 %v4273
    %4387 = vmatpush1.bf16.msra.mxu0 %v4272
    %4388 = vmatprep.subr.bf16.mxu0 %v4271
    %4389 = vmatpush1.bf16.msra.mxu0 %v4270
    %4390 = vmatprep.subr.bf16.mxu0 %v4269
    %4391 = vmatpush1.bf16.msra.mxu0 %v4268
    %4392 = vmatprep.subr.bf16.mxu0 %v4267
    %4393 = vmatpush1.bf16.msra.mxu0 %v4266
    %4394 = vmatprep.subr.bf16.mxu0 %v4265
    %4395 = vmatpush1.bf16.msra.mxu0 %v4264
    %4396 = vmatprep.subr.bf16.mxu0 %v4263
    %4397 = vmatpush1.bf16.msra.mxu0 %v4262
    %4398 = vmatprep.subr.bf16.mxu0 %v4261
    %4399 = vmatpush1.bf16.msra.mxu0 %v4260
    %4400 = vmatprep.subr.bf16.mxu0 %v4259
    %4401 = vmatpush1.bf16.msra.mxu0 %v4258
    %4402 = vmatprep.subr.bf16.mxu0 %v4289
    %4403 = vmatpush2.bf16.msra.mxu0 %v4288
    %4404 = vmatprep.subr.bf16.mxu0 %v4287
    %4405 = vmatpush2.bf16.msra.mxu0 %v4286
    %4406 = vmatprep.subr.bf16.mxu0 %v4285
    %4407 = vmatpush2.bf16.msra.mxu0 %v4284
    %4408 = vmatprep.subr.bf16.mxu0 %v4283
    %4409 = vmatpush2.bf16.msra.mxu0 %v4282
    %4410 = vmatprep.subr.bf16.mxu0 %v4281
    %4411 = vmatpush2.bf16.msra.mxu0 %v4280
    %4412 = vmatprep.subr.bf16.mxu0 %v4279
    %4413 = vmatpush2.bf16.msra.mxu0 %v4278
    %4414 = vmatprep.subr.bf16.mxu0 %v4277
    %4415 = vmatpush2.bf16.msra.mxu0 %v4276
    %4416 = vmatprep.subr.bf16.mxu0 %v4275
    %4417 = vmatpush2.bf16.msra.mxu0 %v4274
    %4418 = vmatprep.mubr.bf16.mxu0 %v4052
    %4419 = vmatmul.mubr.bf16.gmra.mxu0 %v4051
    %v4420 = vpop.f32.mrf.mxu0
    %v4421 = vadd.f32 %v4059, %v4420
    %v4422 = vpop.f32.mrf.mxu0
    %v4423 = vadd.f32 %v4063, %v4422
    %v4424 = vpop.f32.mrf.mxu0
    %v4425 = vpop.f32.mrf.mxu0
    %4426 = vdwg.mxu0
    %4427 = vmatprep.subr.bf16.mxu0 %v4305
    %4428 = vmatpush1.bf16.msra.mxu0 %v4304
    %4429 = vmatprep.subr.bf16.mxu0 %v4303
    %4430 = vmatpush1.bf16.msra.mxu0 %v4302
    %4431 = vmatprep.subr.bf16.mxu0 %v4301
    %4432 = vmatpush1.bf16.msra.mxu0 %v4300
    %4433 = vmatprep.subr.bf16.mxu0 %v4299
    %4434 = vmatpush1.bf16.msra.mxu0 %v4298
    %4435 = vmatprep.subr.bf16.mxu0 %v4297
    %4436 = vmatpush1.bf16.msra.mxu0 %v4296
    %4437 = vmatprep.subr.bf16.mxu0 %v4295
    %4438 = vmatpush1.bf16.msra.mxu0 %v4294
    %4439 = vmatprep.subr.bf16.mxu0 %v4293
    %4440 = vmatpush1.bf16.msra.mxu0 %v4292
    %4441 = vmatprep.subr.bf16.mxu0 %v4291
    %4442 = vmatpush1.bf16.msra.mxu0 %v4290
    %4443 = vmatprep.subr.bf16.mxu0 %v4321
    %4444 = vmatpush2.bf16.msra.mxu0 %v4320
    %4445 = vmatprep.subr.bf16.mxu0 %v4319
    %4446 = vmatpush2.bf16.msra.mxu0 %v4318
    %4447 = vmatprep.subr.bf16.mxu0 %v4317
    %4448 = vmatpush2.bf16.msra.mxu0 %v4316
    %4449 = vmatprep.subr.bf16.mxu0 %v4315
    %4450 = vmatpush2.bf16.msra.mxu0 %v4314
    %4451 = vmatprep.subr.bf16.mxu0 %v4313
    %4452 = vmatpush2.bf16.msra.mxu0 %v4312
    %4453 = vmatprep.subr.bf16.mxu0 %v4311
    %4454 = vmatpush2.bf16.msra.mxu0 %v4310
    %4455 = vmatprep.subr.bf16.mxu0 %v4309
    %4456 = vmatpush2.bf16.msra.mxu0 %v4308
    %4457 = vmatprep.subr.bf16.mxu0 %v4307
    %4458 = vmatpush2.bf16.msra.mxu0 %v4306
    %4459 = vmatprep.mubr.bf16.mxu0 %v4054
    %4460 = vmatmul.mubr.bf16.gmra.mxu0 %v4053
    %v4461 = vpop.f32.mrf.mxu0
    %v4462 = vadd.f32 %v4421, %v4461
    %v4463 = vpop.f32.mrf.mxu0
    %v4464 = vadd.f32 %v4423, %v4463
    %v4465 = vpop.f32.mrf.mxu0
    %v4466 = vpop.f32.mrf.mxu0
    %4467 = vdwg.mxu0
    %v4468 = vadd.f32 %v4462, %v4464
    %4469 = vadd.xlane.f32.xlu0 %v4468
    %v4470 = vpop.xlane.xlu0 %4469
    %v4471 = vmul.f32 %v4470, %v967
    %v4472 = vsub.f32 %v4462, %v4471
    %v4473 = vsub.f32 %v4464, %v4471
    %v4474 = vmul.f32 %v4472, %v4472
    %v4475 = vmul.f32 %v4473, %v4473
    %v4476 = vadd.f32 %v4474, %v4475
    %4477 = vadd.xlane.f32.xlu0 %v4476
    %v4478 = vpop.xlane.xlu0 %4477
    %v4479 = vmul.f32 %v4478, %v967
    %v4480 = vadd.f32 %v4479, 1e-05
    %v4481 = vrsqrt.pop %v4480
    %v4482 = vmul.f32 %v4472, %v4481
    %v4483 = vmul.f32 %v4473, %v4481
    %v4485 = vlaneseq
    %v4486 = vshrl.u32 %v4485, 7
    %v4487 = vsub.s32 0, %v4486
    %v4488 = vrot.slane %v4048, %v4487
    %v4489 = vlaneseq
    %v4490 = vshrl.u32 %v4489, 7
    %v4491 = vsub.s32 1, %v4490
    %v4492 = vrot.slane %v4048, %v4491
    %v4495 = vmul.f32 %v4482, %v4488
    %v4496 = vmul.f32 %v4483, %v4492
    %v4498 = vlaneseq
    %v4499 = vshrl.u32 %v4498, 7
    %v4500 = vsub.s32 0, %v4499
    %v4501 = vrot.slane %v4050, %v4500
    %v4502 = vlaneseq
    %v4503 = vshrl.u32 %v4502, 7
    %v4504 = vsub.s32 1, %v4503
    %v4505 = vrot.slane %v4050, %v4504
    %v4508 = vadd.f32 %v4495, %v4501
    %v4509 = vadd.f32 %v4496, %v4505
    %v4510 = vmul.f32 %v4508, 0.5
    %v4511 = vmul.f32 %v4509, 0.5
    %v4512 = vmul.f32 %v4508, 0.044715
    %v4513 = vmul.f32 %v4509, 0.044715
    %v4514 = vmul.f32 %v4512, %v4508
    %v4515 = vmul.f32 %v4513, %v4509
    %v4516 = vmul.f32 %v4514, %v4508
    %v4517 = vmul.f32 %v4515, %v4509
    %v4518 = vadd.f32 %v4508, %v4516
    %v4519 = vadd.f32 %v4509, %v4517
    %v4520 = vmul.f32 %v4518, 0.7978846
    %v4521 = vmul.f32 %v4519, 0.7978846
    %v4522 = vtanh.pop %v4520
    %v4523 = vtanh.pop %v4521
    %v4524 = vadd.f32 %v4522, 1.0
    %v4525 = vadd.f32 %v4523, 1.0
    %v4526 = vmul.f32 %v4510, %v4524
    %v4527 = vmul.f32 %v4511, %v4525
    %v4528 = vld [vmem:[#allocation14] sm:$0xf]
    %v4529 = vld [vmem:[#allocation14 + $0x4] sm:$0xf]
    %v4530 = vld [vmem:[#allocation14 + $0x8] sm:$0xf]
    %v4531 = vld [vmem:[#allocation14 + $0xc] sm:$0xf]
    %v4532 = vld [vmem:[#allocation14 + $0x10] sm:$0xf]
    %v4533 = vld [vmem:[#allocation14 + $0x14] sm:$0xf]
    %v4534 = vld [vmem:[#allocation14 + $0x18] sm:$0xf]
    %v4535 = vld [vmem:[#allocation14 + $0x1c] sm:$0xf]
    %v4536 = vld [vmem:[#allocation14 + $0x20] sm:$0xf]
    %v4537 = vld [vmem:[#allocation14 + $0x24] sm:$0xf]
    %v4538 = vld [vmem:[#allocation14 + $0x28] sm:$0xf]
    %v4539 = vld [vmem:[#allocation14 + $0x2c] sm:$0xf]
    %v4540 = vld [vmem:[#allocation14 + $0x30] sm:$0xf]
    %v4541 = vld [vmem:[#allocation14 + $0x34] sm:$0xf]
    %v4542 = vld [vmem:[#allocation14 + $0x38] sm:$0xf]
    %v4543 = vld [vmem:[#allocation14 + $0x3c] sm:$0xf]
    %v4544 = vld [vmem:[#allocation14 + $0x40] sm:$0xf]
    %v4545 = vld [vmem:[#allocation14 + $0x44] sm:$0xf]
    %v4546 = vld [vmem:[#allocation14 + $0x48] sm:$0xf]
    %v4547 = vld [vmem:[#allocation14 + $0x4c] sm:$0xf]
    %v4548 = vld [vmem:[#allocation14 + $0x50] sm:$0xf]
    %v4549 = vld [vmem:[#allocation14 + $0x54] sm:$0xf]
    %v4550 = vld [vmem:[#allocation14 + $0x58] sm:$0xf]
    %v4551 = vld [vmem:[#allocation14 + $0x5c] sm:$0xf]
    %v4552 = vld [vmem:[#allocation14 + $0x60] sm:$0xf]
    %v4553 = vld [vmem:[#allocation14 + $0x64] sm:$0xf]
    %v4554 = vld [vmem:[#allocation14 + $0x68] sm:$0xf]
    %v4555 = vld [vmem:[#allocation14 + $0x6c] sm:$0xf]
    %v4556 = vld [vmem:[#allocation14 + $0x70] sm:$0xf]
    %v4557 = vld [vmem:[#allocation14 + $0x74] sm:$0xf]
    %v4558 = vld [vmem:[#allocation14 + $0x78] sm:$0xf]
    %v4559 = vld [vmem:[#allocation14 + $0x7c] sm:$0xf]
    %v4560 = vld [vmem:[#allocation19 + $0xc] sm:$0x1]
    %v4561 = vld [vmem:[#allocation19 + $0xd] sm:$0x1]
    %v4562 = vld [vmem:[#allocation19 + $0xe] sm:$0x1]
    %v4563 = vpack.c.bf16 %v4526, %v4526
    %v4564 = vpack.c.bf16 %v4527, %v4527
    %v4565 = vlaneseq
    %v4566 = vshrl.u32 %v4565, 7
    %v4567 = vsub.s32 0, %v4566
    %v4568 = vrot.slane %v4560, %v4567
    %v4601 = vunpack.c.l.b16 %v4528
    %v4602 = vunpack.c.l.b16 %v4529
    %v4603 = vunpack.c.l.b16 %v4530
    %v4604 = vunpack.c.l.b16 %v4531
    %v4605 = vunpack.c.l.b16 %v4532
    %v4606 = vunpack.c.l.b16 %v4533
    %v4607 = vunpack.c.l.b16 %v4534
    %v4608 = vunpack.c.l.b16 %v4535
    %v4609 = vunpack.c.l.b16 %v4536
    %v4610 = vunpack.c.l.b16 %v4537
    %v4611 = vunpack.c.l.b16 %v4538
    %v4612 = vunpack.c.l.b16 %v4539
    %v4613 = vunpack.c.l.b16 %v4540
    %v4614 = vunpack.c.l.b16 %v4541
    %v4615 = vunpack.c.l.b16 %v4542
    %v4616 = vunpack.c.l.b16 %v4543
    %v4617 = vunpack.c.l.b16 %v4544
    %v4618 = vunpack.c.l.b16 %v4545
    %v4619 = vunpack.c.l.b16 %v4546
    %v4620 = vunpack.c.l.b16 %v4547
    %v4621 = vunpack.c.l.b16 %v4548
    %v4622 = vunpack.c.l.b16 %v4549
    %v4623 = vunpack.c.l.b16 %v4550
    %v4624 = vunpack.c.l.b16 %v4551
    %v4625 = vunpack.c.l.b16 %v4552
    %v4626 = vunpack.c.l.b16 %v4553
    %v4627 = vunpack.c.l.b16 %v4554
    %v4628 = vunpack.c.l.b16 %v4555
    %v4629 = vunpack.c.l.b16 %v4556
    %v4630 = vunpack.c.l.b16 %v4557
    %v4631 = vunpack.c.l.b16 %v4558
    %v4632 = vunpack.c.l.b16 %v4559
    %v4633 = vpack.c.b16 %v4602, %v4601
    %v4634 = vpack.c.b16 %v4604, %v4603
    %v4635 = vpack.c.b16 %v4606, %v4605
    %v4636 = vpack.c.b16 %v4608, %v4607
    %v4637 = vpack.c.b16 %v4610, %v4609
    %v4638 = vpack.c.b16 %v4612, %v4611
    %v4639 = vpack.c.b16 %v4614, %v4613
    %v4640 = vpack.c.b16 %v4616, %v4615
    %v4641 = vpack.c.b16 %v4618, %v4617
    %v4642 = vpack.c.b16 %v4620, %v4619
    %v4643 = vpack.c.b16 %v4622, %v4621
    %v4644 = vpack.c.b16 %v4624, %v4623
    %v4645 = vpack.c.b16 %v4626, %v4625
    %v4646 = vpack.c.b16 %v4628, %v4627
    %v4647 = vpack.c.b16 %v4630, %v4629
    %v4648 = vpack.c.b16 %v4632, %v4631
    %4665 = vmatprep.subr.bf16.mxu0 0
    %4666 = vmatpush1.bf16.msra.mxu0 %v4640
    %4667 = vmatprep.subr.bf16.mxu0 0
    %4668 = vmatpush1.bf16.msra.mxu0 %v4639
    %4669 = vmatprep.subr.bf16.mxu0 0
    %4670 = vmatpush1.bf16.msra.mxu0 %v4638
    %4671 = vmatprep.subr.bf16.mxu0 0
    %4672 = vmatpush1.bf16.msra.mxu0 %v4637
    %4673 = vmatprep.subr.bf16.mxu0 0
    %4674 = vmatpush1.bf16.msra.mxu0 %v4636
    %4675 = vmatprep.subr.bf16.mxu0 0
    %4676 = vmatpush1.bf16.msra.mxu0 %v4635
    %4677 = vmatprep.subr.bf16.mxu0 0
    %4678 = vmatpush1.bf16.msra.mxu0 %v4634
    %4679 = vmatprep.subr.bf16.mxu0 0
    %4680 = vmatpush1.bf16.msra.mxu0 %v4633
    %4681 = vmatprep.subr.bf16.mxu0 0
    %4682 = vmatpush2.bf16.msra.mxu0 %v4648
    %4683 = vmatprep.subr.bf16.mxu0 0
    %4684 = vmatpush2.bf16.msra.mxu0 %v4647
    %4685 = vmatprep.subr.bf16.mxu0 0
    %4686 = vmatpush2.bf16.msra.mxu0 %v4646
    %4687 = vmatprep.subr.bf16.mxu0 0
    %4688 = vmatpush2.bf16.msra.mxu0 %v4645
    %4689 = vmatprep.subr.bf16.mxu0 0
    %4690 = vmatpush2.bf16.msra.mxu0 %v4644
    %4691 = vmatprep.subr.bf16.mxu0 0
    %4692 = vmatpush2.bf16.msra.mxu0 %v4643
    %4693 = vmatprep.subr.bf16.mxu0 0
    %4694 = vmatpush2.bf16.msra.mxu0 %v4642
    %4695 = vmatprep.subr.bf16.mxu0 0
    %4696 = vmatpush2.bf16.msra.mxu0 %v4641
    %4697 = vmatprep.mubr.bf16.mxu0 %v4564
    %4698 = vmatmul.mubr.bf16.gmra.mxu0 %v4563
    %v4699 = vpop.f32.mrf.mxu0
    %v4700 = vadd.f32 %v4568, %v4699
    %v4701 = vpop.f32.mrf.mxu0
    %v4702 = vpop.f32.mrf.mxu0
    %v4703 = vpop.f32.mrf.mxu0
    %4704 = vdwg.mxu0
    %4705 = vadd.xlane.f32.xlu0 %v4700
    %v4706 = vpop.xlane.xlu0 %4705
    %v4707 = vmul.f32 %v4706, %v1204
    %v4708 = vsub.f32 %v4700, %v4707
    %v4709 = vmul.f32 %v4708, %v4708
    %4710 = vadd.xlane.f32.xlu0 %v4709
    %v4711 = vpop.xlane.xlu0 %4710
    %v4712 = vmul.f32 %v4711, %v1204
    %v4713 = vadd.f32 %v4712, 1e-05
    %v4714 = vrsqrt.pop %v4713
    %v4715 = vmul.f32 %v4708, %v4714
    %v4716 = vlaneseq
    %v4717 = vshrl.u32 %v4716, 7
    %v4718 = vsub.s32 0, %v4717
    %v4719 = vrot.slane %v4561, %v4718
    %v4720 = vmul.f32 %v4715, %v4719
    %v4721 = vlaneseq
    %v4722 = vshrl.u32 %v4721, 7
    %v4723 = vsub.s32 0, %v4722
    %v4724 = vrot.slane %v4562, %v4723
    %v4725 = vadd.f32 %v4720, %v4724
    %v4726 = vmul.f32 %v4725, 0.5
    %v4727 = vmul.f32 %v4725, 0.044715
    %v4728 = vmul.f32 %v4727, %v4725
    %v4729 = vmul.f32 %v4728, %v4725
    %v4730 = vadd.f32 %v4725, %v4729
    %v4731 = vmul.f32 %v4730, 0.7978846
    %v4732 = vtanh.pop %v4731
    %v4733 = vadd.f32 %v4732, 1.0
    %v4734 = vmul.f32 %v4726, %v4733
    %v4735 = vadd.f32 %v4734, %v3731
    %v4736 = vlaneseq
    %v4737 = vshrl.u32 %v4736, 7
    %v4738 = vadd.s32 %v4737, 8
    %v4739 = vadd.s32 %v4737, 16
    %v4740 = vadd.s32 %v4737, 24
    %v4741 = vadd.s32 %v4737, 32
    %v4742 = vadd.s32 %v4737, 40
    %v4743 = vadd.s32 %v4737, 48
    %v4744 = vadd.s32 %v4737, 56
    %v4745 = vadd.s32 %v4737, 64
    %v4746 = vadd.s32 %v4737, 72
    %v4747 = vadd.s32 %v4737, 80
    %v4748 = vadd.s32 %v4737, 88
    %v4749 = vadd.s32 %v4737, 96
    %v4750 = vadd.s32 %v4737, 104
    %v4751 = vadd.s32 %v4737, 112
    %v4752 = vadd.s32 %v4737, 120
    %v4753 = vlaneseq
    %v4754 = vand.u32 %v4753, 127
    %v4755 = vmul.u32 %v4754, 32
    %vm4756 = vcmp.ge.s32.totalorder %v4737, %v4755
    %vm4757 = vcmp.ge.s32.totalorder %v4738, %v4755
    %vm4758 = vcmp.ge.s32.totalorder %v4739, %v4755
    %vm4759 = vcmp.ge.s32.totalorder %v4740, %v4755
    %vm4760 = vcmp.ge.s32.totalorder %v4741, %v4755
    %vm4761 = vcmp.ge.s32.totalorder %v4742, %v4755
    %vm4762 = vcmp.ge.s32.totalorder %v4743, %v4755
    %vm4763 = vcmp.ge.s32.totalorder %v4744, %v4755
    %vm4764 = vcmp.ge.s32.totalorder %v4745, %v4755
    %vm4765 = vcmp.ge.s32.totalorder %v4746, %v4755
    %vm4766 = vcmp.ge.s32.totalorder %v4747, %v4755
    %vm4767 = vcmp.ge.s32.totalorder %v4748, %v4755
    %vm4768 = vcmp.ge.s32.totalorder %v4749, %v4755
    %vm4769 = vcmp.ge.s32.totalorder %v4750, %v4755
    %vm4770 = vcmp.ge.s32.totalorder %v4751, %v4755
    %vm4771 = vcmp.ge.s32.totalorder %v4752, %v4755
    %v4772 = vadd.s32 %v4754, 1
    %v4773 = vmul.u32 %v4772, 32
    %vm4774 = vcmp.lt.s32.totalorder %v4737, %v4773
    %vm4775 = vcmp.lt.s32.totalorder %v4738, %v4773
    %vm4776 = vcmp.lt.s32.totalorder %v4739, %v4773
    %vm4777 = vcmp.lt.s32.totalorder %v4740, %v4773
    %vm4778 = vcmp.lt.s32.totalorder %v4741, %v4773
    %vm4779 = vcmp.lt.s32.totalorder %v4742, %v4773
    %vm4780 = vcmp.lt.s32.totalorder %v4743, %v4773
    %vm4781 = vcmp.lt.s32.totalorder %v4744, %v4773
    %vm4782 = vcmp.lt.s32.totalorder %v4745, %v4773
    %vm4783 = vcmp.lt.s32.totalorder %v4746, %v4773
    %vm4784 = vcmp.lt.s32.totalorder %v4747, %v4773
    %vm4785 = vcmp.lt.s32.totalorder %v4748, %v4773
    %vm4786 = vcmp.lt.s32.totalorder %v4749, %v4773
    %vm4787 = vcmp.lt.s32.totalorder %v4750, %v4773
    %vm4788 = vcmp.lt.s32.totalorder %v4751, %v4773
    %vm4789 = vcmp.lt.s32.totalorder %v4752, %v4773
    %vm4790 = vmand %vm4756, %vm4774
    %vm4791 = vmand %vm4757, %vm4775
    %vm4792 = vmand %vm4758, %vm4776
    %vm4793 = vmand %vm4759, %vm4777
    %vm4794 = vmand %vm4760, %vm4778
    %vm4795 = vmand %vm4761, %vm4779
    %vm4796 = vmand %vm4762, %vm4780
    %vm4797 = vmand %vm4763, %vm4781
    %vm4798 = vmand %vm4764, %vm4782
    %vm4799 = vmand %vm4765, %vm4783
    %vm4800 = vmand %vm4766, %vm4784
    %vm4801 = vmand %vm4767, %vm4785
    %vm4802 = vmand %vm4768, %vm4786
    %vm4803 = vmand %vm4769, %vm4787
    %vm4804 = vmand %vm4770, %vm4788
    %vm4805 = vmand %vm4771, %vm4789
    %v4806 = vsel %vm4790, 0.17677669, 0.0
    %v4807 = vsel %vm4791, 0.17677669, 0.0
    %v4808 = vsel %vm4792, 0.17677669, 0.0
    %v4809 = vsel %vm4793, 0.17677669, 0.0
    %v4810 = vsel %vm4794, 0.17677669, 0.0
    %v4811 = vsel %vm4795, 0.17677669, 0.0
    %v4812 = vsel %vm4796, 0.17677669, 0.0
    %v4813 = vsel %vm4797, 0.17677669, 0.0
    %v4814 = vsel %vm4798, 0.17677669, 0.0
    %v4815 = vsel %vm4799, 0.17677669, 0.0
    %v4816 = vsel %vm4800, 0.17677669, 0.0
    %v4817 = vsel %vm4801, 0.17677669, 0.0
    %v4818 = vsel %vm4802, 0.17677669, 0.0
    %v4819 = vsel %vm4803, 0.17677669, 0.0
    %v4820 = vsel %vm4804, 0.17677669, 0.0
    %v4821 = vsel %vm4805, 0.17677669, 0.0
    %v4822 = vpack.c.bf16 %v4807, %v4806
    %v4823 = vpack.c.bf16 %v4809, %v4808
    %v4824 = vpack.c.bf16 %v4811, %v4810
    %v4825 = vpack.c.bf16 %v4813, %v4812
    %v4826 = vpack.c.bf16 %v4815, %v4814
    %v4827 = vpack.c.bf16 %v4817, %v4816
    %v4828 = vpack.c.bf16 %v4819, %v4818
    %v4829 = vpack.c.bf16 %v4821, %v4820
    %v4830 = vmul.u32 %v4737, 32
    %vm4831 = vcmp.ge.s32.totalorder %v4754, %v4830
    %v4832 = vadd.s32 %v4737, 1
    %v4833 = vmul.u32 %v4832, 32
    %vm4834 = vcmp.lt.s32.totalorder %v4754, %v4833
    %vm4835 = vmand %vm4831, %vm4834
    %v4836 = vsel %vm4835, 1.0, 0.0
    %v4837 = vpack.c.bf16 %v4836, %v4836
    %v4838 = vld [vmem:[#allocation14 + $0x88] sm:$0xf]
    %v4839 = vld [vmem:[#allocation14 + $0x8c] sm:$0xf]
    %v4840 = vld [vmem:[#allocation14 + $0x90] sm:$0xf]
    %v4841 = vld [vmem:[#allocation14 + $0x94] sm:$0xf]
    %v4842 = vld [vmem:[#allocation14 + $0x98] sm:$0xf]
    %v4843 = vld [vmem:[#allocation14 + $0x9c] sm:$0xf]
    %v4844 = vld [vmem:[#allocation14 + $0xa0] sm:$0xf]
    %v4845 = vld [vmem:[#allocation14 + $0xa4] sm:$0xf]
    %v4846 = vld [vmem:[#allocation14 + $0xa8] sm:$0xf]
    %v4847 = vld [vmem:[#allocation14 + $0xac] sm:$0xf]
    %v4848 = vld [vmem:[#allocation14 + $0xb0] sm:$0xf]
    %v4849 = vld [vmem:[#allocation14 + $0xb4] sm:$0xf]
    %v4850 = vld [vmem:[#allocation14 + $0xb8] sm:$0xf]
    %v4851 = vld [vmem:[#allocation14 + $0xbc] sm:$0xf]
    %v4852 = vld [vmem:[#allocation14 + $0xc0] sm:$0xf]
    %v4853 = vld [vmem:[#allocation14 + $0xc4] sm:$0xf]
    %v4854 = vld [vmem:[#allocation19 + $0x10] sm:$0x1]
    %v4855 = vpack.c.bf16 %v4735, %v4735
    %v4856 = vlaneseq
    %v4857 = vshrl.u32 %v4856, 7
    %v4858 = vsub.s32 0, %v4857
    %v4859 = vrot.slane %v4854, %v4858
    %v4876 = vunpack.c.l.b16 %v4838
    %v4877 = vunpack.c.l.b16 %v4839
    %v4878 = vunpack.c.l.b16 %v4840
    %v4879 = vunpack.c.l.b16 %v4841
    %v4880 = vunpack.c.l.b16 %v4842
    %v4881 = vunpack.c.l.b16 %v4843
    %v4882 = vunpack.c.l.b16 %v4844
    %v4883 = vunpack.c.l.b16 %v4845
    %v4884 = vunpack.c.l.b16 %v4846
    %v4885 = vunpack.c.l.b16 %v4847
    %v4886 = vunpack.c.l.b16 %v4848
    %v4887 = vunpack.c.l.b16 %v4849
    %v4888 = vunpack.c.l.b16 %v4850
    %v4889 = vunpack.c.l.b16 %v4851
    %v4890 = vunpack.c.l.b16 %v4852
    %v4891 = vunpack.c.l.b16 %v4853
    %v4892 = vpack.c.b16 %v4877, %v4876
    %v4893 = vpack.c.b16 %v4879, %v4878
    %v4894 = vpack.c.b16 %v4881, %v4880
    %v4895 = vpack.c.b16 %v4883, %v4882
    %v4896 = vpack.c.b16 %v4885, %v4884
    %v4897 = vpack.c.b16 %v4887, %v4886
    %v4898 = vpack.c.b16 %v4889, %v4888
    %v4899 = vpack.c.b16 %v4891, %v4890
    %4908 = vmatprep.subr.bf16.mxu0 0
    %4909 = vmatpush1.bf16.msra.mxu0 %v4899
    %4910 = vmatprep.subr.bf16.mxu0 0
    %4911 = vmatpush1.bf16.msra.mxu0 %v4898
    %4912 = vmatprep.subr.bf16.mxu0 0
    %4913 = vmatpush1.bf16.msra.mxu0 %v4897
    %4914 = vmatprep.subr.bf16.mxu0 0
    %4915 = vmatpush1.bf16.msra.mxu0 %v4896
    %4916 = vmatprep.subr.bf16.mxu0 0
    %4917 = vmatpush1.bf16.msra.mxu0 %v4895
    %4918 = vmatprep.subr.bf16.mxu0 0
    %4919 = vmatpush1.bf16.msra.mxu0 %v4894
    %4920 = vmatprep.subr.bf16.mxu0 0
    %4921 = vmatpush1.bf16.msra.mxu0 %v4893
    %4922 = vmatprep.subr.bf16.mxu0 0
    %4923 = vmatpush1.bf16.msra.mxu0 %v4892
    %4924 = vmatprep.subr.bf16.mxu0 0
    %4925 = vmatpush2.bf16.msra.mxu0 0
    %4926 = vmatprep.subr.bf16.mxu0 0
    %4927 = vmatpush2.bf16.msra.mxu0 0
    %4928 = vmatprep.subr.bf16.mxu0 0
    %4929 = vmatpush2.bf16.msra.mxu0 0
    %4930 = vmatprep.subr.bf16.mxu0 0
    %4931 = vmatpush2.bf16.msra.mxu0 0
    %4932 = vmatprep.subr.bf16.mxu0 0
    %4933 = vmatpush2.bf16.msra.mxu0 0
    %4934 = vmatprep.subr.bf16.mxu0 0
    %4935 = vmatpush2.bf16.msra.mxu0 0
    %4936 = vmatprep.subr.bf16.mxu0 0
    %4937 = vmatpush2.bf16.msra.mxu0 0
    %4938 = vmatprep.subr.bf16.mxu0 0
    %4939 = vmatpush2.bf16.msra.mxu0 0
    %4940 = vmatprep.mubr.bf16.mxu0 0
    %4941 = vmatmul.mubr.bf16.gmra.mxu0 %v4855
    %v4942 = vpop.f32.mrf.mxu0
    %v4943 = vadd.f32 %v4859, %v4942
    %v4944 = vpop.f32.mrf.mxu0
    %v4945 = vpop.f32.mrf.mxu0
    %v4946 = vpop.f32.mrf.mxu0
    %4947 = vdwg.mxu0
    %v4948 = vld [vmem:[#allocation13 + $0x200] sm:$0xff]
    %v4949 = vld [vmem:[#allocation13 + $0x208] sm:$0xff]
    %v4950 = vld [vmem:[#allocation13 + $0x210] sm:$0xff]
    %v4951 = vld [vmem:[#allocation13 + $0x218] sm:$0xff]
    %v4952 = vld [vmem:[#allocation13 + $0x220] sm:$0xff]
    %v4953 = vld [vmem:[#allocation13 + $0x228] sm:$0xff]
    %v4954 = vld [vmem:[#allocation13 + $0x230] sm:$0xff]
    %v4955 = vld [vmem:[#allocation13 + $0x238] sm:$0xff]
    %v4956 = vld [vmem:[#allocation13 + $0x240] sm:$0xff]
    %v4957 = vld [vmem:[#allocation13 + $0x248] sm:$0xff]
    %v4958 = vld [vmem:[#allocation13 + $0x250] sm:$0xff]
    %v4959 = vld [vmem:[#allocation13 + $0x258] sm:$0xff]
    %v4960 = vld [vmem:[#allocation13 + $0x260] sm:$0xff]
    %v4961 = vld [vmem:[#allocation13 + $0x268] sm:$0xff]
    %v4962 = vld [vmem:[#allocation13 + $0x270] sm:$0xff]
    %v4963 = vld [vmem:[#allocation13 + $0x278] sm:$0xff]
    %s4964 = scalar_lea.vmem [#allocation17], 20
    %v4965 = vld [vmem:[%s4964] ss:$8 sm:$0x3]
    %v4966 = vpack.c.bf16 %v2513, %v1354
    %v4967 = vpack.c.bf16 %v3672, %v3672
    %v4969 = vlaneseq
    %v4970 = vshrl.u32 %v4969, 7
    %v4971 = vsub.s32 0, %v4970
    %v4972 = vrot.slane %v4965, %v4971
    %v4973 = vlaneseq
    %v4974 = vshrl.u32 %v4973, 7
    %v4975 = vsub.s32 1, %v4974
    %v4976 = vrot.slane %v4965, %v4975
    %v4995 = vunpack.c.l.b16 %v4948
    %v4996 = vunpack.c.h.b16 %v4948
    %v4997 = vunpack.c.l.b16 %v4949
    %v4998 = vunpack.c.h.b16 %v4949
    %v4999 = vunpack.c.l.b16 %v4950
    %v5000 = vunpack.c.h.b16 %v4950
    %v5001 = vunpack.c.l.b16 %v4951
    %v5002 = vunpack.c.h.b16 %v4951
    %v5003 = vunpack.c.l.b16 %v4952
    %v5004 = vunpack.c.h.b16 %v4952
    %v5005 = vunpack.c.l.b16 %v4953
    %v5006 = vunpack.c.h.b16 %v4953
    %v5007 = vunpack.c.l.b16 %v4954
    %v5008 = vunpack.c.h.b16 %v4954
    %v5009 = vunpack.c.l.b16 %v4955
    %v5010 = vunpack.c.h.b16 %v4955
    %v5011 = vunpack.c.l.b16 %v4956
    %v5012 = vunpack.c.h.b16 %v4956
    %v5013 = vunpack.c.l.b16 %v4957
    %v5014 = vunpack.c.h.b16 %v4957
    %v5015 = vunpack.c.l.b16 %v4958
    %v5016 = vunpack.c.h.b16 %v4958
    %v5017 = vunpack.c.l.b16 %v4959
    %v5018 = vunpack.c.h.b16 %v4959
    %v5019 = vunpack.c.l.b16 %v4960
    %v5020 = vunpack.c.h.b16 %v4960
    %v5021 = vunpack.c.l.b16 %v4961
    %v5022 = vunpack.c.h.b16 %v4961
    %v5023 = vunpack.c.l.b16 %v4962
    %v5024 = vunpack.c.h.b16 %v4962
    %v5025 = vunpack.c.l.b16 %v4963
    %v5026 = vunpack.c.h.b16 %v4963
    %v5027 = vpack.c.b16 %v4997, %v4995
    %v5028 = vpack.c.b16 %v4998, %v4996
    %v5029 = vpack.c.b16 %v5001, %v4999
    %v5030 = vpack.c.b16 %v5002, %v5000
    %v5031 = vpack.c.b16 %v5005, %v5003
    %v5032 = vpack.c.b16 %v5006, %v5004
    %v5033 = vpack.c.b16 %v5009, %v5007
    %v5034 = vpack.c.b16 %v5010, %v5008
    %v5035 = vpack.c.b16 %v5013, %v5011
    %v5036 = vpack.c.b16 %v5014, %v5012
    %v5037 = vpack.c.b16 %v5017, %v5015
    %v5038 = vpack.c.b16 %v5018, %v5016
    %v5039 = vpack.c.b16 %v5021, %v5019
    %v5040 = vpack.c.b16 %v5022, %v5020
    %v5041 = vpack.c.b16 %v5025, %v5023
    %v5042 = vpack.c.b16 %v5026, %v5024
    %5059 = vmatprep.subr.bf16.mxu0 %v5042
    %5060 = vmatpush1.bf16.msra.mxu0 %v5041
    %5061 = vmatprep.subr.bf16.mxu0 %v5040
    %5062 = vmatpush1.bf16.msra.mxu0 %v5039
    %5063 = vmatprep.subr.bf16.mxu0 %v5038
    %5064 = vmatpush1.bf16.msra.mxu0 %v5037
    %5065 = vmatprep.subr.bf16.mxu0 %v5036
    %5066 = vmatpush1.bf16.msra.mxu0 %v5035
    %5067 = vmatprep.subr.bf16.mxu0 %v5034
    %5068 = vmatpush1.bf16.msra.mxu0 %v5033
    %5069 = vmatprep.subr.bf16.mxu0 %v5032
    %5070 = vmatpush1.bf16.msra.mxu0 %v5031
    %5071 = vmatprep.subr.bf16.mxu0 %v5030
    %5072 = vmatpush1.bf16.msra.mxu0 %v5029
    %5073 = vmatprep.subr.bf16.mxu0 %v5028
    %5074 = vmatpush1.bf16.msra.mxu0 %v5027
    %5075 = vmatprep.subr.bf16.mxu0 0
    %5076 = vmatpush2.bf16.msra.mxu0 0
    %5077 = vmatprep.subr.bf16.mxu0 0
    %5078 = vmatpush2.bf16.msra.mxu0 0
    %5079 = vmatprep.subr.bf16.mxu0 0
    %5080 = vmatpush2.bf16.msra.mxu0 0
    %5081 = vmatprep.subr.bf16.mxu0 0
    %5082 = vmatpush2.bf16.msra.mxu0 0
    %5083 = vmatprep.subr.bf16.mxu0 0
    %5084 = vmatpush2.bf16.msra.mxu0 0
    %5085 = vmatprep.subr.bf16.mxu0 0
    %5086 = vmatpush2.bf16.msra.mxu0 0
    %5087 = vmatprep.subr.bf16.mxu0 0
    %5088 = vmatpush2.bf16.msra.mxu0 0
    %5089 = vmatprep.subr.bf16.mxu0 0
    %5090 = vmatpush2.bf16.msra.mxu0 0
    %5091 = vmatprep.mubr.bf16.mxu0 0
    %5092 = vmatmul.mubr.bf16.gmra.mxu0 %v4966
    %v5093 = vpop.f32.mrf.mxu0
    %v5094 = vadd.f32 %v4972, %v5093
    %v5095 = vpop.f32.mrf.mxu0
    %v5096 = vadd.f32 %v4976, %v5095
    %v5097 = vpop.f32.mrf.mxu0
    %v5098 = vadd.f32 %v4972, %v5097
    %v5099 = vpop.f32.mrf.mxu0
    %v5100 = vadd.f32 %v4976, %v5099
    %5101 = vmatprep.mubr.bf16.mxu0 0
    %5102 = vmatmul.mubr.bf16.gmra.mxu0 %v4967
    %v5103 = vpop.f32.mrf.mxu0
    %v5104 = vadd.f32 %v4972, %v5103
    %v5105 = vpop.f32.mrf.mxu0
    %v5106 = vadd.f32 %v4976, %v5105
    %v5107 = vpop.f32.mrf.mxu0
    %v5108 = vpop.f32.mrf.mxu0
    %5109 = vdwg.mxu0
    %v5110 = vmul.f32 %v4943, %v5094
    %v5111 = vmul.f32 %v4943, %v5098
    %v5112 = vmul.f32 %v4943, %v5104
    %v5113 = vpack.c.bf16 %v5111, %v5110
    %v5114 = vpack.c.bf16 %v5112, %v5112
    %5115 = vmatprep.subr.bf16.mxu0 0
    %5116 = vmatpush1.bf16.msra.mxu0 %v4829
    %5117 = vmatprep.subr.bf16.mxu0 0
    %5118 = vmatpush1.bf16.msra.mxu0 %v4828
    %5119 = vmatprep.subr.bf16.mxu0 0
    %5120 = vmatpush1.bf16.msra.mxu0 %v4827
    %5121 = vmatprep.subr.bf16.mxu0 0
    %5122 = vmatpush1.bf16.msra.mxu0 %v4826
    %5123 = vmatprep.subr.bf16.mxu0 0
    %5124 = vmatpush1.bf16.msra.mxu0 %v4825
    %5125 = vmatprep.subr.bf16.mxu0 0
    %5126 = vmatpush1.bf16.msra.mxu0 %v4824
    %5127 = vmatprep.subr.bf16.mxu0 0
    %5128 = vmatpush1.bf16.msra.mxu0 %v4823
    %5129 = vmatprep.subr.bf16.mxu0 0
    %5130 = vmatpush1.bf16.msra.mxu0 %v4822
    %5131 = vmatprep.subr.bf16.mxu0 0
    %5132 = vmatpush2.bf16.msra.mxu0 0
    %5133 = vmatprep.subr.bf16.mxu0 0
    %5134 = vmatpush2.bf16.msra.mxu0 0
    %5135 = vmatprep.subr.bf16.mxu0 0
    %5136 = vmatpush2.bf16.msra.mxu0 0
    %5137 = vmatprep.subr.bf16.mxu0 0
    %5138 = vmatpush2.bf16.msra.mxu0 0
    %5139 = vmatprep.subr.bf16.mxu0 0
    %5140 = vmatpush2.bf16.msra.mxu0 0
    %5141 = vmatprep.subr.bf16.mxu0 0
    %5142 = vmatpush2.bf16.msra.mxu0 0
    %5143 = vmatprep.subr.bf16.mxu0 0
    %5144 = vmatpush2.bf16.msra.mxu0 0
    %5145 = vmatprep.subr.bf16.mxu0 0
    %5146 = vmatpush2.bf16.msra.mxu0 0
    %5147 = vmatprep.mubr.bf16.mxu0 0
    %5148 = vmatmul.mubr.bf16.gmra.mxu0 %v5113
    %v5149 = vpop.f32.mrf.mxu0
    %v5150 = vadd.f32 0.0, %v5149
    %v5151 = vpop.f32.mrf.mxu0
    %v5152 = vpop.f32.mrf.mxu0
    %v5153 = vadd.f32 0.0, %v5152
    %v5154 = vpop.f32.mrf.mxu0
    %5155 = vmatprep.mubr.bf16.mxu0 0
    %5156 = vmatmul.mubr.bf16.gmra.mxu0 %v5114
    %v5157 = vpop.f32.mrf.mxu0
    %v5158 = vadd.f32 0.0, %v5157
    %v5159 = vpop.f32.mrf.mxu0
    %v5160 = vpop.f32.mrf.mxu0
    %v5161 = vpop.f32.mrf.mxu0
    %5162 = vdwg.mxu0
    %v5163 = vmax.f32 %v5150, %v5153
    %v5164 = vmax.f32 %v5163, %v5158
    %v5165 = vsub.f32 %v5150, %v5164
    %v5166 = vmul.f32 %v5165, 1.442695
    %v5167 = vpow.pop %v5166
    %v5168 = vsub.f32 %v5153, %v5164
    %v5169 = vmul.f32 %v5168, 1.442695
    %v5170 = vpow.pop %v5169
    %v5171 = vsub.f32 %v5158, %v5164
    %v5172 = vmul.f32 %v5171, 1.442695
    %v5173 = vpow.pop %v5172
    %v5174 = vadd.f32 %v5167, %v5170
    %v5175 = vadd.f32 %v5174, %v5173
    %v5176 = vrcp.pop %v5175
    %v5177 = vmul.f32 %v5167, %v5176
    %v5178 = vmul.f32 %v5170, %v5176
    %v5179 = vmul.f32 %v5173, %v5176
    %v5180 = vpack.c.bf16 %v5178, %v5177
    %v5181 = vpack.c.bf16 %v5179, %v5179
    %vm5182 = vcmask 31744
    %v5184 = vsel %vm5182, %v5180, 0
    %v5187 = vsel %vm5182, %v5181, 0
    %vm5189 = vcmask 1041408
    %v5191 = vsel %vm5189, %v4837, 0
    %5193 = vmatprep.subr.bf16.mxu0 0
    %5194 = vmatpush1.bf16.msra.mxu0 0
    %5195 = vmatprep.subr.bf16.mxu0 0
    %5196 = vmatpush1.bf16.msra.mxu0 0
    %5197 = vmatprep.subr.bf16.mxu0 0
    %5198 = vmatpush1.bf16.msra.mxu0 0
    %5199 = vmatprep.subr.bf16.mxu0 0
    %5200 = vmatpush1.bf16.msra.mxu0 0
    %5201 = vmatprep.subr.bf16.mxu0 0
    %5202 = vmatpush1.bf16.msra.mxu0 0
    %5203 = vmatprep.subr.bf16.mxu0 0
    %5204 = vmatpush1.bf16.msra.mxu0 0
    %5205 = vmatprep.subr.bf16.mxu0 0
    %5206 = vmatpush1.bf16.msra.mxu0 0
    %5207 = vmatprep.subr.bf16.mxu0 0
    %5208 = vmatpush1.bf16.msra.mxu0 %v5191
    %5209 = vmatprep.subr.bf16.mxu0 0
    %5210 = vmatpush2.bf16.msra.mxu0 0
    %5211 = vmatprep.subr.bf16.mxu0 0
    %5212 = vmatpush2.bf16.msra.mxu0 0
    %5213 = vmatprep.subr.bf16.mxu0 0
    %5214 = vmatpush2.bf16.msra.mxu0 0
    %5215 = vmatprep.subr.bf16.mxu0 0
    %5216 = vmatpush2.bf16.msra.mxu0 0
    %5217 = vmatprep.subr.bf16.mxu0 0
    %5218 = vmatpush2.bf16.msra.mxu0 0
    %5219 = vmatprep.subr.bf16.mxu0 0
    %5220 = vmatpush2.bf16.msra.mxu0 0
    %5221 = vmatprep.subr.bf16.mxu0 0
    %5222 = vmatpush2.bf16.msra.mxu0 0
    %5223 = vmatprep.subr.bf16.mxu0 0
    %5224 = vmatpush2.bf16.msra.mxu0 0
    %5225 = vmatprep.mubr.bf16.mxu0 0
    %5226 = vmatmul.mubr.bf16.gmra.mxu0 %v5184
    %v5227 = vpop.f32.mrf.mxu0
    %v5228 = vadd.f32 0.0, %v5227
    %v5229 = vpop.f32.mrf.mxu0
    %v5230 = vpop.f32.mrf.mxu0
    %v5231 = vadd.f32 0.0, %v5230
    %v5232 = vpop.f32.mrf.mxu0
    %5233 = vmatprep.mubr.bf16.mxu0 0
    %5234 = vmatmul.mubr.bf16.gmra.mxu0 %v5187
    %v5235 = vpop.f32.mrf.mxu0
    %v5236 = vadd.f32 0.0, %v5235
    %v5237 = vpop.f32.mrf.mxu0
    %v5238 = vpop.f32.mrf.mxu0
    %v5239 = vpop.f32.mrf.mxu0
    %5240 = vdwg.mxu0
    %v5241 = vmul.f32 %v5228, %v5096
    %v5242 = vmul.f32 %v5231, %v5100
    %v5243 = vmul.f32 %v5236, %v5106
    %v5244 = vadd.f32 %v5241, %v5242
    %v5245 = vadd.f32 %v5244, %v5243
    %v5246 = vld [vmem:[#allocation14 + $0xc8] sm:$0xf]
    %v5247 = vld [vmem:[#allocation14 + $0xcc] sm:$0xf]
    %v5248 = vld [vmem:[#allocation14 + $0xd0] sm:$0xf]
    %v5249 = vld [vmem:[#allocation14 + $0xd4] sm:$0xf]
    %v5250 = vld [vmem:[#allocation14 + $0xd8] sm:$0xf]
    %v5251 = vld [vmem:[#allocation14 + $0xdc] sm:$0xf]
    %v5252 = vld [vmem:[#allocation14 + $0xe0] sm:$0xf]
    %v5253 = vld [vmem:[#allocation14 + $0xe4] sm:$0xf]
    %v5254 = vld [vmem:[#allocation14 + $0xe8] sm:$0xf]
    %v5255 = vld [vmem:[#allocation14 + $0xec] sm:$0xf]
    %v5256 = vld [vmem:[#allocation14 + $0xf0] sm:$0xf]
    %v5257 = vld [vmem:[#allocation14 + $0xf4] sm:$0xf]
    %v5258 = vld [vmem:[#allocation14 + $0xf8] sm:$0xf]
    %v5259 = vld [vmem:[#allocation14 + $0xfc] sm:$0xf]
    %v5260 = vld [vmem:[#allocation14 + $0x100] sm:$0xf]
    %v5261 = vld [vmem:[#allocation14 + $0x104] sm:$0xf]
    %v5262 = vld [vmem:[#allocation19 + $0x11] sm:$0x1]
    %v5263 = vpack.c.bf16 %v5245, %v5245
    %v5264 = vlaneseq
    %v5265 = vshrl.u32 %v5264, 7
    %v5266 = vsub.s32 0, %v5265
    %v5267 = vrot.slane %v5262, %v5266
    %v5284 = vunpack.c.l.b16 %v5246
    %v5285 = vunpack.c.l.b16 %v5247
    %v5286 = vunpack.c.l.b16 %v5248
    %v5287 = vunpack.c.l.b16 %v5249
    %v5288 = vunpack.c.l.b16 %v5250
    %v5289 = vunpack.c.l.b16 %v5251
    %v5290 = vunpack.c.l.b16 %v5252
    %v5291 = vunpack.c.l.b16 %v5253
    %v5292 = vunpack.c.l.b16 %v5254
    %v5293 = vunpack.c.l.b16 %v5255
    %v5294 = vunpack.c.l.b16 %v5256
    %v5295 = vunpack.c.l.b16 %v5257
    %v5296 = vunpack.c.l.b16 %v5258
    %v5297 = vunpack.c.l.b16 %v5259
    %v5298 = vunpack.c.l.b16 %v5260
    %v5299 = vunpack.c.l.b16 %v5261
    %v5300 = vpack.c.b16 %v5285, %v5284
    %v5301 = vpack.c.b16 %v5287, %v5286
    %v5302 = vpack.c.b16 %v5289, %v5288
    %v5303 = vpack.c.b16 %v5291, %v5290
    %v5304 = vpack.c.b16 %v5293, %v5292
    %v5305 = vpack.c.b16 %v5295, %v5294
    %v5306 = vpack.c.b16 %v5297, %v5296
    %v5307 = vpack.c.b16 %v5299, %v5298
    %5316 = vmatprep.subr.bf16.mxu0 0
    %5317 = vmatpush1.bf16.msra.mxu0 %v5307
    %5318 = vmatprep.subr.bf16.mxu0 0
    %5319 = vmatpush1.bf16.msra.mxu0 %v5306
    %5320 = vmatprep.subr.bf16.mxu0 0
    %5321 = vmatpush1.bf16.msra.mxu0 %v5305
    %5322 = vmatprep.subr.bf16.mxu0 0
    %5323 = vmatpush1.bf16.msra.mxu0 %v5304
    %5324 = vmatprep.subr.bf16.mxu0 0
    %5325 = vmatpush1.bf16.msra.mxu0 %v5303
    %5326 = vmatprep.subr.bf16.mxu0 0
    %5327 = vmatpush1.bf16.msra.mxu0 %v5302
    %5328 = vmatprep.subr.bf16.mxu0 0
    %5329 = vmatpush1.bf16.msra.mxu0 %v5301
    %5330 = vmatprep.subr.bf16.mxu0 0
    %5331 = vmatpush1.bf16.msra.mxu0 %v5300
    %5332 = vmatprep.subr.bf16.mxu0 0
    %5333 = vmatpush2.bf16.msra.mxu0 0
    %5334 = vmatprep.subr.bf16.mxu0 0
    %5335 = vmatpush2.bf16.msra.mxu0 0
    %5336 = vmatprep.subr.bf16.mxu0 0
    %5337 = vmatpush2.bf16.msra.mxu0 0
    %5338 = vmatprep.subr.bf16.mxu0 0
    %5339 = vmatpush2.bf16.msra.mxu0 0
    %5340 = vmatprep.subr.bf16.mxu0 0
    %5341 = vmatpush2.bf16.msra.mxu0 0
    %5342 = vmatprep.subr.bf16.mxu0 0
    %5343 = vmatpush2.bf16.msra.mxu0 0
    %5344 = vmatprep.subr.bf16.mxu0 0
    %5345 = vmatpush2.bf16.msra.mxu0 0
    %5346 = vmatprep.subr.bf16.mxu0 0
    %5347 = vmatpush2.bf16.msra.mxu0 0
    %5348 = vmatprep.mubr.bf16.mxu0 0
    %5349 = vmatmul.mubr.bf16.gmra.mxu0 %v5263
    %v5350 = vpop.f32.mrf.mxu0
    %v5351 = vadd.f32 %v5267, %v5350
    %v5352 = vpop.f32.mrf.mxu0
    %v5353 = vpop.f32.mrf.mxu0
    %v5354 = vpop.f32.mrf.mxu0
    %5355 = vdwg.mxu0
    %v5356 = vld [vmem:[#allocation13 + $0x280] sm:$0xff]
    %v5357 = vld [vmem:[#allocation13 + $0x288] sm:$0xff]
    %v5358 = vld [vmem:[#allocation13 + $0x290] sm:$0xff]
    %v5359 = vld [vmem:[#allocation13 + $0x298] sm:$0xff]
    %v5360 = vld [vmem:[#allocation13 + $0x2a0] sm:$0xff]
    %v5361 = vld [vmem:[#allocation13 + $0x2a8] sm:$0xff]
    %v5362 = vld [vmem:[#allocation13 + $0x2b0] sm:$0xff]
    %v5363 = vld [vmem:[#allocation13 + $0x2b8] sm:$0xff]
    %v5364 = vld [vmem:[#allocation13 + $0x2c0] sm:$0xff]
    %v5365 = vld [vmem:[#allocation13 + $0x2c8] sm:$0xff]
    %v5366 = vld [vmem:[#allocation13 + $0x2d0] sm:$0xff]
    %v5367 = vld [vmem:[#allocation13 + $0x2d8] sm:$0xff]
    %v5368 = vld [vmem:[#allocation13 + $0x2e0] sm:$0xff]
    %v5369 = vld [vmem:[#allocation13 + $0x2e8] sm:$0xff]
    %v5370 = vld [vmem:[#allocation13 + $0x2f0] sm:$0xff]
    %v5371 = vld [vmem:[#allocation13 + $0x2f8] sm:$0xff]
    %s5372 = scalar_lea.vmem [#allocation17], 21
    %v5373 = vld [vmem:[%s5372] ss:$8 sm:$0x3]
    %s5374 = scalar_lea.vmem [#allocation17], 22
    %v5375 = vld [vmem:[%s5374] ss:$8 sm:$0x3]
    %s5376 = scalar_lea.vmem [#allocation17], 23
    %v5377 = vld [vmem:[%s5376] ss:$8 sm:$0x3]
    %v5378 = vpack.c.bf16 %v5351, %v5351
    %v5380 = vlaneseq
    %v5381 = vshrl.u32 %v5380, 7
    %v5382 = vsub.s32 0, %v5381
    %v5383 = vrot.slane %v5373, %v5382
    %v5384 = vlaneseq
    %v5385 = vshrl.u32 %v5384, 7
    %v5386 = vsub.s32 1, %v5385
    %v5387 = vrot.slane %v5373, %v5386
    %v5406 = vunpack.c.l.b16 %v5356
    %v5407 = vunpack.c.h.b16 %v5356
    %v5408 = vunpack.c.l.b16 %v5357
    %v5409 = vunpack.c.h.b16 %v5357
    %v5410 = vunpack.c.l.b16 %v5358
    %v5411 = vunpack.c.h.b16 %v5358
    %v5412 = vunpack.c.l.b16 %v5359
    %v5413 = vunpack.c.h.b16 %v5359
    %v5414 = vunpack.c.l.b16 %v5360
    %v5415 = vunpack.c.h.b16 %v5360
    %v5416 = vunpack.c.l.b16 %v5361
    %v5417 = vunpack.c.h.b16 %v5361
    %v5418 = vunpack.c.l.b16 %v5362
    %v5419 = vunpack.c.h.b16 %v5362
    %v5420 = vunpack.c.l.b16 %v5363
    %v5421 = vunpack.c.h.b16 %v5363
    %v5422 = vunpack.c.l.b16 %v5364
    %v5423 = vunpack.c.h.b16 %v5364
    %v5424 = vunpack.c.l.b16 %v5365
    %v5425 = vunpack.c.h.b16 %v5365
    %v5426 = vunpack.c.l.b16 %v5366
    %v5427 = vunpack.c.h.b16 %v5366
    %v5428 = vunpack.c.l.b16 %v5367
    %v5429 = vunpack.c.h.b16 %v5367
    %v5430 = vunpack.c.l.b16 %v5368
    %v5431 = vunpack.c.h.b16 %v5368
    %v5432 = vunpack.c.l.b16 %v5369
    %v5433 = vunpack.c.h.b16 %v5369
    %v5434 = vunpack.c.l.b16 %v5370
    %v5435 = vunpack.c.h.b16 %v5370
    %v5436 = vunpack.c.l.b16 %v5371
    %v5437 = vunpack.c.h.b16 %v5371
    %v5438 = vpack.c.b16 %v5408, %v5406
    %v5439 = vpack.c.b16 %v5409, %v5407
    %v5440 = vpack.c.b16 %v5412, %v5410
    %v5441 = vpack.c.b16 %v5413, %v5411
    %v5442 = vpack.c.b16 %v5416, %v5414
    %v5443 = vpack.c.b16 %v5417, %v5415
    %v5444 = vpack.c.b16 %v5420, %v5418
    %v5445 = vpack.c.b16 %v5421, %v5419
    %v5446 = vpack.c.b16 %v5424, %v5422
    %v5447 = vpack.c.b16 %v5425, %v5423
    %v5448 = vpack.c.b16 %v5428, %v5426
    %v5449 = vpack.c.b16 %v5429, %v5427
    %v5450 = vpack.c.b16 %v5432, %v5430
    %v5451 = vpack.c.b16 %v5433, %v5431
    %v5452 = vpack.c.b16 %v5436, %v5434
    %v5453 = vpack.c.b16 %v5437, %v5435
    %5470 = vmatprep.subr.bf16.mxu0 %v5453
    %5471 = vmatpush1.bf16.msra.mxu0 %v5452
    %5472 = vmatprep.subr.bf16.mxu0 %v5451
    %5473 = vmatpush1.bf16.msra.mxu0 %v5450
    %5474 = vmatprep.subr.bf16.mxu0 %v5449
    %5475 = vmatpush1.bf16.msra.mxu0 %v5448
    %5476 = vmatprep.subr.bf16.mxu0 %v5447
    %5477 = vmatpush1.bf16.msra.mxu0 %v5446
    %5478 = vmatprep.subr.bf16.mxu0 %v5445
    %5479 = vmatpush1.bf16.msra.mxu0 %v5444
    %5480 = vmatprep.subr.bf16.mxu0 %v5443
    %5481 = vmatpush1.bf16.msra.mxu0 %v5442
    %5482 = vmatprep.subr.bf16.mxu0 %v5441
    %5483 = vmatpush1.bf16.msra.mxu0 %v5440
    %5484 = vmatprep.subr.bf16.mxu0 %v5439
    %5485 = vmatpush1.bf16.msra.mxu0 %v5438
    %5486 = vmatprep.subr.bf16.mxu0 0
    %5487 = vmatpush2.bf16.msra.mxu0 0
    %5488 = vmatprep.subr.bf16.mxu0 0
    %5489 = vmatpush2.bf16.msra.mxu0 0
    %5490 = vmatprep.subr.bf16.mxu0 0
    %5491 = vmatpush2.bf16.msra.mxu0 0
    %5492 = vmatprep.subr.bf16.mxu0 0
    %5493 = vmatpush2.bf16.msra.mxu0 0
    %5494 = vmatprep.subr.bf16.mxu0 0
    %5495 = vmatpush2.bf16.msra.mxu0 0
    %5496 = vmatprep.subr.bf16.mxu0 0
    %5497 = vmatpush2.bf16.msra.mxu0 0
    %5498 = vmatprep.subr.bf16.mxu0 0
    %5499 = vmatpush2.bf16.msra.mxu0 0
    %5500 = vmatprep.subr.bf16.mxu0 0
    %5501 = vmatpush2.bf16.msra.mxu0 0
    %5502 = vmatprep.mubr.bf16.mxu0 0
    %5503 = vmatmul.mubr.bf16.gmra.mxu0 %v5378
    %v5504 = vpop.f32.mrf.mxu0
    %v5505 = vadd.f32 %v5383, %v5504
    %v5506 = vpop.f32.mrf.mxu0
    %v5507 = vadd.f32 %v5387, %v5506
    %v5508 = vpop.f32.mrf.mxu0
    %v5509 = vpop.f32.mrf.mxu0
    %5510 = vdwg.mxu0
    %v5511 = vadd.f32 %v5505, %v5507
    %5512 = vadd.xlane.f32.xlu0 %v5511
    %v5513 = vpop.xlane.xlu0 %5512
    %v5514 = vmul.f32 %v5513, %v967
    %v5515 = vsub.f32 %v5505, %v5514
    %v5516 = vsub.f32 %v5507, %v5514
    %v5517 = vmul.f32 %v5515, %v5515
    %v5518 = vmul.f32 %v5516, %v5516
    %v5519 = vadd.f32 %v5517, %v5518
    %5520 = vadd.xlane.f32.xlu0 %v5519
    %v5521 = vpop.xlane.xlu0 %5520
    %v5522 = vmul.f32 %v5521, %v967
    %v5523 = vadd.f32 %v5522, 1e-05
    %v5524 = vrsqrt.pop %v5523
    %v5525 = vmul.f32 %v5515, %v5524
    %v5526 = vmul.f32 %v5516, %v5524
    %v5528 = vlaneseq
    %v5529 = vshrl.u32 %v5528, 7
    %v5530 = vsub.s32 0, %v5529
    %v5531 = vrot.slane %v5375, %v5530
    %v5532 = vlaneseq
    %v5533 = vshrl.u32 %v5532, 7
    %v5534 = vsub.s32 1, %v5533
    %v5535 = vrot.slane %v5375, %v5534
    %v5538 = vmul.f32 %v5525, %v5531
    %v5539 = vmul.f32 %v5526, %v5535
    %v5541 = vlaneseq
    %v5542 = vshrl.u32 %v5541, 7
    %v5543 = vsub.s32 0, %v5542
    %v5544 = vrot.slane %v5377, %v5543
    %v5545 = vlaneseq
    %v5546 = vshrl.u32 %v5545, 7
    %v5547 = vsub.s32 1, %v5546
    %v5548 = vrot.slane %v5377, %v5547
    %v5551 = vadd.f32 %v5538, %v5544
    %v5552 = vadd.f32 %v5539, %v5548
    %v5553 = vmul.f32 %v5551, 0.5
    %v5554 = vmul.f32 %v5552, 0.5
    %v5555 = vmul.f32 %v5551, 0.044715
    %v5556 = vmul.f32 %v5552, 0.044715
    %v5557 = vmul.f32 %v5555, %v5551
    %v5558 = vmul.f32 %v5556, %v5552
    %v5559 = vmul.f32 %v5557, %v5551
    %v5560 = vmul.f32 %v5558, %v5552
    %v5561 = vadd.f32 %v5551, %v5559
    %v5562 = vadd.f32 %v5552, %v5560
    %v5563 = vmul.f32 %v5561, 0.7978846
    %v5564 = vmul.f32 %v5562, 0.7978846
    %v5565 = vtanh.pop %v5563
    %v5566 = vtanh.pop %v5564
    %v5567 = vadd.f32 %v5565, 1.0
    %v5568 = vadd.f32 %v5566, 1.0
    %v5569 = vmul.f32 %v5553, %v5567
    %v5570 = vmul.f32 %v5554, %v5568
    %v5571 = vld [vmem:[#allocation14 + $0x108] sm:$0xf]
    %v5572 = vld [vmem:[#allocation14 + $0x10c] sm:$0xf]
    %v5573 = vld [vmem:[#allocation14 + $0x110] sm:$0xf]
    %v5574 = vld [vmem:[#allocation14 + $0x114] sm:$0xf]
    %v5575 = vld [vmem:[#allocation14 + $0x118] sm:$0xf]
    %v5576 = vld [vmem:[#allocation14 + $0x11c] sm:$0xf]
    %v5577 = vld [vmem:[#allocation14 + $0x120] sm:$0xf]
    %v5578 = vld [vmem:[#allocation14 + $0x124] sm:$0xf]
    %v5579 = vld [vmem:[#allocation14 + $0x128] sm:$0xf]
    %v5580 = vld [vmem:[#allocation14 + $0x12c] sm:$0xf]
    %v5581 = vld [vmem:[#allocation14 + $0x130] sm:$0xf]
    %v5582 = vld [vmem:[#allocation14 + $0x134] sm:$0xf]
    %v5583 = vld [vmem:[#allocation14 + $0x138] sm:$0xf]
    %v5584 = vld [vmem:[#allocation14 + $0x13c] sm:$0xf]
    %v5585 = vld [vmem:[#allocation14 + $0x140] sm:$0xf]
    %v5586 = vld [vmem:[#allocation14 + $0x144] sm:$0xf]
    %v5587 = vld [vmem:[#allocation14 + $0x148] sm:$0xf]
    %v5588 = vld [vmem:[#allocation14 + $0x14c] sm:$0xf]
    %v5589 = vld [vmem:[#allocation14 + $0x150] sm:$0xf]
    %v5590 = vld [vmem:[#allocation14 + $0x154] sm:$0xf]
    %v5591 = vld [vmem:[#allocation14 + $0x158] sm:$0xf]
    %v5592 = vld [vmem:[#allocation14 + $0x15c] sm:$0xf]
    %v5593 = vld [vmem:[#allocation14 + $0x160] sm:$0xf]
    %v5594 = vld [vmem:[#allocation14 + $0x164] sm:$0xf]
    %v5595 = vld [vmem:[#allocation14 + $0x168] sm:$0xf]
    %v5596 = vld [vmem:[#allocation14 + $0x16c] sm:$0xf]
    %v5597 = vld [vmem:[#allocation14 + $0x170] sm:$0xf]
    %v5598 = vld [vmem:[#allocation14 + $0x174] sm:$0xf]
    %v5599 = vld [vmem:[#allocation14 + $0x178] sm:$0xf]
    %v5600 = vld [vmem:[#allocation14 + $0x17c] sm:$0xf]
    %v5601 = vld [vmem:[#allocation14 + $0x180] sm:$0xf]
    %v5602 = vld [vmem:[#allocation14 + $0x184] sm:$0xf]
    %v5603 = vld [vmem:[#allocation19 + $0x12] sm:$0x1]
    %v5604 = vpack.c.bf16 %v5569, %v5569
    %v5605 = vpack.c.bf16 %v5570, %v5570
    %v5606 = vlaneseq
    %v5607 = vshrl.u32 %v5606, 7
    %v5608 = vsub.s32 0, %v5607
    %v5609 = vrot.slane %v5603, %v5608
    %v5642 = vunpack.c.l.b16 %v5571
    %v5643 = vunpack.c.l.b16 %v5572
    %v5644 = vunpack.c.l.b16 %v5573
    %v5645 = vunpack.c.l.b16 %v5574
    %v5646 = vunpack.c.l.b16 %v5575
    %v5647 = vunpack.c.l.b16 %v5576
    %v5648 = vunpack.c.l.b16 %v5577
    %v5649 = vunpack.c.l.b16 %v5578
    %v5650 = vunpack.c.l.b16 %v5579
    %v5651 = vunpack.c.l.b16 %v5580
    %v5652 = vunpack.c.l.b16 %v5581
    %v5653 = vunpack.c.l.b16 %v5582
    %v5654 = vunpack.c.l.b16 %v5583
    %v5655 = vunpack.c.l.b16 %v5584
    %v5656 = vunpack.c.l.b16 %v5585
    %v5657 = vunpack.c.l.b16 %v5586
    %v5658 = vunpack.c.l.b16 %v5587
    %v5659 = vunpack.c.l.b16 %v5588
    %v5660 = vunpack.c.l.b16 %v5589
    %v5661 = vunpack.c.l.b16 %v5590
    %v5662 = vunpack.c.l.b16 %v5591
    %v5663 = vunpack.c.l.b16 %v5592
    %v5664 = vunpack.c.l.b16 %v5593
    %v5665 = vunpack.c.l.b16 %v5594
    %v5666 = vunpack.c.l.b16 %v5595
    %v5667 = vunpack.c.l.b16 %v5596
    %v5668 = vunpack.c.l.b16 %v5597
    %v5669 = vunpack.c.l.b16 %v5598
    %v5670 = vunpack.c.l.b16 %v5599
    %v5671 = vunpack.c.l.b16 %v5600
    %v5672 = vunpack.c.l.b16 %v5601
    %v5673 = vunpack.c.l.b16 %v5602
    %v5674 = vpack.c.b16 %v5643, %v5642
    %v5675 = vpack.c.b16 %v5645, %v5644
    %v5676 = vpack.c.b16 %v5647, %v5646
    %v5677 = vpack.c.b16 %v5649, %v5648
    %v5678 = vpack.c.b16 %v5651, %v5650
    %v5679 = vpack.c.b16 %v5653, %v5652
    %v5680 = vpack.c.b16 %v5655, %v5654
    %v5681 = vpack.c.b16 %v5657, %v5656
    %v5682 = vpack.c.b16 %v5659, %v5658
    %v5683 = vpack.c.b16 %v5661, %v5660
    %v5684 = vpack.c.b16 %v5663, %v5662
    %v5685 = vpack.c.b16 %v5665, %v5664
    %v5686 = vpack.c.b16 %v5667, %v5666
    %v5687 = vpack.c.b16 %v5669, %v5668
    %v5688 = vpack.c.b16 %v5671, %v5670
    %v5689 = vpack.c.b16 %v5673, %v5672
    %5706 = vmatprep.subr.bf16.mxu0 0
    %5707 = vmatpush1.bf16.msra.mxu0 %v5681
    %5708 = vmatprep.subr.bf16.mxu0 0
    %5709 = vmatpush1.bf16.msra.mxu0 %v5680
    %5710 = vmatprep.subr.bf16.mxu0 0
    %5711 = vmatpush1.bf16.msra.mxu0 %v5679
    %5712 = vmatprep.subr.bf16.mxu0 0
    %5713 = vmatpush1.bf16.msra.mxu0 %v5678
    %5714 = vmatprep.subr.bf16.mxu0 0
    %5715 = vmatpush1.bf16.msra.mxu0 %v5677
    %5716 = vmatprep.subr.bf16.mxu0 0
    %5717 = vmatpush1.bf16.msra.mxu0 %v5676
    %5718 = vmatprep.subr.bf16.mxu0 0
    %5719 = vmatpush1.bf16.msra.mxu0 %v5675
    %5720 = vmatprep.subr.bf16.mxu0 0
    %5721 = vmatpush1.bf16.msra.mxu0 %v5674
    %5722 = vmatprep.subr.bf16.mxu0 0
    %5723 = vmatpush2.bf16.msra.mxu0 %v5689
    %5724 = vmatprep.subr.bf16.mxu0 0
    %5725 = vmatpush2.bf16.msra.mxu0 %v5688
    %5726 = vmatprep.subr.bf16.mxu0 0
    %5727 = vmatpush2.bf16.msra.mxu0 %v5687
    %5728 = vmatprep.subr.bf16.mxu0 0
    %5729 = vmatpush2.bf16.msra.mxu0 %v5686
    %5730 = vmatprep.subr.bf16.mxu0 0
    %5731 = vmatpush2.bf16.msra.mxu0 %v5685
    %5732 = vmatprep.subr.bf16.mxu0 0
    %5733 = vmatpush2.bf16.msra.mxu0 %v5684
    %5734 = vmatprep.subr.bf16.mxu0 0
    %5735 = vmatpush2.bf16.msra.mxu0 %v5683
    %5736 = vmatprep.subr.bf16.mxu0 0
    %5737 = vmatpush2.bf16.msra.mxu0 %v5682
    %5738 = vmatprep.mubr.bf16.mxu0 %v5605
    %5739 = vmatmul.mubr.bf16.gmra.mxu0 %v5604
    %v5740 = vpop.f32.mrf.mxu0
    %v5741 = vadd.f32 %v5609, %v5740
    %v5742 = vpop.f32.mrf.mxu0
    %v5743 = vpop.f32.mrf.mxu0
    %v5744 = vpop.f32.mrf.mxu0
    %5745 = vdwg.mxu0
    %s5746 = smul.u32 4, 32
    %s5747 = smul.u32 %s5746, 8
    %s5748 = sshll.u32 %s5747, 4
    %5749 = dma.done [#allocation5], %s5748
    %v5750 = vld [vmem:[#allocation2] sm:$0xff]
    %v5751 = vld [vmem:[#allocation2 + $0x8] sm:$0xff]
    %v5752 = vld [vmem:[#allocation2 + $0x10] sm:$0xff]
    %v5753 = vld [vmem:[#allocation2 + $0x18] sm:$0xff]
    %v5754 = vld [vmem:[#allocation2 + $0x20] sm:$0xff]
    %v5755 = vld [vmem:[#allocation2 + $0x28] sm:$0xff]
    %v5756 = vld [vmem:[#allocation2 + $0x30] sm:$0xff]
    %v5757 = vld [vmem:[#allocation2 + $0x38] sm:$0xff]
    %v5758 = vld [vmem:[#allocation2 + $0x40] sm:$0xff]
    %v5759 = vld [vmem:[#allocation2 + $0x48] sm:$0xff]
    %v5760 = vld [vmem:[#allocation2 + $0x50] sm:$0xff]
    %v5761 = vld [vmem:[#allocation2 + $0x58] sm:$0xff]
    %v5762 = vld [vmem:[#allocation2 + $0x60] sm:$0xff]
    %v5763 = vld [vmem:[#allocation2 + $0x68] sm:$0xff]
    %v5764 = vld [vmem:[#allocation2 + $0x70] sm:$0xff]
    %v5765 = vld [vmem:[#allocation2 + $0x78] sm:$0xff]
    %v5766 = vld [vmem:[#allocation2 + $0x80] sm:$0xff]
    %v5767 = vld [vmem:[#allocation2 + $0x88] sm:$0xff]
    %v5768 = vld [vmem:[#allocation2 + $0x90] sm:$0xff]
    %v5769 = vld [vmem:[#allocation2 + $0x98] sm:$0xff]
    %v5770 = vld [vmem:[#allocation2 + $0xa0] sm:$0xff]
    %v5771 = vld [vmem:[#allocation2 + $0xa8] sm:$0xff]
    %v5772 = vld [vmem:[#allocation2 + $0xb0] sm:$0xff]
    %v5773 = vld [vmem:[#allocation2 + $0xb8] sm:$0xff]
    %v5774 = vld [vmem:[#allocation2 + $0xc0] sm:$0xff]
    %v5775 = vld [vmem:[#allocation2 + $0xc8] sm:$0xff]
    %v5776 = vld [vmem:[#allocation2 + $0xd0] sm:$0xff]
    %v5777 = vld [vmem:[#allocation2 + $0xd8] sm:$0xff]
    %v5778 = vld [vmem:[#allocation2 + $0xe0] sm:$0xff]
    %v5779 = vld [vmem:[#allocation2 + $0xe8] sm:$0xff]
    %v5780 = vld [vmem:[#allocation2 + $0xf0] sm:$0xff]
    %v5781 = vld [vmem:[#allocation2 + $0xf8] sm:$0xff]
    %v5782 = vld [vmem:[#allocation2 + $0x100] sm:$0xff]
    %v5783 = vld [vmem:[#allocation2 + $0x108] sm:$0xff]
    %v5784 = vld [vmem:[#allocation2 + $0x110] sm:$0xff]
    %v5785 = vld [vmem:[#allocation2 + $0x118] sm:$0xff]
    %v5786 = vld [vmem:[#allocation2 + $0x120] sm:$0xff]
    %v5787 = vld [vmem:[#allocation2 + $0x128] sm:$0xff]
    %v5788 = vld [vmem:[#allocation2 + $0x130] sm:$0xff]
    %v5789 = vld [vmem:[#allocation2 + $0x138] sm:$0xff]
    %v5790 = vld [vmem:[#allocation2 + $0x140] sm:$0xff]
    %v5791 = vld [vmem:[#allocation2 + $0x148] sm:$0xff]
    %v5792 = vld [vmem:[#allocation2 + $0x150] sm:$0xff]
    %v5793 = vld [vmem:[#allocation2 + $0x158] sm:$0xff]
    %v5794 = vld [vmem:[#allocation2 + $0x160] sm:$0xff]
    %v5795 = vld [vmem:[#allocation2 + $0x168] sm:$0xff]
    %v5796 = vld [vmem:[#allocation2 + $0x170] sm:$0xff]
    %v5797 = vld [vmem:[#allocation2 + $0x178] sm:$0xff]
    %v5798 = vld [vmem:[#allocation2 + $0x180] sm:$0xff]
    %v5799 = vld [vmem:[#allocation2 + $0x188] sm:$0xff]
    %v5800 = vld [vmem:[#allocation2 + $0x190] sm:$0xff]
    %v5801 = vld [vmem:[#allocation2 + $0x198] sm:$0xff]
    %v5802 = vld [vmem:[#allocation2 + $0x1a0] sm:$0xff]
    %v5803 = vld [vmem:[#allocation2 + $0x1a8] sm:$0xff]
    %v5804 = vld [vmem:[#allocation2 + $0x1b0] sm:$0xff]
    %v5805 = vld [vmem:[#allocation2 + $0x1b8] sm:$0xff]
    %v5806 = vld [vmem:[#allocation2 + $0x1c0] sm:$0xff]
    %v5807 = vld [vmem:[#allocation2 + $0x1c8] sm:$0xff]
    %v5808 = vld [vmem:[#allocation2 + $0x1d0] sm:$0xff]
    %v5809 = vld [vmem:[#allocation2 + $0x1d8] sm:$0xff]
    %v5810 = vld [vmem:[#allocation2 + $0x1e0] sm:$0xff]
    %v5811 = vld [vmem:[#allocation2 + $0x1e8] sm:$0xff]
    %v5812 = vld [vmem:[#allocation2 + $0x1f0] sm:$0xff]
    %v5813 = vld [vmem:[#allocation2 + $0x1f8] sm:$0xff]
    %v5814 = vld [vmem:[#allocation2 + $0x200] sm:$0xff]
    %v5815 = vld [vmem:[#allocation2 + $0x208] sm:$0xff]
    %v5816 = vld [vmem:[#allocation2 + $0x210] sm:$0xff]
    %v5817 = vld [vmem:[#allocation2 + $0x218] sm:$0xff]
    %v5818 = vld [vmem:[#allocation2 + $0x220] sm:$0xff]
    %v5819 = vld [vmem:[#allocation2 + $0x228] sm:$0xff]
    %v5820 = vld [vmem:[#allocation2 + $0x230] sm:$0xff]
    %v5821 = vld [vmem:[#allocation2 + $0x238] sm:$0xff]
    %v5822 = vld [vmem:[#allocation2 + $0x240] sm:$0xff]
    %v5823 = vld [vmem:[#allocation2 + $0x248] sm:$0xff]
    %v5824 = vld [vmem:[#allocation2 + $0x250] sm:$0xff]
    %v5825 = vld [vmem:[#allocation2 + $0x258] sm:$0xff]
    %v5826 = vld [vmem:[#allocation2 + $0x260] sm:$0xff]
    %v5827 = vld [vmem:[#allocation2 + $0x268] sm:$0xff]
    %v5828 = vld [vmem:[#allocation2 + $0x270] sm:$0xff]
    %v5829 = vld [vmem:[#allocation2 + $0x278] sm:$0xff]
    %v5830 = vld [vmem:[#allocation2 + $0x280] sm:$0xff]
    %v5831 = vld [vmem:[#allocation2 + $0x288] sm:$0xff]
    %v5832 = vld [vmem:[#allocation2 + $0x290] sm:$0xff]
    %v5833 = vld [vmem:[#allocation2 + $0x298] sm:$0xff]
    %v5834 = vld [vmem:[#allocation2 + $0x2a0] sm:$0xff]
    %v5835 = vld [vmem:[#allocation2 + $0x2a8] sm:$0xff]
    %v5836 = vld [vmem:[#allocation2 + $0x2b0] sm:$0xff]
    %v5837 = vld [vmem:[#allocation2 + $0x2b8] sm:$0xff]
    %v5838 = vld [vmem:[#allocation2 + $0x2c0] sm:$0xff]
    %v5839 = vld [vmem:[#allocation2 + $0x2c8] sm:$0xff]
    %v5840 = vld [vmem:[#allocation2 + $0x2d0] sm:$0xff]
    %v5841 = vld [vmem:[#allocation2 + $0x2d8] sm:$0xff]
    %v5842 = vld [vmem:[#allocation2 + $0x2e0] sm:$0xff]
    %v5843 = vld [vmem:[#allocation2 + $0x2e8] sm:$0xff]
    %v5844 = vld [vmem:[#allocation2 + $0x2f0] sm:$0xff]
    %v5845 = vld [vmem:[#allocation2 + $0x2f8] sm:$0xff]
    %v5846 = vld [vmem:[#allocation2 + $0x300] sm:$0xff]
    %v5847 = vld [vmem:[#allocation2 + $0x308] sm:$0xff]
    %v5848 = vld [vmem:[#allocation2 + $0x310] sm:$0xff]
    %v5849 = vld [vmem:[#allocation2 + $0x318] sm:$0xff]
    %v5850 = vld [vmem:[#allocation2 + $0x320] sm:$0xff]
    %v5851 = vld [vmem:[#allocation2 + $0x328] sm:$0xff]
    %v5852 = vld [vmem:[#allocation2 + $0x330] sm:$0xff]
    %v5853 = vld [vmem:[#allocation2 + $0x338] sm:$0xff]
    %v5854 = vld [vmem:[#allocation2 + $0x340] sm:$0xff]
    %v5855 = vld [vmem:[#allocation2 + $0x348] sm:$0xff]
    %v5856 = vld [vmem:[#allocation2 + $0x350] sm:$0xff]
    %v5857 = vld [vmem:[#allocation2 + $0x358] sm:$0xff]
    %v5858 = vld [vmem:[#allocation2 + $0x360] sm:$0xff]
    %v5859 = vld [vmem:[#allocation2 + $0x368] sm:$0xff]
    %v5860 = vld [vmem:[#allocation2 + $0x370] sm:$0xff]
    %v5861 = vld [vmem:[#allocation2 + $0x378] sm:$0xff]
    %v5862 = vld [vmem:[#allocation2 + $0x380] sm:$0xff]
    %v5863 = vld [vmem:[#allocation2 + $0x388] sm:$0xff]
    %v5864 = vld [vmem:[#allocation2 + $0x390] sm:$0xff]
    %v5865 = vld [vmem:[#allocation2 + $0x398] sm:$0xff]
    %v5866 = vld [vmem:[#allocation2 + $0x3a0] sm:$0xff]
    %v5867 = vld [vmem:[#allocation2 + $0x3a8] sm:$0xff]
    %v5868 = vld [vmem:[#allocation2 + $0x3b0] sm:$0xff]
    %v5869 = vld [vmem:[#allocation2 + $0x3b8] sm:$0xff]
    %v5870 = vld [vmem:[#allocation2 + $0x3c0] sm:$0xff]
    %v5871 = vld [vmem:[#allocation2 + $0x3c8] sm:$0xff]
    %v5872 = vld [vmem:[#allocation2 + $0x3d0] sm:$0xff]
    %v5873 = vld [vmem:[#allocation2 + $0x3d8] sm:$0xff]
    %v5874 = vld [vmem:[#allocation2 + $0x3e0] sm:$0xff]
    %v5875 = vld [vmem:[#allocation2 + $0x3e8] sm:$0xff]
    %v5876 = vld [vmem:[#allocation2 + $0x3f0] sm:$0xff]
    %v5877 = vld [vmem:[#allocation2 + $0x3f8] sm:$0xff]
    %v5878 = vld [vmem:[#allocation16] ss:$4 sm:$0xff]
    %s5879 = scalar_lea.vmem [#allocation16], 1
    %v5880 = vld [vmem:[%s5879] ss:$4 sm:$0xff]
    %s5881 = scalar_lea.vmem [#allocation16], 2
    %v5882 = vld [vmem:[%s5881] ss:$4 sm:$0xff]
    %v5883 = vpack.c.bf16 %v5741, %v5741
    %v5885 = vlaneseq
    %v5886 = vshrl.u32 %v5885, 7
    %v5887 = vsub.s32 0, %v5886
    %v5888 = vrot.slane %v5878, %v5887
    %v5889 = vlaneseq
    %v5890 = vshrl.u32 %v5889, 7
    %v5891 = vsub.s32 1, %v5890
    %v5892 = vrot.slane %v5878, %v5891
    %v5893 = vlaneseq
    %v5894 = vshrl.u32 %v5893, 7
    %v5895 = vsub.s32 2, %v5894
    %v5896 = vrot.slane %v5878, %v5895
    %v5897 = vlaneseq
    %v5898 = vshrl.u32 %v5897, 7
    %v5899 = vsub.s32 3, %v5898
    %v5900 = vrot.slane %v5878, %v5899
    %v5901 = vlaneseq
    %v5902 = vshrl.u32 %v5901, 7
    %v5903 = vsub.s32 4, %v5902
    %v5904 = vrot.slane %v5878, %v5903
    %v5905 = vlaneseq
    %v5906 = vshrl.u32 %v5905, 7
    %v5907 = vsub.s32 5, %v5906
    %v5908 = vrot.slane %v5878, %v5907
    %v5909 = vlaneseq
    %v5910 = vshrl.u32 %v5909, 7
    %v5911 = vsub.s32 6, %v5910
    %v5912 = vrot.slane %v5878, %v5911
    %v5913 = vlaneseq
    %v5914 = vshrl.u32 %v5913, 7
    %v5915 = vsub.s32 7, %v5914
    %v5916 = vrot.slane %v5878, %v5915
    %v6053 = vunpack.c.l.b16 %v5750
    %v6054 = vunpack.c.h.b16 %v5750
    %v6055 = vunpack.c.l.b16 %v5751
    %v6056 = vunpack.c.h.b16 %v5751
    %v6057 = vunpack.c.l.b16 %v5752
    %v6058 = vunpack.c.h.b16 %v5752
    %v6059 = vunpack.c.l.b16 %v5753
    %v6060 = vunpack.c.h.b16 %v5753
    %v6061 = vunpack.c.l.b16 %v5754
    %v6062 = vunpack.c.h.b16 %v5754
    %v6063 = vunpack.c.l.b16 %v5755
    %v6064 = vunpack.c.h.b16 %v5755
    %v6065 = vunpack.c.l.b16 %v5756
    %v6066 = vunpack.c.h.b16 %v5756
    %v6067 = vunpack.c.l.b16 %v5757
    %v6068 = vunpack.c.h.b16 %v5757
    %v6069 = vunpack.c.l.b16 %v5758
    %v6070 = vunpack.c.h.b16 %v5758
    %v6071 = vunpack.c.l.b16 %v5759
    %v6072 = vunpack.c.h.b16 %v5759
    %v6073 = vunpack.c.l.b16 %v5760
    %v6074 = vunpack.c.h.b16 %v5760
    %v6075 = vunpack.c.l.b16 %v5761
    %v6076 = vunpack.c.h.b16 %v5761
    %v6077 = vunpack.c.l.b16 %v5762
    %v6078 = vunpack.c.h.b16 %v5762
    %v6079 = vunpack.c.l.b16 %v5763
    %v6080 = vunpack.c.h.b16 %v5763
    %v6081 = vunpack.c.l.b16 %v5764
    %v6082 = vunpack.c.h.b16 %v5764
    %v6083 = vunpack.c.l.b16 %v5765
    %v6084 = vunpack.c.h.b16 %v5765
    %v6085 = vunpack.c.l.b16 %v5766
    %v6086 = vunpack.c.h.b16 %v5766
    %v6087 = vunpack.c.l.b16 %v5767
    %v6088 = vunpack.c.h.b16 %v5767
    %v6089 = vunpack.c.l.b16 %v5768
    %v6090 = vunpack.c.h.b16 %v5768
    %v6091 = vunpack.c.l.b16 %v5769
    %v6092 = vunpack.c.h.b16 %v5769
    %v6093 = vunpack.c.l.b16 %v5770
    %v6094 = vunpack.c.h.b16 %v5770
    %v6095 = vunpack.c.l.b16 %v5771
    %v6096 = vunpack.c.h.b16 %v5771
    %v6097 = vunpack.c.l.b16 %v5772
    %v6098 = vunpack.c.h.b16 %v5772
    %v6099 = vunpack.c.l.b16 %v5773
    %v6100 = vunpack.c.h.b16 %v5773
    %v6101 = vunpack.c.l.b16 %v5774
    %v6102 = vunpack.c.h.b16 %v5774
    %v6103 = vunpack.c.l.b16 %v5775
    %v6104 = vunpack.c.h.b16 %v5775
    %v6105 = vunpack.c.l.b16 %v5776
    %v6106 = vunpack.c.h.b16 %v5776
    %v6107 = vunpack.c.l.b16 %v5777
    %v6108 = vunpack.c.h.b16 %v5777
    %v6109 = vunpack.c.l.b16 %v5778
    %v6110 = vunpack.c.h.b16 %v5778
    %v6111 = vunpack.c.l.b16 %v5779
    %v6112 = vunpack.c.h.b16 %v5779
    %v6113 = vunpack.c.l.b16 %v5780
    %v6114 = vunpack.c.h.b16 %v5780
    %v6115 = vunpack.c.l.b16 %v5781
    %v6116 = vunpack.c.h.b16 %v5781
    %v6117 = vunpack.c.l.b16 %v5782
    %v6118 = vunpack.c.h.b16 %v5782
    %v6119 = vunpack.c.l.b16 %v5783
    %v6120 = vunpack.c.h.b16 %v5783
    %v6121 = vunpack.c.l.b16 %v5784
    %v6122 = vunpack.c.h.b16 %v5784
    %v6123 = vunpack.c.l.b16 %v5785
    %v6124 = vunpack.c.h.b16 %v5785
    %v6125 = vunpack.c.l.b16 %v5786
    %v6126 = vunpack.c.h.b16 %v5786
    %v6127 = vunpack.c.l.b16 %v5787
    %v6128 = vunpack.c.h.b16 %v5787
    %v6129 = vunpack.c.l.b16 %v5788
    %v6130 = vunpack.c.h.b16 %v5788
    %v6131 = vunpack.c.l.b16 %v5789
    %v6132 = vunpack.c.h.b16 %v5789
    %v6133 = vunpack.c.l.b16 %v5790
    %v6134 = vunpack.c.h.b16 %v5790
    %v6135 = vunpack.c.l.b16 %v5791
    %v6136 = vunpack.c.h.b16 %v5791
    %v6137 = vunpack.c.l.b16 %v5792
    %v6138 = vunpack.c.h.b16 %v5792
    %v6139 = vunpack.c.l.b16 %v5793
    %v6140 = vunpack.c.h.b16 %v5793
    %v6141 = vunpack.c.l.b16 %v5794
    %v6142 = vunpack.c.h.b16 %v5794
    %v6143 = vunpack.c.l.b16 %v5795
    %v6144 = vunpack.c.h.b16 %v5795
    %v6145 = vunpack.c.l.b16 %v5796
    %v6146 = vunpack.c.h.b16 %v5796
    %v6147 = vunpack.c.l.b16 %v5797
    %v6148 = vunpack.c.h.b16 %v5797
    %v6149 = vunpack.c.l.b16 %v5798
    %v6150 = vunpack.c.h.b16 %v5798
    %v6151 = vunpack.c.l.b16 %v5799
    %v6152 = vunpack.c.h.b16 %v5799
    %v6153 = vunpack.c.l.b16 %v5800
    %v6154 = vunpack.c.h.b16 %v5800
    %v6155 = vunpack.c.l.b16 %v5801
    %v6156 = vunpack.c.h.b16 %v5801
    %v6157 = vunpack.c.l.b16 %v5802
    %v6158 = vunpack.c.h.b16 %v5802
    %v6159 = vunpack.c.l.b16 %v5803
    %v6160 = vunpack.c.h.b16 %v5803
    %v6161 = vunpack.c.l.b16 %v5804
    %v6162 = vunpack.c.h.b16 %v5804
    %v6163 = vunpack.c.l.b16 %v5805
    %v6164 = vunpack.c.h.b16 %v5805
    %v6165 = vunpack.c.l.b16 %v5806
    %v6166 = vunpack.c.h.b16 %v5806
    %v6167 = vunpack.c.l.b16 %v5807
    %v6168 = vunpack.c.h.b16 %v5807
    %v6169 = vunpack.c.l.b16 %v5808
    %v6170 = vunpack.c.h.b16 %v5808
    %v6171 = vunpack.c.l.b16 %v5809
    %v6172 = vunpack.c.h.b16 %v5809
    %v6173 = vunpack.c.l.b16 %v5810
    %v6174 = vunpack.c.h.b16 %v5810
    %v6175 = vunpack.c.l.b16 %v5811
    %v6176 = vunpack.c.h.b16 %v5811
    %v6177 = vunpack.c.l.b16 %v5812
    %v6178 = vunpack.c.h.b16 %v5812
    %v6179 = vunpack.c.l.b16 %v5813
    %v6180 = vunpack.c.h.b16 %v5813
    %v6181 = vunpack.c.l.b16 %v5814
    %v6182 = vunpack.c.h.b16 %v5814
    %v6183 = vunpack.c.l.b16 %v5815
    %v6184 = vunpack.c.h.b16 %v5815
    %v6185 = vunpack.c.l.b16 %v5816
    %v6186 = vunpack.c.h.b16 %v5816
    %v6187 = vunpack.c.l.b16 %v5817
    %v6188 = vunpack.c.h.b16 %v5817
    %v6189 = vunpack.c.l.b16 %v5818
    %v6190 = vunpack.c.h.b16 %v5818
    %v6191 = vunpack.c.l.b16 %v5819
    %v6192 = vunpack.c.h.b16 %v5819
    %v6193 = vunpack.c.l.b16 %v5820
    %v6194 = vunpack.c.h.b16 %v5820
    %v6195 = vunpack.c.l.b16 %v5821
    %v6196 = vunpack.c.h.b16 %v5821
    %v6197 = vunpack.c.l.b16 %v5822
    %v6198 = vunpack.c.h.b16 %v5822
    %v6199 = vunpack.c.l.b16 %v5823
    %v6200 = vunpack.c.h.b16 %v5823
    %v6201 = vunpack.c.l.b16 %v5824
    %v6202 = vunpack.c.h.b16 %v5824
    %v6203 = vunpack.c.l.b16 %v5825
    %v6204 = vunpack.c.h.b16 %v5825
    %v6205 = vunpack.c.l.b16 %v5826
    %v6206 = vunpack.c.h.b16 %v5826
    %v6207 = vunpack.c.l.b16 %v5827
    %v6208 = vunpack.c.h.b16 %v5827
    %v6209 = vunpack.c.l.b16 %v5828
    %v6210 = vunpack.c.h.b16 %v5828
    %v6211 = vunpack.c.l.b16 %v5829
    %v6212 = vunpack.c.h.b16 %v5829
    %v6213 = vunpack.c.l.b16 %v5830
    %v6214 = vunpack.c.h.b16 %v5830
    %v6215 = vunpack.c.l.b16 %v5831
    %v6216 = vunpack.c.h.b16 %v5831
    %v6217 = vunpack.c.l.b16 %v5832
    %v6218 = vunpack.c.h.b16 %v5832
    %v6219 = vunpack.c.l.b16 %v5833
    %v6220 = vunpack.c.h.b16 %v5833
    %v6221 = vunpack.c.l.b16 %v5834
    %v6222 = vunpack.c.h.b16 %v5834
    %v6223 = vunpack.c.l.b16 %v5835
    %v6224 = vunpack.c.h.b16 %v5835
    %v6225 = vunpack.c.l.b16 %v5836
    %v6226 = vunpack.c.h.b16 %v5836
    %v6227 = vunpack.c.l.b16 %v5837
    %v6228 = vunpack.c.h.b16 %v5837
    %v6229 = vunpack.c.l.b16 %v5838
    %v6230 = vunpack.c.h.b16 %v5838
    %v6231 = vunpack.c.l.b16 %v5839
    %v6232 = vunpack.c.h.b16 %v5839
    %v6233 = vunpack.c.l.b16 %v5840
    %v6234 = vunpack.c.h.b16 %v5840
    %v6235 = vunpack.c.l.b16 %v5841
    %v6236 = vunpack.c.h.b16 %v5841
    %v6237 = vunpack.c.l.b16 %v5842
    %v6238 = vunpack.c.h.b16 %v5842
    %v6239 = vunpack.c.l.b16 %v5843
    %v6240 = vunpack.c.h.b16 %v5843
    %v6241 = vunpack.c.l.b16 %v5844
    %v6242 = vunpack.c.h.b16 %v5844
    %v6243 = vunpack.c.l.b16 %v5845
    %v6244 = vunpack.c.h.b16 %v5845
    %v6245 = vunpack.c.l.b16 %v5846
    %v6246 = vunpack.c.h.b16 %v5846
    %v6247 = vunpack.c.l.b16 %v5847
    %v6248 = vunpack.c.h.b16 %v5847
    %v6249 = vunpack.c.l.b16 %v5848
    %v6250 = vunpack.c.h.b16 %v5848
    %v6251 = vunpack.c.l.b16 %v5849
    %v6252 = vunpack.c.h.b16 %v5849
    %v6253 = vunpack.c.l.b16 %v5850
    %v6254 = vunpack.c.h.b16 %v5850
    %v6255 = vunpack.c.l.b16 %v5851
    %v6256 = vunpack.c.h.b16 %v5851
    %v6257 = vunpack.c.l.b16 %v5852
    %v6258 = vunpack.c.h.b16 %v5852
    %v6259 = vunpack.c.l.b16 %v5853
    %v6260 = vunpack.c.h.b16 %v5853
    %v6261 = vunpack.c.l.b16 %v5854
    %v6262 = vunpack.c.h.b16 %v5854
    %v6263 = vunpack.c.l.b16 %v5855
    %v6264 = vunpack.c.h.b16 %v5855
    %v6265 = vunpack.c.l.b16 %v5856
    %v6266 = vunpack.c.h.b16 %v5856
    %v6267 = vunpack.c.l.b16 %v5857
    %v6268 = vunpack.c.h.b16 %v5857
    %v6269 = vunpack.c.l.b16 %v5858
    %v6270 = vunpack.c.h.b16 %v5858
    %v6271 = vunpack.c.l.b16 %v5859
    %v6272 = vunpack.c.h.b16 %v5859
    %v6273 = vunpack.c.l.b16 %v5860
    %v6274 = vunpack.c.h.b16 %v5860
    %v6275 = vunpack.c.l.b16 %v5861
    %v6276 = vunpack.c.h.b16 %v5861
    %v6277 = vunpack.c.l.b16 %v5862
    %v6278 = vunpack.c.h.b16 %v5862
    %v6279 = vunpack.c.l.b16 %v5863
    %v6280 = vunpack.c.h.b16 %v5863
    %v6281 = vunpack.c.l.b16 %v5864
    %v6282 = vunpack.c.h.b16 %v5864
    %v6283 = vunpack.c.l.b16 %v5865
    %v6284 = vunpack.c.h.b16 %v5865
    %v6285 = vunpack.c.l.b16 %v5866
    %v6286 = vunpack.c.h.b16 %v5866
    %v6287 = vunpack.c.l.b16 %v5867
    %v6288 = vunpack.c.h.b16 %v5867
    %v6289 = vunpack.c.l.b16 %v5868
    %v6290 = vunpack.c.h.b16 %v5868
    %v6291 = vunpack.c.l.b16 %v5869
    %v6292 = vunpack.c.h.b16 %v5869
    %v6293 = vunpack.c.l.b16 %v5870
    %v6294 = vunpack.c.h.b16 %v5870
    %v6295 = vunpack.c.l.b16 %v5871
    %v6296 = vunpack.c.h.b16 %v5871
    %v6297 = vunpack.c.l.b16 %v5872
    %v6298 = vunpack.c.h.b16 %v5872
    %v6299 = vunpack.c.l.b16 %v5873
    %v6300 = vunpack.c.h.b16 %v5873
    %v6301 = vunpack.c.l.b16 %v5874
    %v6302 = vunpack.c.h.b16 %v5874
    %v6303 = vunpack.c.l.b16 %v5875
    %v6304 = vunpack.c.h.b16 %v5875
    %v6305 = vunpack.c.l.b16 %v5876
    %v6306 = vunpack.c.h.b16 %v5876
    %v6307 = vunpack.c.l.b16 %v5877
    %v6308 = vunpack.c.h.b16 %v5877
    %v6309 = vpack.c.b16 %v6061, %v6053
    %v6310 = vpack.c.b16 %v6062, %v6054
    %v6311 = vpack.c.b16 %v6063, %v6055
    %v6312 = vpack.c.b16 %v6064, %v6056
    %v6313 = vpack.c.b16 %v6065, %v6057
    %v6314 = vpack.c.b16 %v6066, %v6058
    %v6315 = vpack.c.b16 %v6067, %v6059
    %v6316 = vpack.c.b16 %v6068, %v6060
    %v6317 = vpack.c.b16 %v6077, %v6069
    %v6318 = vpack.c.b16 %v6078, %v6070
    %v6319 = vpack.c.b16 %v6079, %v6071
    %v6320 = vpack.c.b16 %v6080, %v6072
    %v6321 = vpack.c.b16 %v6081, %v6073
    %v6322 = vpack.c.b16 %v6082, %v6074
    %v6323 = vpack.c.b16 %v6083, %v6075
    %v6324 = vpack.c.b16 %v6084, %v6076
    %v6325 = vpack.c.b16 %v6093, %v6085
    %v6326 = vpack.c.b16 %v6094, %v6086
    %v6327 = vpack.c.b16 %v6095, %v6087
    %v6328 = vpack.c.b16 %v6096, %v6088
    %v6329 = vpack.c.b16 %v6097, %v6089
    %v6330 = vpack.c.b16 %v6098, %v6090
    %v6331 = vpack.c.b16 %v6099, %v6091
    %v6332 = vpack.c.b16 %v6100, %v6092
    %v6333 = vpack.c.b16 %v6109, %v6101
    %v6334 = vpack.c.b16 %v6110, %v6102
    %v6335 = vpack.c.b16 %v6111, %v6103
    %v6336 = vpack.c.b16 %v6112, %v6104
    %v6337 = vpack.c.b16 %v6113, %v6105
    %v6338 = vpack.c.b16 %v6114, %v6106
    %v6339 = vpack.c.b16 %v6115, %v6107
    %v6340 = vpack.c.b16 %v6116, %v6108
    %v6341 = vpack.c.b16 %v6125, %v6117
    %v6342 = vpack.c.b16 %v6126, %v6118
    %v6343 = vpack.c.b16 %v6127, %v6119
    %v6344 = vpack.c.b16 %v6128, %v6120
    %v6345 = vpack.c.b16 %v6129, %v6121
    %v6346 = vpack.c.b16 %v6130, %v6122
    %v6347 = vpack.c.b16 %v6131, %v6123
    %v6348 = vpack.c.b16 %v6132, %v6124
    %v6349 = vpack.c.b16 %v6141, %v6133
    %v6350 = vpack.c.b16 %v6142, %v6134
    %v6351 = vpack.c.b16 %v6143, %v6135
    %v6352 = vpack.c.b16 %v6144, %v6136
    %v6353 = vpack.c.b16 %v6145, %v6137
    %v6354 = vpack.c.b16 %v6146, %v6138
    %v6355 = vpack.c.b16 %v6147, %v6139
    %v6356 = vpack.c.b16 %v6148, %v6140
    %v6357 = vpack.c.b16 %v6157, %v6149
    %v6358 = vpack.c.b16 %v6158, %v6150
    %v6359 = vpack.c.b16 %v6159, %v6151
    %v6360 = vpack.c.b16 %v6160, %v6152
    %v6361 = vpack.c.b16 %v6161, %v6153
    %v6362 = vpack.c.b16 %v6162, %v6154
    %v6363 = vpack.c.b16 %v6163, %v6155
    %v6364 = vpack.c.b16 %v6164, %v6156
    %v6365 = vpack.c.b16 %v6173, %v6165
    %v6366 = vpack.c.b16 %v6174, %v6166
    %v6367 = vpack.c.b16 %v6175, %v6167
    %v6368 = vpack.c.b16 %v6176, %v6168
    %v6369 = vpack.c.b16 %v6177, %v6169
    %v6370 = vpack.c.b16 %v6178, %v6170
    %v6371 = vpack.c.b16 %v6179, %v6171
    %v6372 = vpack.c.b16 %v6180, %v6172
    %v6373 = vpack.c.b16 %v6189, %v6181
    %v6374 = vpack.c.b16 %v6190, %v6182
    %v6375 = vpack.c.b16 %v6191, %v6183
    %v6376 = vpack.c.b16 %v6192, %v6184
    %v6377 = vpack.c.b16 %v6193, %v6185
    %v6378 = vpack.c.b16 %v6194, %v6186
    %v6379 = vpack.c.b16 %v6195, %v6187
    %v6380 = vpack.c.b16 %v6196, %v6188
    %v6381 = vpack.c.b16 %v6205, %v6197
    %v6382 = vpack.c.b16 %v6206, %v6198
    %v6383 = vpack.c.b16 %v6207, %v6199
    %v6384 = vpack.c.b16 %v6208, %v6200
    %v6385 = vpack.c.b16 %v6209, %v6201
    %v6386 = vpack.c.b16 %v6210, %v6202
    %v6387 = vpack.c.b16 %v6211, %v6203
    %v6388 = vpack.c.b16 %v6212, %v6204
    %v6389 = vpack.c.b16 %v6221, %v6213
    %v6390 = vpack.c.b16 %v6222, %v6214
    %v6391 = vpack.c.b16 %v6223, %v6215
    %v6392 = vpack.c.b16 %v6224, %v6216
    %v6393 = vpack.c.b16 %v6225, %v6217
    %v6394 = vpack.c.b16 %v6226, %v6218
    %v6395 = vpack.c.b16 %v6227, %v6219
    %v6396 = vpack.c.b16 %v6228, %v6220
    %v6397 = vpack.c.b16 %v6237, %v6229
    %v6398 = vpack.c.b16 %v6238, %v6230
    %v6399 = vpack.c.b16 %v6239, %v6231
    %v6400 = vpack.c.b16 %v6240, %v6232
    %v6401 = vpack.c.b16 %v6241, %v6233
    %v6402 = vpack.c.b16 %v6242, %v6234
    %v6403 = vpack.c.b16 %v6243, %v6235
    %v6404 = vpack.c.b16 %v6244, %v6236
    %v6405 = vpack.c.b16 %v6253, %v6245
    %v6406 = vpack.c.b16 %v6254, %v6246
    %v6407 = vpack.c.b16 %v6255, %v6247
    %v6408 = vpack.c.b16 %v6256, %v6248
    %v6409 = vpack.c.b16 %v6257, %v6249
    %v6410 = vpack.c.b16 %v6258, %v6250
    %v6411 = vpack.c.b16 %v6259, %v6251
    %v6412 = vpack.c.b16 %v6260, %v6252
    %v6413 = vpack.c.b16 %v6269, %v6261
    %v6414 = vpack.c.b16 %v6270, %v6262
    %v6415 = vpack.c.b16 %v6271, %v6263
    %v6416 = vpack.c.b16 %v6272, %v6264
    %v6417 = vpack.c.b16 %v6273, %v6265
    %v6418 = vpack.c.b16 %v6274, %v6266
    %v6419 = vpack.c.b16 %v6275, %v6267
    %v6420 = vpack.c.b16 %v6276, %v6268
    %v6421 = vpack.c.b16 %v6285, %v6277
    %v6422 = vpack.c.b16 %v6286, %v6278
    %v6423 = vpack.c.b16 %v6287, %v6279
    %v6424 = vpack.c.b16 %v6288, %v6280
    %v6425 = vpack.c.b16 %v6289, %v6281
    %v6426 = vpack.c.b16 %v6290, %v6282
    %v6427 = vpack.c.b16 %v6291, %v6283
    %v6428 = vpack.c.b16 %v6292, %v6284
    %v6429 = vpack.c.b16 %v6301, %v6293
    %v6430 = vpack.c.b16 %v6302, %v6294
    %v6431 = vpack.c.b16 %v6303, %v6295
    %v6432 = vpack.c.b16 %v6304, %v6296
    %v6433 = vpack.c.b16 %v6305, %v6297
    %v6434 = vpack.c.b16 %v6306, %v6298
    %v6435 = vpack.c.b16 %v6307, %v6299
    %v6436 = vpack.c.b16 %v6308, %v6300
    %6565 = vmatprep.subr.bf16.mxu0 %v6366
    %6566 = vmatpush1.bf16.msra.mxu0 %v6365
    %6567 = vmatprep.subr.bf16.mxu0 %v6358
    %6568 = vmatpush1.bf16.msra.mxu0 %v6357
    %6569 = vmatprep.subr.bf16.mxu0 %v6350
    %6570 = vmatpush1.bf16.msra.mxu0 %v6349
    %6571 = vmatprep.subr.bf16.mxu0 %v6342
    %6572 = vmatpush1.bf16.msra.mxu0 %v6341
    %6573 = vmatprep.subr.bf16.mxu0 %v6334
    %6574 = vmatpush1.bf16.msra.mxu0 %v6333
    %6575 = vmatprep.subr.bf16.mxu0 %v6326
    %6576 = vmatpush1.bf16.msra.mxu0 %v6325
    %6577 = vmatprep.subr.bf16.mxu0 %v6318
    %6578 = vmatpush1.bf16.msra.mxu0 %v6317
    %6579 = vmatprep.subr.bf16.mxu0 %v6310
    %6580 = vmatpush1.bf16.msra.mxu0 %v6309
    %6581 = vmatprep.subr.bf16.mxu0 %v6430
    %6582 = vmatpush2.bf16.msra.mxu0 %v6429
    %6583 = vmatprep.subr.bf16.mxu0 %v6422
    %6584 = vmatpush2.bf16.msra.mxu0 %v6421
    %6585 = vmatprep.subr.bf16.mxu0 %v6414
    %6586 = vmatpush2.bf16.msra.mxu0 %v6413
    %6587 = vmatprep.subr.bf16.mxu0 %v6406
    %6588 = vmatpush2.bf16.msra.mxu0 %v6405
    %6589 = vmatprep.subr.bf16.mxu0 %v6398
    %6590 = vmatpush2.bf16.msra.mxu0 %v6397
    %6591 = vmatprep.subr.bf16.mxu0 %v6390
    %6592 = vmatpush2.bf16.msra.mxu0 %v6389
    %6593 = vmatprep.subr.bf16.mxu0 %v6382
    %6594 = vmatpush2.bf16.msra.mxu0 %v6381
    %6595 = vmatprep.subr.bf16.mxu0 %v6374
    %6596 = vmatpush2.bf16.msra.mxu0 %v6373
    %6597 = vmatprep.mubr.bf16.mxu0 %v4855
    %6598 = vmatmul.mubr.bf16.gmra.mxu0 %v5883
    %v6599 = vpop.f32.mrf.mxu0
    %v6600 = vadd.f32 %v5888, %v6599
    %v6601 = vpop.f32.mrf.mxu0
    %v6602 = vadd.f32 %v5892, %v6601
    %v6603 = vpop.f32.mrf.mxu0
    %v6604 = vpop.f32.mrf.mxu0
    %6605 = vdwg.mxu0
    %6606 = vmatprep.subr.bf16.mxu0 %v6368
    %6607 = vmatpush1.bf16.msra.mxu0 %v6367
    %6608 = vmatprep.subr.bf16.mxu0 %v6360
    %6609 = vmatpush1.bf16.msra.mxu0 %v6359
    %6610 = vmatprep.subr.bf16.mxu0 %v6352
    %6611 = vmatpush1.bf16.msra.mxu0 %v6351
    %6612 = vmatprep.subr.bf16.mxu0 %v6344
    %6613 = vmatpush1.bf16.msra.mxu0 %v6343
    %6614 = vmatprep.subr.bf16.mxu0 %v6336
    %6615 = vmatpush1.bf16.msra.mxu0 %v6335
    %6616 = vmatprep.subr.bf16.mxu0 %v6328
    %6617 = vmatpush1.bf16.msra.mxu0 %v6327
    %6618 = vmatprep.subr.bf16.mxu0 %v6320
    %6619 = vmatpush1.bf16.msra.mxu0 %v6319
    %6620 = vmatprep.subr.bf16.mxu0 %v6312
    %6621 = vmatpush1.bf16.msra.mxu0 %v6311
    %6622 = vmatprep.subr.bf16.mxu0 %v6432
    %6623 = vmatpush2.bf16.msra.mxu0 %v6431
    %6624 = vmatprep.subr.bf16.mxu0 %v6424
    %6625 = vmatpush2.bf16.msra.mxu0 %v6423
    %6626 = vmatprep.subr.bf16.mxu0 %v6416
    %6627 = vmatpush2.bf16.msra.mxu0 %v6415
    %6628 = vmatprep.subr.bf16.mxu0 %v6408
    %6629 = vmatpush2.bf16.msra.mxu0 %v6407
    %6630 = vmatprep.subr.bf16.mxu0 %v6400
    %6631 = vmatpush2.bf16.msra.mxu0 %v6399
    %6632 = vmatprep.subr.bf16.mxu0 %v6392
    %6633 = vmatpush2.bf16.msra.mxu0 %v6391
    %6634 = vmatprep.subr.bf16.mxu0 %v6384
    %6635 = vmatpush2.bf16.msra.mxu0 %v6383
    %6636 = vmatprep.subr.bf16.mxu0 %v6376
    %6637 = vmatpush2.bf16.msra.mxu0 %v6375
    %6638 = vmatprep.mubr.bf16.mxu0 %v4855
    %6639 = vmatmul.mubr.bf16.gmra.mxu0 %v5883
    %v6640 = vpop.f32.mrf.mxu0
    %v6641 = vadd.f32 %v5896, %v6640
    %v6642 = vpop.f32.mrf.mxu0
    %v6643 = vadd.f32 %v5900, %v6642
    %v6644 = vpop.f32.mrf.mxu0
    %v6645 = vpop.f32.mrf.mxu0
    %6646 = vdwg.mxu0
    %6647 = vmatprep.subr.bf16.mxu0 %v6370
    %6648 = vmatpush1.bf16.msra.mxu0 %v6369
    %6649 = vmatprep.subr.bf16.mxu0 %v6362
    %6650 = vmatpush1.bf16.msra.mxu0 %v6361
    %6651 = vmatprep.subr.bf16.mxu0 %v6354
    %6652 = vmatpush1.bf16.msra.mxu0 %v6353
    %6653 = vmatprep.subr.bf16.mxu0 %v6346
    %6654 = vmatpush1.bf16.msra.mxu0 %v6345
    %6655 = vmatprep.subr.bf16.mxu0 %v6338
    %6656 = vmatpush1.bf16.msra.mxu0 %v6337
    %6657 = vmatprep.subr.bf16.mxu0 %v6330
    %6658 = vmatpush1.bf16.msra.mxu0 %v6329
    %6659 = vmatprep.subr.bf16.mxu0 %v6322
    %6660 = vmatpush1.bf16.msra.mxu0 %v6321
    %6661 = vmatprep.subr.bf16.mxu0 %v6314
    %6662 = vmatpush1.bf16.msra.mxu0 %v6313
    %6663 = vmatprep.subr.bf16.mxu0 %v6434
    %6664 = vmatpush2.bf16.msra.mxu0 %v6433
    %6665 = vmatprep.subr.bf16.mxu0 %v6426
    %6666 = vmatpush2.bf16.msra.mxu0 %v6425
    %6667 = vmatprep.subr.bf16.mxu0 %v6418
    %6668 = vmatpush2.bf16.msra.mxu0 %v6417
    %6669 = vmatprep.subr.bf16.mxu0 %v6410
    %6670 = vmatpush2.bf16.msra.mxu0 %v6409
    %6671 = vmatprep.subr.bf16.mxu0 %v6402
    %6672 = vmatpush2.bf16.msra.mxu0 %v6401
    %6673 = vmatprep.subr.bf16.mxu0 %v6394
    %6674 = vmatpush2.bf16.msra.mxu0 %v6393
    %6675 = vmatprep.subr.bf16.mxu0 %v6386
    %6676 = vmatpush2.bf16.msra.mxu0 %v6385
    %6677 = vmatprep.subr.bf16.mxu0 %v6378
    %6678 = vmatpush2.bf16.msra.mxu0 %v6377
    %6679 = vmatprep.mubr.bf16.mxu0 %v4855
    %6680 = vmatmul.mubr.bf16.gmra.mxu0 %v5883
    %v6681 = vpop.f32.mrf.mxu0
    %v6682 = vadd.f32 %v5904, %v6681
    %v6683 = vpop.f32.mrf.mxu0
    %v6684 = vadd.f32 %v5908, %v6683
    %v6685 = vpop.f32.mrf.mxu0
    %v6686 = vpop.f32.mrf.mxu0
    %6687 = vdwg.mxu0
    %6688 = vmatprep.subr.bf16.mxu0 %v6372
    %6689 = vmatpush1.bf16.msra.mxu0 %v6371
    %6690 = vmatprep.subr.bf16.mxu0 %v6364
    %6691 = vmatpush1.bf16.msra.mxu0 %v6363
    %6692 = vmatprep.subr.bf16.mxu0 %v6356
    %6693 = vmatpush1.bf16.msra.mxu0 %v6355
    %6694 = vmatprep.subr.bf16.mxu0 %v6348
    %6695 = vmatpush1.bf16.msra.mxu0 %v6347
    %6696 = vmatprep.subr.bf16.mxu0 %v6340
    %6697 = vmatpush1.bf16.msra.mxu0 %v6339
    %6698 = vmatprep.subr.bf16.mxu0 %v6332
    %6699 = vmatpush1.bf16.msra.mxu0 %v6331
    %6700 = vmatprep.subr.bf16.mxu0 %v6324
    %6701 = vmatpush1.bf16.msra.mxu0 %v6323
    %6702 = vmatprep.subr.bf16.mxu0 %v6316
    %6703 = vmatpush1.bf16.msra.mxu0 %v6315
    %6704 = vmatprep.subr.bf16.mxu0 %v6436
    %6705 = vmatpush2.bf16.msra.mxu0 %v6435
    %6706 = vmatprep.subr.bf16.mxu0 %v6428
    %6707 = vmatpush2.bf16.msra.mxu0 %v6427
    %6708 = vmatprep.subr.bf16.mxu0 %v6420
    %6709 = vmatpush2.bf16.msra.mxu0 %v6419
    %6710 = vmatprep.subr.bf16.mxu0 %v6412
    %6711 = vmatpush2.bf16.msra.mxu0 %v6411
    %6712 = vmatprep.subr.bf16.mxu0 %v6404
    %6713 = vmatpush2.bf16.msra.mxu0 %v6403
    %6714 = vmatprep.subr.bf16.mxu0 %v6396
    %6715 = vmatpush2.bf16.msra.mxu0 %v6395
    %6716 = vmatprep.subr.bf16.mxu0 %v6388
    %6717 = vmatpush2.bf16.msra.mxu0 %v6387
    %6718 = vmatprep.subr.bf16.mxu0 %v6380
    %6719 = vmatpush2.bf16.msra.mxu0 %v6379
    %6720 = vmatprep.mubr.bf16.mxu0 %v4855
    %6721 = vmatmul.mubr.bf16.gmra.mxu0 %v5883
    %v6722 = vpop.f32.mrf.mxu0
    %v6723 = vadd.f32 %v5912, %v6722
    %v6724 = vpop.f32.mrf.mxu0
    %v6725 = vadd.f32 %v5916, %v6724
    %v6726 = vpop.f32.mrf.mxu0
    %v6727 = vpop.f32.mrf.mxu0
    %6728 = vdwg.mxu0
    %v6729 = vadd.f32 %v6600, %v6602
    %v6730 = vadd.f32 %v6729, %v6641
    %v6731 = vadd.f32 %v6730, %v6643
    %v6732 = vadd.f32 %v6731, %v6682
    %v6733 = vadd.f32 %v6732, %v6684
    %v6734 = vadd.f32 %v6733, %v6723
    %v6735 = vadd.f32 %v6734, %v6725
    %6736 = vadd.xlane.f32.xlu0 %v6735
    %v6737 = vpop.xlane.xlu0 %6736
    %v6738 = vrcp.pop 1024.0
    %v6739 = vmul.f32 %v6737, %v6738
    %v6740 = vsub.f32 %v6600, %v6739
    %v6741 = vsub.f32 %v6602, %v6739
    %v6742 = vsub.f32 %v6641, %v6739
    %v6743 = vsub.f32 %v6643, %v6739
    %v6744 = vsub.f32 %v6682, %v6739
    %v6745 = vsub.f32 %v6684, %v6739
    %v6746 = vsub.f32 %v6723, %v6739
    %v6747 = vsub.f32 %v6725, %v6739
    %v6748 = vmul.f32 %v6740, %v6740
    %v6749 = vmul.f32 %v6741, %v6741
    %v6750 = vmul.f32 %v6742, %v6742
    %v6751 = vmul.f32 %v6743, %v6743
    %v6752 = vmul.f32 %v6744, %v6744
    %v6753 = vmul.f32 %v6745, %v6745
    %v6754 = vmul.f32 %v6746, %v6746
    %v6755 = vmul.f32 %v6747, %v6747
    %v6756 = vadd.f32 %v6748, %v6749
    %v6757 = vadd.f32 %v6756, %v6750
    %v6758 = vadd.f32 %v6757, %v6751
    %v6759 = vadd.f32 %v6758, %v6752
    %v6760 = vadd.f32 %v6759, %v6753
    %v6761 = vadd.f32 %v6760, %v6754
    %v6762 = vadd.f32 %v6761, %v6755
    %6763 = vadd.xlane.f32.xlu0 %v6762
    %v6764 = vpop.xlane.xlu0 %6763
    %v6765 = vmul.f32 %v6764, %v6738
    %v6766 = vadd.f32 %v6765, 1e-05
    %v6767 = vrsqrt.pop %v6766
    %v6768 = vmul.f32 %v6740, %v6767
    %v6769 = vmul.f32 %v6741, %v6767
    %v6770 = vmul.f32 %v6742, %v6767
    %v6771 = vmul.f32 %v6743, %v6767
    %v6772 = vmul.f32 %v6744, %v6767
    %v6773 = vmul.f32 %v6745, %v6767
    %v6774 = vmul.f32 %v6746, %v6767
    %v6775 = vmul.f32 %v6747, %v6767
    %v6777 = vlaneseq
    %v6778 = vshrl.u32 %v6777, 7
    %v6779 = vsub.s32 0, %v6778
    %v6780 = vrot.slane %v5880, %v6779
    %v6781 = vlaneseq
    %v6782 = vshrl.u32 %v6781, 7
    %v6783 = vsub.s32 1, %v6782
    %v6784 = vrot.slane %v5880, %v6783
    %v6785 = vlaneseq
    %v6786 = vshrl.u32 %v6785, 7
    %v6787 = vsub.s32 2, %v6786
    %v6788 = vrot.slane %v5880, %v6787
    %v6789 = vlaneseq
    %v6790 = vshrl.u32 %v6789, 7
    %v6791 = vsub.s32 3, %v6790
    %v6792 = vrot.slane %v5880, %v6791
    %v6793 = vlaneseq
    %v6794 = vshrl.u32 %v6793, 7
    %v6795 = vsub.s32 4, %v6794
    %v6796 = vrot.slane %v5880, %v6795
    %v6797 = vlaneseq
    %v6798 = vshrl.u32 %v6797, 7
    %v6799 = vsub.s32 5, %v6798
    %v6800 = vrot.slane %v5880, %v6799
    %v6801 = vlaneseq
    %v6802 = vshrl.u32 %v6801, 7
    %v6803 = vsub.s32 6, %v6802
    %v6804 = vrot.slane %v5880, %v6803
    %v6805 = vlaneseq
    %v6806 = vshrl.u32 %v6805, 7
    %v6807 = vsub.s32 7, %v6806
    %v6808 = vrot.slane %v5880, %v6807
    %v6817 = vmul.f32 %v6768, %v6780
    %v6818 = vmul.f32 %v6769, %v6784
    %v6819 = vmul.f32 %v6770, %v6788
    %v6820 = vmul.f32 %v6771, %v6792
    %v6821 = vmul.f32 %v6772, %v6796
    %v6822 = vmul.f32 %v6773, %v6800
    %v6823 = vmul.f32 %v6774, %v6804
    %v6824 = vmul.f32 %v6775, %v6808
    %v6826 = vlaneseq
    %v6827 = vshrl.u32 %v6826, 7
    %v6828 = vsub.s32 0, %v6827
    %v6829 = vrot.slane %v5882, %v6828
    %v6830 = vlaneseq
    %v6831 = vshrl.u32 %v6830, 7
    %v6832 = vsub.s32 1, %v6831
    %v6833 = vrot.slane %v5882, %v6832
    %v6834 = vlaneseq
    %v6835 = vshrl.u32 %v6834, 7
    %v6836 = vsub.s32 2, %v6835
    %v6837 = vrot.slane %v5882, %v6836
    %v6838 = vlaneseq
    %v6839 = vshrl.u32 %v6838, 7
    %v6840 = vsub.s32 3, %v6839
    %v6841 = vrot.slane %v5882, %v6840
    %v6842 = vlaneseq
    %v6843 = vshrl.u32 %v6842, 7
    %v6844 = vsub.s32 4, %v6843
    %v6845 = vrot.slane %v5882, %v6844
    %v6846 = vlaneseq
    %v6847 = vshrl.u32 %v6846, 7
    %v6848 = vsub.s32 5, %v6847
    %v6849 = vrot.slane %v5882, %v6848
    %v6850 = vlaneseq
    %v6851 = vshrl.u32 %v6850, 7
    %v6852 = vsub.s32 6, %v6851
    %v6853 = vrot.slane %v5882, %v6852
    %v6854 = vlaneseq
    %v6855 = vshrl.u32 %v6854, 7
    %v6856 = vsub.s32 7, %v6855
    %v6857 = vrot.slane %v5882, %v6856
    %v6866 = vadd.f32 %v6817, %v6829
    %v6867 = vadd.f32 %v6818, %v6833
    %v6868 = vadd.f32 %v6819, %v6837
    %v6869 = vadd.f32 %v6820, %v6841
    %v6870 = vadd.f32 %v6821, %v6845
    %v6871 = vadd.f32 %v6822, %v6849
    %v6872 = vadd.f32 %v6823, %v6853
    %v6873 = vadd.f32 %v6824, %v6857
    %v6874 = vmul.f32 %v6866, 0.5
    %v6875 = vmul.f32 %v6867, 0.5
    %v6876 = vmul.f32 %v6868, 0.5
    %v6877 = vmul.f32 %v6869, 0.5
    %v6878 = vmul.f32 %v6870, 0.5
    %v6879 = vmul.f32 %v6871, 0.5
    %v6880 = vmul.f32 %v6872, 0.5
    %v6881 = vmul.f32 %v6873, 0.5
    %v6882 = vmul.f32 %v6866, 0.044715
    %v6883 = vmul.f32 %v6867, 0.044715
    %v6884 = vmul.f32 %v6868, 0.044715
    %v6885 = vmul.f32 %v6869, 0.044715
    %v6886 = vmul.f32 %v6870, 0.044715
    %v6887 = vmul.f32 %v6871, 0.044715
    %v6888 = vmul.f32 %v6872, 0.044715
    %v6889 = vmul.f32 %v6873, 0.044715
    %v6890 = vmul.f32 %v6882, %v6866
    %v6891 = vmul.f32 %v6883, %v6867
    %v6892 = vmul.f32 %v6884, %v6868
    %v6893 = vmul.f32 %v6885, %v6869
    %v6894 = vmul.f32 %v6886, %v6870
    %v6895 = vmul.f32 %v6887, %v6871
    %v6896 = vmul.f32 %v6888, %v6872
    %v6897 = vmul.f32 %v6889, %v6873
    %v6898 = vmul.f32 %v6890, %v6866
    %v6899 = vmul.f32 %v6891, %v6867
    %v6900 = vmul.f32 %v6892, %v6868
    %v6901 = vmul.f32 %v6893, %v6869
    %v6902 = vmul.f32 %v6894, %v6870
    %v6903 = vmul.f32 %v6895, %v6871
    %v6904 = vmul.f32 %v6896, %v6872
    %v6905 = vmul.f32 %v6897, %v6873
    %v6906 = vadd.f32 %v6866, %v6898
    %v6907 = vadd.f32 %v6867, %v6899
    %v6908 = vadd.f32 %v6868, %v6900
    %v6909 = vadd.f32 %v6869, %v6901
    %v6910 = vadd.f32 %v6870, %v6902
    %v6911 = vadd.f32 %v6871, %v6903
    %v6912 = vadd.f32 %v6872, %v6904
    %v6913 = vadd.f32 %v6873, %v6905
    %v6914 = vmul.f32 %v6906, 0.7978846
    %v6915 = vmul.f32 %v6907, 0.7978846
    %v6916 = vmul.f32 %v6908, 0.7978846
    %v6917 = vmul.f32 %v6909, 0.7978846
    %v6918 = vmul.f32 %v6910, 0.7978846
    %v6919 = vmul.f32 %v6911, 0.7978846
    %v6920 = vmul.f32 %v6912, 0.7978846
    %v6921 = vmul.f32 %v6913, 0.7978846
    %v6922 = vtanh.pop %v6914
    %v6923 = vtanh.pop %v6915
    %v6924 = vtanh.pop %v6916
    %v6925 = vtanh.pop %v6917
    %v6926 = vtanh.pop %v6918
    %v6927 = vtanh.pop %v6919
    %v6928 = vtanh.pop %v6920
    %v6929 = vtanh.pop %v6921
    %v6930 = vadd.f32 %v6922, 1.0
    %v6931 = vadd.f32 %v6923, 1.0
    %v6932 = vadd.f32 %v6924, 1.0
    %v6933 = vadd.f32 %v6925, 1.0
    %v6934 = vadd.f32 %v6926, 1.0
    %v6935 = vadd.f32 %v6927, 1.0
    %v6936 = vadd.f32 %v6928, 1.0
    %v6937 = vadd.f32 %v6929, 1.0
    %v6938 = vmul.f32 %v6874, %v6930
    %v6939 = vmul.f32 %v6875, %v6931
    %v6940 = vmul.f32 %v6876, %v6932
    %v6941 = vmul.f32 %v6877, %v6933
    %v6942 = vmul.f32 %v6878, %v6934
    %v6943 = vmul.f32 %v6879, %v6935
    %v6944 = vmul.f32 %v6880, %v6936
    %v6945 = vmul.f32 %v6881, %v6937
    %s6946 = smul.u32 4, 128
    %s6947 = smul.u32 %s6946, 4
    %s6948 = sshll.u32 %s6947, 4
    %6949 = dma.done %s179, %s6948
    %v6950 = vld [vmem:[#allocation3] sm:$0xff]
    %v6951 = vld [vmem:[#allocation3 + $0x8] sm:$0xff]
    %v6952 = vld [vmem:[#allocation3 + $0x10] sm:$0xff]
    %v6953 = vld [vmem:[#allocation3 + $0x18] sm:$0xff]
    %v6954 = vld [vmem:[#allocation3 + $0x20] sm:$0xff]
    %v6955 = vld [vmem:[#allocation3 + $0x28] sm:$0xff]
    %v6956 = vld [vmem:[#allocation3 + $0x30] sm:$0xff]
    %v6957 = vld [vmem:[#allocation3 + $0x38] sm:$0xff]
    %v6958 = vld [vmem:[#allocation3 + $0x40] sm:$0xff]
    %v6959 = vld [vmem:[#allocation3 + $0x48] sm:$0xff]
    %v6960 = vld [vmem:[#allocation3 + $0x50] sm:$0xff]
    %v6961 = vld [vmem:[#allocation3 + $0x58] sm:$0xff]
    %v6962 = vld [vmem:[#allocation3 + $0x60] sm:$0xff]
    %v6963 = vld [vmem:[#allocation3 + $0x68] sm:$0xff]
    %v6964 = vld [vmem:[#allocation3 + $0x70] sm:$0xff]
    %v6965 = vld [vmem:[#allocation3 + $0x78] sm:$0xff]
    %v6966 = vld [vmem:[#allocation3 + $0x80] sm:$0xff]
    %v6967 = vld [vmem:[#allocation3 + $0x88] sm:$0xff]
    %v6968 = vld [vmem:[#allocation3 + $0x90] sm:$0xff]
    %v6969 = vld [vmem:[#allocation3 + $0x98] sm:$0xff]
    %v6970 = vld [vmem:[#allocation3 + $0xa0] sm:$0xff]
    %v6971 = vld [vmem:[#allocation3 + $0xa8] sm:$0xff]
    %v6972 = vld [vmem:[#allocation3 + $0xb0] sm:$0xff]
    %v6973 = vld [vmem:[#allocation3 + $0xb8] sm:$0xff]
    %v6974 = vld [vmem:[#allocation3 + $0xc0] sm:$0xff]
    %v6975 = vld [vmem:[#allocation3 + $0xc8] sm:$0xff]
    %v6976 = vld [vmem:[#allocation3 + $0xd0] sm:$0xff]
    %v6977 = vld [vmem:[#allocation3 + $0xd8] sm:$0xff]
    %v6978 = vld [vmem:[#allocation3 + $0xe0] sm:$0xff]
    %v6979 = vld [vmem:[#allocation3 + $0xe8] sm:$0xff]
    %v6980 = vld [vmem:[#allocation3 + $0xf0] sm:$0xff]
    %v6981 = vld [vmem:[#allocation3 + $0xf8] sm:$0xff]
    %v6982 = vld [vmem:[#allocation3 + $0x100] sm:$0xff]
    %v6983 = vld [vmem:[#allocation3 + $0x108] sm:$0xff]
    %v6984 = vld [vmem:[#allocation3 + $0x110] sm:$0xff]
    %v6985 = vld [vmem:[#allocation3 + $0x118] sm:$0xff]
    %v6986 = vld [vmem:[#allocation3 + $0x120] sm:$0xff]
    %v6987 = vld [vmem:[#allocation3 + $0x128] sm:$0xff]
    %v6988 = vld [vmem:[#allocation3 + $0x130] sm:$0xff]
    %v6989 = vld [vmem:[#allocation3 + $0x138] sm:$0xff]
    %v6990 = vld [vmem:[#allocation3 + $0x140] sm:$0xff]
    %v6991 = vld [vmem:[#allocation3 + $0x148] sm:$0xff]
    %v6992 = vld [vmem:[#allocation3 + $0x150] sm:$0xff]
    %v6993 = vld [vmem:[#allocation3 + $0x158] sm:$0xff]
    %v6994 = vld [vmem:[#allocation3 + $0x160] sm:$0xff]
    %v6995 = vld [vmem:[#allocation3 + $0x168] sm:$0xff]
    %v6996 = vld [vmem:[#allocation3 + $0x170] sm:$0xff]
    %v6997 = vld [vmem:[#allocation3 + $0x178] sm:$0xff]
    %v6998 = vld [vmem:[#allocation3 + $0x180] sm:$0xff]
    %v6999 = vld [vmem:[#allocation3 + $0x188] sm:$0xff]
    %v7000 = vld [vmem:[#allocation3 + $0x190] sm:$0xff]
    %v7001 = vld [vmem:[#allocation3 + $0x198] sm:$0xff]
    %v7002 = vld [vmem:[#allocation3 + $0x1a0] sm:$0xff]
    %v7003 = vld [vmem:[#allocation3 + $0x1a8] sm:$0xff]
    %v7004 = vld [vmem:[#allocation3 + $0x1b0] sm:$0xff]
    %v7005 = vld [vmem:[#allocation3 + $0x1b8] sm:$0xff]
    %v7006 = vld [vmem:[#allocation3 + $0x1c0] sm:$0xff]
    %v7007 = vld [vmem:[#allocation3 + $0x1c8] sm:$0xff]
    %v7008 = vld [vmem:[#allocation3 + $0x1d0] sm:$0xff]
    %v7009 = vld [vmem:[#allocation3 + $0x1d8] sm:$0xff]
    %v7010 = vld [vmem:[#allocation3 + $0x1e0] sm:$0xff]
    %v7011 = vld [vmem:[#allocation3 + $0x1e8] sm:$0xff]
    %v7012 = vld [vmem:[#allocation3 + $0x1f0] sm:$0xff]
    %v7013 = vld [vmem:[#allocation3 + $0x1f8] sm:$0xff]
    %v7014 = vld [vmem:[#allocation3 + $0x200] sm:$0xff]
    %v7015 = vld [vmem:[#allocation3 + $0x208] sm:$0xff]
    %v7016 = vld [vmem:[#allocation3 + $0x210] sm:$0xff]
    %v7017 = vld [vmem:[#allocation3 + $0x218] sm:$0xff]
    %v7018 = vld [vmem:[#allocation3 + $0x220] sm:$0xff]
    %v7019 = vld [vmem:[#allocation3 + $0x228] sm:$0xff]
    %v7020 = vld [vmem:[#allocation3 + $0x230] sm:$0xff]
    %v7021 = vld [vmem:[#allocation3 + $0x238] sm:$0xff]
    %v7022 = vld [vmem:[#allocation3 + $0x240] sm:$0xff]
    %v7023 = vld [vmem:[#allocation3 + $0x248] sm:$0xff]
    %v7024 = vld [vmem:[#allocation3 + $0x250] sm:$0xff]
    %v7025 = vld [vmem:[#allocation3 + $0x258] sm:$0xff]
    %v7026 = vld [vmem:[#allocation3 + $0x260] sm:$0xff]
    %v7027 = vld [vmem:[#allocation3 + $0x268] sm:$0xff]
    %v7028 = vld [vmem:[#allocation3 + $0x270] sm:$0xff]
    %v7029 = vld [vmem:[#allocation3 + $0x278] sm:$0xff]
    %v7030 = vld [vmem:[#allocation3 + $0x280] sm:$0xff]
    %v7031 = vld [vmem:[#allocation3 + $0x288] sm:$0xff]
    %v7032 = vld [vmem:[#allocation3 + $0x290] sm:$0xff]
    %v7033 = vld [vmem:[#allocation3 + $0x298] sm:$0xff]
    %v7034 = vld [vmem:[#allocation3 + $0x2a0] sm:$0xff]
    %v7035 = vld [vmem:[#allocation3 + $0x2a8] sm:$0xff]
    %v7036 = vld [vmem:[#allocation3 + $0x2b0] sm:$0xff]
    %v7037 = vld [vmem:[#allocation3 + $0x2b8] sm:$0xff]
    %v7038 = vld [vmem:[#allocation3 + $0x2c0] sm:$0xff]
    %v7039 = vld [vmem:[#allocation3 + $0x2c8] sm:$0xff]
    %v7040 = vld [vmem:[#allocation3 + $0x2d0] sm:$0xff]
    %v7041 = vld [vmem:[#allocation3 + $0x2d8] sm:$0xff]
    %v7042 = vld [vmem:[#allocation3 + $0x2e0] sm:$0xff]
    %v7043 = vld [vmem:[#allocation3 + $0x2e8] sm:$0xff]
    %v7044 = vld [vmem:[#allocation3 + $0x2f0] sm:$0xff]
    %v7045 = vld [vmem:[#allocation3 + $0x2f8] sm:$0xff]
    %v7046 = vld [vmem:[#allocation3 + $0x300] sm:$0xff]
    %v7047 = vld [vmem:[#allocation3 + $0x308] sm:$0xff]
    %v7048 = vld [vmem:[#allocation3 + $0x310] sm:$0xff]
    %v7049 = vld [vmem:[#allocation3 + $0x318] sm:$0xff]
    %v7050 = vld [vmem:[#allocation3 + $0x320] sm:$0xff]
    %v7051 = vld [vmem:[#allocation3 + $0x328] sm:$0xff]
    %v7052 = vld [vmem:[#allocation3 + $0x330] sm:$0xff]
    %v7053 = vld [vmem:[#allocation3 + $0x338] sm:$0xff]
    %v7054 = vld [vmem:[#allocation3 + $0x340] sm:$0xff]
    %v7055 = vld [vmem:[#allocation3 + $0x348] sm:$0xff]
    %v7056 = vld [vmem:[#allocation3 + $0x350] sm:$0xff]
    %v7057 = vld [vmem:[#allocation3 + $0x358] sm:$0xff]
    %v7058 = vld [vmem:[#allocation3 + $0x360] sm:$0xff]
    %v7059 = vld [vmem:[#allocation3 + $0x368] sm:$0xff]
    %v7060 = vld [vmem:[#allocation3 + $0x370] sm:$0xff]
    %v7061 = vld [vmem:[#allocation3 + $0x378] sm:$0xff]
    %v7062 = vld [vmem:[#allocation3 + $0x380] sm:$0xff]
    %v7063 = vld [vmem:[#allocation3 + $0x388] sm:$0xff]
    %v7064 = vld [vmem:[#allocation3 + $0x390] sm:$0xff]
    %v7065 = vld [vmem:[#allocation3 + $0x398] sm:$0xff]
    %v7066 = vld [vmem:[#allocation3 + $0x3a0] sm:$0xff]
    %v7067 = vld [vmem:[#allocation3 + $0x3a8] sm:$0xff]
    %v7068 = vld [vmem:[#allocation3 + $0x3b0] sm:$0xff]
    %v7069 = vld [vmem:[#allocation3 + $0x3b8] sm:$0xff]
    %v7070 = vld [vmem:[#allocation3 + $0x3c0] sm:$0xff]
    %v7071 = vld [vmem:[#allocation3 + $0x3c8] sm:$0xff]
    %v7072 = vld [vmem:[#allocation3 + $0x3d0] sm:$0xff]
    %v7073 = vld [vmem:[#allocation3 + $0x3d8] sm:$0xff]
    %v7074 = vld [vmem:[#allocation3 + $0x3e0] sm:$0xff]
    %v7075 = vld [vmem:[#allocation3 + $0x3e8] sm:$0xff]
    %v7076 = vld [vmem:[#allocation3 + $0x3f0] sm:$0xff]
    %v7077 = vld [vmem:[#allocation3 + $0x3f8] sm:$0xff]
    %v7078 = vld [vmem:[#allocation3 + $0x400] sm:$0xff]
    %v7079 = vld [vmem:[#allocation3 + $0x408] sm:$0xff]
    %v7080 = vld [vmem:[#allocation3 + $0x410] sm:$0xff]
    %v7081 = vld [vmem:[#allocation3 + $0x418] sm:$0xff]
    %v7082 = vld [vmem:[#allocation3 + $0x420] sm:$0xff]
    %v7083 = vld [vmem:[#allocation3 + $0x428] sm:$0xff]
    %v7084 = vld [vmem:[#allocation3 + $0x430] sm:$0xff]
    %v7085 = vld [vmem:[#allocation3 + $0x438] sm:$0xff]
    %v7086 = vld [vmem:[#allocation3 + $0x440] sm:$0xff]
    %v7087 = vld [vmem:[#allocation3 + $0x448] sm:$0xff]
    %v7088 = vld [vmem:[#allocation3 + $0x450] sm:$0xff]
    %v7089 = vld [vmem:[#allocation3 + $0x458] sm:$0xff]
    %v7090 = vld [vmem:[#allocation3 + $0x460] sm:$0xff]
    %v7091 = vld [vmem:[#allocation3 + $0x468] sm:$0xff]
    %v7092 = vld [vmem:[#allocation3 + $0x470] sm:$0xff]
    %v7093 = vld [vmem:[#allocation3 + $0x478] sm:$0xff]
    %v7094 = vld [vmem:[#allocation3 + $0x480] sm:$0xff]
    %v7095 = vld [vmem:[#allocation3 + $0x488] sm:$0xff]
    %v7096 = vld [vmem:[#allocation3 + $0x490] sm:$0xff]
    %v7097 = vld [vmem:[#allocation3 + $0x498] sm:$0xff]
    %v7098 = vld [vmem:[#allocation3 + $0x4a0] sm:$0xff]
    %v7099 = vld [vmem:[#allocation3 + $0x4a8] sm:$0xff]
    %v7100 = vld [vmem:[#allocation3 + $0x4b0] sm:$0xff]
    %v7101 = vld [vmem:[#allocation3 + $0x4b8] sm:$0xff]
    %v7102 = vld [vmem:[#allocation3 + $0x4c0] sm:$0xff]
    %v7103 = vld [vmem:[#allocation3 + $0x4c8] sm:$0xff]
    %v7104 = vld [vmem:[#allocation3 + $0x4d0] sm:$0xff]
    %v7105 = vld [vmem:[#allocation3 + $0x4d8] sm:$0xff]
    %v7106 = vld [vmem:[#allocation3 + $0x4e0] sm:$0xff]
    %v7107 = vld [vmem:[#allocation3 + $0x4e8] sm:$0xff]
    %v7108 = vld [vmem:[#allocation3 + $0x4f0] sm:$0xff]
    %v7109 = vld [vmem:[#allocation3 + $0x4f8] sm:$0xff]
    %v7110 = vld [vmem:[#allocation3 + $0x500] sm:$0xff]
    %v7111 = vld [vmem:[#allocation3 + $0x508] sm:$0xff]
    %v7112 = vld [vmem:[#allocation3 + $0x510] sm:$0xff]
    %v7113 = vld [vmem:[#allocation3 + $0x518] sm:$0xff]
    %v7114 = vld [vmem:[#allocation3 + $0x520] sm:$0xff]
    %v7115 = vld [vmem:[#allocation3 + $0x528] sm:$0xff]
    %v7116 = vld [vmem:[#allocation3 + $0x530] sm:$0xff]
    %v7117 = vld [vmem:[#allocation3 + $0x538] sm:$0xff]
    %v7118 = vld [vmem:[#allocation3 + $0x540] sm:$0xff]
    %v7119 = vld [vmem:[#allocation3 + $0x548] sm:$0xff]
    %v7120 = vld [vmem:[#allocation3 + $0x550] sm:$0xff]
    %v7121 = vld [vmem:[#allocation3 + $0x558] sm:$0xff]
    %v7122 = vld [vmem:[#allocation3 + $0x560] sm:$0xff]
    %v7123 = vld [vmem:[#allocation3 + $0x568] sm:$0xff]
    %v7124 = vld [vmem:[#allocation3 + $0x570] sm:$0xff]
    %v7125 = vld [vmem:[#allocation3 + $0x578] sm:$0xff]
    %v7126 = vld [vmem:[#allocation3 + $0x580] sm:$0xff]
    %v7127 = vld [vmem:[#allocation3 + $0x588] sm:$0xff]
    %v7128 = vld [vmem:[#allocation3 + $0x590] sm:$0xff]
    %v7129 = vld [vmem:[#allocation3 + $0x598] sm:$0xff]
    %v7130 = vld [vmem:[#allocation3 + $0x5a0] sm:$0xff]
    %v7131 = vld [vmem:[#allocation3 + $0x5a8] sm:$0xff]
    %v7132 = vld [vmem:[#allocation3 + $0x5b0] sm:$0xff]
    %v7133 = vld [vmem:[#allocation3 + $0x5b8] sm:$0xff]
    %v7134 = vld [vmem:[#allocation3 + $0x5c0] sm:$0xff]
    %v7135 = vld [vmem:[#allocation3 + $0x5c8] sm:$0xff]
    %v7136 = vld [vmem:[#allocation3 + $0x5d0] sm:$0xff]
    %v7137 = vld [vmem:[#allocation3 + $0x5d8] sm:$0xff]
    %v7138 = vld [vmem:[#allocation3 + $0x5e0] sm:$0xff]
    %v7139 = vld [vmem:[#allocation3 + $0x5e8] sm:$0xff]
    %v7140 = vld [vmem:[#allocation3 + $0x5f0] sm:$0xff]
    %v7141 = vld [vmem:[#allocation3 + $0x5f8] sm:$0xff]
    %v7142 = vld [vmem:[#allocation3 + $0x600] sm:$0xff]
    %v7143 = vld [vmem:[#allocation3 + $0x608] sm:$0xff]
    %v7144 = vld [vmem:[#allocation3 + $0x610] sm:$0xff]
    %v7145 = vld [vmem:[#allocation3 + $0x618] sm:$0xff]
    %v7146 = vld [vmem:[#allocation3 + $0x620] sm:$0xff]
    %v7147 = vld [vmem:[#allocation3 + $0x628] sm:$0xff]
    %v7148 = vld [vmem:[#allocation3 + $0x630] sm:$0xff]
    %v7149 = vld [vmem:[#allocation3 + $0x638] sm:$0xff]
    %v7150 = vld [vmem:[#allocation3 + $0x640] sm:$0xff]
    %v7151 = vld [vmem:[#allocation3 + $0x648] sm:$0xff]
    %v7152 = vld [vmem:[#allocation3 + $0x650] sm:$0xff]
    %v7153 = vld [vmem:[#allocation3 + $0x658] sm:$0xff]
    %v7154 = vld [vmem:[#allocation3 + $0x660] sm:$0xff]
    %v7155 = vld [vmem:[#allocation3 + $0x668] sm:$0xff]
    %v7156 = vld [vmem:[#allocation3 + $0x670] sm:$0xff]
    %v7157 = vld [vmem:[#allocation3 + $0x678] sm:$0xff]
    %v7158 = vld [vmem:[#allocation3 + $0x680] sm:$0xff]
    %v7159 = vld [vmem:[#allocation3 + $0x688] sm:$0xff]
    %v7160 = vld [vmem:[#allocation3 + $0x690] sm:$0xff]
    %v7161 = vld [vmem:[#allocation3 + $0x698] sm:$0xff]
    %v7162 = vld [vmem:[#allocation3 + $0x6a0] sm:$0xff]
    %v7163 = vld [vmem:[#allocation3 + $0x6a8] sm:$0xff]
    %v7164 = vld [vmem:[#allocation3 + $0x6b0] sm:$0xff]
    %v7165 = vld [vmem:[#allocation3 + $0x6b8] sm:$0xff]
    %v7166 = vld [vmem:[#allocation3 + $0x6c0] sm:$0xff]
    %v7167 = vld [vmem:[#allocation3 + $0x6c8] sm:$0xff]
    %v7168 = vld [vmem:[#allocation3 + $0x6d0] sm:$0xff]
    %v7169 = vld [vmem:[#allocation3 + $0x6d8] sm:$0xff]
    %v7170 = vld [vmem:[#allocation3 + $0x6e0] sm:$0xff]
    %v7171 = vld [vmem:[#allocation3 + $0x6e8] sm:$0xff]
    %v7172 = vld [vmem:[#allocation3 + $0x6f0] sm:$0xff]
    %v7173 = vld [vmem:[#allocation3 + $0x6f8] sm:$0xff]
    %v7174 = vld [vmem:[#allocation3 + $0x700] sm:$0xff]
    %v7175 = vld [vmem:[#allocation3 + $0x708] sm:$0xff]
    %v7176 = vld [vmem:[#allocation3 + $0x710] sm:$0xff]
    %v7177 = vld [vmem:[#allocation3 + $0x718] sm:$0xff]
    %v7178 = vld [vmem:[#allocation3 + $0x720] sm:$0xff]
    %v7179 = vld [vmem:[#allocation3 + $0x728] sm:$0xff]
    %v7180 = vld [vmem:[#allocation3 + $0x730] sm:$0xff]
    %v7181 = vld [vmem:[#allocation3 + $0x738] sm:$0xff]
    %v7182 = vld [vmem:[#allocation3 + $0x740] sm:$0xff]
    %v7183 = vld [vmem:[#allocation3 + $0x748] sm:$0xff]
    %v7184 = vld [vmem:[#allocation3 + $0x750] sm:$0xff]
    %v7185 = vld [vmem:[#allocation3 + $0x758] sm:$0xff]
    %v7186 = vld [vmem:[#allocation3 + $0x760] sm:$0xff]
    %v7187 = vld [vmem:[#allocation3 + $0x768] sm:$0xff]
    %v7188 = vld [vmem:[#allocation3 + $0x770] sm:$0xff]
    %v7189 = vld [vmem:[#allocation3 + $0x778] sm:$0xff]
    %v7190 = vld [vmem:[#allocation3 + $0x780] sm:$0xff]
    %v7191 = vld [vmem:[#allocation3 + $0x788] sm:$0xff]
    %v7192 = vld [vmem:[#allocation3 + $0x790] sm:$0xff]
    %v7193 = vld [vmem:[#allocation3 + $0x798] sm:$0xff]
    %v7194 = vld [vmem:[#allocation3 + $0x7a0] sm:$0xff]
    %v7195 = vld [vmem:[#allocation3 + $0x7a8] sm:$0xff]
    %v7196 = vld [vmem:[#allocation3 + $0x7b0] sm:$0xff]
    %v7197 = vld [vmem:[#allocation3 + $0x7b8] sm:$0xff]
    %v7198 = vld [vmem:[#allocation3 + $0x7c0] sm:$0xff]
    %v7199 = vld [vmem:[#allocation3 + $0x7c8] sm:$0xff]
    %v7200 = vld [vmem:[#allocation3 + $0x7d0] sm:$0xff]
    %v7201 = vld [vmem:[#allocation3 + $0x7d8] sm:$0xff]
    %v7202 = vld [vmem:[#allocation3 + $0x7e0] sm:$0xff]
    %v7203 = vld [vmem:[#allocation3 + $0x7e8] sm:$0xff]
    %v7204 = vld [vmem:[#allocation3 + $0x7f0] sm:$0xff]
    %v7205 = vld [vmem:[#allocation3 + $0x7f8] sm:$0xff]
    %s7206 = scalar_lea.vmem %s10, 36
    %v7207 = vld [vmem:[%s7206] ss:$8 sm:$0xf]
    %s7208 = scalar_lea.vmem %s10, 37
    %v7209 = vld [vmem:[%s7208] ss:$8 sm:$0xf]
    %s7210 = scalar_lea.vmem %s10, 38
    %v7211 = vld [vmem:[%s7210] ss:$8 sm:$0xf]
    %v7212 = vpack.c.bf16 %v6938, %v6938
    %v7213 = vpack.c.bf16 %v6939, %v6939
    %v7214 = vpack.c.bf16 %v6940, %v6940
    %v7215 = vpack.c.bf16 %v6941, %v6941
    %v7216 = vpack.c.bf16 %v6942, %v6942
    %v7217 = vpack.c.bf16 %v6943, %v6943
    %v7218 = vpack.c.bf16 %v6944, %v6944
    %v7219 = vpack.c.bf16 %v6945, %v6945
    %v7221 = vlaneseq
    %v7222 = vshrl.u32 %v7221, 7
    %v7223 = vsub.s32 0, %v7222
    %v7224 = vrot.slane %v7207, %v7223
    %v7225 = vlaneseq
    %v7226 = vshrl.u32 %v7225, 7
    %v7227 = vsub.s32 1, %v7226
    %v7228 = vrot.slane %v7207, %v7227
    %v7229 = vlaneseq
    %v7230 = vshrl.u32 %v7229, 7
    %v7231 = vsub.s32 2, %v7230
    %v7232 = vrot.slane %v7207, %v7231
    %v7233 = vlaneseq
    %v7234 = vshrl.u32 %v7233, 7
    %v7235 = vsub.s32 3, %v7234
    %v7236 = vrot.slane %v7207, %v7235
    %v7497 = vunpack.c.l.b16 %v6950
    %v7498 = vunpack.c.h.b16 %v6950
    %v7499 = vunpack.c.l.b16 %v6951
    %v7500 = vunpack.c.h.b16 %v6951
    %v7501 = vunpack.c.l.b16 %v6952
    %v7502 = vunpack.c.h.b16 %v6952
    %v7503 = vunpack.c.l.b16 %v6953
    %v7504 = vunpack.c.h.b16 %v6953
    %v7505 = vunpack.c.l.b16 %v6954
    %v7506 = vunpack.c.h.b16 %v6954
    %v7507 = vunpack.c.l.b16 %v6955
    %v7508 = vunpack.c.h.b16 %v6955
    %v7509 = vunpack.c.l.b16 %v6956
    %v7510 = vunpack.c.h.b16 %v6956
    %v7511 = vunpack.c.l.b16 %v6957
    %v7512 = vunpack.c.h.b16 %v6957
    %v7513 = vunpack.c.l.b16 %v6958
    %v7514 = vunpack.c.h.b16 %v6958
    %v7515 = vunpack.c.l.b16 %v6959
    %v7516 = vunpack.c.h.b16 %v6959
    %v7517 = vunpack.c.l.b16 %v6960
    %v7518 = vunpack.c.h.b16 %v6960
    %v7519 = vunpack.c.l.b16 %v6961
    %v7520 = vunpack.c.h.b16 %v6961
    %v7521 = vunpack.c.l.b16 %v6962
    %v7522 = vunpack.c.h.b16 %v6962
    %v7523 = vunpack.c.l.b16 %v6963
    %v7524 = vunpack.c.h.b16 %v6963
    %v7525 = vunpack.c.l.b16 %v6964
    %v7526 = vunpack.c.h.b16 %v6964
    %v7527 = vunpack.c.l.b16 %v6965
    %v7528 = vunpack.c.h.b16 %v6965
    %v7529 = vunpack.c.l.b16 %v6966
    %v7530 = vunpack.c.h.b16 %v6966
    %v7531 = vunpack.c.l.b16 %v6967
    %v7532 = vunpack.c.h.b16 %v6967
    %v7533 = vunpack.c.l.b16 %v6968
    %v7534 = vunpack.c.h.b16 %v6968
    %v7535 = vunpack.c.l.b16 %v6969
    %v7536 = vunpack.c.h.b16 %v6969
    %v7537 = vunpack.c.l.b16 %v6970
    %v7538 = vunpack.c.h.b16 %v6970
    %v7539 = vunpack.c.l.b16 %v6971
    %v7540 = vunpack.c.h.b16 %v6971
    %v7541 = vunpack.c.l.b16 %v6972
    %v7542 = vunpack.c.h.b16 %v6972
    %v7543 = vunpack.c.l.b16 %v6973
    %v7544 = vunpack.c.h.b16 %v6973
    %v7545 = vunpack.c.l.b16 %v6974
    %v7546 = vunpack.c.h.b16 %v6974
    %v7547 = vunpack.c.l.b16 %v6975
    %v7548 = vunpack.c.h.b16 %v6975
    %v7549 = vunpack.c.l.b16 %v6976
    %v7550 = vunpack.c.h.b16 %v6976
    %v7551 = vunpack.c.l.b16 %v6977
    %v7552 = vunpack.c.h.b16 %v6977
    %v7553 = vunpack.c.l.b16 %v6978
    %v7554 = vunpack.c.h.b16 %v6978
    %v7555 = vunpack.c.l.b16 %v6979
    %v7556 = vunpack.c.h.b16 %v6979
    %v7557 = vunpack.c.l.b16 %v6980
    %v7558 = vunpack.c.h.b16 %v6980
    %v7559 = vunpack.c.l.b16 %v6981
    %v7560 = vunpack.c.h.b16 %v6981
    %v7561 = vunpack.c.l.b16 %v6982
    %v7562 = vunpack.c.h.b16 %v6982
    %v7563 = vunpack.c.l.b16 %v6983
    %v7564 = vunpack.c.h.b16 %v6983
    %v7565 = vunpack.c.l.b16 %v6984
    %v7566 = vunpack.c.h.b16 %v6984
    %v7567 = vunpack.c.l.b16 %v6985
    %v7568 = vunpack.c.h.b16 %v6985
    %v7569 = vunpack.c.l.b16 %v6986
    %v7570 = vunpack.c.h.b16 %v6986
    %v7571 = vunpack.c.l.b16 %v6987
    %v7572 = vunpack.c.h.b16 %v6987
    %v7573 = vunpack.c.l.b16 %v6988
    %v7574 = vunpack.c.h.b16 %v6988
    %v7575 = vunpack.c.l.b16 %v6989
    %v7576 = vunpack.c.h.b16 %v6989
    %v7577 = vunpack.c.l.b16 %v6990
    %v7578 = vunpack.c.h.b16 %v6990
    %v7579 = vunpack.c.l.b16 %v6991
    %v7580 = vunpack.c.h.b16 %v6991
    %v7581 = vunpack.c.l.b16 %v6992
    %v7582 = vunpack.c.h.b16 %v6992
    %v7583 = vunpack.c.l.b16 %v6993
    %v7584 = vunpack.c.h.b16 %v6993
    %v7585 = vunpack.c.l.b16 %v6994
    %v7586 = vunpack.c.h.b16 %v6994
    %v7587 = vunpack.c.l.b16 %v6995
    %v7588 = vunpack.c.h.b16 %v6995
    %v7589 = vunpack.c.l.b16 %v6996
    %v7590 = vunpack.c.h.b16 %v6996
    %v7591 = vunpack.c.l.b16 %v6997
    %v7592 = vunpack.c.h.b16 %v6997
    %v7593 = vunpack.c.l.b16 %v6998
    %v7594 = vunpack.c.h.b16 %v6998
    %v7595 = vunpack.c.l.b16 %v6999
    %v7596 = vunpack.c.h.b16 %v6999
    %v7597 = vunpack.c.l.b16 %v7000
    %v7598 = vunpack.c.h.b16 %v7000
    %v7599 = vunpack.c.l.b16 %v7001
    %v7600 = vunpack.c.h.b16 %v7001
    %v7601 = vunpack.c.l.b16 %v7002
    %v7602 = vunpack.c.h.b16 %v7002
    %v7603 = vunpack.c.l.b16 %v7003
    %v7604 = vunpack.c.h.b16 %v7003
    %v7605 = vunpack.c.l.b16 %v7004
    %v7606 = vunpack.c.h.b16 %v7004
    %v7607 = vunpack.c.l.b16 %v7005
    %v7608 = vunpack.c.h.b16 %v7005
    %v7609 = vunpack.c.l.b16 %v7006
    %v7610 = vunpack.c.h.b16 %v7006
    %v7611 = vunpack.c.l.b16 %v7007
    %v7612 = vunpack.c.h.b16 %v7007
    %v7613 = vunpack.c.l.b16 %v7008
    %v7614 = vunpack.c.h.b16 %v7008
    %v7615 = vunpack.c.l.b16 %v7009
    %v7616 = vunpack.c.h.b16 %v7009
    %v7617 = vunpack.c.l.b16 %v7010
    %v7618 = vunpack.c.h.b16 %v7010
    %v7619 = vunpack.c.l.b16 %v7011
    %v7620 = vunpack.c.h.b16 %v7011
    %v7621 = vunpack.c.l.b16 %v7012
    %v7622 = vunpack.c.h.b16 %v7012
    %v7623 = vunpack.c.l.b16 %v7013
    %v7624 = vunpack.c.h.b16 %v7013
    %v7625 = vunpack.c.l.b16 %v7014
    %v7626 = vunpack.c.h.b16 %v7014
    %v7627 = vunpack.c.l.b16 %v7015
    %v7628 = vunpack.c.h.b16 %v7015
    %v7629 = vunpack.c.l.b16 %v7016
    %v7630 = vunpack.c.h.b16 %v7016
    %v7631 = vunpack.c.l.b16 %v7017
    %v7632 = vunpack.c.h.b16 %v7017
    %v7633 = vunpack.c.l.b16 %v7018
    %v7634 = vunpack.c.h.b16 %v7018
    %v7635 = vunpack.c.l.b16 %v7019
    %v7636 = vunpack.c.h.b16 %v7019
    %v7637 = vunpack.c.l.b16 %v7020
    %v7638 = vunpack.c.h.b16 %v7020
    %v7639 = vunpack.c.l.b16 %v7021
    %v7640 = vunpack.c.h.b16 %v7021
    %v7641 = vunpack.c.l.b16 %v7022
    %v7642 = vunpack.c.h.b16 %v7022
    %v7643 = vunpack.c.l.b16 %v7023
    %v7644 = vunpack.c.h.b16 %v7023
    %v7645 = vunpack.c.l.b16 %v7024
    %v7646 = vunpack.c.h.b16 %v7024
    %v7647 = vunpack.c.l.b16 %v7025
    %v7648 = vunpack.c.h.b16 %v7025
    %v7649 = vunpack.c.l.b16 %v7026
    %v7650 = vunpack.c.h.b16 %v7026
    %v7651 = vunpack.c.l.b16 %v7027
    %v7652 = vunpack.c.h.b16 %v7027
    %v7653 = vunpack.c.l.b16 %v7028
    %v7654 = vunpack.c.h.b16 %v7028
    %v7655 = vunpack.c.l.b16 %v7029
    %v7656 = vunpack.c.h.b16 %v7029
    %v7657 = vunpack.c.l.b16 %v7030
    %v7658 = vunpack.c.h.b16 %v7030
    %v7659 = vunpack.c.l.b16 %v7031
    %v7660 = vunpack.c.h.b16 %v7031
    %v7661 = vunpack.c.l.b16 %v7032
    %v7662 = vunpack.c.h.b16 %v7032
    %v7663 = vunpack.c.l.b16 %v7033
    %v7664 = vunpack.c.h.b16 %v7033
    %v7665 = vunpack.c.l.b16 %v7034
    %v7666 = vunpack.c.h.b16 %v7034
    %v7667 = vunpack.c.l.b16 %v7035
    %v7668 = vunpack.c.h.b16 %v7035
    %v7669 = vunpack.c.l.b16 %v7036
    %v7670 = vunpack.c.h.b16 %v7036
    %v7671 = vunpack.c.l.b16 %v7037
    %v7672 = vunpack.c.h.b16 %v7037
    %v7673 = vunpack.c.l.b16 %v7038
    %v7674 = vunpack.c.h.b16 %v7038
    %v7675 = vunpack.c.l.b16 %v7039
    %v7676 = vunpack.c.h.b16 %v7039
    %v7677 = vunpack.c.l.b16 %v7040
    %v7678 = vunpack.c.h.b16 %v7040
    %v7679 = vunpack.c.l.b16 %v7041
    %v7680 = vunpack.c.h.b16 %v7041
    %v7681 = vunpack.c.l.b16 %v7042
    %v7682 = vunpack.c.h.b16 %v7042
    %v7683 = vunpack.c.l.b16 %v7043
    %v7684 = vunpack.c.h.b16 %v7043
    %v7685 = vunpack.c.l.b16 %v7044
    %v7686 = vunpack.c.h.b16 %v7044
    %v7687 = vunpack.c.l.b16 %v7045
    %v7688 = vunpack.c.h.b16 %v7045
    %v7689 = vunpack.c.l.b16 %v7046
    %v7690 = vunpack.c.h.b16 %v7046
    %v7691 = vunpack.c.l.b16 %v7047
    %v7692 = vunpack.c.h.b16 %v7047
    %v7693 = vunpack.c.l.b16 %v7048
    %v7694 = vunpack.c.h.b16 %v7048
    %v7695 = vunpack.c.l.b16 %v7049
    %v7696 = vunpack.c.h.b16 %v7049
    %v7697 = vunpack.c.l.b16 %v7050
    %v7698 = vunpack.c.h.b16 %v7050
    %v7699 = vunpack.c.l.b16 %v7051
    %v7700 = vunpack.c.h.b16 %v7051
    %v7701 = vunpack.c.l.b16 %v7052
    %v7702 = vunpack.c.h.b16 %v7052
    %v7703 = vunpack.c.l.b16 %v7053
    %v7704 = vunpack.c.h.b16 %v7053
    %v7705 = vunpack.c.l.b16 %v7054
    %v7706 = vunpack.c.h.b16 %v7054
    %v7707 = vunpack.c.l.b16 %v7055
    %v7708 = vunpack.c.h.b16 %v7055
    %v7709 = vunpack.c.l.b16 %v7056
    %v7710 = vunpack.c.h.b16 %v7056
    %v7711 = vunpack.c.l.b16 %v7057
    %v7712 = vunpack.c.h.b16 %v7057
    %v7713 = vunpack.c.l.b16 %v7058
    %v7714 = vunpack.c.h.b16 %v7058
    %v7715 = vunpack.c.l.b16 %v7059
    %v7716 = vunpack.c.h.b16 %v7059
    %v7717 = vunpack.c.l.b16 %v7060
    %v7718 = vunpack.c.h.b16 %v7060
    %v7719 = vunpack.c.l.b16 %v7061
    %v7720 = vunpack.c.h.b16 %v7061
    %v7721 = vunpack.c.l.b16 %v7062
    %v7722 = vunpack.c.h.b16 %v7062
    %v7723 = vunpack.c.l.b16 %v7063
    %v7724 = vunpack.c.h.b16 %v7063
    %v7725 = vunpack.c.l.b16 %v7064
    %v7726 = vunpack.c.h.b16 %v7064
    %v7727 = vunpack.c.l.b16 %v7065
    %v7728 = vunpack.c.h.b16 %v7065
    %v7729 = vunpack.c.l.b16 %v7066
    %v7730 = vunpack.c.h.b16 %v7066
    %v7731 = vunpack.c.l.b16 %v7067
    %v7732 = vunpack.c.h.b16 %v7067
    %v7733 = vunpack.c.l.b16 %v7068
    %v7734 = vunpack.c.h.b16 %v7068
    %v7735 = vunpack.c.l.b16 %v7069
    %v7736 = vunpack.c.h.b16 %v7069
    %v7737 = vunpack.c.l.b16 %v7070
    %v7738 = vunpack.c.h.b16 %v7070
    %v7739 = vunpack.c.l.b16 %v7071
    %v7740 = vunpack.c.h.b16 %v7071
    %v7741 = vunpack.c.l.b16 %v7072
    %v7742 = vunpack.c.h.b16 %v7072
    %v7743 = vunpack.c.l.b16 %v7073
    %v7744 = vunpack.c.h.b16 %v7073
    %v7745 = vunpack.c.l.b16 %v7074
    %v7746 = vunpack.c.h.b16 %v7074
    %v7747 = vunpack.c.l.b16 %v7075
    %v7748 = vunpack.c.h.b16 %v7075
    %v7749 = vunpack.c.l.b16 %v7076
    %v7750 = vunpack.c.h.b16 %v7076
    %v7751 = vunpack.c.l.b16 %v7077
    %v7752 = vunpack.c.h.b16 %v7077
    %v7753 = vunpack.c.l.b16 %v7078
    %v7754 = vunpack.c.h.b16 %v7078
    %v7755 = vunpack.c.l.b16 %v7079
    %v7756 = vunpack.c.h.b16 %v7079
    %v7757 = vunpack.c.l.b16 %v7080
    %v7758 = vunpack.c.h.b16 %v7080
    %v7759 = vunpack.c.l.b16 %v7081
    %v7760 = vunpack.c.h.b16 %v7081
    %v7761 = vunpack.c.l.b16 %v7082
    %v7762 = vunpack.c.h.b16 %v7082
    %v7763 = vunpack.c.l.b16 %v7083
    %v7764 = vunpack.c.h.b16 %v7083
    %v7765 = vunpack.c.l.b16 %v7084
    %v7766 = vunpack.c.h.b16 %v7084
    %v7767 = vunpack.c.l.b16 %v7085
    %v7768 = vunpack.c.h.b16 %v7085
    %v7769 = vunpack.c.l.b16 %v7086
    %v7770 = vunpack.c.h.b16 %v7086
    %v7771 = vunpack.c.l.b16 %v7087
    %v7772 = vunpack.c.h.b16 %v7087
    %v7773 = vunpack.c.l.b16 %v7088
    %v7774 = vunpack.c.h.b16 %v7088
    %v7775 = vunpack.c.l.b16 %v7089
    %v7776 = vunpack.c.h.b16 %v7089
    %v7777 = vunpack.c.l.b16 %v7090
    %v7778 = vunpack.c.h.b16 %v7090
    %v7779 = vunpack.c.l.b16 %v7091
    %v7780 = vunpack.c.h.b16 %v7091
    %v7781 = vunpack.c.l.b16 %v7092
    %v7782 = vunpack.c.h.b16 %v7092
    %v7783 = vunpack.c.l.b16 %v7093
    %v7784 = vunpack.c.h.b16 %v7093
    %v7785 = vunpack.c.l.b16 %v7094
    %v7786 = vunpack.c.h.b16 %v7094
    %v7787 = vunpack.c.l.b16 %v7095
    %v7788 = vunpack.c.h.b16 %v7095
    %v7789 = vunpack.c.l.b16 %v7096
    %v7790 = vunpack.c.h.b16 %v7096
    %v7791 = vunpack.c.l.b16 %v7097
    %v7792 = vunpack.c.h.b16 %v7097
    %v7793 = vunpack.c.l.b16 %v7098
    %v7794 = vunpack.c.h.b16 %v7098
    %v7795 = vunpack.c.l.b16 %v7099
    %v7796 = vunpack.c.h.b16 %v7099
    %v7797 = vunpack.c.l.b16 %v7100
    %v7798 = vunpack.c.h.b16 %v7100
    %v7799 = vunpack.c.l.b16 %v7101
    %v7800 = vunpack.c.h.b16 %v7101
    %v7801 = vunpack.c.l.b16 %v7102
    %v7802 = vunpack.c.h.b16 %v7102
    %v7803 = vunpack.c.l.b16 %v7103
    %v7804 = vunpack.c.h.b16 %v7103
    %v7805 = vunpack.c.l.b16 %v7104
    %v7806 = vunpack.c.h.b16 %v7104
    %v7807 = vunpack.c.l.b16 %v7105
    %v7808 = vunpack.c.h.b16 %v7105
    %v7809 = vunpack.c.l.b16 %v7106
    %v7810 = vunpack.c.h.b16 %v7106
    %v7811 = vunpack.c.l.b16 %v7107
    %v7812 = vunpack.c.h.b16 %v7107
    %v7813 = vunpack.c.l.b16 %v7108
    %v7814 = vunpack.c.h.b16 %v7108
    %v7815 = vunpack.c.l.b16 %v7109
    %v7816 = vunpack.c.h.b16 %v7109
    %v7817 = vunpack.c.l.b16 %v7110
    %v7818 = vunpack.c.h.b16 %v7110
    %v7819 = vunpack.c.l.b16 %v7111
    %v7820 = vunpack.c.h.b16 %v7111
    %v7821 = vunpack.c.l.b16 %v7112
    %v7822 = vunpack.c.h.b16 %v7112
    %v7823 = vunpack.c.l.b16 %v7113
    %v7824 = vunpack.c.h.b16 %v7113
    %v7825 = vunpack.c.l.b16 %v7114
    %v7826 = vunpack.c.h.b16 %v7114
    %v7827 = vunpack.c.l.b16 %v7115
    %v7828 = vunpack.c.h.b16 %v7115
    %v7829 = vunpack.c.l.b16 %v7116
    %v7830 = vunpack.c.h.b16 %v7116
    %v7831 = vunpack.c.l.b16 %v7117
    %v7832 = vunpack.c.h.b16 %v7117
    %v7833 = vunpack.c.l.b16 %v7118
    %v7834 = vunpack.c.h.b16 %v7118
    %v7835 = vunpack.c.l.b16 %v7119
    %v7836 = vunpack.c.h.b16 %v7119
    %v7837 = vunpack.c.l.b16 %v7120
    %v7838 = vunpack.c.h.b16 %v7120
    %v7839 = vunpack.c.l.b16 %v7121
    %v7840 = vunpack.c.h.b16 %v7121
    %v7841 = vunpack.c.l.b16 %v7122
    %v7842 = vunpack.c.h.b16 %v7122
    %v7843 = vunpack.c.l.b16 %v7123
    %v7844 = vunpack.c.h.b16 %v7123
    %v7845 = vunpack.c.l.b16 %v7124
    %v7846 = vunpack.c.h.b16 %v7124
    %v7847 = vunpack.c.l.b16 %v7125
    %v7848 = vunpack.c.h.b16 %v7125
    %v7849 = vunpack.c.l.b16 %v7126
    %v7850 = vunpack.c.h.b16 %v7126
    %v7851 = vunpack.c.l.b16 %v7127
    %v7852 = vunpack.c.h.b16 %v7127
    %v7853 = vunpack.c.l.b16 %v7128
    %v7854 = vunpack.c.h.b16 %v7128
    %v7855 = vunpack.c.l.b16 %v7129
    %v7856 = vunpack.c.h.b16 %v7129
    %v7857 = vunpack.c.l.b16 %v7130
    %v7858 = vunpack.c.h.b16 %v7130
    %v7859 = vunpack.c.l.b16 %v7131
    %v7860 = vunpack.c.h.b16 %v7131
    %v7861 = vunpack.c.l.b16 %v7132
    %v7862 = vunpack.c.h.b16 %v7132
    %v7863 = vunpack.c.l.b16 %v7133
    %v7864 = vunpack.c.h.b16 %v7133
    %v7865 = vunpack.c.l.b16 %v7134
    %v7866 = vunpack.c.h.b16 %v7134
    %v7867 = vunpack.c.l.b16 %v7135
    %v7868 = vunpack.c.h.b16 %v7135
    %v7869 = vunpack.c.l.b16 %v7136
    %v7870 = vunpack.c.h.b16 %v7136
    %v7871 = vunpack.c.l.b16 %v7137
    %v7872 = vunpack.c.h.b16 %v7137
    %v7873 = vunpack.c.l.b16 %v7138
    %v7874 = vunpack.c.h.b16 %v7138
    %v7875 = vunpack.c.l.b16 %v7139
    %v7876 = vunpack.c.h.b16 %v7139
    %v7877 = vunpack.c.l.b16 %v7140
    %v7878 = vunpack.c.h.b16 %v7140
    %v7879 = vunpack.c.l.b16 %v7141
    %v7880 = vunpack.c.h.b16 %v7141
    %v7881 = vunpack.c.l.b16 %v7142
    %v7882 = vunpack.c.h.b16 %v7142
    %v7883 = vunpack.c.l.b16 %v7143
    %v7884 = vunpack.c.h.b16 %v7143
    %v7885 = vunpack.c.l.b16 %v7144
    %v7886 = vunpack.c.h.b16 %v7144
    %v7887 = vunpack.c.l.b16 %v7145
    %v7888 = vunpack.c.h.b16 %v7145
    %v7889 = vunpack.c.l.b16 %v7146
    %v7890 = vunpack.c.h.b16 %v7146
    %v7891 = vunpack.c.l.b16 %v7147
    %v7892 = vunpack.c.h.b16 %v7147
    %v7893 = vunpack.c.l.b16 %v7148
    %v7894 = vunpack.c.h.b16 %v7148
    %v7895 = vunpack.c.l.b16 %v7149
    %v7896 = vunpack.c.h.b16 %v7149
    %v7897 = vunpack.c.l.b16 %v7150
    %v7898 = vunpack.c.h.b16 %v7150
    %v7899 = vunpack.c.l.b16 %v7151
    %v7900 = vunpack.c.h.b16 %v7151
    %v7901 = vunpack.c.l.b16 %v7152
    %v7902 = vunpack.c.h.b16 %v7152
    %v7903 = vunpack.c.l.b16 %v7153
    %v7904 = vunpack.c.h.b16 %v7153
    %v7905 = vunpack.c.l.b16 %v7154
    %v7906 = vunpack.c.h.b16 %v7154
    %v7907 = vunpack.c.l.b16 %v7155
    %v7908 = vunpack.c.h.b16 %v7155
    %v7909 = vunpack.c.l.b16 %v7156
    %v7910 = vunpack.c.h.b16 %v7156
    %v7911 = vunpack.c.l.b16 %v7157
    %v7912 = vunpack.c.h.b16 %v7157
    %v7913 = vunpack.c.l.b16 %v7158
    %v7914 = vunpack.c.h.b16 %v7158
    %v7915 = vunpack.c.l.b16 %v7159
    %v7916 = vunpack.c.h.b16 %v7159
    %v7917 = vunpack.c.l.b16 %v7160
    %v7918 = vunpack.c.h.b16 %v7160
    %v7919 = vunpack.c.l.b16 %v7161
    %v7920 = vunpack.c.h.b16 %v7161
    %v7921 = vunpack.c.l.b16 %v7162
    %v7922 = vunpack.c.h.b16 %v7162
    %v7923 = vunpack.c.l.b16 %v7163
    %v7924 = vunpack.c.h.b16 %v7163
    %v7925 = vunpack.c.l.b16 %v7164
    %v7926 = vunpack.c.h.b16 %v7164
    %v7927 = vunpack.c.l.b16 %v7165
    %v7928 = vunpack.c.h.b16 %v7165
    %v7929 = vunpack.c.l.b16 %v7166
    %v7930 = vunpack.c.h.b16 %v7166
    %v7931 = vunpack.c.l.b16 %v7167
    %v7932 = vunpack.c.h.b16 %v7167
    %v7933 = vunpack.c.l.b16 %v7168
    %v7934 = vunpack.c.h.b16 %v7168
    %v7935 = vunpack.c.l.b16 %v7169
    %v7936 = vunpack.c.h.b16 %v7169
    %v7937 = vunpack.c.l.b16 %v7170
    %v7938 = vunpack.c.h.b16 %v7170
    %v7939 = vunpack.c.l.b16 %v7171
    %v7940 = vunpack.c.h.b16 %v7171
    %v7941 = vunpack.c.l.b16 %v7172
    %v7942 = vunpack.c.h.b16 %v7172
    %v7943 = vunpack.c.l.b16 %v7173
    %v7944 = vunpack.c.h.b16 %v7173
    %v7945 = vunpack.c.l.b16 %v7174
    %v7946 = vunpack.c.h.b16 %v7174
    %v7947 = vunpack.c.l.b16 %v7175
    %v7948 = vunpack.c.h.b16 %v7175
    %v7949 = vunpack.c.l.b16 %v7176
    %v7950 = vunpack.c.h.b16 %v7176
    %v7951 = vunpack.c.l.b16 %v7177
    %v7952 = vunpack.c.h.b16 %v7177
    %v7953 = vunpack.c.l.b16 %v7178
    %v7954 = vunpack.c.h.b16 %v7178
    %v7955 = vunpack.c.l.b16 %v7179
    %v7956 = vunpack.c.h.b16 %v7179
    %v7957 = vunpack.c.l.b16 %v7180
    %v7958 = vunpack.c.h.b16 %v7180
    %v7959 = vunpack.c.l.b16 %v7181
    %v7960 = vunpack.c.h.b16 %v7181
    %v7961 = vunpack.c.l.b16 %v7182
    %v7962 = vunpack.c.h.b16 %v7182
    %v7963 = vunpack.c.l.b16 %v7183
    %v7964 = vunpack.c.h.b16 %v7183
    %v7965 = vunpack.c.l.b16 %v7184
    %v7966 = vunpack.c.h.b16 %v7184
    %v7967 = vunpack.c.l.b16 %v7185
    %v7968 = vunpack.c.h.b16 %v7185
    %v7969 = vunpack.c.l.b16 %v7186
    %v7970 = vunpack.c.h.b16 %v7186
    %v7971 = vunpack.c.l.b16 %v7187
    %v7972 = vunpack.c.h.b16 %v7187
    %v7973 = vunpack.c.l.b16 %v7188
    %v7974 = vunpack.c.h.b16 %v7188
    %v7975 = vunpack.c.l.b16 %v7189
    %v7976 = vunpack.c.h.b16 %v7189
    %v7977 = vunpack.c.l.b16 %v7190
    %v7978 = vunpack.c.h.b16 %v7190
    %v7979 = vunpack.c.l.b16 %v7191
    %v7980 = vunpack.c.h.b16 %v7191
    %v7981 = vunpack.c.l.b16 %v7192
    %v7982 = vunpack.c.h.b16 %v7192
    %v7983 = vunpack.c.l.b16 %v7193
    %v7984 = vunpack.c.h.b16 %v7193
    %v7985 = vunpack.c.l.b16 %v7194
    %v7986 = vunpack.c.h.b16 %v7194
    %v7987 = vunpack.c.l.b16 %v7195
    %v7988 = vunpack.c.h.b16 %v7195
    %v7989 = vunpack.c.l.b16 %v7196
    %v7990 = vunpack.c.h.b16 %v7196
    %v7991 = vunpack.c.l.b16 %v7197
    %v7992 = vunpack.c.h.b16 %v7197
    %v7993 = vunpack.c.l.b16 %v7198
    %v7994 = vunpack.c.h.b16 %v7198
    %v7995 = vunpack.c.l.b16 %v7199
    %v7996 = vunpack.c.h.b16 %v7199
    %v7997 = vunpack.c.l.b16 %v7200
    %v7998 = vunpack.c.h.b16 %v7200
    %v7999 = vunpack.c.l.b16 %v7201
    %v8000 = vunpack.c.h.b16 %v7201
    %v8001 = vunpack.c.l.b16 %v7202
    %v8002 = vunpack.c.h.b16 %v7202
    %v8003 = vunpack.c.l.b16 %v7203
    %v8004 = vunpack.c.h.b16 %v7203
    %v8005 = vunpack.c.l.b16 %v7204
    %v8006 = vunpack.c.h.b16 %v7204
    %v8007 = vunpack.c.l.b16 %v7205
    %v8008 = vunpack.c.h.b16 %v7205
    %v8009 = vpack.c.b16 %v7501, %v7497
    %v8010 = vpack.c.b16 %v7502, %v7498
    %v8011 = vpack.c.b16 %v7503, %v7499
    %v8012 = vpack.c.b16 %v7504, %v7500
    %v8013 = vpack.c.b16 %v7509, %v7505
    %v8014 = vpack.c.b16 %v7510, %v7506
    %v8015 = vpack.c.b16 %v7511, %v7507
    %v8016 = vpack.c.b16 %v7512, %v7508
    %v8017 = vpack.c.b16 %v7517, %v7513
    %v8018 = vpack.c.b16 %v7518, %v7514
    %v8019 = vpack.c.b16 %v7519, %v7515
    %v8020 = vpack.c.b16 %v7520, %v7516
    %v8021 = vpack.c.b16 %v7525, %v7521
    %v8022 = vpack.c.b16 %v7526, %v7522
    %v8023 = vpack.c.b16 %v7527, %v7523
    %v8024 = vpack.c.b16 %v7528, %v7524
    %v8025 = vpack.c.b16 %v7533, %v7529
    %v8026 = vpack.c.b16 %v7534, %v7530
    %v8027 = vpack.c.b16 %v7535, %v7531
    %v8028 = vpack.c.b16 %v7536, %v7532
    %v8029 = vpack.c.b16 %v7541, %v7537
    %v8030 = vpack.c.b16 %v7542, %v7538
    %v8031 = vpack.c.b16 %v7543, %v7539
    %v8032 = vpack.c.b16 %v7544, %v7540
    %v8033 = vpack.c.b16 %v7549, %v7545
    %v8034 = vpack.c.b16 %v7550, %v7546
    %v8035 = vpack.c.b16 %v7551, %v7547
    %v8036 = vpack.c.b16 %v7552, %v7548
    %v8037 = vpack.c.b16 %v7557, %v7553
    %v8038 = vpack.c.b16 %v7558, %v7554
    %v8039 = vpack.c.b16 %v7559, %v7555
    %v8040 = vpack.c.b16 %v7560, %v7556
    %v8041 = vpack.c.b16 %v7565, %v7561
    %v8042 = vpack.c.b16 %v7566, %v7562
    %v8043 = vpack.c.b16 %v7567, %v7563
    %v8044 = vpack.c.b16 %v7568, %v7564
    %v8045 = vpack.c.b16 %v7573, %v7569
    %v8046 = vpack.c.b16 %v7574, %v7570
    %v8047 = vpack.c.b16 %v7575, %v7571
    %v8048 = vpack.c.b16 %v7576, %v7572
    %v8049 = vpack.c.b16 %v7581, %v7577
    %v8050 = vpack.c.b16 %v7582, %v7578
    %v8051 = vpack.c.b16 %v7583, %v7579
    %v8052 = vpack.c.b16 %v7584, %v7580
    %v8053 = vpack.c.b16 %v7589, %v7585
    %v8054 = vpack.c.b16 %v7590, %v7586
    %v8055 = vpack.c.b16 %v7591, %v7587
    %v8056 = vpack.c.b16 %v7592, %v7588
    %v8057 = vpack.c.b16 %v7597, %v7593
    %v8058 = vpack.c.b16 %v7598, %v7594
    %v8059 = vpack.c.b16 %v7599, %v7595
    %v8060 = vpack.c.b16 %v7600, %v7596
    %v8061 = vpack.c.b16 %v7605, %v7601
    %v8062 = vpack.c.b16 %v7606, %v7602
    %v8063 = vpack.c.b16 %v7607, %v7603
    %v8064 = vpack.c.b16 %v7608, %v7604
    %v8065 = vpack.c.b16 %v7613, %v7609
    %v8066 = vpack.c.b16 %v7614, %v7610
    %v8067 = vpack.c.b16 %v7615, %v7611
    %v8068 = vpack.c.b16 %v7616, %v7612
    %v8069 = vpack.c.b16 %v7621, %v7617
    %v8070 = vpack.c.b16 %v7622, %v7618
    %v8071 = vpack.c.b16 %v7623, %v7619
    %v8072 = vpack.c.b16 %v7624, %v7620
    %v8073 = vpack.c.b16 %v7629, %v7625
    %v8074 = vpack.c.b16 %v7630, %v7626
    %v8075 = vpack.c.b16 %v7631, %v7627
    %v8076 = vpack.c.b16 %v7632, %v7628
    %v8077 = vpack.c.b16 %v7637, %v7633
    %v8078 = vpack.c.b16 %v7638, %v7634
    %v8079 = vpack.c.b16 %v7639, %v7635
    %v8080 = vpack.c.b16 %v7640, %v7636
    %v8081 = vpack.c.b16 %v7645, %v7641
    %v8082 = vpack.c.b16 %v7646, %v7642
    %v8083 = vpack.c.b16 %v7647, %v7643
    %v8084 = vpack.c.b16 %v7648, %v7644
    %v8085 = vpack.c.b16 %v7653, %v7649
    %v8086 = vpack.c.b16 %v7654, %v7650
    %v8087 = vpack.c.b16 %v7655, %v7651
    %v8088 = vpack.c.b16 %v7656, %v7652
    %v8089 = vpack.c.b16 %v7661, %v7657
    %v8090 = vpack.c.b16 %v7662, %v7658
    %v8091 = vpack.c.b16 %v7663, %v7659
    %v8092 = vpack.c.b16 %v7664, %v7660
    %v8093 = vpack.c.b16 %v7669, %v7665
    %v8094 = vpack.c.b16 %v7670, %v7666
    %v8095 = vpack.c.b16 %v7671, %v7667
    %v8096 = vpack.c.b16 %v7672, %v7668
    %v8097 = vpack.c.b16 %v7677, %v7673
    %v8098 = vpack.c.b16 %v7678, %v7674
    %v8099 = vpack.c.b16 %v7679, %v7675
    %v8100 = vpack.c.b16 %v7680, %v7676
    %v8101 = vpack.c.b16 %v7685, %v7681
    %v8102 = vpack.c.b16 %v7686, %v7682
    %v8103 = vpack.c.b16 %v7687, %v7683
    %v8104 = vpack.c.b16 %v7688, %v7684
    %v8105 = vpack.c.b16 %v7693, %v7689
    %v8106 = vpack.c.b16 %v7694, %v7690
    %v8107 = vpack.c.b16 %v7695, %v7691
    %v8108 = vpack.c.b16 %v7696, %v7692
    %v8109 = vpack.c.b16 %v7701, %v7697
    %v8110 = vpack.c.b16 %v7702, %v7698
    %v8111 = vpack.c.b16 %v7703, %v7699
    %v8112 = vpack.c.b16 %v7704, %v7700
    %v8113 = vpack.c.b16 %v7709, %v7705
    %v8114 = vpack.c.b16 %v7710, %v7706
    %v8115 = vpack.c.b16 %v7711, %v7707
    %v8116 = vpack.c.b16 %v7712, %v7708
    %v8117 = vpack.c.b16 %v7717, %v7713
    %v8118 = vpack.c.b16 %v7718, %v7714
    %v8119 = vpack.c.b16 %v7719, %v7715
    %v8120 = vpack.c.b16 %v7720, %v7716
    %v8121 = vpack.c.b16 %v7725, %v7721
    %v8122 = vpack.c.b16 %v7726, %v7722
    %v8123 = vpack.c.b16 %v7727, %v7723
    %v8124 = vpack.c.b16 %v7728, %v7724
    %v8125 = vpack.c.b16 %v7733, %v7729
    %v8126 = vpack.c.b16 %v7734, %v7730
    %v8127 = vpack.c.b16 %v7735, %v7731
    %v8128 = vpack.c.b16 %v7736, %v7732
    %v8129 = vpack.c.b16 %v7741, %v7737
    %v8130 = vpack.c.b16 %v7742, %v7738
    %v8131 = vpack.c.b16 %v7743, %v7739
    %v8132 = vpack.c.b16 %v7744, %v7740
    %v8133 = vpack.c.b16 %v7749, %v7745
    %v8134 = vpack.c.b16 %v7750, %v7746
    %v8135 = vpack.c.b16 %v7751, %v7747
    %v8136 = vpack.c.b16 %v7752, %v7748
    %v8137 = vpack.c.b16 %v7757, %v7753
    %v8138 = vpack.c.b16 %v7758, %v7754
    %v8139 = vpack.c.b16 %v7759, %v7755
    %v8140 = vpack.c.b16 %v7760, %v7756
    %v8141 = vpack.c.b16 %v7765, %v7761
    %v8142 = vpack.c.b16 %v7766, %v7762
    %v8143 = vpack.c.b16 %v7767, %v7763
    %v8144 = vpack.c.b16 %v7768, %v7764
    %v8145 = vpack.c.b16 %v7773, %v7769
    %v8146 = vpack.c.b16 %v7774, %v7770
    %v8147 = vpack.c.b16 %v7775, %v7771
    %v8148 = vpack.c.b16 %v7776, %v7772
    %v8149 = vpack.c.b16 %v7781, %v7777
    %v8150 = vpack.c.b16 %v7782, %v7778
    %v8151 = vpack.c.b16 %v7783, %v7779
    %v8152 = vpack.c.b16 %v7784, %v7780
    %v8153 = vpack.c.b16 %v7789, %v7785
    %v8154 = vpack.c.b16 %v7790, %v7786
    %v8155 = vpack.c.b16 %v7791, %v7787
    %v8156 = vpack.c.b16 %v7792, %v7788
    %v8157 = vpack.c.b16 %v7797, %v7793
    %v8158 = vpack.c.b16 %v7798, %v7794
    %v8159 = vpack.c.b16 %v7799, %v7795
    %v8160 = vpack.c.b16 %v7800, %v7796
    %v8161 = vpack.c.b16 %v7805, %v7801
    %v8162 = vpack.c.b16 %v7806, %v7802
    %v8163 = vpack.c.b16 %v7807, %v7803
    %v8164 = vpack.c.b16 %v7808, %v7804
    %v8165 = vpack.c.b16 %v7813, %v7809
    %v8166 = vpack.c.b16 %v7814, %v7810
    %v8167 = vpack.c.b16 %v7815, %v7811
    %v8168 = vpack.c.b16 %v7816, %v7812
    %v8169 = vpack.c.b16 %v7821, %v7817
    %v8170 = vpack.c.b16 %v7822, %v7818
    %v8171 = vpack.c.b16 %v7823, %v7819
    %v8172 = vpack.c.b16 %v7824, %v7820
    %v8173 = vpack.c.b16 %v7829, %v7825
    %v8174 = vpack.c.b16 %v7830, %v7826
    %v8175 = vpack.c.b16 %v7831, %v7827
    %v8176 = vpack.c.b16 %v7832, %v7828
    %v8177 = vpack.c.b16 %v7837, %v7833
    %v8178 = vpack.c.b16 %v7838, %v7834
    %v8179 = vpack.c.b16 %v7839, %v7835
    %v8180 = vpack.c.b16 %v7840, %v7836
    %v8181 = vpack.c.b16 %v7845, %v7841
    %v8182 = vpack.c.b16 %v7846, %v7842
    %v8183 = vpack.c.b16 %v7847, %v7843
    %v8184 = vpack.c.b16 %v7848, %v7844
    %v8185 = vpack.c.b16 %v7853, %v7849
    %v8186 = vpack.c.b16 %v7854, %v7850
    %v8187 = vpack.c.b16 %v7855, %v7851
    %v8188 = vpack.c.b16 %v7856, %v7852
    %v8189 = vpack.c.b16 %v7861, %v7857
    %v8190 = vpack.c.b16 %v7862, %v7858
    %v8191 = vpack.c.b16 %v7863, %v7859
    %v8192 = vpack.c.b16 %v7864, %v7860
    %v8193 = vpack.c.b16 %v7869, %v7865
    %v8194 = vpack.c.b16 %v7870, %v7866
    %v8195 = vpack.c.b16 %v7871, %v7867
    %v8196 = vpack.c.b16 %v7872, %v7868
    %v8197 = vpack.c.b16 %v7877, %v7873
    %v8198 = vpack.c.b16 %v7878, %v7874
    %v8199 = vpack.c.b16 %v7879, %v7875
    %v8200 = vpack.c.b16 %v7880, %v7876
    %v8201 = vpack.c.b16 %v7885, %v7881
    %v8202 = vpack.c.b16 %v7886, %v7882
    %v8203 = vpack.c.b16 %v7887, %v7883
    %v8204 = vpack.c.b16 %v7888, %v7884
    %v8205 = vpack.c.b16 %v7893, %v7889
    %v8206 = vpack.c.b16 %v7894, %v7890
    %v8207 = vpack.c.b16 %v7895, %v7891
    %v8208 = vpack.c.b16 %v7896, %v7892
    %v8209 = vpack.c.b16 %v7901, %v7897
    %v8210 = vpack.c.b16 %v7902, %v7898
    %v8211 = vpack.c.b16 %v7903, %v7899
    %v8212 = vpack.c.b16 %v7904, %v7900
    %v8213 = vpack.c.b16 %v7909, %v7905
    %v8214 = vpack.c.b16 %v7910, %v7906
    %v8215 = vpack.c.b16 %v7911, %v7907
    %v8216 = vpack.c.b16 %v7912, %v7908
    %v8217 = vpack.c.b16 %v7917, %v7913
    %v8218 = vpack.c.b16 %v7918, %v7914
    %v8219 = vpack.c.b16 %v7919, %v7915
    %v8220 = vpack.c.b16 %v7920, %v7916
    %v8221 = vpack.c.b16 %v7925, %v7921
    %v8222 = vpack.c.b16 %v7926, %v7922
    %v8223 = vpack.c.b16 %v7927, %v7923
    %v8224 = vpack.c.b16 %v7928, %v7924
    %v8225 = vpack.c.b16 %v7933, %v7929
    %v8226 = vpack.c.b16 %v7934, %v7930
    %v8227 = vpack.c.b16 %v7935, %v7931
    %v8228 = vpack.c.b16 %v7936, %v7932
    %v8229 = vpack.c.b16 %v7941, %v7937
    %v8230 = vpack.c.b16 %v7942, %v7938
    %v8231 = vpack.c.b16 %v7943, %v7939
    %v8232 = vpack.c.b16 %v7944, %v7940
    %v8233 = vpack.c.b16 %v7949, %v7945
    %v8234 = vpack.c.b16 %v7950, %v7946
    %v8235 = vpack.c.b16 %v7951, %v7947
    %v8236 = vpack.c.b16 %v7952, %v7948
    %v8237 = vpack.c.b16 %v7957, %v7953
    %v8238 = vpack.c.b16 %v7958, %v7954
    %v8239 = vpack.c.b16 %v7959, %v7955
    %v8240 = vpack.c.b16 %v7960, %v7956
    %v8241 = vpack.c.b16 %v7965, %v7961
    %v8242 = vpack.c.b16 %v7966, %v7962
    %v8243 = vpack.c.b16 %v7967, %v7963
    %v8244 = vpack.c.b16 %v7968, %v7964
    %v8245 = vpack.c.b16 %v7973, %v7969
    %v8246 = vpack.c.b16 %v7974, %v7970
    %v8247 = vpack.c.b16 %v7975, %v7971
    %v8248 = vpack.c.b16 %v7976, %v7972
    %v8249 = vpack.c.b16 %v7981, %v7977
    %v8250 = vpack.c.b16 %v7982, %v7978
    %v8251 = vpack.c.b16 %v7983, %v7979
    %v8252 = vpack.c.b16 %v7984, %v7980
    %v8253 = vpack.c.b16 %v7989, %v7985
    %v8254 = vpack.c.b16 %v7990, %v7986
    %v8255 = vpack.c.b16 %v7991, %v7987
    %v8256 = vpack.c.b16 %v7992, %v7988
    %v8257 = vpack.c.b16 %v7997, %v7993
    %v8258 = vpack.c.b16 %v7998, %v7994
    %v8259 = vpack.c.b16 %v7999, %v7995
    %v8260 = vpack.c.b16 %v8000, %v7996
    %v8261 = vpack.c.b16 %v8005, %v8001
    %v8262 = vpack.c.b16 %v8006, %v8002
    %v8263 = vpack.c.b16 %v8007, %v8003
    %v8264 = vpack.c.b16 %v8008, %v8004
    %8521 = vmatprep.subr.bf16.mxu0 %v8038
    %8522 = vmatpush1.bf16.msra.mxu0 %v8037
    %8523 = vmatprep.subr.bf16.mxu0 %v8034
    %8524 = vmatpush1.bf16.msra.mxu0 %v8033
    %8525 = vmatprep.subr.bf16.mxu0 %v8030
    %8526 = vmatpush1.bf16.msra.mxu0 %v8029
    %8527 = vmatprep.subr.bf16.mxu0 %v8026
    %8528 = vmatpush1.bf16.msra.mxu0 %v8025
    %8529 = vmatprep.subr.bf16.mxu0 %v8022
    %8530 = vmatpush1.bf16.msra.mxu0 %v8021
    %8531 = vmatprep.subr.bf16.mxu0 %v8018
    %8532 = vmatpush1.bf16.msra.mxu0 %v8017
    %8533 = vmatprep.subr.bf16.mxu0 %v8014
    %8534 = vmatpush1.bf16.msra.mxu0 %v8013
    %8535 = vmatprep.subr.bf16.mxu0 %v8010
    %8536 = vmatpush1.bf16.msra.mxu0 %v8009
    %8537 = vmatprep.subr.bf16.mxu0 %v8070
    %8538 = vmatpush2.bf16.msra.mxu0 %v8069
    %8539 = vmatprep.subr.bf16.mxu0 %v8066
    %8540 = vmatpush2.bf16.msra.mxu0 %v8065
    %8541 = vmatprep.subr.bf16.mxu0 %v8062
    %8542 = vmatpush2.bf16.msra.mxu0 %v8061
    %8543 = vmatprep.subr.bf16.mxu0 %v8058
    %8544 = vmatpush2.bf16.msra.mxu0 %v8057
    %8545 = vmatprep.subr.bf16.mxu0 %v8054
    %8546 = vmatpush2.bf16.msra.mxu0 %v8053
    %8547 = vmatprep.subr.bf16.mxu0 %v8050
    %8548 = vmatpush2.bf16.msra.mxu0 %v8049
    %8549 = vmatprep.subr.bf16.mxu0 %v8046
    %8550 = vmatpush2.bf16.msra.mxu0 %v8045
    %8551 = vmatprep.subr.bf16.mxu0 %v8042
    %8552 = vmatpush2.bf16.msra.mxu0 %v8041
    %8553 = vmatprep.mubr.bf16.mxu0 %v7213
    %8554 = vmatmul.mubr.bf16.gmra.mxu0 %v7212
    %v8555 = vpop.f32.mrf.mxu0
    %v8556 = vadd.f32 %v7224, %v8555
    %v8557 = vpop.f32.mrf.mxu0
    %v8558 = vadd.f32 %v7228, %v8557
    %v8559 = vpop.f32.mrf.mxu0
    %v8560 = vpop.f32.mrf.mxu0
    %8561 = vdwg.mxu0
    %8562 = vmatprep.subr.bf16.mxu0 %v8102
    %8563 = vmatpush1.bf16.msra.mxu0 %v8101
    %8564 = vmatprep.subr.bf16.mxu0 %v8098
    %8565 = vmatpush1.bf16.msra.mxu0 %v8097
    %8566 = vmatprep.subr.bf16.mxu0 %v8094
    %8567 = vmatpush1.bf16.msra.mxu0 %v8093
    %8568 = vmatprep.subr.bf16.mxu0 %v8090
    %8569 = vmatpush1.bf16.msra.mxu0 %v8089
    %8570 = vmatprep.subr.bf16.mxu0 %v8086
    %8571 = vmatpush1.bf16.msra.mxu0 %v8085
    %8572 = vmatprep.subr.bf16.mxu0 %v8082
    %8573 = vmatpush1.bf16.msra.mxu0 %v8081
    %8574 = vmatprep.subr.bf16.mxu0 %v8078
    %8575 = vmatpush1.bf16.msra.mxu0 %v8077
    %8576 = vmatprep.subr.bf16.mxu0 %v8074
    %8577 = vmatpush1.bf16.msra.mxu0 %v8073
    %8578 = vmatprep.subr.bf16.mxu0 %v8134
    %8579 = vmatpush2.bf16.msra.mxu0 %v8133
    %8580 = vmatprep.subr.bf16.mxu0 %v8130
    %8581 = vmatpush2.bf16.msra.mxu0 %v8129
    %8582 = vmatprep.subr.bf16.mxu0 %v8126
    %8583 = vmatpush2.bf16.msra.mxu0 %v8125
    %8584 = vmatprep.subr.bf16.mxu0 %v8122
    %8585 = vmatpush2.bf16.msra.mxu0 %v8121
    %8586 = vmatprep.subr.bf16.mxu0 %v8118
    %8587 = vmatpush2.bf16.msra.mxu0 %v8117
    %8588 = vmatprep.subr.bf16.mxu0 %v8114
    %8589 = vmatpush2.bf16.msra.mxu0 %v8113
    %8590 = vmatprep.subr.bf16.mxu0 %v8110
    %8591 = vmatpush2.bf16.msra.mxu0 %v8109
    %8592 = vmatprep.subr.bf16.mxu0 %v8106
    %8593 = vmatpush2.bf16.msra.mxu0 %v8105
    %8594 = vmatprep.mubr.bf16.mxu0 %v7215
    %8595 = vmatmul.mubr.bf16.gmra.mxu0 %v7214
    %v8596 = vpop.f32.mrf.mxu0
    %v8597 = vadd.f32 %v8556, %v8596
    %v8598 = vpop.f32.mrf.mxu0
    %v8599 = vadd.f32 %v8558, %v8598
    %v8600 = vpop.f32.mrf.mxu0
    %v8601 = vpop.f32.mrf.mxu0
    %8602 = vdwg.mxu0
    %8603 = vmatprep.subr.bf16.mxu0 %v8166
    %8604 = vmatpush1.bf16.msra.mxu0 %v8165
    %8605 = vmatprep.subr.bf16.mxu0 %v8162
    %8606 = vmatpush1.bf16.msra.mxu0 %v8161
    %8607 = vmatprep.subr.bf16.mxu0 %v8158
    %8608 = vmatpush1.bf16.msra.mxu0 %v8157
    %8609 = vmatprep.subr.bf16.mxu0 %v8154
    %8610 = vmatpush1.bf16.msra.mxu0 %v8153
    %8611 = vmatprep.subr.bf16.mxu0 %v8150
    %8612 = vmatpush1.bf16.msra.mxu0 %v8149
    %8613 = vmatprep.subr.bf16.mxu0 %v8146
    %8614 = vmatpush1.bf16.msra.mxu0 %v8145
    %8615 = vmatprep.subr.bf16.mxu0 %v8142
    %8616 = vmatpush1.bf16.msra.mxu0 %v8141
    %8617 = vmatprep.subr.bf16.mxu0 %v8138
    %8618 = vmatpush1.bf16.msra.mxu0 %v8137
    %8619 = vmatprep.subr.bf16.mxu0 %v8198
    %8620 = vmatpush2.bf16.msra.mxu0 %v8197
    %8621 = vmatprep.subr.bf16.mxu0 %v8194
    %8622 = vmatpush2.bf16.msra.mxu0 %v8193
    %8623 = vmatprep.subr.bf16.mxu0 %v8190
    %8624 = vmatpush2.bf16.msra.mxu0 %v8189
    %8625 = vmatprep.subr.bf16.mxu0 %v8186
    %8626 = vmatpush2.bf16.msra.mxu0 %v8185
    %8627 = vmatprep.subr.bf16.mxu0 %v8182
    %8628 = vmatpush2.bf16.msra.mxu0 %v8181
    %8629 = vmatprep.subr.bf16.mxu0 %v8178
    %8630 = vmatpush2.bf16.msra.mxu0 %v8177
    %8631 = vmatprep.subr.bf16.mxu0 %v8174
    %8632 = vmatpush2.bf16.msra.mxu0 %v8173
    %8633 = vmatprep.subr.bf16.mxu0 %v8170
    %8634 = vmatpush2.bf16.msra.mxu0 %v8169
    %8635 = vmatprep.mubr.bf16.mxu0 %v7217
    %8636 = vmatmul.mubr.bf16.gmra.mxu0 %v7216
    %v8637 = vpop.f32.mrf.mxu0
    %v8638 = vadd.f32 %v8597, %v8637
    %v8639 = vpop.f32.mrf.mxu0
    %v8640 = vadd.f32 %v8599, %v8639
    %v8641 = vpop.f32.mrf.mxu0
    %v8642 = vpop.f32.mrf.mxu0
    %8643 = vdwg.mxu0
    %8644 = vmatprep.subr.bf16.mxu0 %v8230
    %8645 = vmatpush1.bf16.msra.mxu0 %v8229
    %8646 = vmatprep.subr.bf16.mxu0 %v8226
    %8647 = vmatpush1.bf16.msra.mxu0 %v8225
    %8648 = vmatprep.subr.bf16.mxu0 %v8222
    %8649 = vmatpush1.bf16.msra.mxu0 %v8221
    %8650 = vmatprep.subr.bf16.mxu0 %v8218
    %8651 = vmatpush1.bf16.msra.mxu0 %v8217
    %8652 = vmatprep.subr.bf16.mxu0 %v8214
    %8653 = vmatpush1.bf16.msra.mxu0 %v8213
    %8654 = vmatprep.subr.bf16.mxu0 %v8210
    %8655 = vmatpush1.bf16.msra.mxu0 %v8209
    %8656 = vmatprep.subr.bf16.mxu0 %v8206
    %8657 = vmatpush1.bf16.msra.mxu0 %v8205
    %8658 = vmatprep.subr.bf16.mxu0 %v8202
    %8659 = vmatpush1.bf16.msra.mxu0 %v8201
    %8660 = vmatprep.subr.bf16.mxu0 %v8262
    %8661 = vmatpush2.bf16.msra.mxu0 %v8261
    %8662 = vmatprep.subr.bf16.mxu0 %v8258
    %8663 = vmatpush2.bf16.msra.mxu0 %v8257
    %8664 = vmatprep.subr.bf16.mxu0 %v8254
    %8665 = vmatpush2.bf16.msra.mxu0 %v8253
    %8666 = vmatprep.subr.bf16.mxu0 %v8250
    %8667 = vmatpush2.bf16.msra.mxu0 %v8249
    %8668 = vmatprep.subr.bf16.mxu0 %v8246
    %8669 = vmatpush2.bf16.msra.mxu0 %v8245
    %8670 = vmatprep.subr.bf16.mxu0 %v8242
    %8671 = vmatpush2.bf16.msra.mxu0 %v8241
    %8672 = vmatprep.subr.bf16.mxu0 %v8238
    %8673 = vmatpush2.bf16.msra.mxu0 %v8237
    %8674 = vmatprep.subr.bf16.mxu0 %v8234
    %8675 = vmatpush2.bf16.msra.mxu0 %v8233
    %8676 = vmatprep.mubr.bf16.mxu0 %v7219
    %8677 = vmatmul.mubr.bf16.gmra.mxu0 %v7218
    %v8678 = vpop.f32.mrf.mxu0
    %v8679 = vadd.f32 %v8638, %v8678
    %v8680 = vpop.f32.mrf.mxu0
    %v8681 = vadd.f32 %v8640, %v8680
    %v8682 = vpop.f32.mrf.mxu0
    %v8683 = vpop.f32.mrf.mxu0
    %8684 = vdwg.mxu0
    %8685 = vmatprep.subr.bf16.mxu0 %v8040
    %8686 = vmatpush1.bf16.msra.mxu0 %v8039
    %8687 = vmatprep.subr.bf16.mxu0 %v8036
    %8688 = vmatpush1.bf16.msra.mxu0 %v8035
    %8689 = vmatprep.subr.bf16.mxu0 %v8032
    %8690 = vmatpush1.bf16.msra.mxu0 %v8031
    %8691 = vmatprep.subr.bf16.mxu0 %v8028
    %8692 = vmatpush1.bf16.msra.mxu0 %v8027
    %8693 = vmatprep.subr.bf16.mxu0 %v8024
    %8694 = vmatpush1.bf16.msra.mxu0 %v8023
    %8695 = vmatprep.subr.bf16.mxu0 %v8020
    %8696 = vmatpush1.bf16.msra.mxu0 %v8019
    %8697 = vmatprep.subr.bf16.mxu0 %v8016
    %8698 = vmatpush1.bf16.msra.mxu0 %v8015
    %8699 = vmatprep.subr.bf16.mxu0 %v8012
    %8700 = vmatpush1.bf16.msra.mxu0 %v8011
    %8701 = vmatprep.subr.bf16.mxu0 %v8072
    %8702 = vmatpush2.bf16.msra.mxu0 %v8071
    %8703 = vmatprep.subr.bf16.mxu0 %v8068
    %8704 = vmatpush2.bf16.msra.mxu0 %v8067
    %8705 = vmatprep.subr.bf16.mxu0 %v8064
    %8706 = vmatpush2.bf16.msra.mxu0 %v8063
    %8707 = vmatprep.subr.bf16.mxu0 %v8060
    %8708 = vmatpush2.bf16.msra.mxu0 %v8059
    %8709 = vmatprep.subr.bf16.mxu0 %v8056
    %8710 = vmatpush2.bf16.msra.mxu0 %v8055
    %8711 = vmatprep.subr.bf16.mxu0 %v8052
    %8712 = vmatpush2.bf16.msra.mxu0 %v8051
    %8713 = vmatprep.subr.bf16.mxu0 %v8048
    %8714 = vmatpush2.bf16.msra.mxu0 %v8047
    %8715 = vmatprep.subr.bf16.mxu0 %v8044
    %8716 = vmatpush2.bf16.msra.mxu0 %v8043
    %8717 = vmatprep.mubr.bf16.mxu0 %v7213
    %8718 = vmatmul.mubr.bf16.gmra.mxu0 %v7212
    %v8719 = vpop.f32.mrf.mxu0
    %v8720 = vadd.f32 %v7232, %v8719
    %v8721 = vpop.f32.mrf.mxu0
    %v8722 = vadd.f32 %v7236, %v8721
    %v8723 = vpop.f32.mrf.mxu0
    %v8724 = vpop.f32.mrf.mxu0
    %8725 = vdwg.mxu0
    %8726 = vmatprep.subr.bf16.mxu0 %v8104
    %8727 = vmatpush1.bf16.msra.mxu0 %v8103
    %8728 = vmatprep.subr.bf16.mxu0 %v8100
    %8729 = vmatpush1.bf16.msra.mxu0 %v8099
    %8730 = vmatprep.subr.bf16.mxu0 %v8096
    %8731 = vmatpush1.bf16.msra.mxu0 %v8095
    %8732 = vmatprep.subr.bf16.mxu0 %v8092
    %8733 = vmatpush1.bf16.msra.mxu0 %v8091
    %8734 = vmatprep.subr.bf16.mxu0 %v8088
    %8735 = vmatpush1.bf16.msra.mxu0 %v8087
    %8736 = vmatprep.subr.bf16.mxu0 %v8084
    %8737 = vmatpush1.bf16.msra.mxu0 %v8083
    %8738 = vmatprep.subr.bf16.mxu0 %v8080
    %8739 = vmatpush1.bf16.msra.mxu0 %v8079
    %8740 = vmatprep.subr.bf16.mxu0 %v8076
    %8741 = vmatpush1.bf16.msra.mxu0 %v8075
    %8742 = vmatprep.subr.bf16.mxu0 %v8136
    %8743 = vmatpush2.bf16.msra.mxu0 %v8135
    %8744 = vmatprep.subr.bf16.mxu0 %v8132
    %8745 = vmatpush2.bf16.msra.mxu0 %v8131
    %8746 = vmatprep.subr.bf16.mxu0 %v8128
    %8747 = vmatpush2.bf16.msra.mxu0 %v8127
    %8748 = vmatprep.subr.bf16.mxu0 %v8124
    %8749 = vmatpush2.bf16.msra.mxu0 %v8123
    %8750 = vmatprep.subr.bf16.mxu0 %v8120
    %8751 = vmatpush2.bf16.msra.mxu0 %v8119
    %8752 = vmatprep.subr.bf16.mxu0 %v8116
    %8753 = vmatpush2.bf16.msra.mxu0 %v8115
    %8754 = vmatprep.subr.bf16.mxu0 %v8112
    %8755 = vmatpush2.bf16.msra.mxu0 %v8111
    %8756 = vmatprep.subr.bf16.mxu0 %v8108
    %8757 = vmatpush2.bf16.msra.mxu0 %v8107
    %8758 = vmatprep.mubr.bf16.mxu0 %v7215
    %8759 = vmatmul.mubr.bf16.gmra.mxu0 %v7214
    %v8760 = vpop.f32.mrf.mxu0
    %v8761 = vadd.f32 %v8720, %v8760
    %v8762 = vpop.f32.mrf.mxu0
    %v8763 = vadd.f32 %v8722, %v8762
    %v8764 = vpop.f32.mrf.mxu0
    %v8765 = vpop.f32.mrf.mxu0
    %8766 = vdwg.mxu0
    %8767 = vmatprep.subr.bf16.mxu0 %v8168
    %8768 = vmatpush1.bf16.msra.mxu0 %v8167
    %8769 = vmatprep.subr.bf16.mxu0 %v8164
    %8770 = vmatpush1.bf16.msra.mxu0 %v8163
    %8771 = vmatprep.subr.bf16.mxu0 %v8160
    %8772 = vmatpush1.bf16.msra.mxu0 %v8159
    %8773 = vmatprep.subr.bf16.mxu0 %v8156
    %8774 = vmatpush1.bf16.msra.mxu0 %v8155
    %8775 = vmatprep.subr.bf16.mxu0 %v8152
    %8776 = vmatpush1.bf16.msra.mxu0 %v8151
    %8777 = vmatprep.subr.bf16.mxu0 %v8148
    %8778 = vmatpush1.bf16.msra.mxu0 %v8147
    %8779 = vmatprep.subr.bf16.mxu0 %v8144
    %8780 = vmatpush1.bf16.msra.mxu0 %v8143
    %8781 = vmatprep.subr.bf16.mxu0 %v8140
    %8782 = vmatpush1.bf16.msra.mxu0 %v8139
    %8783 = vmatprep.subr.bf16.mxu0 %v8200
    %8784 = vmatpush2.bf16.msra.mxu0 %v8199
    %8785 = vmatprep.subr.bf16.mxu0 %v8196
    %8786 = vmatpush2.bf16.msra.mxu0 %v8195
    %8787 = vmatprep.subr.bf16.mxu0 %v8192
    %8788 = vmatpush2.bf16.msra.mxu0 %v8191
    %8789 = vmatprep.subr.bf16.mxu0 %v8188
    %8790 = vmatpush2.bf16.msra.mxu0 %v8187
    %8791 = vmatprep.subr.bf16.mxu0 %v8184
    %8792 = vmatpush2.bf16.msra.mxu0 %v8183
    %8793 = vmatprep.subr.bf16.mxu0 %v8180
    %8794 = vmatpush2.bf16.msra.mxu0 %v8179
    %8795 = vmatprep.subr.bf16.mxu0 %v8176
    %8796 = vmatpush2.bf16.msra.mxu0 %v8175
    %8797 = vmatprep.subr.bf16.mxu0 %v8172
    %8798 = vmatpush2.bf16.msra.mxu0 %v8171
    %8799 = vmatprep.mubr.bf16.mxu0 %v7217
    %8800 = vmatmul.mubr.bf16.gmra.mxu0 %v7216
    %v8801 = vpop.f32.mrf.mxu0
    %v8802 = vadd.f32 %v8761, %v8801
    %v8803 = vpop.f32.mrf.mxu0
    %v8804 = vadd.f32 %v8763, %v8803
    %v8805 = vpop.f32.mrf.mxu0
    %v8806 = vpop.f32.mrf.mxu0
    %8807 = vdwg.mxu0
    %8808 = vmatprep.subr.bf16.mxu0 %v8232
    %8809 = vmatpush1.bf16.msra.mxu0 %v8231
    %8810 = vmatprep.subr.bf16.mxu0 %v8228
    %8811 = vmatpush1.bf16.msra.mxu0 %v8227
    %8812 = vmatprep.subr.bf16.mxu0 %v8224
    %8813 = vmatpush1.bf16.msra.mxu0 %v8223
    %8814 = vmatprep.subr.bf16.mxu0 %v8220
    %8815 = vmatpush1.bf16.msra.mxu0 %v8219
    %8816 = vmatprep.subr.bf16.mxu0 %v8216
    %8817 = vmatpush1.bf16.msra.mxu0 %v8215
    %8818 = vmatprep.subr.bf16.mxu0 %v8212
    %8819 = vmatpush1.bf16.msra.mxu0 %v8211
    %8820 = vmatprep.subr.bf16.mxu0 %v8208
    %8821 = vmatpush1.bf16.msra.mxu0 %v8207
    %8822 = vmatprep.subr.bf16.mxu0 %v8204
    %8823 = vmatpush1.bf16.msra.mxu0 %v8203
    %8824 = vmatprep.subr.bf16.mxu0 %v8264
    %8825 = vmatpush2.bf16.msra.mxu0 %v8263
    %8826 = vmatprep.subr.bf16.mxu0 %v8260
    %8827 = vmatpush2.bf16.msra.mxu0 %v8259
    %8828 = vmatprep.subr.bf16.mxu0 %v8256
    %8829 = vmatpush2.bf16.msra.mxu0 %v8255
    %8830 = vmatprep.subr.bf16.mxu0 %v8252
    %8831 = vmatpush2.bf16.msra.mxu0 %v8251
    %8832 = vmatprep.subr.bf16.mxu0 %v8248
    %8833 = vmatpush2.bf16.msra.mxu0 %v8247
    %8834 = vmatprep.subr.bf16.mxu0 %v8244
    %8835 = vmatpush2.bf16.msra.mxu0 %v8243
    %8836 = vmatprep.subr.bf16.mxu0 %v8240
    %8837 = vmatpush2.bf16.msra.mxu0 %v8239
    %8838 = vmatprep.subr.bf16.mxu0 %v8236
    %8839 = vmatpush2.bf16.msra.mxu0 %v8235
    %8840 = vmatprep.mubr.bf16.mxu0 %v7219
    %8841 = vmatmul.mubr.bf16.gmra.mxu0 %v7218
    %v8842 = vpop.f32.mrf.mxu0
    %v8843 = vadd.f32 %v8802, %v8842
    %v8844 = vpop.f32.mrf.mxu0
    %v8845 = vadd.f32 %v8804, %v8844
    %v8846 = vpop.f32.mrf.mxu0
    %v8847 = vpop.f32.mrf.mxu0
    %8848 = vdwg.mxu0
    %v8849 = vadd.f32 %v8679, %v8681
    %v8850 = vadd.f32 %v8849, %v8843
    %v8851 = vadd.f32 %v8850, %v8845
    %8852 = vadd.xlane.f32.xlu0 %v8851
    %v8853 = vpop.xlane.xlu0 %8852
    %v8854 = vmul.f32 %v8853, %v370
    %v8855 = vsub.f32 %v8679, %v8854
    %v8856 = vsub.f32 %v8681, %v8854
    %v8857 = vsub.f32 %v8843, %v8854
    %v8858 = vsub.f32 %v8845, %v8854
    %v8859 = vmul.f32 %v8855, %v8855
    %v8860 = vmul.f32 %v8856, %v8856
    %v8861 = vmul.f32 %v8857, %v8857
    %v8862 = vmul.f32 %v8858, %v8858
    %v8863 = vadd.f32 %v8859, %v8860
    %v8864 = vadd.f32 %v8863, %v8861
    %v8865 = vadd.f32 %v8864, %v8862
    %8866 = vadd.xlane.f32.xlu0 %v8865
    %v8867 = vpop.xlane.xlu0 %8866
    %v8868 = vmul.f32 %v8867, %v370
    %v8869 = vadd.f32 %v8868, 1e-05
    %v8870 = vrsqrt.pop %v8869
    %v8871 = vmul.f32 %v8855, %v8870
    %v8872 = vmul.f32 %v8856, %v8870
    %v8873 = vmul.f32 %v8857, %v8870
    %v8874 = vmul.f32 %v8858, %v8870
    %v8876 = vlaneseq
    %v8877 = vshrl.u32 %v8876, 7
    %v8878 = vsub.s32 0, %v8877
    %v8879 = vrot.slane %v7209, %v8878
    %v8880 = vlaneseq
    %v8881 = vshrl.u32 %v8880, 7
    %v8882 = vsub.s32 1, %v8881
    %v8883 = vrot.slane %v7209, %v8882
    %v8884 = vlaneseq
    %v8885 = vshrl.u32 %v8884, 7
    %v8886 = vsub.s32 2, %v8885
    %v8887 = vrot.slane %v7209, %v8886
    %v8888 = vlaneseq
    %v8889 = vshrl.u32 %v8888, 7
    %v8890 = vsub.s32 3, %v8889
    %v8891 = vrot.slane %v7209, %v8890
    %v8896 = vmul.f32 %v8871, %v8879
    %v8897 = vmul.f32 %v8872, %v8883
    %v8898 = vmul.f32 %v8873, %v8887
    %v8899 = vmul.f32 %v8874, %v8891
    %v8901 = vlaneseq
    %v8902 = vshrl.u32 %v8901, 7
    %v8903 = vsub.s32 0, %v8902
    %v8904 = vrot.slane %v7211, %v8903
    %v8905 = vlaneseq
    %v8906 = vshrl.u32 %v8905, 7
    %v8907 = vsub.s32 1, %v8906
    %v8908 = vrot.slane %v7211, %v8907
    %v8909 = vlaneseq
    %v8910 = vshrl.u32 %v8909, 7
    %v8911 = vsub.s32 2, %v8910
    %v8912 = vrot.slane %v7211, %v8911
    %v8913 = vlaneseq
    %v8914 = vshrl.u32 %v8913, 7
    %v8915 = vsub.s32 3, %v8914
    %v8916 = vrot.slane %v7211, %v8915
    %v8921 = vadd.f32 %v8896, %v8904
    %v8922 = vadd.f32 %v8897, %v8908
    %v8923 = vadd.f32 %v8898, %v8912
    %v8924 = vadd.f32 %v8899, %v8916
    %v8925 = vmul.f32 %v8921, 0.5
    %v8926 = vmul.f32 %v8922, 0.5
    %v8927 = vmul.f32 %v8923, 0.5
    %v8928 = vmul.f32 %v8924, 0.5
    %v8929 = vmul.f32 %v8921, 0.044715
    %v8930 = vmul.f32 %v8922, 0.044715
    %v8931 = vmul.f32 %v8923, 0.044715
    %v8932 = vmul.f32 %v8924, 0.044715
    %v8933 = vmul.f32 %v8929, %v8921
    %v8934 = vmul.f32 %v8930, %v8922
    %v8935 = vmul.f32 %v8931, %v8923
    %v8936 = vmul.f32 %v8932, %v8924
    %v8937 = vmul.f32 %v8933, %v8921
    %v8938 = vmul.f32 %v8934, %v8922
    %v8939 = vmul.f32 %v8935, %v8923
    %v8940 = vmul.f32 %v8936, %v8924
    %v8941 = vadd.f32 %v8921, %v8937
    %v8942 = vadd.f32 %v8922, %v8938
    %v8943 = vadd.f32 %v8923, %v8939
    %v8944 = vadd.f32 %v8924, %v8940
    %v8945 = vmul.f32 %v8941, 0.7978846
    %v8946 = vmul.f32 %v8942, 0.7978846
    %v8947 = vmul.f32 %v8943, 0.7978846
    %v8948 = vmul.f32 %v8944, 0.7978846
    %v8949 = vtanh.pop %v8945
    %v8950 = vtanh.pop %v8946
    %v8951 = vtanh.pop %v8947
    %v8952 = vtanh.pop %v8948
    %v8953 = vadd.f32 %v8949, 1.0
    %v8954 = vadd.f32 %v8950, 1.0
    %v8955 = vadd.f32 %v8951, 1.0
    %v8956 = vadd.f32 %v8952, 1.0
    %v8957 = vmul.f32 %v8925, %v8953
    %v8958 = vmul.f32 %v8926, %v8954
    %v8959 = vmul.f32 %v8927, %v8955
    %v8960 = vmul.f32 %v8928, %v8956
    %s8961 = smul.u32 4, 64
    %s8962 = smul.u32 %s8961, 2
    %s8963 = sshll.u32 %s8962, 4
    %8964 = dma.done %s191, %s8963
    %v8965 = vld [vmem:[#allocation4] sm:$0xff]
    %v8966 = vld [vmem:[#allocation4 + $0x8] sm:$0xff]
    %v8967 = vld [vmem:[#allocation4 + $0x10] sm:$0xff]
    %v8968 = vld [vmem:[#allocation4 + $0x18] sm:$0xff]
    %v8969 = vld [vmem:[#allocation4 + $0x20] sm:$0xff]
    %v8970 = vld [vmem:[#allocation4 + $0x28] sm:$0xff]
    %v8971 = vld [vmem:[#allocation4 + $0x30] sm:$0xff]
    %v8972 = vld [vmem:[#allocation4 + $0x38] sm:$0xff]
    %v8973 = vld [vmem:[#allocation4 + $0x40] sm:$0xff]
    %v8974 = vld [vmem:[#allocation4 + $0x48] sm:$0xff]
    %v8975 = vld [vmem:[#allocation4 + $0x50] sm:$0xff]
    %v8976 = vld [vmem:[#allocation4 + $0x58] sm:$0xff]
    %v8977 = vld [vmem:[#allocation4 + $0x60] sm:$0xff]
    %v8978 = vld [vmem:[#allocation4 + $0x68] sm:$0xff]
    %v8979 = vld [vmem:[#allocation4 + $0x70] sm:$0xff]
    %v8980 = vld [vmem:[#allocation4 + $0x78] sm:$0xff]
    %v8981 = vld [vmem:[#allocation4 + $0x80] sm:$0xff]
    %v8982 = vld [vmem:[#allocation4 + $0x88] sm:$0xff]
    %v8983 = vld [vmem:[#allocation4 + $0x90] sm:$0xff]
    %v8984 = vld [vmem:[#allocation4 + $0x98] sm:$0xff]
    %v8985 = vld [vmem:[#allocation4 + $0xa0] sm:$0xff]
    %v8986 = vld [vmem:[#allocation4 + $0xa8] sm:$0xff]
    %v8987 = vld [vmem:[#allocation4 + $0xb0] sm:$0xff]
    %v8988 = vld [vmem:[#allocation4 + $0xb8] sm:$0xff]
    %v8989 = vld [vmem:[#allocation4 + $0xc0] sm:$0xff]
    %v8990 = vld [vmem:[#allocation4 + $0xc8] sm:$0xff]
    %v8991 = vld [vmem:[#allocation4 + $0xd0] sm:$0xff]
    %v8992 = vld [vmem:[#allocation4 + $0xd8] sm:$0xff]
    %v8993 = vld [vmem:[#allocation4 + $0xe0] sm:$0xff]
    %v8994 = vld [vmem:[#allocation4 + $0xe8] sm:$0xff]
    %v8995 = vld [vmem:[#allocation4 + $0xf0] sm:$0xff]
    %v8996 = vld [vmem:[#allocation4 + $0xf8] sm:$0xff]
    %v8997 = vld [vmem:[#allocation4 + $0x100] sm:$0xff]
    %v8998 = vld [vmem:[#allocation4 + $0x108] sm:$0xff]
    %v8999 = vld [vmem:[#allocation4 + $0x110] sm:$0xff]
    %v9000 = vld [vmem:[#allocation4 + $0x118] sm:$0xff]
    %v9001 = vld [vmem:[#allocation4 + $0x120] sm:$0xff]
    %v9002 = vld [vmem:[#allocation4 + $0x128] sm:$0xff]
    %v9003 = vld [vmem:[#allocation4 + $0x130] sm:$0xff]
    %v9004 = vld [vmem:[#allocation4 + $0x138] sm:$0xff]
    %v9005 = vld [vmem:[#allocation4 + $0x140] sm:$0xff]
    %v9006 = vld [vmem:[#allocation4 + $0x148] sm:$0xff]
    %v9007 = vld [vmem:[#allocation4 + $0x150] sm:$0xff]
    %v9008 = vld [vmem:[#allocation4 + $0x158] sm:$0xff]
    %v9009 = vld [vmem:[#allocation4 + $0x160] sm:$0xff]
    %v9010 = vld [vmem:[#allocation4 + $0x168] sm:$0xff]
    %v9011 = vld [vmem:[#allocation4 + $0x170] sm:$0xff]
    %v9012 = vld [vmem:[#allocation4 + $0x178] sm:$0xff]
    %v9013 = vld [vmem:[#allocation4 + $0x180] sm:$0xff]
    %v9014 = vld [vmem:[#allocation4 + $0x188] sm:$0xff]
    %v9015 = vld [vmem:[#allocation4 + $0x190] sm:$0xff]
    %v9016 = vld [vmem:[#allocation4 + $0x198] sm:$0xff]
    %v9017 = vld [vmem:[#allocation4 + $0x1a0] sm:$0xff]
    %v9018 = vld [vmem:[#allocation4 + $0x1a8] sm:$0xff]
    %v9019 = vld [vmem:[#allocation4 + $0x1b0] sm:$0xff]
    %v9020 = vld [vmem:[#allocation4 + $0x1b8] sm:$0xff]
    %v9021 = vld [vmem:[#allocation4 + $0x1c0] sm:$0xff]
    %v9022 = vld [vmem:[#allocation4 + $0x1c8] sm:$0xff]
    %v9023 = vld [vmem:[#allocation4 + $0x1d0] sm:$0xff]
    %v9024 = vld [vmem:[#allocation4 + $0x1d8] sm:$0xff]
    %v9025 = vld [vmem:[#allocation4 + $0x1e0] sm:$0xff]
    %v9026 = vld [vmem:[#allocation4 + $0x1e8] sm:$0xff]
    %v9027 = vld [vmem:[#allocation4 + $0x1f0] sm:$0xff]
    %v9028 = vld [vmem:[#allocation4 + $0x1f8] sm:$0xff]
    %s9029 = scalar_lea.vmem [#allocation17], 32
    %v9030 = vld [vmem:[%s9029] ss:$8 sm:$0x3]
    %s9031 = scalar_lea.vmem [#allocation17], 33
    %v9032 = vld [vmem:[%s9031] ss:$8 sm:$0x3]
    %s9033 = scalar_lea.vmem [#allocation17], 34
    %v9034 = vld [vmem:[%s9033] ss:$8 sm:$0x3]
    %v9035 = vpack.c.bf16 %v8957, %v8957
    %v9036 = vpack.c.bf16 %v8958, %v8958
    %v9037 = vpack.c.bf16 %v8959, %v8959
    %v9038 = vpack.c.bf16 %v8960, %v8960
    %v9040 = vlaneseq
    %v9041 = vshrl.u32 %v9040, 7
    %v9042 = vsub.s32 0, %v9041
    %v9043 = vrot.slane %v9030, %v9042
    %v9044 = vlaneseq
    %v9045 = vshrl.u32 %v9044, 7
    %v9046 = vsub.s32 1, %v9045
    %v9047 = vrot.slane %v9030, %v9046
    %v9114 = vunpack.c.l.b16 %v8965
    %v9115 = vunpack.c.h.b16 %v8965
    %v9116 = vunpack.c.l.b16 %v8966
    %v9117 = vunpack.c.h.b16 %v8966
    %v9118 = vunpack.c.l.b16 %v8967
    %v9119 = vunpack.c.h.b16 %v8967
    %v9120 = vunpack.c.l.b16 %v8968
    %v9121 = vunpack.c.h.b16 %v8968
    %v9122 = vunpack.c.l.b16 %v8969
    %v9123 = vunpack.c.h.b16 %v8969
    %v9124 = vunpack.c.l.b16 %v8970
    %v9125 = vunpack.c.h.b16 %v8970
    %v9126 = vunpack.c.l.b16 %v8971
    %v9127 = vunpack.c.h.b16 %v8971
    %v9128 = vunpack.c.l.b16 %v8972
    %v9129 = vunpack.c.h.b16 %v8972
    %v9130 = vunpack.c.l.b16 %v8973
    %v9131 = vunpack.c.h.b16 %v8973
    %v9132 = vunpack.c.l.b16 %v8974
    %v9133 = vunpack.c.h.b16 %v8974
    %v9134 = vunpack.c.l.b16 %v8975
    %v9135 = vunpack.c.h.b16 %v8975
    %v9136 = vunpack.c.l.b16 %v8976
    %v9137 = vunpack.c.h.b16 %v8976
    %v9138 = vunpack.c.l.b16 %v8977
    %v9139 = vunpack.c.h.b16 %v8977
    %v9140 = vunpack.c.l.b16 %v8978
    %v9141 = vunpack.c.h.b16 %v8978
    %v9142 = vunpack.c.l.b16 %v8979
    %v9143 = vunpack.c.h.b16 %v8979
    %v9144 = vunpack.c.l.b16 %v8980
    %v9145 = vunpack.c.h.b16 %v8980
    %v9146 = vunpack.c.l.b16 %v8981
    %v9147 = vunpack.c.h.b16 %v8981
    %v9148 = vunpack.c.l.b16 %v8982
    %v9149 = vunpack.c.h.b16 %v8982
    %v9150 = vunpack.c.l.b16 %v8983
    %v9151 = vunpack.c.h.b16 %v8983
    %v9152 = vunpack.c.l.b16 %v8984
    %v9153 = vunpack.c.h.b16 %v8984
    %v9154 = vunpack.c.l.b16 %v8985
    %v9155 = vunpack.c.h.b16 %v8985
    %v9156 = vunpack.c.l.b16 %v8986
    %v9157 = vunpack.c.h.b16 %v8986
    %v9158 = vunpack.c.l.b16 %v8987
    %v9159 = vunpack.c.h.b16 %v8987
    %v9160 = vunpack.c.l.b16 %v8988
    %v9161 = vunpack.c.h.b16 %v8988
    %v9162 = vunpack.c.l.b16 %v8989
    %v9163 = vunpack.c.h.b16 %v8989
    %v9164 = vunpack.c.l.b16 %v8990
    %v9165 = vunpack.c.h.b16 %v8990
    %v9166 = vunpack.c.l.b16 %v8991
    %v9167 = vunpack.c.h.b16 %v8991
    %v9168 = vunpack.c.l.b16 %v8992
    %v9169 = vunpack.c.h.b16 %v8992
    %v9170 = vunpack.c.l.b16 %v8993
    %v9171 = vunpack.c.h.b16 %v8993
    %v9172 = vunpack.c.l.b16 %v8994
    %v9173 = vunpack.c.h.b16 %v8994
    %v9174 = vunpack.c.l.b16 %v8995
    %v9175 = vunpack.c.h.b16 %v8995
    %v9176 = vunpack.c.l.b16 %v8996
    %v9177 = vunpack.c.h.b16 %v8996
    %v9178 = vunpack.c.l.b16 %v8997
    %v9179 = vunpack.c.h.b16 %v8997
    %v9180 = vunpack.c.l.b16 %v8998
    %v9181 = vunpack.c.h.b16 %v8998
    %v9182 = vunpack.c.l.b16 %v8999
    %v9183 = vunpack.c.h.b16 %v8999
    %v9184 = vunpack.c.l.b16 %v9000
    %v9185 = vunpack.c.h.b16 %v9000
    %v9186 = vunpack.c.l.b16 %v9001
    %v9187 = vunpack.c.h.b16 %v9001
    %v9188 = vunpack.c.l.b16 %v9002
    %v9189 = vunpack.c.h.b16 %v9002
    %v9190 = vunpack.c.l.b16 %v9003
    %v9191 = vunpack.c.h.b16 %v9003
    %v9192 = vunpack.c.l.b16 %v9004
    %v9193 = vunpack.c.h.b16 %v9004
    %v9194 = vunpack.c.l.b16 %v9005
    %v9195 = vunpack.c.h.b16 %v9005
    %v9196 = vunpack.c.l.b16 %v9006
    %v9197 = vunpack.c.h.b16 %v9006
    %v9198 = vunpack.c.l.b16 %v9007
    %v9199 = vunpack.c.h.b16 %v9007
    %v9200 = vunpack.c.l.b16 %v9008
    %v9201 = vunpack.c.h.b16 %v9008
    %v9202 = vunpack.c.l.b16 %v9009
    %v9203 = vunpack.c.h.b16 %v9009
    %v9204 = vunpack.c.l.b16 %v9010
    %v9205 = vunpack.c.h.b16 %v9010
    %v9206 = vunpack.c.l.b16 %v9011
    %v9207 = vunpack.c.h.b16 %v9011
    %v9208 = vunpack.c.l.b16 %v9012
    %v9209 = vunpack.c.h.b16 %v9012
    %v9210 = vunpack.c.l.b16 %v9013
    %v9211 = vunpack.c.h.b16 %v9013
    %v9212 = vunpack.c.l.b16 %v9014
    %v9213 = vunpack.c.h.b16 %v9014
    %v9214 = vunpack.c.l.b16 %v9015
    %v9215 = vunpack.c.h.b16 %v9015
    %v9216 = vunpack.c.l.b16 %v9016
    %v9217 = vunpack.c.h.b16 %v9016
    %v9218 = vunpack.c.l.b16 %v9017
    %v9219 = vunpack.c.h.b16 %v9017
    %v9220 = vunpack.c.l.b16 %v9018
    %v9221 = vunpack.c.h.b16 %v9018
    %v9222 = vunpack.c.l.b16 %v9019
    %v9223 = vunpack.c.h.b16 %v9019
    %v9224 = vunpack.c.l.b16 %v9020
    %v9225 = vunpack.c.h.b16 %v9020
    %v9226 = vunpack.c.l.b16 %v9021
    %v9227 = vunpack.c.h.b16 %v9021
    %v9228 = vunpack.c.l.b16 %v9022
    %v9229 = vunpack.c.h.b16 %v9022
    %v9230 = vunpack.c.l.b16 %v9023
    %v9231 = vunpack.c.h.b16 %v9023
    %v9232 = vunpack.c.l.b16 %v9024
    %v9233 = vunpack.c.h.b16 %v9024
    %v9234 = vunpack.c.l.b16 %v9025
    %v9235 = vunpack.c.h.b16 %v9025
    %v9236 = vunpack.c.l.b16 %v9026
    %v9237 = vunpack.c.h.b16 %v9026
    %v9238 = vunpack.c.l.b16 %v9027
    %v9239 = vunpack.c.h.b16 %v9027
    %v9240 = vunpack.c.l.b16 %v9028
    %v9241 = vunpack.c.h.b16 %v9028
    %v9242 = vpack.c.b16 %v9116, %v9114
    %v9243 = vpack.c.b16 %v9117, %v9115
    %v9244 = vpack.c.b16 %v9120, %v9118
    %v9245 = vpack.c.b16 %v9121, %v9119
    %v9246 = vpack.c.b16 %v9124, %v9122
    %v9247 = vpack.c.b16 %v9125, %v9123
    %v9248 = vpack.c.b16 %v9128, %v9126
    %v9249 = vpack.c.b16 %v9129, %v9127
    %v9250 = vpack.c.b16 %v9132, %v9130
    %v9251 = vpack.c.b16 %v9133, %v9131
    %v9252 = vpack.c.b16 %v9136, %v9134
    %v9253 = vpack.c.b16 %v9137, %v9135
    %v9254 = vpack.c.b16 %v9140, %v9138
    %v9255 = vpack.c.b16 %v9141, %v9139
    %v9256 = vpack.c.b16 %v9144, %v9142
    %v9257 = vpack.c.b16 %v9145, %v9143
    %v9258 = vpack.c.b16 %v9148, %v9146
    %v9259 = vpack.c.b16 %v9149, %v9147
    %v9260 = vpack.c.b16 %v9152, %v9150
    %v9261 = vpack.c.b16 %v9153, %v9151
    %v9262 = vpack.c.b16 %v9156, %v9154
    %v9263 = vpack.c.b16 %v9157, %v9155
    %v9264 = vpack.c.b16 %v9160, %v9158
    %v9265 = vpack.c.b16 %v9161, %v9159
    %v9266 = vpack.c.b16 %v9164, %v9162
    %v9267 = vpack.c.b16 %v9165, %v9163
    %v9268 = vpack.c.b16 %v9168, %v9166
    %v9269 = vpack.c.b16 %v9169, %v9167
    %v9270 = vpack.c.b16 %v9172, %v9170
    %v9271 = vpack.c.b16 %v9173, %v9171
    %v9272 = vpack.c.b16 %v9176, %v9174
    %v9273 = vpack.c.b16 %v9177, %v9175
    %v9274 = vpack.c.b16 %v9180, %v9178
    %v9275 = vpack.c.b16 %v9181, %v9179
    %v9276 = vpack.c.b16 %v9184, %v9182
    %v9277 = vpack.c.b16 %v9185, %v9183
    %v9278 = vpack.c.b16 %v9188, %v9186
    %v9279 = vpack.c.b16 %v9189, %v9187
    %v9280 = vpack.c.b16 %v9192, %v9190
    %v9281 = vpack.c.b16 %v9193, %v9191
    %v9282 = vpack.c.b16 %v9196, %v9194
    %v9283 = vpack.c.b16 %v9197, %v9195
    %v9284 = vpack.c.b16 %v9200, %v9198
    %v9285 = vpack.c.b16 %v9201, %v9199
    %v9286 = vpack.c.b16 %v9204, %v9202
    %v9287 = vpack.c.b16 %v9205, %v9203
    %v9288 = vpack.c.b16 %v9208, %v9206
    %v9289 = vpack.c.b16 %v9209, %v9207
    %v9290 = vpack.c.b16 %v9212, %v9210
    %v9291 = vpack.c.b16 %v9213, %v9211
    %v9292 = vpack.c.b16 %v9216, %v9214
    %v9293 = vpack.c.b16 %v9217, %v9215
    %v9294 = vpack.c.b16 %v9220, %v9218
    %v9295 = vpack.c.b16 %v9221, %v9219
    %v9296 = vpack.c.b16 %v9224, %v9222
    %v9297 = vpack.c.b16 %v9225, %v9223
    %v9298 = vpack.c.b16 %v9228, %v9226
    %v9299 = vpack.c.b16 %v9229, %v9227
    %v9300 = vpack.c.b16 %v9232, %v9230
    %v9301 = vpack.c.b16 %v9233, %v9231
    %v9302 = vpack.c.b16 %v9236, %v9234
    %v9303 = vpack.c.b16 %v9237, %v9235
    %v9304 = vpack.c.b16 %v9240, %v9238
    %v9305 = vpack.c.b16 %v9241, %v9239
    %9370 = vmatprep.subr.bf16.mxu0 %v9257
    %9371 = vmatpush1.bf16.msra.mxu0 %v9256
    %9372 = vmatprep.subr.bf16.mxu0 %v9255
    %9373 = vmatpush1.bf16.msra.mxu0 %v9254
    %9374 = vmatprep.subr.bf16.mxu0 %v9253
    %9375 = vmatpush1.bf16.msra.mxu0 %v9252
    %9376 = vmatprep.subr.bf16.mxu0 %v9251
    %9377 = vmatpush1.bf16.msra.mxu0 %v9250
    %9378 = vmatprep.subr.bf16.mxu0 %v9249
    %9379 = vmatpush1.bf16.msra.mxu0 %v9248
    %9380 = vmatprep.subr.bf16.mxu0 %v9247
    %9381 = vmatpush1.bf16.msra.mxu0 %v9246
    %9382 = vmatprep.subr.bf16.mxu0 %v9245
    %9383 = vmatpush1.bf16.msra.mxu0 %v9244
    %9384 = vmatprep.subr.bf16.mxu0 %v9243
    %9385 = vmatpush1.bf16.msra.mxu0 %v9242
    %9386 = vmatprep.subr.bf16.mxu0 %v9273
    %9387 = vmatpush2.bf16.msra.mxu0 %v9272
    %9388 = vmatprep.subr.bf16.mxu0 %v9271
    %9389 = vmatpush2.bf16.msra.mxu0 %v9270
    %9390 = vmatprep.subr.bf16.mxu0 %v9269
    %9391 = vmatpush2.bf16.msra.mxu0 %v9268
    %9392 = vmatprep.subr.bf16.mxu0 %v9267
    %9393 = vmatpush2.bf16.msra.mxu0 %v9266
    %9394 = vmatprep.subr.bf16.mxu0 %v9265
    %9395 = vmatpush2.bf16.msra.mxu0 %v9264
    %9396 = vmatprep.subr.bf16.mxu0 %v9263
    %9397 = vmatpush2.bf16.msra.mxu0 %v9262
    %9398 = vmatprep.subr.bf16.mxu0 %v9261
    %9399 = vmatpush2.bf16.msra.mxu0 %v9260
    %9400 = vmatprep.subr.bf16.mxu0 %v9259
    %9401 = vmatpush2.bf16.msra.mxu0 %v9258
    %9402 = vmatprep.mubr.bf16.mxu0 %v9036
    %9403 = vmatmul.mubr.bf16.gmra.mxu0 %v9035
    %v9404 = vpop.f32.mrf.mxu0
    %v9405 = vadd.f32 %v9043, %v9404
    %v9406 = vpop.f32.mrf.mxu0
    %v9407 = vadd.f32 %v9047, %v9406
    %v9408 = vpop.f32.mrf.mxu0
    %v9409 = vpop.f32.mrf.mxu0
    %9410 = vdwg.mxu0
    %9411 = vmatprep.subr.bf16.mxu0 %v9289
    %9412 = vmatpush1.bf16.msra.mxu0 %v9288
    %9413 = vmatprep.subr.bf16.mxu0 %v9287
    %9414 = vmatpush1.bf16.msra.mxu0 %v9286
    %9415 = vmatprep.subr.bf16.mxu0 %v9285
    %9416 = vmatpush1.bf16.msra.mxu0 %v9284
    %9417 = vmatprep.subr.bf16.mxu0 %v9283
    %9418 = vmatpush1.bf16.msra.mxu0 %v9282
    %9419 = vmatprep.subr.bf16.mxu0 %v9281
    %9420 = vmatpush1.bf16.msra.mxu0 %v9280
    %9421 = vmatprep.subr.bf16.mxu0 %v9279
    %9422 = vmatpush1.bf16.msra.mxu0 %v9278
    %9423 = vmatprep.subr.bf16.mxu0 %v9277
    %9424 = vmatpush1.bf16.msra.mxu0 %v9276
    %9425 = vmatprep.subr.bf16.mxu0 %v9275
    %9426 = vmatpush1.bf16.msra.mxu0 %v9274
    %9427 = vmatprep.subr.bf16.mxu0 %v9305
    %9428 = vmatpush2.bf16.msra.mxu0 %v9304
    %9429 = vmatprep.subr.bf16.mxu0 %v9303
    %9430 = vmatpush2.bf16.msra.mxu0 %v9302
    %9431 = vmatprep.subr.bf16.mxu0 %v9301
    %9432 = vmatpush2.bf16.msra.mxu0 %v9300
    %9433 = vmatprep.subr.bf16.mxu0 %v9299
    %9434 = vmatpush2.bf16.msra.mxu0 %v9298
    %9435 = vmatprep.subr.bf16.mxu0 %v9297
    %9436 = vmatpush2.bf16.msra.mxu0 %v9296
    %9437 = vmatprep.subr.bf16.mxu0 %v9295
    %9438 = vmatpush2.bf16.msra.mxu0 %v9294
    %9439 = vmatprep.subr.bf16.mxu0 %v9293
    %9440 = vmatpush2.bf16.msra.mxu0 %v9292
    %9441 = vmatprep.subr.bf16.mxu0 %v9291
    %9442 = vmatpush2.bf16.msra.mxu0 %v9290
    %9443 = vmatprep.mubr.bf16.mxu0 %v9038
    %9444 = vmatmul.mubr.bf16.gmra.mxu0 %v9037
    %v9445 = vpop.f32.mrf.mxu0
    %v9446 = vadd.f32 %v9405, %v9445
    %v9447 = vpop.f32.mrf.mxu0
    %v9448 = vadd.f32 %v9407, %v9447
    %v9449 = vpop.f32.mrf.mxu0
    %v9450 = vpop.f32.mrf.mxu0
    %9451 = vdwg.mxu0
    %v9452 = vadd.f32 %v9446, %v9448
    %9453 = vadd.xlane.f32.xlu0 %v9452
    %v9454 = vpop.xlane.xlu0 %9453
    %v9455 = vmul.f32 %v9454, %v967
    %v9456 = vsub.f32 %v9446, %v9455
    %v9457 = vsub.f32 %v9448, %v9455
    %v9458 = vmul.f32 %v9456, %v9456
    %v9459 = vmul.f32 %v9457, %v9457
    %v9460 = vadd.f32 %v9458, %v9459
    %9461 = vadd.xlane.f32.xlu0 %v9460
    %v9462 = vpop.xlane.xlu0 %9461
    %v9463 = vmul.f32 %v9462, %v967
    %v9464 = vadd.f32 %v9463, 1e-05
    %v9465 = vrsqrt.pop %v9464
    %v9466 = vmul.f32 %v9456, %v9465
    %v9467 = vmul.f32 %v9457, %v9465
    %v9469 = vlaneseq
    %v9470 = vshrl.u32 %v9469, 7
    %v9471 = vsub.s32 0, %v9470
    %v9472 = vrot.slane %v9032, %v9471
    %v9473 = vlaneseq
    %v9474 = vshrl.u32 %v9473, 7
    %v9475 = vsub.s32 1, %v9474
    %v9476 = vrot.slane %v9032, %v9475
    %v9479 = vmul.f32 %v9466, %v9472
    %v9480 = vmul.f32 %v9467, %v9476
    %v9482 = vlaneseq
    %v9483 = vshrl.u32 %v9482, 7
    %v9484 = vsub.s32 0, %v9483
    %v9485 = vrot.slane %v9034, %v9484
    %v9486 = vlaneseq
    %v9487 = vshrl.u32 %v9486, 7
    %v9488 = vsub.s32 1, %v9487
    %v9489 = vrot.slane %v9034, %v9488
    %v9492 = vadd.f32 %v9479, %v9485
    %v9493 = vadd.f32 %v9480, %v9489
    %v9494 = vmul.f32 %v9492, 0.5
    %v9495 = vmul.f32 %v9493, 0.5
    %v9496 = vmul.f32 %v9492, 0.044715
    %v9497 = vmul.f32 %v9493, 0.044715
    %v9498 = vmul.f32 %v9496, %v9492
    %v9499 = vmul.f32 %v9497, %v9493
    %v9500 = vmul.f32 %v9498, %v9492
    %v9501 = vmul.f32 %v9499, %v9493
    %v9502 = vadd.f32 %v9492, %v9500
    %v9503 = vadd.f32 %v9493, %v9501
    %v9504 = vmul.f32 %v9502, 0.7978846
    %v9505 = vmul.f32 %v9503, 0.7978846
    %v9506 = vtanh.pop %v9504
    %v9507 = vtanh.pop %v9505
    %v9508 = vadd.f32 %v9506, 1.0
    %v9509 = vadd.f32 %v9507, 1.0
    %v9510 = vmul.f32 %v9494, %v9508
    %v9511 = vmul.f32 %v9495, %v9509
    %v9512 = vld [vmem:[#allocation14 + $0x188] sm:$0xf]
    %v9513 = vld [vmem:[#allocation14 + $0x18c] sm:$0xf]
    %v9514 = vld [vmem:[#allocation14 + $0x190] sm:$0xf]
    %v9515 = vld [vmem:[#allocation14 + $0x194] sm:$0xf]
    %v9516 = vld [vmem:[#allocation14 + $0x198] sm:$0xf]
    %v9517 = vld [vmem:[#allocation14 + $0x19c] sm:$0xf]
    %v9518 = vld [vmem:[#allocation14 + $0x1a0] sm:$0xf]
    %v9519 = vld [vmem:[#allocation14 + $0x1a4] sm:$0xf]
    %v9520 = vld [vmem:[#allocation14 + $0x1a8] sm:$0xf]
    %v9521 = vld [vmem:[#allocation14 + $0x1ac] sm:$0xf]
    %v9522 = vld [vmem:[#allocation14 + $0x1b0] sm:$0xf]
    %v9523 = vld [vmem:[#allocation14 + $0x1b4] sm:$0xf]
    %v9524 = vld [vmem:[#allocation14 + $0x1b8] sm:$0xf]
    %v9525 = vld [vmem:[#allocation14 + $0x1bc] sm:$0xf]
    %v9526 = vld [vmem:[#allocation14 + $0x1c0] sm:$0xf]
    %v9527 = vld [vmem:[#allocation14 + $0x1c4] sm:$0xf]
    %v9528 = vld [vmem:[#allocation14 + $0x1c8] sm:$0xf]
    %v9529 = vld [vmem:[#allocation14 + $0x1cc] sm:$0xf]
    %v9530 = vld [vmem:[#allocation14 + $0x1d0] sm:$0xf]
    %v9531 = vld [vmem:[#allocation14 + $0x1d4] sm:$0xf]
    %v9532 = vld [vmem:[#allocation14 + $0x1d8] sm:$0xf]
    %v9533 = vld [vmem:[#allocation14 + $0x1dc] sm:$0xf]
    %v9534 = vld [vmem:[#allocation14 + $0x1e0] sm:$0xf]
    %v9535 = vld [vmem:[#allocation14 + $0x1e4] sm:$0xf]
    %v9536 = vld [vmem:[#allocation14 + $0x1e8] sm:$0xf]
    %v9537 = vld [vmem:[#allocation14 + $0x1ec] sm:$0xf]
    %v9538 = vld [vmem:[#allocation14 + $0x1f0] sm:$0xf]
    %v9539 = vld [vmem:[#allocation14 + $0x1f4] sm:$0xf]
    %v9540 = vld [vmem:[#allocation14 + $0x1f8] sm:$0xf]
    %v9541 = vld [vmem:[#allocation14 + $0x1fc] sm:$0xf]
    %v9542 = vld [vmem:[#allocation14 + $0x200] sm:$0xf]
    %v9543 = vld [vmem:[#allocation14 + $0x204] sm:$0xf]
    %v9544 = vld [vmem:[#allocation19 + $0x13] sm:$0x1]
    %v9545 = vld [vmem:[#allocation19 + $0x14] sm:$0x1]
    %v9546 = vld [vmem:[#allocation19 + $0x15] sm:$0x1]
    %v9547 = vpack.c.bf16 %v9510, %v9510
    %v9548 = vpack.c.bf16 %v9511, %v9511
    %v9549 = vlaneseq
    %v9550 = vshrl.u32 %v9549, 7
    %v9551 = vsub.s32 0, %v9550
    %v9552 = vrot.slane %v9544, %v9551
    %v9585 = vunpack.c.l.b16 %v9512
    %v9586 = vunpack.c.l.b16 %v9513
    %v9587 = vunpack.c.l.b16 %v9514
    %v9588 = vunpack.c.l.b16 %v9515
    %v9589 = vunpack.c.l.b16 %v9516
    %v9590 = vunpack.c.l.b16 %v9517
    %v9591 = vunpack.c.l.b16 %v9518
    %v9592 = vunpack.c.l.b16 %v9519
    %v9593 = vunpack.c.l.b16 %v9520
    %v9594 = vunpack.c.l.b16 %v9521
    %v9595 = vunpack.c.l.b16 %v9522
    %v9596 = vunpack.c.l.b16 %v9523
    %v9597 = vunpack.c.l.b16 %v9524
    %v9598 = vunpack.c.l.b16 %v9525
    %v9599 = vunpack.c.l.b16 %v9526
    %v9600 = vunpack.c.l.b16 %v9527
    %v9601 = vunpack.c.l.b16 %v9528
    %v9602 = vunpack.c.l.b16 %v9529
    %v9603 = vunpack.c.l.b16 %v9530
    %v9604 = vunpack.c.l.b16 %v9531
    %v9605 = vunpack.c.l.b16 %v9532
    %v9606 = vunpack.c.l.b16 %v9533
    %v9607 = vunpack.c.l.b16 %v9534
    %v9608 = vunpack.c.l.b16 %v9535
    %v9609 = vunpack.c.l.b16 %v9536
    %v9610 = vunpack.c.l.b16 %v9537
    %v9611 = vunpack.c.l.b16 %v9538
    %v9612 = vunpack.c.l.b16 %v9539
    %v9613 = vunpack.c.l.b16 %v9540
    %v9614 = vunpack.c.l.b16 %v9541
    %v9615 = vunpack.c.l.b16 %v9542
    %v9616 = vunpack.c.l.b16 %v9543
    %v9617 = vpack.c.b16 %v9586, %v9585
    %v9618 = vpack.c.b16 %v9588, %v9587
    %v9619 = vpack.c.b16 %v9590, %v9589
    %v9620 = vpack.c.b16 %v9592, %v9591
    %v9621 = vpack.c.b16 %v9594, %v9593
    %v9622 = vpack.c.b16 %v9596, %v9595
    %v9623 = vpack.c.b16 %v9598, %v9597
    %v9624 = vpack.c.b16 %v9600, %v9599
    %v9625 = vpack.c.b16 %v9602, %v9601
    %v9626 = vpack.c.b16 %v9604, %v9603
    %v9627 = vpack.c.b16 %v9606, %v9605
    %v9628 = vpack.c.b16 %v9608, %v9607
    %v9629 = vpack.c.b16 %v9610, %v9609
    %v9630 = vpack.c.b16 %v9612, %v9611
    %v9631 = vpack.c.b16 %v9614, %v9613
    %v9632 = vpack.c.b16 %v9616, %v9615
    %9649 = vmatprep.subr.bf16.mxu0 0
    %9650 = vmatpush1.bf16.msra.mxu0 %v9624
    %9651 = vmatprep.subr.bf16.mxu0 0
    %9652 = vmatpush1.bf16.msra.mxu0 %v9623
    %9653 = vmatprep.subr.bf16.mxu0 0
    %9654 = vmatpush1.bf16.msra.mxu0 %v9622
    %9655 = vmatprep.subr.bf16.mxu0 0
    %9656 = vmatpush1.bf16.msra.mxu0 %v9621
    %9657 = vmatprep.subr.bf16.mxu0 0
    %9658 = vmatpush1.bf16.msra.mxu0 %v9620
    %9659 = vmatprep.subr.bf16.mxu0 0
    %9660 = vmatpush1.bf16.msra.mxu0 %v9619
    %9661 = vmatprep.subr.bf16.mxu0 0
    %9662 = vmatpush1.bf16.msra.mxu0 %v9618
    %9663 = vmatprep.subr.bf16.mxu0 0
    %9664 = vmatpush1.bf16.msra.mxu0 %v9617
    %9665 = vmatprep.subr.bf16.mxu0 0
    %9666 = vmatpush2.bf16.msra.mxu0 %v9632
    %9667 = vmatprep.subr.bf16.mxu0 0
    %9668 = vmatpush2.bf16.msra.mxu0 %v9631
    %9669 = vmatprep.subr.bf16.mxu0 0
    %9670 = vmatpush2.bf16.msra.mxu0 %v9630
    %9671 = vmatprep.subr.bf16.mxu0 0
    %9672 = vmatpush2.bf16.msra.mxu0 %v9629
    %9673 = vmatprep.subr.bf16.mxu0 0
    %9674 = vmatpush2.bf16.msra.mxu0 %v9628
    %9675 = vmatprep.subr.bf16.mxu0 0
    %9676 = vmatpush2.bf16.msra.mxu0 %v9627
    %9677 = vmatprep.subr.bf16.mxu0 0
    %9678 = vmatpush2.bf16.msra.mxu0 %v9626
    %9679 = vmatprep.subr.bf16.mxu0 0
    %9680 = vmatpush2.bf16.msra.mxu0 %v9625
    %9681 = vmatprep.mubr.bf16.mxu0 %v9548
    %9682 = vmatmul.mubr.bf16.gmra.mxu0 %v9547
    %v9683 = vpop.f32.mrf.mxu0
    %v9684 = vadd.f32 %v9552, %v9683
    %v9685 = vpop.f32.mrf.mxu0
    %v9686 = vpop.f32.mrf.mxu0
    %v9687 = vpop.f32.mrf.mxu0
    %9688 = vdwg.mxu0
    %9689 = vadd.xlane.f32.xlu0 %v9684
    %v9690 = vpop.xlane.xlu0 %9689
    %v9691 = vmul.f32 %v9690, %v1204
    %v9692 = vsub.f32 %v9684, %v9691
    %v9693 = vmul.f32 %v9692, %v9692
    %9694 = vadd.xlane.f32.xlu0 %v9693
    %v9695 = vpop.xlane.xlu0 %9694
    %v9696 = vmul.f32 %v9695, %v1204
    %v9697 = vadd.f32 %v9696, 1e-05
    %v9698 = vrsqrt.pop %v9697
    %v9699 = vmul.f32 %v9692, %v9698
    %v9700 = vlaneseq
    %v9701 = vshrl.u32 %v9700, 7
    %v9702 = vsub.s32 0, %v9701
    %v9703 = vrot.slane %v9545, %v9702
    %v9704 = vmul.f32 %v9699, %v9703
    %v9705 = vlaneseq
    %v9706 = vshrl.u32 %v9705, 7
    %v9707 = vsub.s32 0, %v9706
    %v9708 = vrot.slane %v9546, %v9707
    %v9709 = vadd.f32 %v9704, %v9708
    %v9710 = vmul.f32 %v9709, 0.5
    %v9711 = vmul.f32 %v9709, 0.044715
    %v9712 = vmul.f32 %v9711, %v9709
    %v9713 = vmul.f32 %v9712, %v9709
    %v9714 = vadd.f32 %v9709, %v9713
    %v9715 = vmul.f32 %v9714, 0.7978846
    %v9716 = vtanh.pop %v9715
    %v9717 = vadd.f32 %v9716, 1.0
    %v9718 = vmul.f32 %v9710, %v9717
    %v9719 = vld [vmem:[#allocation14 + $0x208] sm:$0xf]
    %v9720 = vld [vmem:[#allocation14 + $0x20c] sm:$0xf]
    %v9721 = vld [vmem:[#allocation14 + $0x210] sm:$0xf]
    %v9722 = vld [vmem:[#allocation14 + $0x214] sm:$0xf]
    %v9723 = vld [vmem:[#allocation14 + $0x218] sm:$0xf]
    %v9724 = vld [vmem:[#allocation14 + $0x21c] sm:$0xf]
    %v9725 = vld [vmem:[#allocation14 + $0x220] sm:$0xf]
    %v9726 = vld [vmem:[#allocation14 + $0x224] sm:$0xf]
    %v9727 = vld [vmem:[#allocation14 + $0x228] sm:$0xf]
    %v9728 = vld [vmem:[#allocation14 + $0x22c] sm:$0xf]
    %v9729 = vld [vmem:[#allocation14 + $0x230] sm:$0xf]
    %v9730 = vld [vmem:[#allocation14 + $0x234] sm:$0xf]
    %v9731 = vld [vmem:[#allocation14 + $0x238] sm:$0xf]
    %v9732 = vld [vmem:[#allocation14 + $0x23c] sm:$0xf]
    %v9733 = vld [vmem:[#allocation14 + $0x240] sm:$0xf]
    %v9734 = vld [vmem:[#allocation14 + $0x244] sm:$0xf]
    %v9735 = vld [vmem:[#allocation19 + $0x16] sm:$0x1]
    %v9736 = vpack.c.bf16 %v9718, %v9718
    %v9737 = vlaneseq
    %v9738 = vshrl.u32 %v9737, 7
    %v9739 = vsub.s32 0, %v9738
    %v9740 = vrot.slane %v9735, %v9739
    %v9757 = vunpack.c.l.b16 %v9719
    %v9758 = vunpack.c.l.b16 %v9720
    %v9759 = vunpack.c.l.b16 %v9721
    %v9760 = vunpack.c.l.b16 %v9722
    %v9761 = vunpack.c.l.b16 %v9723
    %v9762 = vunpack.c.l.b16 %v9724
    %v9763 = vunpack.c.l.b16 %v9725
    %v9764 = vunpack.c.l.b16 %v9726
    %v9765 = vunpack.c.l.b16 %v9727
    %v9766 = vunpack.c.l.b16 %v9728
    %v9767 = vunpack.c.l.b16 %v9729
    %v9768 = vunpack.c.l.b16 %v9730
    %v9769 = vunpack.c.l.b16 %v9731
    %v9770 = vunpack.c.l.b16 %v9732
    %v9771 = vunpack.c.l.b16 %v9733
    %v9772 = vunpack.c.l.b16 %v9734
    %v9773 = vpack.c.b16 %v9758, %v9757
    %v9774 = vpack.c.b16 %v9760, %v9759
    %v9775 = vpack.c.b16 %v9762, %v9761
    %v9776 = vpack.c.b16 %v9764, %v9763
    %v9777 = vpack.c.b16 %v9766, %v9765
    %v9778 = vpack.c.b16 %v9768, %v9767
    %v9779 = vpack.c.b16 %v9770, %v9769
    %v9780 = vpack.c.b16 %v9772, %v9771
    %9789 = vmatprep.subr.bf16.mxu0 0
    %9790 = vmatpush1.bf16.msra.mxu0 %v9780
    %9791 = vmatprep.subr.bf16.mxu0 0
    %9792 = vmatpush1.bf16.msra.mxu0 %v9779
    %9793 = vmatprep.subr.bf16.mxu0 0
    %9794 = vmatpush1.bf16.msra.mxu0 %v9778
    %9795 = vmatprep.subr.bf16.mxu0 0
    %9796 = vmatpush1.bf16.msra.mxu0 %v9777
    %9797 = vmatprep.subr.bf16.mxu0 0
    %9798 = vmatpush1.bf16.msra.mxu0 %v9776
    %9799 = vmatprep.subr.bf16.mxu0 0
    %9800 = vmatpush1.bf16.msra.mxu0 %v9775
    %9801 = vmatprep.subr.bf16.mxu0 0
    %9802 = vmatpush1.bf16.msra.mxu0 %v9774
    %9803 = vmatprep.subr.bf16.mxu0 0
    %9804 = vmatpush1.bf16.msra.mxu0 %v9773
    %9805 = vmatprep.subr.bf16.mxu0 0
    %9806 = vmatpush2.bf16.msra.mxu0 0
    %9807 = vmatprep.subr.bf16.mxu0 0
    %9808 = vmatpush2.bf16.msra.mxu0 0
    %9809 = vmatprep.subr.bf16.mxu0 0
    %9810 = vmatpush2.bf16.msra.mxu0 0
    %9811 = vmatprep.subr.bf16.mxu0 0
    %9812 = vmatpush2.bf16.msra.mxu0 0
    %9813 = vmatprep.subr.bf16.mxu0 0
    %9814 = vmatpush2.bf16.msra.mxu0 0
    %9815 = vmatprep.subr.bf16.mxu0 0
    %9816 = vmatpush2.bf16.msra.mxu0 0
    %9817 = vmatprep.subr.bf16.mxu0 0
    %9818 = vmatpush2.bf16.msra.mxu0 0
    %9819 = vmatprep.subr.bf16.mxu0 0
    %9820 = vmatpush2.bf16.msra.mxu0 0
    %9821 = vmatprep.mubr.bf16.mxu0 0
    %9822 = vmatmul.mubr.bf16.gmra.mxu0 %v9736
    %v9823 = vpop.f32.mrf.mxu0
    %v9824 = vadd.f32 %v9740, %v9823
    %v9825 = vpop.f32.mrf.mxu0
    %v9826 = vpop.f32.mrf.mxu0
    %v9827 = vpop.f32.mrf.mxu0
    %9828 = vdwg.mxu0
    %9829 = vst [vmem:[%s16] sm:$0xff] %v9824
    // Predicated region
    $region102: #{forward.1} parent=1 // pred_check
      _
    $region103: #{forward.1} parent=1 // pred_check_branch
      %9831 = sbr.rel (0) target = $region105
    $region104: #{forward.1} parent=1 // pred_region
      _
    $region105: #{forward.1} parent=1 // pred_fallthru
      _
    // Predicated region
    $region106: #{forward.1} parent=1 // pred_check
      _
    $region107: #{forward.1} parent=1 // pred_check_branch
      %9833 = sbr.rel (0) target = $region109
    $region108: #{forward.1} parent=1 // pred_region
      _
    $region109: #{forward.1} parent=1 // pred_fallthru
      _
    %9834 = vsyncpa [#allocation7], 1
    %9835 = vsyncpa [#allocation9], 1
    %9836 = vsyncpa [#allocation12], 1
    %9837 = vsyncpa [#allocation15], 1
    %9838 = vsyncpa [#allocation18], 1
  %9839 = vsyncmov [#allocation5]
  %s9840 = vpop.sfrf %9839
  %p9841 = scmp.eq.s32.totalorder %s9840, 0
  %p9842 = pneg %p9841
  %9844 = shalt.err (%p9842)
  %s9845 = scalar_lea.sflag [#allocation5], 1
  %9846 = vsyncmov %s9845
  %s9847 = vpop.sfrf %9846
  %p9848 = scmp.eq.s32.totalorder %s9847, 0
  %p9849 = pneg %p9848
  %9851 = shalt.err (%p9849)
  %s9852 = scalar_lea.sflag [#allocation5], 2
  %9853 = vsyncmov %s9852
  %s9854 = vpop.sfrf %9853
  %p9855 = scmp.eq.s32.totalorder %s9854, 0
  %p9856 = pneg %p9855
  %9858 = shalt.err (%p9856)

</llo_original>
